<compile_context>
chip_gen: v7x
topology: tpu7x:2x2x1
jax: 0.10.0
libtpu: 0.0.40
codegen_flags: <defaults>
</compile_context>

<pallas_src>
import functools

import jax
import jax.numpy as jnp
from jax.experimental import pallas as pl
from jax.experimental.pallas import tpu as pltpu

EPS = 1e-5


# -------------------------- Pallas kernel --------------------------

def _token_transformer_kernel(x3_ref, g1_ref, b1_ref, wqkv_ref,
                              wp_ref, bp_ref, g2_ref, b2_ref,
                              w1_ref, bb1_ref, w2_ref, bb2_ref,
                              o_ref, tok_ref, *,
                              n_tok, wp2, c3, embed_dim, tq, tkv):
    """One batch element per grid step.

    x3_ref : (1, 16, lanes_p) f32 packed padded input (kw-shifted, zero padded)
             x3[kw*C + c, r*(W+2) + w'] = x_padded[c, r, kw + w']
    o_ref  : (1, N, E) f32
    tok_ref: (N, 3*3*C) f32 VMEM scratch (assembled unfold rows)
    """
    E = embed_dim

    # ---- fused 3x3 unfold: rebuild token rows in VMEM (no im2col in HBM) ----
    # Aligned (16, lanes_p) transpose, then the kh-th row block of every token is
    # a contiguous 324-row slice of the transposed slab (row stride == W+2).
    x3t = x3_ref[0].T                                            # (lanes_p, 16) f32
    for kh in range(3):
        tok_ref[:, kh * c3:(kh + 1) * c3] = x3t[kh * wp2: kh * wp2 + n_tok, 0:c3]
    tok = tok_ref[...]                                           # (N, 36) f32

    # ---- LayerNorm 1 over the 3*3*C unfold features (f32, true 36 features) ----
    mu = jnp.mean(tok, axis=-1, keepdims=True)
    var = jnp.mean(jnp.square(tok - mu), axis=-1, keepdims=True)
    xn = (tok - mu) * jax.lax.rsqrt(var + EPS)
    xn = xn * g1_ref[0] + b1_ref[0]

    # ---- fused QKV projection: one K=36 matmul, q pre-scaled host-side ----
    qkv = jnp.dot(xn.astype(jnp.bfloat16), wqkv_ref[...],
                  preferred_element_type=jnp.float32)            # (N, 3E) f32
    qb = qkv[:, 0:E].astype(jnp.bfloat16)
    kb = qkv[:, E:2 * E].astype(jnp.bfloat16)
    v = qkv[:, 2 * E:3 * E]                                      # f32 (v-residual)
    vb = v.astype(jnp.bfloat16)

    # ---- attention (online softmax over KV tiles) + proj + residual + LN2 + MLP,
    #      fused per query tile; the (N, N) score matrix is never resident. ----
    for q0 in range(0, n_tok, tq):
        ql = min(tq, n_tok - q0)
        q_t = qb[q0:q0 + ql, :]                                  # (ql, E) bf16

        m_i = jnp.full((ql, 1), -jnp.inf, jnp.float32)
        l_i = jnp.zeros((ql, 1), jnp.float32)
        acc = jnp.zeros((ql, E), jnp.float32)
        for k0 in range(0, n_tok, tkv):
            kl = min(tkv, n_tok - k0)
            # q.k^T via dot_general contracting E on both sides (no k transpose).
            s = jax.lax.dot_general(q_t, kb[k0:k0 + kl, :],
                                    (((1,), (1,)), ((), ())),
                                    preferred_element_type=jnp.float32)  # (ql, kl)
            m_new = jnp.maximum(m_i, jnp.max(s, axis=-1, keepdims=True))
            alpha = jnp.exp(m_i - m_new)
            p = jnp.exp(s - m_new)
            l_i = alpha * l_i + jnp.sum(p, axis=-1, keepdims=True)
            acc = alpha * acc + jnp.dot(p.astype(jnp.bfloat16), vb[k0:k0 + kl, :],
                                        preferred_element_type=jnp.float32)
            m_i = m_new

        # Deferred, exact softmax normalization on the small (ql, E) slab.
        attn = acc / l_i

        # proj + v skip connection (T2T uses v for the residual).
        a = jnp.dot(attn.astype(jnp.bfloat16), wp_ref[...],
                    preferred_element_type=jnp.float32) + bp_ref[0]
        x1 = v[q0:q0 + ql, :] + a                                # (ql, E) f32

        # LayerNorm 2 (over E, f32).
        mu2 = jnp.mean(x1, axis=-1, keepdims=True)
        var2 = jnp.mean(jnp.square(x1 - mu2), axis=-1, keepdims=True)
        x2 = (x1 - mu2) * jax.lax.rsqrt(var2 + EPS) * g2_ref[0] + b2_ref[0]

        # MLP (fc1 -> exact GELU -> fc2), mlp_ratio = 1.0.
        h = jnp.dot(x2.astype(jnp.bfloat16), w1_ref[...],
                    preferred_element_type=jnp.float32) + bb1_ref[0]
        h = 0.5 * h * (1.0 + jax.lax.erf(h * jnp.float32(0.7071067811865476)))
        h = jnp.dot(h.astype(jnp.bfloat16), w2_ref[...],
                    preferred_element_type=jnp.float32) + bb2_ref[0]

        o_ref[0, q0:q0 + ql, :] = x1 + h          # lane-dense (E = mult of 128) store


# -------------------------- wrapper (host glue + pallas_call) --------------------------

@jax.jit
def aspp_block_forward(x, params):
    """x: (B, C, H, W) f32 -> (B, (H+2)*(W+2), E) f32."""
    B, C, H, W = x.shape
    E = params["wp"].shape[0]
    din = C * 9
    c3 = 3 * C
    wp2 = W + 2
    n_tok = (H + 2) * (W + 2)

    # ---- pack the zero-padded input into the kw-shifted slab (no 9x im2col) ----
    xp = jnp.pad(x, ((0, 0), (0, 0), (2, 2), (2, 2)))                    # (B,C,H+4,W+4)
    cols = jnp.stack([xp[:, :, :, kw:kw + wp2] for kw in range(3)], axis=1)  # (B,3,C,H+4,W+2)
    x3 = cols.reshape(B, c3, (H + 4) * wp2)
    rows_p = ((c3 + 7) // 8) * 8
    lanes_p = (((H + 4) * wp2 + 127) // 128) * 128
    x3 = jnp.pad(x3, ((0, 0), (0, rows_p - c3), (0, lanes_p - (H + 4) * wp2)))

    # ---- host-side weight prep ----
    # Kernel unfold feature order is (kh*3+kw)*C + c; PyTorch nn.Unfold order is
    # c*9 + (kh*3+kw).  Permute LN1 affine + QKV weight rows to match.
    perm = jnp.array([c * 9 + t for t in range(9) for c in range(C)], jnp.int32)
    scale = jnp.float32(E) ** -0.5                    # head_dim ** -0.5 (num_heads=1)
    wqkv = jnp.concatenate([params["wq"] * scale, params["wk"], params["wv"]], axis=1)
    wqkv = wqkv[perm, :].astype(jnp.bfloat16)         # (36, 3E) bf16, q pre-scaled
    g1 = params["g1"][:, perm]
    b1 = params["b1"][:, perm]
    wp_ = params["wp"].astype(jnp.bfloat16)
    w1 = params["w1"].astype(jnp.bfloat16)
    w2 = params["w2"].astype(jnp.bfloat16)

    kernel = functools.partial(_token_transformer_kernel,
                               n_tok=n_tok, wp2=wp2, c3=c3, embed_dim=E,
                               tq=128, tkv=128)

    const = lambda shape: pl.BlockSpec(shape, lambda b: (0, 0))
    in_specs = [
        pl.BlockSpec((1, rows_p, lanes_p), lambda b: (b, 0, 0)),  # packed input slab
        const((1, din)), const((1, din)),                         # g1, b1 (permuted)
        const((din, 3 * E)),                                      # wqkv (bf16)
        const((E, E)), const((1, E)),                             # wp, bp
        const((1, E)), const((1, E)),                             # g2, b2
        const((E, E)), const((1, E)),                             # w1, bb1
        const((E, E)), const((1, E)),                             # w2, bb2
    ]
    out_spec = pl.BlockSpec((1, n_tok, E), lambda b: (b, 0, 0))

    # Weights are fetched once (constant index_map) -> no B multiplier.
    weight_bytes = 2 * (din * 3 * E + 3 * E * E) + 4 * (2 * din + 7 * E)
    cost = pl.CostEstimate(
        flops=2 * B * n_tok * (din * 3 * E + 2 * n_tok * E + 3 * E * E),
        transcendentals=B * (n_tok * n_tok + n_tok * E),
        bytes_accessed=B * (rows_p * lanes_p * 4 + n_tok * E * 4) + weight_bytes,
    )

    fn = pl.pallas_call(
        kernel,
        out_shape=jax.ShapeDtypeStruct((B, n_tok, E), jnp.float32),
        grid_spec=pltpu.PrefetchScalarGridSpec(
            num_scalar_prefetch=0,
            grid=(B,),
            in_specs=in_specs,
            out_specs=out_spec,
            scratch_shapes=[pltpu.VMEM((n_tok, din), jnp.float32)],
        ),
        compiler_params=pltpu.CompilerParams(
            dimension_semantics=("parallel",)),
        cost_estimate=cost,
    )
    return fn(x3, g1, b1, wqkv,
              wp_, params["bp"], params["g2"], params["b2"],
              w1, params["bb1"], w2, params["bb2"])


# -------------------------- params + pure-JAX reference --------------------------

def init_params(key, in_chans, K, embed_dim):
    din = in_chans * K * K
    E = embed_dim
    ks = jax.random.split(key, 6)
    w = lambda k, shape: (0.02 * jax.random.normal(k, shape, jnp.float32))
    return {
        "g1": jnp.ones((1, din), jnp.float32),
        "b1": jnp.zeros((1, din), jnp.float32),
        "wq": w(ks[0], (din, E)),
        "wk": w(ks[1], (din, E)),
        "wv": w(ks[2], (din, E)),
        "wp": w(ks[3], (E, E)),
        "bp": jnp.zeros((1, E), jnp.float32),
        "g2": jnp.ones((1, E), jnp.float32),
        "b2": jnp.zeros((1, E), jnp.float32),
        "w1": w(ks[4], (E, E)),
        "bb1": jnp.zeros((1, E), jnp.float32),
        "w2": w(ks[5], (E, E)),
        "bb2": jnp.zeros((1, E), jnp.float32),
    }


def unfold_3x3_s1_p2(x):
    """nn.Unfold(3, stride=1, padding=2).transpose(1,2): (B,C,H,W)->(B,L,C*9)."""
    B, C, H, W = x.shape
    xp = jnp.pad(x, ((0, 0), (0, 0), (2, 2), (2, 2)))
    oh, ow = H + 2, W + 2
    patches = []
    for kh in range(3):
        for kw in range(3):
            patches.append(xp[:, :, kh:kh + oh, kw:kw + ow])
    p = jnp.stack(patches, axis=2)                 # (B, C, 9, oh, ow)
    p = p.reshape(B, C * 9, oh * ow)               # PyTorch order c*9 + kh*3 + kw
    return jnp.transpose(p, (0, 2, 1))


@jax.jit
def _ref_forward(x, params):
    t = unfold_3x3_s1_p2(x)
    E = params["wp"].shape[0]
    ln = lambda z, g, b: ((z - z.mean(-1, keepdims=True))
                          * jax.lax.rsqrt(z.var(-1, keepdims=True) + EPS)) * g + b
    xn = ln(t, params["g1"][0], params["b1"][0])
    q = xn @ params["wq"]
    k = xn @ params["wk"]
    v = xn @ params["wv"]
    s = jnp.einsum("bnd,bmd->bnm", q, k) * (E ** -0.5)
    p = jax.nn.softmax(s, axis=-1)
    a = jnp.einsum("bnm,bmd->bnd", p, v) @ params["wp"] + params["bp"][0]
    x1 = v + a
    x2 = ln(x1, params["g2"][0], params["b2"][0])
    h = x2 @ params["w1"] + params["bb1"][0]
    h = 0.5 * h * (1.0 + jax.lax.erf(h / jnp.sqrt(2.0).astype(jnp.float32)))
    h = h @ params["w2"] + params["bb2"][0]
    return x1 + h


# -------------------------- main --------------------------

if __name__ == "__main__":
    B, C, H = 2, 4, 16           # img_size=16, in_chans=4
    K, S, P, D = 3, 1, 2, 1
    embed_dim = 128              # lane-dense output (multiple of 128)

    key = jax.random.PRNGKey(0)
    kx, kp = jax.random.split(key)
    x = jax.random.normal(kx, (B, C, H, H), jnp.float32)
    params = init_params(kp, C, K, embed_dim)

    num_patches = ((H + 2 * P - (D * (K - 1) + 1)) // S + 1) ** 2

    out = jax.block_until_ready(aspp_block_forward(x, params))
    assert out.shape == (B, num_patches, embed_dim), out.shape

    ref = jax.block_until_ready(_ref_forward(x, params))
    # bf16 MXU operands in the kernel -> looser tolerance vs the f32 reference.
    assert jnp.allclose(out, ref, rtol=2e-2, atol=2e-2), "mismatch vs JAX reference"

    print("KERNEL_OK")
</pallas_src>

<mosaic_0001>
module attributes {stable_mosaic.version = 11 : i64} {
  func.func @_token_transformer_kernel(%arg0: i32, %arg1: memref<1x16x384xf32, #tpu.memory_space<vmem>>, %arg2: memref<1x36xf32, #tpu.memory_space<vmem>>, %arg3: memref<1x36xf32, #tpu.memory_space<vmem>>, %arg4: memref<36x384xbf16, #tpu.memory_space<vmem>>, %arg5: memref<128x128xbf16, #tpu.memory_space<vmem>>, %arg6: memref<1x128xf32, #tpu.memory_space<vmem>>, %arg7: memref<1x128xf32, #tpu.memory_space<vmem>>, %arg8: memref<1x128xf32, #tpu.memory_space<vmem>>, %arg9: memref<128x128xbf16, #tpu.memory_space<vmem>>, %arg10: memref<1x128xf32, #tpu.memory_space<vmem>>, %arg11: memref<128x128xbf16, #tpu.memory_space<vmem>>, %arg12: memref<1x128xf32, #tpu.memory_space<vmem>>, %arg13: memref<1x324x128xf32, #tpu.memory_space<vmem>>, %arg14: memref<324x36xf32, #tpu.memory_space<vmem>>) attributes {dimension_semantics = [#tpu.dimension_semantics<parallel>], iteration_bounds = array<i64: 2>, scalar_prefetch = 0 : i64, scratch_operands = 1 : i64, tpu.core_type = #tpu.core_type<tc>, window_params = [{transform_indices = @transform_0, window_bounds = array<i64: 1, 16, 384>}, {pipeline_mode = #tpu.pipeline_mode<synchronous>, transform_indices = @transform_1, window_bounds = array<i64: 1, 36>}, {pipeline_mode = #tpu.pipeline_mode<synchronous>, transform_indices = @transform_2, window_bounds = array<i64: 1, 36>}, {pipeline_mode = #tpu.pipeline_mode<synchronous>, transform_indices = @transform_3, window_bounds = array<i64: 36, 384>}, {pipeline_mode = #tpu.pipeline_mode<synchronous>, transform_indices = @transform_4, window_bounds = array<i64: 128, 128>}, {pipeline_mode = #tpu.pipeline_mode<synchronous>, transform_indices = @transform_5, window_bounds = array<i64: 1, 128>}, {pipeline_mode = #tpu.pipeline_mode<synchronous>, transform_indices = @transform_6, window_bounds = array<i64: 1, 128>}, {pipeline_mode = #tpu.pipeline_mode<synchronous>, transform_indices = @transform_7, window_bounds = array<i64: 1, 128>}, {pipeline_mode = #tpu.pipeline_mode<synchronous>, transform_indices = @transform_8, window_bounds = array<i64: 128, 128>}, {pipeline_mode = #tpu.pipeline_mode<synchronous>, transform_indices = @transform_9, window_bounds = array<i64: 1, 128>}, {pipeline_mode = #tpu.pipeline_mode<synchronous>, transform_indices = @transform_10, window_bounds = array<i64: 128, 128>}, {pipeline_mode = #tpu.pipeline_mode<synchronous>, transform_indices = @transform_11, window_bounds = array<i64: 1, 128>}, {transform_indices = @transform_12, window_bounds = array<i64: 1, 324, 128>}]} {
    %c0 = arith.constant 0 : index
    %c0_0 = arith.constant 0 : index
    %c0_1 = arith.constant 0 : index
    %0 = vector.load %arg1[%c0, %c0_0, %c0_1] : memref<1x16x384xf32, #tpu.memory_space<vmem>>, vector<1x16x384xf32>
    %1 = vector.shape_cast %0 : vector<1x16x384xf32> to vector<16x384xf32>
    %2 = tpu.transpose %1, [1, 0] : vector<16x384xf32> -> vector<384x16xf32>
    %3 = vector.extract_strided_slice %2 {offsets = [0, 0], sizes = [324, 12], strides = [1, 1]} : vector<384x16xf32> to vector<324x12xf32>
    %c0_2 = arith.constant 0 : index
    %c0_3 = arith.constant 0 : index
    %4 = vector.load %arg14[%c0_2, %c0_3] : memref<324x36xf32, #tpu.memory_space<vmem>>, vector<324x12xf32>
    tpu.vector_store %arg14[%c0_2, %c0_3], %3 {strides = array<i32>} : memref<324x36xf32, #tpu.memory_space<vmem>>, vector<324x12xf32>,
    %5 = vector.extract_strided_slice %2 {offsets = [18, 0], sizes = [324, 12], strides = [1, 1]} : vector<384x16xf32> to vector<324x12xf32>
    %c0_4 = arith.constant 0 : index
    %c12 = arith.constant 12 : index
    %6 = vector.load %arg14[%c0_4, %c12] : memref<324x36xf32, #tpu.memory_space<vmem>>, vector<324x12xf32>
    tpu.vector_store %arg14[%c0_4, %c12], %5 {strides = array<i32>} : memref<324x36xf32, #tpu.memory_space<vmem>>, vector<324x12xf32>,
    %7 = vector.extract_strided_slice %2 {offsets = [36, 0], sizes = [324, 12], strides = [1, 1]} : vector<384x16xf32> to vector<324x12xf32>
    %c0_5 = arith.constant 0 : index
    %c24 = arith.constant 24 : index
    %8 = vector.load %arg14[%c0_5, %c24] : memref<324x36xf32, #tpu.memory_space<vmem>>, vector<324x12xf32>
    tpu.vector_store %arg14[%c0_5, %c24], %7 {strides = array<i32>} : memref<324x36xf32, #tpu.memory_space<vmem>>, vector<324x12xf32>,
    %c0_6 = arith.constant 0 : index
    %c0_7 = arith.constant 0 : index
    %9 = vector.load %arg14[%c0_6, %c0_7] : memref<324x36xf32, #tpu.memory_space<vmem>>, vector<324x36xf32>
    %cst = arith.constant dense<0.000000e+00> : vector<324xf32>
    %10 = vector.multi_reduction <add>, %9, %cst [1] : vector<324x36xf32> to vector<324xf32>
    %11 = vector.shape_cast %10 : vector<324xf32> to vector<324x1xf32>
    %cst_8 = arith.constant 3.600000e+01 : f32
    %12 = vector.broadcast %cst_8 : f32 to vector<324x1xf32>
    %13 = arith.divf %11, %12 : vector<324x1xf32>
    %14 = vector.broadcast %13 : vector<324x1xf32> to vector<324x36xf32>
    %15 = arith.subf %9, %14 : vector<324x36xf32>
    %16 = arith.mulf %15, %15 : vector<324x36xf32>
    %cst_9 = arith.constant dense<0.000000e+00> : vector<324xf32>
    %17 = vector.multi_reduction <add>, %16, %cst_9 [1] : vector<324x36xf32> to vector<324xf32>
    %18 = vector.shape_cast %17 : vector<324xf32> to vector<324x1xf32>
    %cst_10 = arith.constant 3.600000e+01 : f32
    %19 = vector.broadcast %cst_10 : f32 to vector<324x1xf32>
    %20 = arith.divf %18, %19 : vector<324x1xf32>
    %21 = vector.broadcast %13 : vector<324x1xf32> to vector<324x36xf32>
    %22 = arith.subf %9, %21 : vector<324x36xf32>
    %cst_11 = arith.constant 9.99999974E-6 : f32
    %23 = vector.broadcast %cst_11 : f32 to vector<324x1xf32>
    %24 = arith.addf %20, %23 : vector<324x1xf32>
    %25 = math.rsqrt %24 : vector<324x1xf32>
    %26 = vector.broadcast %25 : vector<324x1xf32> to vector<324x36xf32>
    %27 = arith.mulf %22, %26 : vector<324x36xf32>
    %c0_12 = arith.constant 0 : index
    %c0_13 = arith.constant 0 : index
    %28 = vector.load %arg2[%c0_12, %c0_13] : memref<1x36xf32, #tpu.memory_space<vmem>>, vector<1x36xf32>
    %29 = vector.shape_cast %28 : vector<1x36xf32> to vector<36xf32>
    %30 = vector.shape_cast %29 : vector<36xf32> to vector<1x36xf32>
    %31 = vector.broadcast %30 : vector<1x36xf32> to vector<324x36xf32>
    %32 = arith.mulf %27, %31 : vector<324x36xf32>
    %c0_14 = arith.constant 0 : index
    %c0_15 = arith.constant 0 : index
    %33 = vector.load %arg3[%c0_14, %c0_15] : memref<1x36xf32, #tpu.memory_space<vmem>>, vector<1x36xf32>
    %34 = vector.shape_cast %33 : vector<1x36xf32> to vector<36xf32>
    %35 = vector.shape_cast %34 : vector<36xf32> to vector<1x36xf32>
    %36 = vector.broadcast %35 : vector<1x36xf32> to vector<324x36xf32>
    %37 = arith.addf %32, %36 : vector<324x36xf32>
    %38 = arith.truncf %37 : vector<324x36xf32> to vector<324x36xbf16>
    %c0_16 = arith.constant 0 : index
    %c0_17 = arith.constant 0 : index
    %39 = vector.load %arg4[%c0_16, %c0_17] : memref<36x384xbf16, #tpu.memory_space<vmem>>, vector<36x384xbf16>
    %cst_18 = arith.constant dense<0.000000e+00> : vector<324x384xf32>
    %40 = tpu.matmul %38, %39, %cst_18 {dimension_numbers = #tpu.dot_dimension_numbers<[1], [0], [0], [1], [0, 0, 1, 1], [], []>} : vector<324x36xbf16>, vector<36x384xbf16>, vector<324x384xf32> -> vector<324x384xf32>
    %41 = vector.extract_strided_slice %40 {offsets = [0, 0], sizes = [324, 128], strides = [1, 1]} : vector<324x384xf32> to vector<324x128xf32>
    %42 = arith.truncf %41 : vector<324x128xf32> to vector<324x128xbf16>
    %43 = vector.extract_strided_slice %40 {offsets = [0, 128], sizes = [324, 128], strides = [1, 1]} : vector<324x384xf32> to vector<324x128xf32>
    %44 = arith.truncf %43 : vector<324x128xf32> to vector<324x128xbf16>
    %45 = vector.extract_strided_slice %40 {offsets = [0, 256], sizes = [324, 128], strides = [1, 1]} : vector<324x384xf32> to vector<324x128xf32>
    %46 = arith.truncf %45 : vector<324x128xf32> to vector<324x128xbf16>
    %47 = vector.extract_strided_slice %42 {offsets = [0, 0], sizes = [128, 128], strides = [1, 1]} : vector<324x128xbf16> to vector<128x128xbf16>
    %cst_19 = arith.constant 0xFF800000 : f32
    %48 = vector.broadcast %cst_19 : f32 to vector<128x1xf32>
    %cst_20 = arith.constant 0.000000e+00 : f32
    %49 = vector.broadcast %cst_20 : f32 to vector<128x1xf32>
    %cst_21 = arith.constant 0.000000e+00 : f32
    %50 = vector.broadcast %cst_21 : f32 to vector<128x128xf32>
    %51 = vector.extract_strided_slice %44 {offsets = [0, 0], sizes = [128, 128], strides = [1, 1]} : vector<324x128xbf16> to vector<128x128xbf16>
    %cst_22 = arith.constant dense<0.000000e+00> : vector<128x128xf32>
    %52 = tpu.matmul %47, %51, %cst_22 {dimension_numbers = #tpu.dot_dimension_numbers<[1], [1], [0], [0], [0, 0, 1, 0], [], []>} : vector<128x128xbf16>, vector<128x128xbf16>, vector<128x128xf32> -> vector<128x128xf32>
    %cst_23 = arith.constant dense<0xFF800000> : vector<128xf32>
    %53 = vector.multi_reduction <maximumf>, %52, %cst_23 [1] : vector<128x128xf32> to vector<128xf32>
    %54 = vector.shape_cast %53 : vector<128xf32> to vector<128x1xf32>
    %55 = arith.maximumf %48, %54 : vector<128x1xf32>
    %56 = arith.subf %48, %55 : vector<128x1xf32>
    %57 = math.exp %56 : vector<128x1xf32>
    %58 = vector.broadcast %55 : vector<128x1xf32> to vector<128x128xf32>
    %59 = arith.subf %52, %58 : vector<128x128xf32>
    %60 = math.exp %59 : vector<128x128xf32>
    %61 = arith.mulf %57, %49 : vector<128x1xf32>
    %cst_24 = arith.constant dense<0.000000e+00> : vector<128xf32>
    %62 = vector.multi_reduction <add>, %60, %cst_24 [1] : vector<128x128xf32> to vector<128xf32>
    %63 = vector.shape_cast %62 : vector<128xf32> to vector<128x1xf32>
    %64 = arith.addf %61, %63 : vector<128x1xf32>
    %65 = vector.broadcast %57 : vector<128x1xf32> to vector<128x128xf32>
    %66 = arith.mulf %65, %50 : vector<128x128xf32>
    %67 = arith.truncf %60 : vector<128x128xf32> to vector<128x128xbf16>
    %68 = vector.extract_strided_slice %46 {offsets = [0, 0], sizes = [128, 128], strides = [1, 1]} : vector<324x128xbf16> to vector<128x128xbf16>
    %cst_25 = arith.constant dense<0.000000e+00> : vector<128x128xf32>
    %69 = tpu.matmul %67, %68, %cst_25 {dimension_numbers = #tpu.dot_dimension_numbers<[1], [0], [0], [1], [0, 0, 1, 1], [], []>} : vector<128x128xbf16>, vector<128x128xbf16>, vector<128x128xf32> -> vector<128x128xf32>
    %70 = arith.addf %66, %69 : vector<128x128xf32>
    %71 = vector.extract_strided_slice %44 {offsets = [128, 0], sizes = [128, 128], strides = [1, 1]} : vector<324x128xbf16> to vector<128x128xbf16>
    %cst_26 = arith.constant dense<0.000000e+00> : vector<128x128xf32>
    %72 = tpu.matmul %47, %71, %cst_26 {dimension_numbers = #tpu.dot_dimension_numbers<[1], [1], [0], [0], [0, 0, 1, 0], [], []>} : vector<128x128xbf16>, vector<128x128xbf16>, vector<128x128xf32> -> vector<128x128xf32>
    %cst_27 = arith.constant dense<0xFF800000> : vector<128xf32>
    %73 = vector.multi_reduction <maximumf>, %72, %cst_27 [1] : vector<128x128xf32> to vector<128xf32>
    %74 = vector.shape_cast %73 : vector<128xf32> to vector<128x1xf32>
    %75 = arith.maximumf %55, %74 : vector<128x1xf32>
    %76 = arith.subf %55, %75 : vector<128x1xf32>
    %77 = math.exp %76 : vector<128x1xf32>
    %78 = vector.broadcast %75 : vector<128x1xf32> to vector<128x128xf32>
    %79 = arith.subf %72, %78 : vector<128x128xf32>
    %80 = math.exp %79 : vector<128x128xf32>
    %81 = arith.mulf %77, %64 : vector<128x1xf32>
    %cst_28 = arith.constant dense<0.000000e+00> : vector<128xf32>
    %82 = vector.multi_reduction <add>, %80, %cst_28 [1] : vector<128x128xf32> to vector<128xf32>
    %83 = vector.shape_cast %82 : vector<128xf32> to vector<128x1xf32>
    %84 = arith.addf %81, %83 : vector<128x1xf32>
    %85 = vector.broadcast %77 : vector<128x1xf32> to vector<128x128xf32>
    %86 = arith.mulf %85, %70 : vector<128x128xf32>
    %87 = arith.truncf %80 : vector<128x128xf32> to vector<128x128xbf16>
    %88 = vector.extract_strided_slice %46 {offsets = [128, 0], sizes = [128, 128], strides = [1, 1]} : vector<324x128xbf16> to vector<128x128xbf16>
    %cst_29 = arith.constant dense<0.000000e+00> : vector<128x128xf32>
    %89 = tpu.matmul %87, %88, %cst_29 {dimension_numbers = #tpu.dot_dimension_numbers<[1], [0], [0], [1], [0, 0, 1, 1], [], []>} : vector<128x128xbf16>, vector<128x128xbf16>, vector<128x128xf32> -> vector<128x128xf32>
    %90 = arith.addf %86, %89 : vector<128x128xf32>
    %91 = vector.extract_strided_slice %44 {offsets = [256, 0], sizes = [68, 128], strides = [1, 1]} : vector<324x128xbf16> to vector<68x128xbf16>
    %cst_30 = arith.constant dense<0.000000e+00> : vector<128x68xf32>
    %92 = tpu.matmul %47, %91, %cst_30 {dimension_numbers = #tpu.dot_dimension_numbers<[1], [1], [0], [0], [0, 0, 1, 0], [], []>} : vector<128x128xbf16>, vector<68x128xbf16>, vector<128x68xf32> -> vector<128x68xf32>
    %cst_31 = arith.constant dense<0xFF800000> : vector<128xf32>
    %93 = vector.multi_reduction <maximumf>, %92, %cst_31 [1] : vector<128x68xf32> to vector<128xf32>
    %94 = vector.shape_cast %93 : vector<128xf32> to vector<128x1xf32>
    %95 = arith.maximumf %75, %94 : vector<128x1xf32>
    %96 = arith.subf %75, %95 : vector<128x1xf32>
    %97 = math.exp %96 : vector<128x1xf32>
    %98 = vector.broadcast %95 : vector<128x1xf32> to vector<128x68xf32>
    %99 = arith.subf %92, %98 : vector<128x68xf32>
    %100 = math.exp %99 : vector<128x68xf32>
    %101 = arith.mulf %97, %84 : vector<128x1xf32>
    %cst_32 = arith.constant dense<0.000000e+00> : vector<128xf32>
    %102 = vector.multi_reduction <add>, %100, %cst_32 [1] : vector<128x68xf32> to vector<128xf32>
    %103 = vector.shape_cast %102 : vector<128xf32> to vector<128x1xf32>
    %104 = arith.addf %101, %103 : vector<128x1xf32>
    %105 = vector.broadcast %97 : vector<128x1xf32> to vector<128x128xf32>
    %106 = arith.mulf %105, %90 : vector<128x128xf32>
    %107 = arith.truncf %100 : vector<128x68xf32> to vector<128x68xbf16>
    %108 = vector.extract_strided_slice %46 {offsets = [256, 0], sizes = [68, 128], strides = [1, 1]} : vector<324x128xbf16> to vector<68x128xbf16>
    %cst_33 = arith.constant dense<0.000000e+00> : vector<128x128xf32>
    %109 = tpu.matmul %107, %108, %cst_33 {dimension_numbers = #tpu.dot_dimension_numbers<[1], [0], [0], [1], [0, 0, 1, 1], [], []>} : vector<128x68xbf16>, vector<68x128xbf16>, vector<128x128xf32> -> vector<128x128xf32>
    %110 = arith.addf %106, %109 : vector<128x128xf32>
    %111 = vector.broadcast %104 : vector<128x1xf32> to vector<128x128xf32>
    %112 = arith.divf %110, %111 : vector<128x128xf32>
    %113 = arith.truncf %112 : vector<128x128xf32> to vector<128x128xbf16>
    %c0_34 = arith.constant 0 : index
    %c0_35 = arith.constant 0 : index
    %114 = vector.load %arg5[%c0_34, %c0_35] : memref<128x128xbf16, #tpu.memory_space<vmem>>, vector<128x128xbf16>
    %cst_36 = arith.constant dense<0.000000e+00> : vector<128x128xf32>
    %115 = tpu.matmul %113, %114, %cst_36 {dimension_numbers = #tpu.dot_dimension_numbers<[1], [0], [0], [1], [0, 0, 1, 1], [], []>} : vector<128x128xbf16>, vector<128x128xbf16>, vector<128x128xf32> -> vector<128x128xf32>
    %c0_37 = arith.constant 0 : index
    %c0_38 = arith.constant 0 : index
    %116 = vector.load %arg6[%c0_37, %c0_38] : memref<1x128xf32, #tpu.memory_space<vmem>>, vector<1x128xf32>
    %117 = vector.shape_cast %116 : vector<1x128xf32> to vector<128xf32>
    %118 = vector.shape_cast %117 : vector<128xf32> to vector<1x128xf32>
    %119 = vector.broadcast %118 : vector<1x128xf32> to vector<128x128xf32>
    %120 = arith.addf %115, %119 : vector<128x128xf32>
    %121 = vector.extract_strided_slice %45 {offsets = [0, 0], sizes = [128, 128], strides = [1, 1]} : vector<324x128xf32> to vector<128x128xf32>
    %122 = arith.addf %121, %120 : vector<128x128xf32>
    %cst_39 = arith.constant dense<0.000000e+00> : vector<128xf32>
    %123 = vector.multi_reduction <add>, %122, %cst_39 [1] : vector<128x128xf32> to vector<128xf32>
    %124 = vector.shape_cast %123 : vector<128xf32> to vector<128x1xf32>
    %cst_40 = arith.constant 1.280000e+02 : f32
    %125 = vector.broadcast %cst_40 : f32 to vector<128x1xf32>
    %126 = arith.divf %124, %125 : vector<128x1xf32>
    %127 = vector.broadcast %126 : vector<128x1xf32> to vector<128x128xf32>
    %128 = arith.subf %122, %127 : vector<128x128xf32>
    %129 = arith.mulf %128, %128 : vector<128x128xf32>
    %cst_41 = arith.constant dense<0.000000e+00> : vector<128xf32>
    %130 = vector.multi_reduction <add>, %129, %cst_41 [1] : vector<128x128xf32> to vector<128xf32>
    %131 = vector.shape_cast %130 : vector<128xf32> to vector<128x1xf32>
    %cst_42 = arith.constant 1.280000e+02 : f32
    %132 = vector.broadcast %cst_42 : f32 to vector<128x1xf32>
    %133 = arith.divf %131, %132 : vector<128x1xf32>
    %134 = vector.broadcast %126 : vector<128x1xf32> to vector<128x128xf32>
    %135 = arith.subf %122, %134 : vector<128x128xf32>
    %cst_43 = arith.constant 9.99999974E-6 : f32
    %136 = vector.broadcast %cst_43 : f32 to vector<128x1xf32>
    %137 = arith.addf %133, %136 : vector<128x1xf32>
    %138 = math.rsqrt %137 : vector<128x1xf32>
    %139 = vector.broadcast %138 : vector<128x1xf32> to vector<128x128xf32>
    %140 = arith.mulf %135, %139 : vector<128x128xf32>
    %c0_44 = arith.constant 0 : index
    %c0_45 = arith.constant 0 : index
    %141 = vector.load %arg7[%c0_44, %c0_45] : memref<1x128xf32, #tpu.memory_space<vmem>>, vector<1x128xf32>
    %142 = vector.shape_cast %141 : vector<1x128xf32> to vector<128xf32>
    %143 = vector.shape_cast %142 : vector<128xf32> to vector<1x128xf32>
    %144 = vector.broadcast %143 : vector<1x128xf32> to vector<128x128xf32>
    %145 = arith.mulf %140, %144 : vector<128x128xf32>
    %c0_46 = arith.constant 0 : index
    %c0_47 = arith.constant 0 : index
    %146 = vector.load %arg8[%c0_46, %c0_47] : memref<1x128xf32, #tpu.memory_space<vmem>>, vector<1x128xf32>
    %147 = vector.shape_cast %146 : vector<1x128xf32> to vector<128xf32>
    %148 = vector.shape_cast %147 : vector<128xf32> to vector<1x128xf32>
    %149 = vector.broadcast %148 : vector<1x128xf32> to vector<128x128xf32>
    %150 = arith.addf %145, %149 : vector<128x128xf32>
    %151 = arith.truncf %150 : vector<128x128xf32> to vector<128x128xbf16>
    %c0_48 = arith.constant 0 : index
    %c0_49 = arith.constant 0 : index
    %152 = vector.load %arg9[%c0_48, %c0_49] : memref<128x128xbf16, #tpu.memory_space<vmem>>, vector<128x128xbf16>
    %cst_50 = arith.constant dense<0.000000e+00> : vector<128x128xf32>
    %153 = tpu.matmul %151, %152, %cst_50 {dimension_numbers = #tpu.dot_dimension_numbers<[1], [0], [0], [1], [0, 0, 1, 1], [], []>} : vector<128x128xbf16>, vector<128x128xbf16>, vector<128x128xf32> -> vector<128x128xf32>
    %c0_51 = arith.constant 0 : index
    %c0_52 = arith.constant 0 : index
    %154 = vector.load %arg10[%c0_51, %c0_52] : memref<1x128xf32, #tpu.memory_space<vmem>>, vector<1x128xf32>
    %155 = vector.shape_cast %154 : vector<1x128xf32> to vector<128xf32>
    %156 = vector.shape_cast %155 : vector<128xf32> to vector<1x128xf32>
    %157 = vector.broadcast %156 : vector<1x128xf32> to vector<128x128xf32>
    %158 = arith.addf %153, %157 : vector<128x128xf32>
    %cst_53 = arith.constant 5.000000e-01 : f32
    %159 = vector.broadcast %cst_53 : f32 to vector<128x128xf32>
    %160 = arith.mulf %159, %158 : vector<128x128xf32>
    %cst_54 = arith.constant 0.707106769 : f32
    %161 = vector.broadcast %cst_54 : f32 to vector<128x128xf32>
    %162 = arith.mulf %158, %161 : vector<128x128xf32>
    %163 = math.erf %162 : vector<128x128xf32>
    %cst_55 = arith.constant 1.000000e+00 : f32
    %164 = vector.broadcast %cst_55 : f32 to vector<128x128xf32>
    %165 = arith.addf %164, %163 : vector<128x128xf32>
    %166 = arith.mulf %160, %165 : vector<128x128xf32>
    %167 = arith.truncf %166 : vector<128x128xf32> to vector<128x128xbf16>
    %c0_56 = arith.constant 0 : index
    %c0_57 = arith.constant 0 : index
    %168 = vector.load %arg11[%c0_56, %c0_57] : memref<128x128xbf16, #tpu.memory_space<vmem>>, vector<128x128xbf16>
    %cst_58 = arith.constant dense<0.000000e+00> : vector<128x128xf32>
    %169 = tpu.matmul %167, %168, %cst_58 {dimension_numbers = #tpu.dot_dimension_numbers<[1], [0], [0], [1], [0, 0, 1, 1], [], []>} : vector<128x128xbf16>, vector<128x128xbf16>, vector<128x128xf32> -> vector<128x128xf32>
    %c0_59 = arith.constant 0 : index
    %c0_60 = arith.constant 0 : index
    %170 = vector.load %arg12[%c0_59, %c0_60] : memref<1x128xf32, #tpu.memory_space<vmem>>, vector<1x128xf32>
    %171 = vector.shape_cast %170 : vector<1x128xf32> to vector<128xf32>
    %172 = vector.shape_cast %171 : vector<128xf32> to vector<1x128xf32>
    %173 = vector.broadcast %172 : vector<1x128xf32> to vector<128x128xf32>
    %174 = arith.addf %169, %173 : vector<128x128xf32>
    %175 = arith.addf %122, %174 : vector<128x128xf32>
    %c0_61 = arith.constant 0 : index
    %c0_62 = arith.constant 0 : index
    %c0_63 = arith.constant 0 : index
    %176 = vector.load %arg13[%c0_61, %c0_62, %c0_63] : memref<1x324x128xf32, #tpu.memory_space<vmem>>, vector<1x128x128xf32>
    %177 = vector.shape_cast %176 : vector<1x128x128xf32> to vector<128x128xf32>
    %178 = vector.shape_cast %175 : vector<128x128xf32> to vector<1x128x128xf32>
    tpu.vector_store %arg13[%c0_61, %c0_62, %c0_63], %178 {strides = array<i32>} : memref<1x324x128xf32, #tpu.memory_space<vmem>>, vector<1x128x128xf32>,
    %179 = vector.extract_strided_slice %42 {offsets = [128, 0], sizes = [128, 128], strides = [1, 1]} : vector<324x128xbf16> to vector<128x128xbf16>
    %cst_64 = arith.constant 0xFF800000 : f32
    %180 = vector.broadcast %cst_64 : f32 to vector<128x1xf32>
    %cst_65 = arith.constant 0.000000e+00 : f32
    %181 = vector.broadcast %cst_65 : f32 to vector<128x1xf32>
    %cst_66 = arith.constant 0.000000e+00 : f32
    %182 = vector.broadcast %cst_66 : f32 to vector<128x128xf32>
    %183 = vector.extract_strided_slice %44 {offsets = [0, 0], sizes = [128, 128], strides = [1, 1]} : vector<324x128xbf16> to vector<128x128xbf16>
    %cst_67 = arith.constant dense<0.000000e+00> : vector<128x128xf32>
    %184 = tpu.matmul %179, %183, %cst_67 {dimension_numbers = #tpu.dot_dimension_numbers<[1], [1], [0], [0], [0, 0, 1, 0], [], []>} : vector<128x128xbf16>, vector<128x128xbf16>, vector<128x128xf32> -> vector<128x128xf32>
    %cst_68 = arith.constant dense<0xFF800000> : vector<128xf32>
    %185 = vector.multi_reduction <maximumf>, %184, %cst_68 [1] : vector<128x128xf32> to vector<128xf32>
    %186 = vector.shape_cast %185 : vector<128xf32> to vector<128x1xf32>
    %187 = arith.maximumf %180, %186 : vector<128x1xf32>
    %188 = arith.subf %180, %187 : vector<128x1xf32>
    %189 = math.exp %188 : vector<128x1xf32>
    %190 = vector.broadcast %187 : vector<128x1xf32> to vector<128x128xf32>
    %191 = arith.subf %184, %190 : vector<128x128xf32>
    %192 = math.exp %191 : vector<128x128xf32>
    %193 = arith.mulf %189, %181 : vector<128x1xf32>
    %cst_69 = arith.constant dense<0.000000e+00> : vector<128xf32>
    %194 = vector.multi_reduction <add>, %192, %cst_69 [1] : vector<128x128xf32> to vector<128xf32>
    %195 = vector.shape_cast %194 : vector<128xf32> to vector<128x1xf32>
    %196 = arith.addf %193, %195 : vector<128x1xf32>
    %197 = vector.broadcast %189 : vector<128x1xf32> to vector<128x128xf32>
    %198 = arith.mulf %197, %182 : vector<128x128xf32>
    %199 = arith.truncf %192 : vector<128x128xf32> to vector<128x128xbf16>
    %200 = vector.extract_strided_slice %46 {offsets = [0, 0], sizes = [128, 128], strides = [1, 1]} : vector<324x128xbf16> to vector<128x128xbf16>
    %cst_70 = arith.constant dense<0.000000e+00> : vector<128x128xf32>
    %201 = tpu.matmul %199, %200, %cst_70 {dimension_numbers = #tpu.dot_dimension_numbers<[1], [0], [0], [1], [0, 0, 1, 1], [], []>} : vector<128x128xbf16>, vector<128x128xbf16>, vector<128x128xf32> -> vector<128x128xf32>
    %202 = arith.addf %198, %201 : vector<128x128xf32>
    %203 = vector.extract_strided_slice %44 {offsets = [128, 0], sizes = [128, 128], strides = [1, 1]} : vector<324x128xbf16> to vector<128x128xbf16>
    %cst_71 = arith.constant dense<0.000000e+00> : vector<128x128xf32>
    %204 = tpu.matmul %179, %203, %cst_71 {dimension_numbers = #tpu.dot_dimension_numbers<[1], [1], [0], [0], [0, 0, 1, 0], [], []>} : vector<128x128xbf16>, vector<128x128xbf16>, vector<128x128xf32> -> vector<128x128xf32>
    %cst_72 = arith.constant dense<0xFF800000> : vector<128xf32>
    %205 = vector.multi_reduction <maximumf>, %204, %cst_72 [1] : vector<128x128xf32> to vector<128xf32>
    %206 = vector.shape_cast %205 : vector<128xf32> to vector<128x1xf32>
    %207 = arith.maximumf %187, %206 : vector<128x1xf32>
    %208 = arith.subf %187, %207 : vector<128x1xf32>
    %209 = math.exp %208 : vector<128x1xf32>
    %210 = vector.broadcast %207 : vector<128x1xf32> to vector<128x128xf32>
    %211 = arith.subf %204, %210 : vector<128x128xf32>
    %212 = math.exp %211 : vector<128x128xf32>
    %213 = arith.mulf %209, %196 : vector<128x1xf32>
    %cst_73 = arith.constant dense<0.000000e+00> : vector<128xf32>
    %214 = vector.multi_reduction <add>, %212, %cst_73 [1] : vector<128x128xf32> to vector<128xf32>
    %215 = vector.shape_cast %214 : vector<128xf32> to vector<128x1xf32>
    %216 = arith.addf %213, %215 : vector<128x1xf32>
    %217 = vector.broadcast %209 : vector<128x1xf32> to vector<128x128xf32>
    %218 = arith.mulf %217, %202 : vector<128x128xf32>
    %219 = arith.truncf %212 : vector<128x128xf32> to vector<128x128xbf16>
    %220 = vector.extract_strided_slice %46 {offsets = [128, 0], sizes = [128, 128], strides = [1, 1]} : vector<324x128xbf16> to vector<128x128xbf16>
    %cst_74 = arith.constant dense<0.000000e+00> : vector<128x128xf32>
    %221 = tpu.matmul %219, %220, %cst_74 {dimension_numbers = #tpu.dot_dimension_numbers<[1], [0], [0], [1], [0, 0, 1, 1], [], []>} : vector<128x128xbf16>, vector<128x128xbf16>, vector<128x128xf32> -> vector<128x128xf32>
    %222 = arith.addf %218, %221 : vector<128x128xf32>
    %223 = vector.extract_strided_slice %44 {offsets = [256, 0], sizes = [68, 128], strides = [1, 1]} : vector<324x128xbf16> to vector<68x128xbf16>
    %cst_75 = arith.constant dense<0.000000e+00> : vector<128x68xf32>
    %224 = tpu.matmul %179, %223, %cst_75 {dimension_numbers = #tpu.dot_dimension_numbers<[1], [1], [0], [0], [0, 0, 1, 0], [], []>} : vector<128x128xbf16>, vector<68x128xbf16>, vector<128x68xf32> -> vector<128x68xf32>
    %cst_76 = arith.constant dense<0xFF800000> : vector<128xf32>
    %225 = vector.multi_reduction <maximumf>, %224, %cst_76 [1] : vector<128x68xf32> to vector<128xf32>
    %226 = vector.shape_cast %225 : vector<128xf32> to vector<128x1xf32>
    %227 = arith.maximumf %207, %226 : vector<128x1xf32>
    %228 = arith.subf %207, %227 : vector<128x1xf32>
    %229 = math.exp %228 : vector<128x1xf32>
    %230 = vector.broadcast %227 : vector<128x1xf32> to vector<128x68xf32>
    %231 = arith.subf %224, %230 : vector<128x68xf32>
    %232 = math.exp %231 : vector<128x68xf32>
    %233 = arith.mulf %229, %216 : vector<128x1xf32>
    %cst_77 = arith.constant dense<0.000000e+00> : vector<128xf32>
    %234 = vector.multi_reduction <add>, %232, %cst_77 [1] : vector<128x68xf32> to vector<128xf32>
    %235 = vector.shape_cast %234 : vector<128xf32> to vector<128x1xf32>
    %236 = arith.addf %233, %235 : vector<128x1xf32>
    %237 = vector.broadcast %229 : vector<128x1xf32> to vector<128x128xf32>
    %238 = arith.mulf %237, %222 : vector<128x128xf32>
    %239 = arith.truncf %232 : vector<128x68xf32> to vector<128x68xbf16>
    %240 = vector.extract_strided_slice %46 {offsets = [256, 0], sizes = [68, 128], strides = [1, 1]} : vector<324x128xbf16> to vector<68x128xbf16>
    %cst_78 = arith.constant dense<0.000000e+00> : vector<128x128xf32>
    %241 = tpu.matmul %239, %240, %cst_78 {dimension_numbers = #tpu.dot_dimension_numbers<[1], [0], [0], [1], [0, 0, 1, 1], [], []>} : vector<128x68xbf16>, vector<68x128xbf16>, vector<128x128xf32> -> vector<128x128xf32>
    %242 = arith.addf %238, %241 : vector<128x128xf32>
    %243 = vector.broadcast %236 : vector<128x1xf32> to vector<128x128xf32>
    %244 = arith.divf %242, %243 : vector<128x128xf32>
    %245 = arith.truncf %244 : vector<128x128xf32> to vector<128x128xbf16>
    %c0_79 = arith.constant 0 : index
    %c0_80 = arith.constant 0 : index
    %246 = vector.load %arg5[%c0_79, %c0_80] : memref<128x128xbf16, #tpu.memory_space<vmem>>, vector<128x128xbf16>
    %cst_81 = arith.constant dense<0.000000e+00> : vector<128x128xf32>
    %247 = tpu.matmul %245, %246, %cst_81 {dimension_numbers = #tpu.dot_dimension_numbers<[1], [0], [0], [1], [0, 0, 1, 1], [], []>} : vector<128x128xbf16>, vector<128x128xbf16>, vector<128x128xf32> -> vector<128x128xf32>
    %c0_82 = arith.constant 0 : index
    %c0_83 = arith.constant 0 : index
    %248 = vector.load %arg6[%c0_82, %c0_83] : memref<1x128xf32, #tpu.memory_space<vmem>>, vector<1x128xf32>
    %249 = vector.shape_cast %248 : vector<1x128xf32> to vector<128xf32>
    %250 = vector.shape_cast %249 : vector<128xf32> to vector<1x128xf32>
    %251 = vector.broadcast %250 : vector<1x128xf32> to vector<128x128xf32>
    %252 = arith.addf %247, %251 : vector<128x128xf32>
    %253 = vector.extract_strided_slice %45 {offsets = [128, 0], sizes = [128, 128], strides = [1, 1]} : vector<324x128xf32> to vector<128x128xf32>
    %254 = arith.addf %253, %252 : vector<128x128xf32>
    %cst_84 = arith.constant dense<0.000000e+00> : vector<128xf32>
    %255 = vector.multi_reduction <add>, %254, %cst_84 [1] : vector<128x128xf32> to vector<128xf32>
    %256 = vector.shape_cast %255 : vector<128xf32> to vector<128x1xf32>
    %cst_85 = arith.constant 1.280000e+02 : f32
    %257 = vector.broadcast %cst_85 : f32 to vector<128x1xf32>
    %258 = arith.divf %256, %257 : vector<128x1xf32>
    %259 = vector.broadcast %258 : vector<128x1xf32> to vector<128x128xf32>
    %260 = arith.subf %254, %259 : vector<128x128xf32>
    %261 = arith.mulf %260, %260 : vector<128x128xf32>
    %cst_86 = arith.constant dense<0.000000e+00> : vector<128xf32>
    %262 = vector.multi_reduction <add>, %261, %cst_86 [1] : vector<128x128xf32> to vector<128xf32>
    %263 = vector.shape_cast %262 : vector<128xf32> to vector<128x1xf32>
    %cst_87 = arith.constant 1.280000e+02 : f32
    %264 = vector.broadcast %cst_87 : f32 to vector<128x1xf32>
    %265 = arith.divf %263, %264 : vector<128x1xf32>
    %266 = vector.broadcast %258 : vector<128x1xf32> to vector<128x128xf32>
    %267 = arith.subf %254, %266 : vector<128x128xf32>
    %cst_88 = arith.constant 9.99999974E-6 : f32
    %268 = vector.broadcast %cst_88 : f32 to vector<128x1xf32>
    %269 = arith.addf %265, %268 : vector<128x1xf32>
    %270 = math.rsqrt %269 : vector<128x1xf32>
    %271 = vector.broadcast %270 : vector<128x1xf32> to vector<128x128xf32>
    %272 = arith.mulf %267, %271 : vector<128x128xf32>
    %c0_89 = arith.constant 0 : index
    %c0_90 = arith.constant 0 : index
    %273 = vector.load %arg7[%c0_89, %c0_90] : memref<1x128xf32, #tpu.memory_space<vmem>>, vector<1x128xf32>
    %274 = vector.shape_cast %273 : vector<1x128xf32> to vector<128xf32>
    %275 = vector.shape_cast %274 : vector<128xf32> to vector<1x128xf32>
    %276 = vector.broadcast %275 : vector<1x128xf32> to vector<128x128xf32>
    %277 = arith.mulf %272, %276 : vector<128x128xf32>
    %c0_91 = arith.constant 0 : index
    %c0_92 = arith.constant 0 : index
    %278 = vector.load %arg8[%c0_91, %c0_92] : memref<1x128xf32, #tpu.memory_space<vmem>>, vector<1x128xf32>
    %279 = vector.shape_cast %278 : vector<1x128xf32> to vector<128xf32>
    %280 = vector.shape_cast %279 : vector<128xf32> to vector<1x128xf32>
    %281 = vector.broadcast %280 : vector<1x128xf32> to vector<128x128xf32>
    %282 = arith.addf %277, %281 : vector<128x128xf32>
    %283 = arith.truncf %282 : vector<128x128xf32> to vector<128x128xbf16>
    %c0_93 = arith.constant 0 : index
    %c0_94 = arith.constant 0 : index
    %284 = vector.load %arg9[%c0_93, %c0_94] : memref<128x128xbf16, #tpu.memory_space<vmem>>, vector<128x128xbf16>
    %cst_95 = arith.constant dense<0.000000e+00> : vector<128x128xf32>
    %285 = tpu.matmul %283, %284, %cst_95 {dimension_numbers = #tpu.dot_dimension_numbers<[1], [0], [0], [1], [0, 0, 1, 1], [], []>} : vector<128x128xbf16>, vector<128x128xbf16>, vector<128x128xf32> -> vector<128x128xf32>
    %c0_96 = arith.constant 0 : index
    %c0_97 = arith.constant 0 : index
    %286 = vector.load %arg10[%c0_96, %c0_97] : memref<1x128xf32, #tpu.memory_space<vmem>>, vector<1x128xf32>
    %287 = vector.shape_cast %286 : vector<1x128xf32> to vector<128xf32>
    %288 = vector.shape_cast %287 : vector<128xf32> to vector<1x128xf32>
    %289 = vector.broadcast %288 : vector<1x128xf32> to vector<128x128xf32>
    %290 = arith.addf %285, %289 : vector<128x128xf32>
    %cst_98 = arith.constant 5.000000e-01 : f32
    %291 = vector.broadcast %cst_98 : f32 to vector<128x128xf32>
    %292 = arith.mulf %291, %290 : vector<128x128xf32>
    %cst_99 = arith.constant 0.707106769 : f32
    %293 = vector.broadcast %cst_99 : f32 to vector<128x128xf32>
    %294 = arith.mulf %290, %293 : vector<128x128xf32>
    %295 = math.erf %294 : vector<128x128xf32>
    %cst_100 = arith.constant 1.000000e+00 : f32
    %296 = vector.broadcast %cst_100 : f32 to vector<128x128xf32>
    %297 = arith.addf %296, %295 : vector<128x128xf32>
    %298 = arith.mulf %292, %297 : vector<128x128xf32>
    %299 = arith.truncf %298 : vector<128x128xf32> to vector<128x128xbf16>
    %c0_101 = arith.constant 0 : index
    %c0_102 = arith.constant 0 : index
    %300 = vector.load %arg11[%c0_101, %c0_102] : memref<128x128xbf16, #tpu.memory_space<vmem>>, vector<128x128xbf16>
    %cst_103 = arith.constant dense<0.000000e+00> : vector<128x128xf32>
    %301 = tpu.matmul %299, %300, %cst_103 {dimension_numbers = #tpu.dot_dimension_numbers<[1], [0], [0], [1], [0, 0, 1, 1], [], []>} : vector<128x128xbf16>, vector<128x128xbf16>, vector<128x128xf32> -> vector<128x128xf32>
    %c0_104 = arith.constant 0 : index
    %c0_105 = arith.constant 0 : index
    %302 = vector.load %arg12[%c0_104, %c0_105] : memref<1x128xf32, #tpu.memory_space<vmem>>, vector<1x128xf32>
    %303 = vector.shape_cast %302 : vector<1x128xf32> to vector<128xf32>
    %304 = vector.shape_cast %303 : vector<128xf32> to vector<1x128xf32>
    %305 = vector.broadcast %304 : vector<1x128xf32> to vector<128x128xf32>
    %306 = arith.addf %301, %305 : vector<128x128xf32>
    %307 = arith.addf %254, %306 : vector<128x128xf32>
    %c0_106 = arith.constant 0 : index
    %c128 = arith.constant 128 : index
    %c0_107 = arith.constant 0 : index
    %308 = vector.load %arg13[%c0_106, %c128, %c0_107] : memref<1x324x128xf32, #tpu.memory_space<vmem>>, vector<1x128x128xf32>
    %309 = vector.shape_cast %308 : vector<1x128x128xf32> to vector<128x128xf32>
    %310 = vector.shape_cast %307 : vector<128x128xf32> to vector<1x128x128xf32>
    tpu.vector_store %arg13[%c0_106, %c128, %c0_107], %310 {strides = array<i32>} : memref<1x324x128xf32, #tpu.memory_space<vmem>>, vector<1x128x128xf32>,
    %311 = vector.extract_strided_slice %42 {offsets = [256, 0], sizes = [68, 128], strides = [1, 1]} : vector<324x128xbf16> to vector<68x128xbf16>
    %cst_108 = arith.constant 0xFF800000 : f32
    %312 = vector.broadcast %cst_108 : f32 to vector<68x1xf32>
    %cst_109 = arith.constant 0.000000e+00 : f32
    %313 = vector.broadcast %cst_109 : f32 to vector<68x1xf32>
    %cst_110 = arith.constant 0.000000e+00 : f32
    %314 = vector.broadcast %cst_110 : f32 to vector<68x128xf32>
    %315 = vector.extract_strided_slice %44 {offsets = [0, 0], sizes = [128, 128], strides = [1, 1]} : vector<324x128xbf16> to vector<128x128xbf16>
    %cst_111 = arith.constant dense<0.000000e+00> : vector<68x128xf32>
    %316 = tpu.matmul %311, %315, %cst_111 {dimension_numbers = #tpu.dot_dimension_numbers<[1], [1], [0], [0], [0, 0, 1, 0], [], []>} : vector<68x128xbf16>, vector<128x128xbf16>, vector<68x128xf32> -> vector<68x128xf32>
    %cst_112 = arith.constant dense<0xFF800000> : vector<68xf32>
    %317 = vector.multi_reduction <maximumf>, %316, %cst_112 [1] : vector<68x128xf32> to vector<68xf32>
    %318 = vector.shape_cast %317 : vector<68xf32> to vector<68x1xf32>
    %319 = arith.maximumf %312, %318 : vector<68x1xf32>
    %320 = arith.subf %312, %319 : vector<68x1xf32>
    %321 = math.exp %320 : vector<68x1xf32>
    %322 = vector.broadcast %319 : vector<68x1xf32> to vector<68x128xf32>
    %323 = arith.subf %316, %322 : vector<68x128xf32>
    %324 = math.exp %323 : vector<68x128xf32>
    %325 = arith.mulf %321, %313 : vector<68x1xf32>
    %cst_113 = arith.constant dense<0.000000e+00> : vector<68xf32>
    %326 = vector.multi_reduction <add>, %324, %cst_113 [1] : vector<68x128xf32> to vector<68xf32>
    %327 = vector.shape_cast %326 : vector<68xf32> to vector<68x1xf32>
    %328 = arith.addf %325, %327 : vector<68x1xf32>
    %329 = vector.broadcast %321 : vector<68x1xf32> to vector<68x128xf32>
    %330 = arith.mulf %329, %314 : vector<68x128xf32>
    %331 = arith.truncf %324 : vector<68x128xf32> to vector<68x128xbf16>
    %332 = vector.extract_strided_slice %46 {offsets = [0, 0], sizes = [128, 128], strides = [1, 1]} : vector<324x128xbf16> to vector<128x128xbf16>
    %cst_114 = arith.constant dense<0.000000e+00> : vector<68x128xf32>
    %333 = tpu.matmul %331, %332, %cst_114 {dimension_numbers = #tpu.dot_dimension_numbers<[1], [0], [0], [1], [0, 0, 1, 1], [], []>} : vector<68x128xbf16>, vector<128x128xbf16>, vector<68x128xf32> -> vector<68x128xf32>
    %334 = arith.addf %330, %333 : vector<68x128xf32>
    %335 = vector.extract_strided_slice %44 {offsets = [128, 0], sizes = [128, 128], strides = [1, 1]} : vector<324x128xbf16> to vector<128x128xbf16>
    %cst_115 = arith.constant dense<0.000000e+00> : vector<68x128xf32>
    %336 = tpu.matmul %311, %335, %cst_115 {dimension_numbers = #tpu.dot_dimension_numbers<[1], [1], [0], [0], [0, 0, 1, 0], [], []>} : vector<68x128xbf16>, vector<128x128xbf16>, vector<68x128xf32> -> vector<68x128xf32>
    %cst_116 = arith.constant dense<0xFF800000> : vector<68xf32>
    %337 = vector.multi_reduction <maximumf>, %336, %cst_116 [1] : vector<68x128xf32> to vector<68xf32>
    %338 = vector.shape_cast %337 : vector<68xf32> to vector<68x1xf32>
    %339 = arith.maximumf %319, %338 : vector<68x1xf32>
    %340 = arith.subf %319, %339 : vector<68x1xf32>
    %341 = math.exp %340 : vector<68x1xf32>
    %342 = vector.broadcast %339 : vector<68x1xf32> to vector<68x128xf32>
    %343 = arith.subf %336, %342 : vector<68x128xf32>
    %344 = math.exp %343 : vector<68x128xf32>
    %345 = arith.mulf %341, %328 : vector<68x1xf32>
    %cst_117 = arith.constant dense<0.000000e+00> : vector<68xf32>
    %346 = vector.multi_reduction <add>, %344, %cst_117 [1] : vector<68x128xf32> to vector<68xf32>
    %347 = vector.shape_cast %346 : vector<68xf32> to vector<68x1xf32>
    %348 = arith.addf %345, %347 : vector<68x1xf32>
    %349 = vector.broadcast %341 : vector<68x1xf32> to vector<68x128xf32>
    %350 = arith.mulf %349, %334 : vector<68x128xf32>
    %351 = arith.truncf %344 : vector<68x128xf32> to vector<68x128xbf16>
    %352 = vector.extract_strided_slice %46 {offsets = [128, 0], sizes = [128, 128], strides = [1, 1]} : vector<324x128xbf16> to vector<128x128xbf16>
    %cst_118 = arith.constant dense<0.000000e+00> : vector<68x128xf32>
    %353 = tpu.matmul %351, %352, %cst_118 {dimension_numbers = #tpu.dot_dimension_numbers<[1], [0], [0], [1], [0, 0, 1, 1], [], []>} : vector<68x128xbf16>, vector<128x128xbf16>, vector<68x128xf32> -> vector<68x128xf32>
    %354 = arith.addf %350, %353 : vector<68x128xf32>
    %355 = vector.extract_strided_slice %44 {offsets = [256, 0], sizes = [68, 128], strides = [1, 1]} : vector<324x128xbf16> to vector<68x128xbf16>
    %cst_119 = arith.constant dense<0.000000e+00> : vector<68x68xf32>
    %356 = tpu.matmul %311, %355, %cst_119 {dimension_numbers = #tpu.dot_dimension_numbers<[1], [1], [0], [0], [0, 0, 1, 0], [], []>} : vector<68x128xbf16>, vector<68x128xbf16>, vector<68x68xf32> -> vector<68x68xf32>
    %cst_120 = arith.constant dense<0xFF800000> : vector<68xf32>
    %357 = vector.multi_reduction <maximumf>, %356, %cst_120 [1] : vector<68x68xf32> to vector<68xf32>
    %358 = vector.shape_cast %357 : vector<68xf32> to vector<68x1xf32>
    %359 = arith.maximumf %339, %358 : vector<68x1xf32>
    %360 = arith.subf %339, %359 : vector<68x1xf32>
    %361 = math.exp %360 : vector<68x1xf32>
    %362 = vector.broadcast %359 : vector<68x1xf32> to vector<68x68xf32>
    %363 = arith.subf %356, %362 : vector<68x68xf32>
    %364 = math.exp %363 : vector<68x68xf32>
    %365 = arith.mulf %361, %348 : vector<68x1xf32>
    %cst_121 = arith.constant dense<0.000000e+00> : vector<68xf32>
    %366 = vector.multi_reduction <add>, %364, %cst_121 [1] : vector<68x68xf32> to vector<68xf32>
    %367 = vector.shape_cast %366 : vector<68xf32> to vector<68x1xf32>
    %368 = arith.addf %365, %367 : vector<68x1xf32>
    %369 = vector.broadcast %361 : vector<68x1xf32> to vector<68x128xf32>
    %370 = arith.mulf %369, %354 : vector<68x128xf32>
    %371 = arith.truncf %364 : vector<68x68xf32> to vector<68x68xbf16>
    %372 = vector.extract_strided_slice %46 {offsets = [256, 0], sizes = [68, 128], strides = [1, 1]} : vector<324x128xbf16> to vector<68x128xbf16>
    %cst_122 = arith.constant dense<0.000000e+00> : vector<68x128xf32>
    %373 = tpu.matmul %371, %372, %cst_122 {dimension_numbers = #tpu.dot_dimension_numbers<[1], [0], [0], [1], [0, 0, 1, 1], [], []>} : vector<68x68xbf16>, vector<68x128xbf16>, vector<68x128xf32> -> vector<68x128xf32>
    %374 = arith.addf %370, %373 : vector<68x128xf32>
    %375 = vector.broadcast %368 : vector<68x1xf32> to vector<68x128xf32>
    %376 = arith.divf %374, %375 : vector<68x128xf32>
    %377 = arith.truncf %376 : vector<68x128xf32> to vector<68x128xbf16>
    %c0_123 = arith.constant 0 : index
    %c0_124 = arith.constant 0 : index
    %378 = vector.load %arg5[%c0_123, %c0_124] : memref<128x128xbf16, #tpu.memory_space<vmem>>, vector<128x128xbf16>
    %cst_125 = arith.constant dense<0.000000e+00> : vector<68x128xf32>
    %379 = tpu.matmul %377, %378, %cst_125 {dimension_numbers = #tpu.dot_dimension_numbers<[1], [0], [0], [1], [0, 0, 1, 1], [], []>} : vector<68x128xbf16>, vector<128x128xbf16>, vector<68x128xf32> -> vector<68x128xf32>
    %c0_126 = arith.constant 0 : index
    %c0_127 = arith.constant 0 : index
    %380 = vector.load %arg6[%c0_126, %c0_127] : memref<1x128xf32, #tpu.memory_space<vmem>>, vector<1x128xf32>
    %381 = vector.shape_cast %380 : vector<1x128xf32> to vector<128xf32>
    %382 = vector.shape_cast %381 : vector<128xf32> to vector<1x128xf32>
    %383 = vector.broadcast %382 : vector<1x128xf32> to vector<68x128xf32>
    %384 = arith.addf %379, %383 : vector<68x128xf32>
    %385 = vector.extract_strided_slice %45 {offsets = [256, 0], sizes = [68, 128], strides = [1, 1]} : vector<324x128xf32> to vector<68x128xf32>
    %386 = arith.addf %385, %384 : vector<68x128xf32>
    %cst_128 = arith.constant dense<0.000000e+00> : vector<68xf32>
    %387 = vector.multi_reduction <add>, %386, %cst_128 [1] : vector<68x128xf32> to vector<68xf32>
    %388 = vector.shape_cast %387 : vector<68xf32> to vector<68x1xf32>
    %cst_129 = arith.constant 1.280000e+02 : f32
    %389 = vector.broadcast %cst_129 : f32 to vector<68x1xf32>
    %390 = arith.divf %388, %389 : vector<68x1xf32>
    %391 = vector.broadcast %390 : vector<68x1xf32> to vector<68x128xf32>
    %392 = arith.subf %386, %391 : vector<68x128xf32>
    %393 = arith.mulf %392, %392 : vector<68x128xf32>
    %cst_130 = arith.constant dense<0.000000e+00> : vector<68xf32>
    %394 = vector.multi_reduction <add>, %393, %cst_130 [1] : vector<68x128xf32> to vector<68xf32>
    %395 = vector.shape_cast %394 : vector<68xf32> to vector<68x1xf32>
    %cst_131 = arith.constant 1.280000e+02 : f32
    %396 = vector.broadcast %cst_131 : f32 to vector<68x1xf32>
    %397 = arith.divf %395, %396 : vector<68x1xf32>
    %398 = vector.broadcast %390 : vector<68x1xf32> to vector<68x128xf32>
    %399 = arith.subf %386, %398 : vector<68x128xf32>
    %cst_132 = arith.constant 9.99999974E-6 : f32
    %400 = vector.broadcast %cst_132 : f32 to vector<68x1xf32>
    %401 = arith.addf %397, %400 : vector<68x1xf32>
    %402 = math.rsqrt %401 : vector<68x1xf32>
    %403 = vector.broadcast %402 : vector<68x1xf32> to vector<68x128xf32>
    %404 = arith.mulf %399, %403 : vector<68x128xf32>
    %c0_133 = arith.constant 0 : index
    %c0_134 = arith.constant 0 : index
    %405 = vector.load %arg7[%c0_133, %c0_134] : memref<1x128xf32, #tpu.memory_space<vmem>>, vector<1x128xf32>
    %406 = vector.shape_cast %405 : vector<1x128xf32> to vector<128xf32>
    %407 = vector.shape_cast %406 : vector<128xf32> to vector<1x128xf32>
    %408 = vector.broadcast %407 : vector<1x128xf32> to vector<68x128xf32>
    %409 = arith.mulf %404, %408 : vector<68x128xf32>
    %c0_135 = arith.constant 0 : index
    %c0_136 = arith.constant 0 : index
    %410 = vector.load %arg8[%c0_135, %c0_136] : memref<1x128xf32, #tpu.memory_space<vmem>>, vector<1x128xf32>
    %411 = vector.shape_cast %410 : vector<1x128xf32> to vector<128xf32>
    %412 = vector.shape_cast %411 : vector<128xf32> to vector<1x128xf32>
    %413 = vector.broadcast %412 : vector<1x128xf32> to vector<68x128xf32>
    %414 = arith.addf %409, %413 : vector<68x128xf32>
    %415 = arith.truncf %414 : vector<68x128xf32> to vector<68x128xbf16>
    %c0_137 = arith.constant 0 : index
    %c0_138 = arith.constant 0 : index
    %416 = vector.load %arg9[%c0_137, %c0_138] : memref<128x128xbf16, #tpu.memory_space<vmem>>, vector<128x128xbf16>
    %cst_139 = arith.constant dense<0.000000e+00> : vector<68x128xf32>
    %417 = tpu.matmul %415, %416, %cst_139 {dimension_numbers = #tpu.dot_dimension_numbers<[1], [0], [0], [1], [0, 0, 1, 1], [], []>} : vector<68x128xbf16>, vector<128x128xbf16>, vector<68x128xf32> -> vector<68x128xf32>
    %c0_140 = arith.constant 0 : index
    %c0_141 = arith.constant 0 : index
    %418 = vector.load %arg10[%c0_140, %c0_141] : memref<1x128xf32, #tpu.memory_space<vmem>>, vector<1x128xf32>
    %419 = vector.shape_cast %418 : vector<1x128xf32> to vector<128xf32>
    %420 = vector.shape_cast %419 : vector<128xf32> to vector<1x128xf32>
    %421 = vector.broadcast %420 : vector<1x128xf32> to vector<68x128xf32>
    %422 = arith.addf %417, %421 : vector<68x128xf32>
    %cst_142 = arith.constant 5.000000e-01 : f32
    %423 = vector.broadcast %cst_142 : f32 to vector<68x128xf32>
    %424 = arith.mulf %423, %422 : vector<68x128xf32>
    %cst_143 = arith.constant 0.707106769 : f32
    %425 = vector.broadcast %cst_143 : f32 to vector<68x128xf32>
    %426 = arith.mulf %422, %425 : vector<68x128xf32>
    %427 = math.erf %426 : vector<68x128xf32>
    %cst_144 = arith.constant 1.000000e+00 : f32
    %428 = vector.broadcast %cst_144 : f32 to vector<68x128xf32>
    %429 = arith.addf %428, %427 : vector<68x128xf32>
    %430 = arith.mulf %424, %429 : vector<68x128xf32>
    %431 = arith.truncf %430 : vector<68x128xf32> to vector<68x128xbf16>
    %c0_145 = arith.constant 0 : index
    %c0_146 = arith.constant 0 : index
    %432 = vector.load %arg11[%c0_145, %c0_146] : memref<128x128xbf16, #tpu.memory_space<vmem>>, vector<128x128xbf16>
    %cst_147 = arith.constant dense<0.000000e+00> : vector<68x128xf32>
    %433 = tpu.matmul %431, %432, %cst_147 {dimension_numbers = #tpu.dot_dimension_numbers<[1], [0], [0], [1], [0, 0, 1, 1], [], []>} : vector<68x128xbf16>, vector<128x128xbf16>, vector<68x128xf32> -> vector<68x128xf32>
    %c0_148 = arith.constant 0 : index
    %c0_149 = arith.constant 0 : index
    %434 = vector.load %arg12[%c0_148, %c0_149] : memref<1x128xf32, #tpu.memory_space<vmem>>, vector<1x128xf32>
    %435 = vector.shape_cast %434 : vector<1x128xf32> to vector<128xf32>
    %436 = vector.shape_cast %435 : vector<128xf32> to vector<1x128xf32>
    %437 = vector.broadcast %436 : vector<1x128xf32> to vector<68x128xf32>
    %438 = arith.addf %433, %437 : vector<68x128xf32>
    %439 = arith.addf %386, %438 : vector<68x128xf32>
    %c0_150 = arith.constant 0 : index
    %c256 = arith.constant 256 : index
    %c0_151 = arith.constant 0 : index
    %440 = vector.load %arg13[%c0_150, %c256, %c0_151] : memref<1x324x128xf32, #tpu.memory_space<vmem>>, vector<1x68x128xf32>
    %441 = vector.shape_cast %440 : vector<1x68x128xf32> to vector<68x128xf32>
    %442 = vector.shape_cast %439 : vector<68x128xf32> to vector<1x68x128xf32>
    tpu.vector_store %arg13[%c0_150, %c256, %c0_151], %442 {strides = array<i32>} : memref<1x324x128xf32, #tpu.memory_space<vmem>>, vector<1x68x128xf32>,
    return
  }
  func.func @transform_0(%arg0: i32) -> (i32, i32, i32) {
    %c0_i32 = arith.constant 0 : i32
    %c0_i32_0 = arith.constant 0 : i32
    %c0_i32_1 = arith.constant 0 : i32
    return %arg0, %c0_i32, %c0_i32_0 : i32, i32, i32
  }
  func.func @transform_1(%arg0: i32) -> (i32, i32) {
    %c0_i32 = arith.constant 0 : i32
    %c0_i32_0 = arith.constant 0 : i32
    %c0_i32_1 = arith.constant 0 : i32
    return %c0_i32, %c0_i32_0 : i32, i32
  }
  func.func @transform_2(%arg0: i32) -> (i32, i32) {
    %c0_i32 = arith.constant 0 : i32
    %c0_i32_0 = arith.constant 0 : i32
    %c0_i32_1 = arith.constant 0 : i32
    return %c0_i32, %c0_i32_0 : i32, i32
  }
  func.func @transform_3(%arg0: i32) -> (i32, i32) {
    %c0_i32 = arith.constant 0 : i32
    %c0_i32_0 = arith.constant 0 : i32
    %c0_i32_1 = arith.constant 0 : i32
    return %c0_i32, %c0_i32_0 : i32, i32
  }
  func.func @transform_4(%arg0: i32) -> (i32, i32) {
    %c0_i32 = arith.constant 0 : i32
    %c0_i32_0 = arith.constant 0 : i32
    %c0_i32_1 = arith.constant 0 : i32
    return %c0_i32, %c0_i32_0 : i32, i32
  }
  func.func @transform_5(%arg0: i32) -> (i32, i32) {
    %c0_i32 = arith.constant 0 : i32
    %c0_i32_0 = arith.constant 0 : i32
    %c0_i32_1 = arith.constant 0 : i32
    return %c0_i32, %c0_i32_0 : i32, i32
  }
  func.func @transform_6(%arg0: i32) -> (i32, i32) {
    %c0_i32 = arith.constant 0 : i32
    %c0_i32_0 = arith.constant 0 : i32
    %c0_i32_1 = arith.constant 0 : i32
    return %c0_i32, %c0_i32_0 : i32, i32
  }
  func.func @transform_7(%arg0: i32) -> (i32, i32) {
    %c0_i32 = arith.constant 0 : i32
    %c0_i32_0 = arith.constant 0 : i32
    %c0_i32_1 = arith.constant 0 : i32
    return %c0_i32, %c0_i32_0 : i32, i32
  }
  func.func @transform_8(%arg0: i32) -> (i32, i32) {
    %c0_i32 = arith.constant 0 : i32
    %c0_i32_0 = arith.constant 0 : i32
    %c0_i32_1 = arith.constant 0 : i32
    return %c0_i32, %c0_i32_0 : i32, i32
  }
  func.func @transform_9(%arg0: i32) -> (i32, i32) {
    %c0_i32 = arith.constant 0 : i32
    %c0_i32_0 = arith.constant 0 : i32
    %c0_i32_1 = arith.constant 0 : i32
    return %c0_i32, %c0_i32_0 : i32, i32
  }
  func.func @transform_10(%arg0: i32) -> (i32, i32) {
    %c0_i32 = arith.constant 0 : i32
    %c0_i32_0 = arith.constant 0 : i32
    %c0_i32_1 = arith.constant 0 : i32
    return %c0_i32, %c0_i32_0 : i32, i32
  }
  func.func @transform_11(%arg0: i32) -> (i32, i32) {
    %c0_i32 = arith.constant 0 : i32
    %c0_i32_0 = arith.constant 0 : i32
    %c0_i32_1 = arith.constant 0 : i32
    return %c0_i32, %c0_i32_0 : i32, i32
  }
  func.func @transform_12(%arg0: i32) -> (i32, i32, i32) {
    %c0_i32 = arith.constant 0 : i32
    %c0_i32_0 = arith.constant 0 : i32
    %c0_i32_1 = arith.constant 0 : i32
    return %arg0, %c0_i32, %c0_i32_0 : i32, i32, i32
  }
}

</mosaic_0001>

<llo_original>
// kernel: aspp_block_forward.1
$region0: #{aspp_block_forward.1}
  #allocation0 [shape = 'u32[]', space=smem, size = 0x4, offset = 0x4, fixed_abs, tag = 'smem constant byte address 0x4 - core index']
  #allocation1 [shape = 'u32[144,128]{1,0:T(1,128)}', space=vmem, size = 0x12000, scoped, tag = 'internal scratch']
  #allocation2 [shape = 'f32[324,36]{1,0:T(8,128)}', space=vmem, size = 0x29000, scoped, tag = 'scratch operand']
  %s0 = inlined_call_operand.vmem [shape: f32[2,16,384], index: 0, kind: input, shape index: {}]
  %s1 = inlined_call_operand.vmem [shape: f32[1,36], index: 1, kind: input, shape index: {}]
  %s2 = inlined_call_operand.vmem [shape: f32[1,36], index: 2, kind: input, shape index: {}]
  %s3 = inlined_call_operand.vmem [shape: bf16[36,384], index: 3, kind: input, shape index: {}]
  %s4 = inlined_call_operand.vmem [shape: bf16[128,128], index: 4, kind: input, shape index: {}]
  %s5 = inlined_call_operand.vmem [shape: f32[1,128], index: 5, kind: input, shape index: {}]
  %s6 = inlined_call_operand.vmem [shape: f32[1,128], index: 6, kind: input, shape index: {}]
  %s7 = inlined_call_operand.vmem [shape: f32[1,128], index: 7, kind: input, shape index: {}]
  %s8 = inlined_call_operand.vmem [shape: bf16[128,128], index: 8, kind: input, shape index: {}]
  %s9 = inlined_call_operand.vmem [shape: f32[1,128], index: 9, kind: input, shape index: {}]
  %s10 = inlined_call_operand.vmem [shape: bf16[128,128], index: 10, kind: input, shape index: {}]
  %s11 = inlined_call_operand.vmem [shape: f32[1,128], index: 11, kind: input, shape index: {}]
  %s12 = inlined_call_operand.vmem [shape: f32[2,324,128], index: 12, kind: output, shape index: {}]
  %s13 = sld [smem:[#allocation0]]
  $region81: #{aspp_block_forward.1} parent=0
    _
  %s15 = ssub.s32 1, %s13
  %s16 = scalar_select 0, %s15, %s13
  loop: start=0, step=1, limit=4
  $region2: #{aspp_block_forward.1} parent=0 // loop_pre_header
    _
  $region3: #{aspp_block_forward.1} parent=0 // loop_header
    %s18 = sphi 0, %s22
    %p19 = scmp.ge.s32.totalorder %s18, 4
    %s28 = sphi 0, %s30
    %s31 = sphi 0, %s28
    %s32 = sphi 0, %s31
    %s48 = sphi 0, %s32
    %s52 = sphi 0, %s52
    %s54 = sphi 0, %s52
    %s55 = sphi 0, %s54
    %s69 = sphi 0, %s55
    %s73 = sphi 0, %s73
    %s75 = sphi 0, %s73
    %s76 = sphi 0, %s75
    %s90 = sphi 0, %s76
    %s94 = sphi 0, %s94
    %s96 = sphi 0, %s94
    %s97 = sphi 0, %s96
    %s111 = sphi 0, %s97
    %s115 = sphi 0, %s115
    %s117 = sphi 0, %s115
    %s118 = sphi 0, %s117
    %s132 = sphi 0, %s118
    %s136 = sphi 0, %s136
    %s138 = sphi 0, %s136
    %s139 = sphi 0, %s138
    %s153 = sphi 0, %s139
    %s157 = sphi 0, %s157
    %s159 = sphi 0, %s157
    %s160 = sphi 0, %s159
    %s174 = sphi 0, %s160
    %s178 = sphi 0, %s178
    %s180 = sphi 0, %s178
    %s181 = sphi 0, %s180
    %s195 = sphi 0, %s181
    %s199 = sphi 0, %s199
    %s201 = sphi 0, %s199
    %s202 = sphi 0, %s201
    %s216 = sphi 0, %s202
    %s220 = sphi 0, %s220
    %s222 = sphi 0, %s220
    %s223 = sphi 0, %s222
    %s237 = sphi 0, %s223
    %s241 = sphi 0, %s241
    %s243 = sphi 0, %s241
    %s244 = sphi 0, %s243
    %s258 = sphi 0, %s244
    %s262 = sphi 0, %s262
    %s264 = sphi 0, %s262
    %s265 = sphi 0, %s264
    %s279 = sphi 0, %s265
    %s285 = sphi 0, %s287
    %s288 = sphi 0, %s285
    %s289 = sphi 0, %s288
    %s305 = sphi 0, %s289
  $region4: #{aspp_block_forward.1} parent=0 // loop_header_branch
    %21 = sbr.rel (%p19) target = $region8
  $region5: #{aspp_block_forward.1} parent=0 // loop_body
    %s23 = ssub.s32 %s18, 1
    %s24 = ssub.s32 %s18, 2
    %s25 = sadd.s32 %s18, 1
    %s26 = ssub.s32 %s18, %s25
    %p27 = scmp.eq.s32.totalorder %s26, 0
    %s29 = sadd.s32 %s28, 1
    %s30 = scalar_select %p27, %s28, %s29
    %p33 = pneg %p27
    %p34 = scmp.eq.s32.totalorder %s18, 1
    %p35 = por %p33, %p34
    %p36 = scmp.ne.s32.totalorder %s28, %s31
    %p37 = scmp.eq.s32.totalorder %s18, 0
    %p38 = por %p36, %p37
    %p39 = scmp.ne.s32.totalorder %s28, %s31
    %p40 = scmp.eq.s32.totalorder %s23, 1
    %p41 = por %p39, %p40
    %p42 = scmp.ne.s32.totalorder %s31, %s32
    %p43 = scmp.eq.s32.totalorder %s23, 0
    %p44 = por %p42, %p43
    %p45 = scmp.ne.s32.totalorder %s31, %s32
    %p46 = scmp.eq.s32.totalorder %s24, 1
    %p47 = por %p45, %p46
    %p49 = scmp.ne.s32.totalorder %s32, %s48
    %p50 = scmp.eq.s32.totalorder %s24, 0
    %p51 = por %p49, %p50
    %s53 = sadd.s32 %s52, 1
    %p56 = scmp.eq.s32.totalorder %s18, 1
    %p57 = scmp.ne.s32.totalorder %s52, %s54
    %p58 = scmp.eq.s32.totalorder %s18, 0
    %p59 = por %p57, %p58
    %p60 = scmp.ne.s32.totalorder %s52, %s54
    %p61 = scmp.eq.s32.totalorder %s23, 1
    %p62 = por %p60, %p61
    %p63 = scmp.ne.s32.totalorder %s54, %s55
    %p64 = scmp.eq.s32.totalorder %s23, 0
    %p65 = por %p63, %p64
    %p66 = scmp.ne.s32.totalorder %s54, %s55
    %p67 = scmp.eq.s32.totalorder %s24, 1
    %p68 = por %p66, %p67
    %p70 = scmp.ne.s32.totalorder %s55, %s69
    %p71 = scmp.eq.s32.totalorder %s24, 0
    %p72 = por %p70, %p71
    %s74 = sadd.s32 %s73, 1
    %p77 = scmp.eq.s32.totalorder %s18, 1
    %p78 = scmp.ne.s32.totalorder %s73, %s75
    %p79 = scmp.eq.s32.totalorder %s18, 0
    %p80 = por %p78, %p79
    %p81 = scmp.ne.s32.totalorder %s73, %s75
    %p82 = scmp.eq.s32.totalorder %s23, 1
    %p83 = por %p81, %p82
    %p84 = scmp.ne.s32.totalorder %s75, %s76
    %p85 = scmp.eq.s32.totalorder %s23, 0
    %p86 = por %p84, %p85
    %p87 = scmp.ne.s32.totalorder %s75, %s76
    %p88 = scmp.eq.s32.totalorder %s24, 1
    %p89 = por %p87, %p88
    %p91 = scmp.ne.s32.totalorder %s76, %s90
    %p92 = scmp.eq.s32.totalorder %s24, 0
    %p93 = por %p91, %p92
    %s95 = sadd.s32 %s94, 1
    %p98 = scmp.eq.s32.totalorder %s18, 1
    %p99 = scmp.ne.s32.totalorder %s94, %s96
    %p100 = scmp.eq.s32.totalorder %s18, 0
    %p101 = por %p99, %p100
    %p102 = scmp.ne.s32.totalorder %s94, %s96
    %p103 = scmp.eq.s32.totalorder %s23, 1
    %p104 = por %p102, %p103
    %p105 = scmp.ne.s32.totalorder %s96, %s97
    %p106 = scmp.eq.s32.totalorder %s23, 0
    %p107 = por %p105, %p106
    %p108 = scmp.ne.s32.totalorder %s96, %s97
    %p109 = scmp.eq.s32.totalorder %s24, 1
    %p110 = por %p108, %p109
    %p112 = scmp.ne.s32.totalorder %s97, %s111
    %p113 = scmp.eq.s32.totalorder %s24, 0
    %p114 = por %p112, %p113
    %s116 = sadd.s32 %s115, 1
    %p119 = scmp.eq.s32.totalorder %s18, 1
    %p120 = scmp.ne.s32.totalorder %s115, %s117
    %p121 = scmp.eq.s32.totalorder %s18, 0
    %p122 = por %p120, %p121
    %p123 = scmp.ne.s32.totalorder %s115, %s117
    %p124 = scmp.eq.s32.totalorder %s23, 1
    %p125 = por %p123, %p124
    %p126 = scmp.ne.s32.totalorder %s117, %s118
    %p127 = scmp.eq.s32.totalorder %s23, 0
    %p128 = por %p126, %p127
    %p129 = scmp.ne.s32.totalorder %s117, %s118
    %p130 = scmp.eq.s32.totalorder %s24, 1
    %p131 = por %p129, %p130
    %p133 = scmp.ne.s32.totalorder %s118, %s132
    %p134 = scmp.eq.s32.totalorder %s24, 0
    %p135 = por %p133, %p134
    %s137 = sadd.s32 %s136, 1
    %p140 = scmp.eq.s32.totalorder %s18, 1
    %p141 = scmp.ne.s32.totalorder %s136, %s138
    %p142 = scmp.eq.s32.totalorder %s18, 0
    %p143 = por %p141, %p142
    %p144 = scmp.ne.s32.totalorder %s136, %s138
    %p145 = scmp.eq.s32.totalorder %s23, 1
    %p146 = por %p144, %p145
    %p147 = scmp.ne.s32.totalorder %s138, %s139
    %p148 = scmp.eq.s32.totalorder %s23, 0
    %p149 = por %p147, %p148
    %p150 = scmp.ne.s32.totalorder %s138, %s139
    %p151 = scmp.eq.s32.totalorder %s24, 1
    %p152 = por %p150, %p151
    %p154 = scmp.ne.s32.totalorder %s139, %s153
    %p155 = scmp.eq.s32.totalorder %s24, 0
    %p156 = por %p154, %p155
    %s158 = sadd.s32 %s157, 1
    %p161 = scmp.eq.s32.totalorder %s18, 1
    %p162 = scmp.ne.s32.totalorder %s157, %s159
    %p163 = scmp.eq.s32.totalorder %s18, 0
    %p164 = por %p162, %p163
    %p165 = scmp.ne.s32.totalorder %s157, %s159
    %p166 = scmp.eq.s32.totalorder %s23, 1
    %p167 = por %p165, %p166
    %p168 = scmp.ne.s32.totalorder %s159, %s160
    %p169 = scmp.eq.s32.totalorder %s23, 0
    %p170 = por %p168, %p169
    %p171 = scmp.ne.s32.totalorder %s159, %s160
    %p172 = scmp.eq.s32.totalorder %s24, 1
    %p173 = por %p171, %p172
    %p175 = scmp.ne.s32.totalorder %s160, %s174
    %p176 = scmp.eq.s32.totalorder %s24, 0
    %p177 = por %p175, %p176
    %s179 = sadd.s32 %s178, 1
    %p182 = scmp.eq.s32.totalorder %s18, 1
    %p183 = scmp.ne.s32.totalorder %s178, %s180
    %p184 = scmp.eq.s32.totalorder %s18, 0
    %p185 = por %p183, %p184
    %p186 = scmp.ne.s32.totalorder %s178, %s180
    %p187 = scmp.eq.s32.totalorder %s23, 1
    %p188 = por %p186, %p187
    %p189 = scmp.ne.s32.totalorder %s180, %s181
    %p190 = scmp.eq.s32.totalorder %s23, 0
    %p191 = por %p189, %p190
    %p192 = scmp.ne.s32.totalorder %s180, %s181
    %p193 = scmp.eq.s32.totalorder %s24, 1
    %p194 = por %p192, %p193
    %p196 = scmp.ne.s32.totalorder %s181, %s195
    %p197 = scmp.eq.s32.totalorder %s24, 0
    %p198 = por %p196, %p197
    %s200 = sadd.s32 %s199, 1
    %p203 = scmp.eq.s32.totalorder %s18, 1
    %p204 = scmp.ne.s32.totalorder %s199, %s201
    %p205 = scmp.eq.s32.totalorder %s18, 0
    %p206 = por %p204, %p205
    %p207 = scmp.ne.s32.totalorder %s199, %s201
    %p208 = scmp.eq.s32.totalorder %s23, 1
    %p209 = por %p207, %p208
    %p210 = scmp.ne.s32.totalorder %s201, %s202
    %p211 = scmp.eq.s32.totalorder %s23, 0
    %p212 = por %p210, %p211
    %p213 = scmp.ne.s32.totalorder %s201, %s202
    %p214 = scmp.eq.s32.totalorder %s24, 1
    %p215 = por %p213, %p214
    %p217 = scmp.ne.s32.totalorder %s202, %s216
    %p218 = scmp.eq.s32.totalorder %s24, 0
    %p219 = por %p217, %p218
    %s221 = sadd.s32 %s220, 1
    %p224 = scmp.eq.s32.totalorder %s18, 1
    %p225 = scmp.ne.s32.totalorder %s220, %s222
    %p226 = scmp.eq.s32.totalorder %s18, 0
    %p227 = por %p225, %p226
    %p228 = scmp.ne.s32.totalorder %s220, %s222
    %p229 = scmp.eq.s32.totalorder %s23, 1
    %p230 = por %p228, %p229
    %p231 = scmp.ne.s32.totalorder %s222, %s223
    %p232 = scmp.eq.s32.totalorder %s23, 0
    %p233 = por %p231, %p232
    %p234 = scmp.ne.s32.totalorder %s222, %s223
    %p235 = scmp.eq.s32.totalorder %s24, 1
    %p236 = por %p234, %p235
    %p238 = scmp.ne.s32.totalorder %s223, %s237
    %p239 = scmp.eq.s32.totalorder %s24, 0
    %p240 = por %p238, %p239
    %s242 = sadd.s32 %s241, 1
    %p245 = scmp.eq.s32.totalorder %s18, 1
    %p246 = scmp.ne.s32.totalorder %s241, %s243
    %p247 = scmp.eq.s32.totalorder %s18, 0
    %p248 = por %p246, %p247
    %p249 = scmp.ne.s32.totalorder %s241, %s243
    %p250 = scmp.eq.s32.totalorder %s23, 1
    %p251 = por %p249, %p250
    %p252 = scmp.ne.s32.totalorder %s243, %s244
    %p253 = scmp.eq.s32.totalorder %s23, 0
    %p254 = por %p252, %p253
    %p255 = scmp.ne.s32.totalorder %s243, %s244
    %p256 = scmp.eq.s32.totalorder %s24, 1
    %p257 = por %p255, %p256
    %p259 = scmp.ne.s32.totalorder %s244, %s258
    %p260 = scmp.eq.s32.totalorder %s24, 0
    %p261 = por %p259, %p260
    %s263 = sadd.s32 %s262, 1
    %p266 = scmp.eq.s32.totalorder %s18, 1
    %p267 = scmp.ne.s32.totalorder %s262, %s264
    %p268 = scmp.eq.s32.totalorder %s18, 0
    %p269 = por %p267, %p268
    %p270 = scmp.ne.s32.totalorder %s262, %s264
    %p271 = scmp.eq.s32.totalorder %s23, 1
    %p272 = por %p270, %p271
    %p273 = scmp.ne.s32.totalorder %s264, %s265
    %p274 = scmp.eq.s32.totalorder %s23, 0
    %p275 = por %p273, %p274
    %p276 = scmp.ne.s32.totalorder %s264, %s265
    %p277 = scmp.eq.s32.totalorder %s24, 1
    %p278 = por %p276, %p277
    %p280 = scmp.ne.s32.totalorder %s265, %s279
    %p281 = scmp.eq.s32.totalorder %s24, 0
    %p282 = por %p280, %p281
    %s283 = ssub.s32 %s18, %s25
    %p284 = scmp.eq.s32.totalorder %s283, 0
    %s286 = sadd.s32 %s285, 1
    %s287 = scalar_select %p284, %s285, %s286
    %p290 = pneg %p284
    %p291 = scmp.eq.s32.totalorder %s18, 1
    %p292 = por %p290, %p291
    %p293 = scmp.ne.s32.totalorder %s285, %s288
    %p294 = scmp.eq.s32.totalorder %s18, 0
    %p295 = por %p293, %p294
    %p296 = scmp.ne.s32.totalorder %s285, %s288
    %p297 = scmp.eq.s32.totalorder %s23, 1
    %p298 = por %p296, %p297
    %p299 = scmp.ne.s32.totalorder %s288, %s289
    %p300 = scmp.eq.s32.totalorder %s23, 0
    %p301 = por %p299, %p300
    %p302 = scmp.ne.s32.totalorder %s288, %s289
    %p303 = scmp.eq.s32.totalorder %s24, 1
    %p304 = por %p302, %p303
    %p306 = scmp.ne.s32.totalorder %s289, %s305
    %p307 = scmp.eq.s32.totalorder %s24, 0
    %p308 = por %p306, %p307
    %p309 = scmp.le.s32.totalorder 1, %s18
    %p310 = scmp.lt.s32.totalorder %s18, 3
    %p311 = pnand %p309, %p310
    %p312 = pneg %p311
    // Predicated region
    $region9: #{aspp_block_forward.1} parent=5 // pred_check
      _
    $region10: #{aspp_block_forward.1} parent=5 // pred_check_branch
      %314 = sbr.rel (%p311) target = $region12
    $region11: #{aspp_block_forward.1} parent=5 // pred_region
      %s315 = ssub.s32 %s18, 1
      // Predicated region
      $region13: #{aspp_block_forward.1} parent=11 // pred_check
        %p316 = pneg %p65
      $region14: #{aspp_block_forward.1} parent=11 // pred_check_branch
        %318 = sbr.rel (%p316) target = $region16
      $region15: #{aspp_block_forward.1} parent=11 // pred_region
        _
      $region16: #{aspp_block_forward.1} parent=11 // pred_fallthru
        _
      // Predicated region
      $region17: #{aspp_block_forward.1} parent=11 // pred_check
        %p319 = pneg %p86
      $region18: #{aspp_block_forward.1} parent=11 // pred_check_branch
        %321 = sbr.rel (%p319) target = $region20
      $region19: #{aspp_block_forward.1} parent=11 // pred_region
        _
      $region20: #{aspp_block_forward.1} parent=11 // pred_fallthru
        _
      // Predicated region
      $region21: #{aspp_block_forward.1} parent=11 // pred_check
        %p322 = pneg %p107
      $region22: #{aspp_block_forward.1} parent=11 // pred_check_branch
        %324 = sbr.rel (%p322) target = $region24
      $region23: #{aspp_block_forward.1} parent=11 // pred_region
        _
      $region24: #{aspp_block_forward.1} parent=11 // pred_fallthru
        _
      // Predicated region
      $region25: #{aspp_block_forward.1} parent=11 // pred_check
        %p325 = pneg %p128
      $region26: #{aspp_block_forward.1} parent=11 // pred_check_branch
        %327 = sbr.rel (%p325) target = $region28
      $region27: #{aspp_block_forward.1} parent=11 // pred_region
        _
      $region28: #{aspp_block_forward.1} parent=11 // pred_fallthru
        _
      // Predicated region
      $region29: #{aspp_block_forward.1} parent=11 // pred_check
        %p328 = pneg %p149
      $region30: #{aspp_block_forward.1} parent=11 // pred_check_branch
        %330 = sbr.rel (%p328) target = $region32
      $region31: #{aspp_block_forward.1} parent=11 // pred_region
        _
      $region32: #{aspp_block_forward.1} parent=11 // pred_fallthru
        _
      // Predicated region
      $region33: #{aspp_block_forward.1} parent=11 // pred_check
        %p331 = pneg %p170
      $region34: #{aspp_block_forward.1} parent=11 // pred_check_branch
        %333 = sbr.rel (%p331) target = $region36
      $region35: #{aspp_block_forward.1} parent=11 // pred_region
        _
      $region36: #{aspp_block_forward.1} parent=11 // pred_fallthru
        _
      // Predicated region
      $region37: #{aspp_block_forward.1} parent=11 // pred_check
        %p334 = pneg %p191
      $region38: #{aspp_block_forward.1} parent=11 // pred_check_branch
        %336 = sbr.rel (%p334) target = $region40
      $region39: #{aspp_block_forward.1} parent=11 // pred_region
        _
      $region40: #{aspp_block_forward.1} parent=11 // pred_fallthru
        _
      // Predicated region
      $region41: #{aspp_block_forward.1} parent=11 // pred_check
        %p337 = pneg %p212
      $region42: #{aspp_block_forward.1} parent=11 // pred_check_branch
        %339 = sbr.rel (%p337) target = $region44
      $region43: #{aspp_block_forward.1} parent=11 // pred_region
        _
      $region44: #{aspp_block_forward.1} parent=11 // pred_fallthru
        _
      // Predicated region
      $region45: #{aspp_block_forward.1} parent=11 // pred_check
        %p340 = pneg %p233
      $region46: #{aspp_block_forward.1} parent=11 // pred_check_branch
        %342 = sbr.rel (%p340) target = $region48
      $region47: #{aspp_block_forward.1} parent=11 // pred_region
        _
      $region48: #{aspp_block_forward.1} parent=11 // pred_fallthru
        _
      // Predicated region
      $region49: #{aspp_block_forward.1} parent=11 // pred_check
        %p343 = pneg %p254
      $region50: #{aspp_block_forward.1} parent=11 // pred_check_branch
        %345 = sbr.rel (%p343) target = $region52
      $region51: #{aspp_block_forward.1} parent=11 // pred_region
        _
      $region52: #{aspp_block_forward.1} parent=11 // pred_fallthru
        _
      // Predicated region
      $region53: #{aspp_block_forward.1} parent=11 // pred_check
        %p346 = pneg %p275
      $region54: #{aspp_block_forward.1} parent=11 // pred_check_branch
        %348 = sbr.rel (%p346) target = $region56
      $region55: #{aspp_block_forward.1} parent=11 // pred_region
        _
      $region56: #{aspp_block_forward.1} parent=11 // pred_fallthru
        _
    $region12: #{aspp_block_forward.1} parent=5 // pred_fallthru
      _
    %p349 = scmp.lt.s32.totalorder %s18, 2
    // Predicated region
    $region57: #{aspp_block_forward.1} parent=5 // pred_check
      %p350 = pneg %p349
    $region58: #{aspp_block_forward.1} parent=5 // pred_check_branch
      %352 = sbr.rel (%p350) target = $region60
    $region59: #{aspp_block_forward.1} parent=5 // pred_region
      // Predicated region
      $region61: #{aspp_block_forward.1} parent=59 // pred_check
        %p353 = pneg %p38
      $region62: #{aspp_block_forward.1} parent=59 // pred_check_branch
        %355 = sbr.rel (%p353) target = $region64
      $region63: #{aspp_block_forward.1} parent=59 // pred_region
        %p356 = scmp.lt.s32.totalorder %s18, 1
        %s357 = scalar_select %p356, %s18, 1
        %s358 = smul.addr %s357, 6
        %s359 = smul.addr %s358, 8
        %s360 = scalar_lea.vmem %s0, %s359
      $region64: #{aspp_block_forward.1} parent=59 // pred_fallthru
        _
    $region60: #{aspp_block_forward.1} parent=5 // pred_fallthru
      _
    %p361 = scmp.le.s32.totalorder 1, %s18
    %p362 = scmp.lt.s32.totalorder %s18, 3
    %p363 = pnand %p361, %p362
    %p364 = pneg %p363
    // Predicated region
    $region65: #{aspp_block_forward.1} parent=5 // pred_check
      _
    $region66: #{aspp_block_forward.1} parent=5 // pred_check_branch
      %366 = sbr.rel (%p363) target = $region68
    $region67: #{aspp_block_forward.1} parent=5 // pred_region
      %s367 = ssub.s32 %s18, 1
      %p368 = scmp.lt.s32.totalorder %s23, 1
      %s369 = scalar_select %p368, %s23, 1
      %s370 = smul.addr %s369, 6
      %s371 = smul.addr %s370, 8
      %s372 = scalar_lea.vmem %s0, %s371
      %p373 = pneg %p44
      %p374 = pneg %p41
      %p375 = pneg %p65
      %p376 = pneg %p62
      %p377 = pneg %p86
      %p378 = pneg %p83
      %p379 = pneg %p107
      %p380 = pneg %p104
      %p381 = pneg %p128
      %p382 = pneg %p125
      %p383 = pneg %p149
      %p384 = pneg %p146
      %p385 = pneg %p170
      %p386 = pneg %p167
      %p387 = pneg %p191
      %p388 = pneg %p188
      %p389 = pneg %p212
      %p390 = pneg %p209
      %p391 = pneg %p233
      %p392 = pneg %p230
      %p393 = pneg %p254
      %p394 = pneg %p251
      %p395 = pneg %p275
      %p396 = pneg %p272
      %p397 = pneg %p301
      %p398 = pneg %p298
      %p399 = scmp.lt.s32.totalorder %s23, 1
      %s400 = scalar_select %p399, %s23, 1
      %s401 = smul.addr %s400, 41
      %s402 = smul.addr %s401, 8
      %s403 = scalar_lea.vmem %s12, %s402
      %p404 = scmp.lt.s32.totalorder %s23, 1
      %s405 = scalar_select %p404, %s23, 1
      %s406 = smul.addr %s405, 6
      %s407 = smul.addr %s406, 8
      %s408 = scalar_lea.vmem %s0, %s407
      %p409 = scmp.lt.s32.totalorder %s23, 1
      %s410 = scalar_select %p409, %s23, 1
      %s411 = smul.addr %s410, 41
      %s412 = smul.addr %s411, 8
      %s413 = scalar_lea.vmem %s12, %s412
      %v415 = vld [vmem:[%s408] sm:$0xff]
      %v416 = vld [vmem:[%s408 + $0x8] sm:$0xff]
      %v417 = vld [vmem:[%s408 + $0x10] sm:$0xff]
      %v418 = vld [vmem:[%s408 + $0x18] sm:$0xff]
      %v419 = vld [vmem:[%s408 + $0x20] sm:$0xff]
      %v420 = vld [vmem:[%s408 + $0x28] sm:$0xff]
      %421 = vxpose.xlu0.b32.start [1/16] %v415, 128
      %422 = vxpose.xlu0.b32.cont [2/16] %v418, 128
      %423 = vxpose.xlu0.b32.cont [3/16] 0.0, 128
      %424 = vxpose.xlu0.b32.cont [4/16] 0.0, 128
      %425 = vxpose.xlu0.b32.cont [5/16] 0.0, 128
      %426 = vxpose.xlu0.b32.cont [6/16] 0.0, 128
      %427 = vxpose.xlu0.b32.cont [7/16] 0.0, 128
      %428 = vxpose.xlu0.b32.cont [8/16] 0.0, 128
      %429 = vxpose.xlu0.b32.cont [9/16] 0.0, 128
      %430 = vxpose.xlu0.b32.cont [10/16] 0.0, 128
      %431 = vxpose.xlu0.b32.cont [11/16] 0.0, 128
      %432 = vxpose.xlu0.b32.cont [12/16] 0.0, 128
      %433 = vxpose.xlu0.b32.cont [13/16] 0.0, 128
      %434 = vxpose.xlu0.b32.cont [14/16] 0.0, 128
      %435 = vxpose.xlu0.b32.cont [15/16] 0.0, 128
      %436 = vxpose.xlu0.b32.end [16/16] 0.0, 128
      %v437 = vpop.trf.xlu0
      %v438 = vpop.trf.xlu0
      %v439 = vpop.trf.xlu0
      %v440 = vpop.trf.xlu0
      %v441 = vpop.trf.xlu0
      %v442 = vpop.trf.xlu0
      %v443 = vpop.trf.xlu0
      %v444 = vpop.trf.xlu0
      %v445 = vpop.trf.xlu0
      %v446 = vpop.trf.xlu0
      %v447 = vpop.trf.xlu0
      %v448 = vpop.trf.xlu0
      %v449 = vpop.trf.xlu0
      %v450 = vpop.trf.xlu0
      %v451 = vpop.trf.xlu0
      %v452 = vpop.trf.xlu0
      %453 = vxpose.xlu0.b32.start [1/16] %v416, 128
      %454 = vxpose.xlu0.b32.cont [2/16] %v419, 128
      %455 = vxpose.xlu0.b32.cont [3/16] 0.0, 128
      %456 = vxpose.xlu0.b32.cont [4/16] 0.0, 128
      %457 = vxpose.xlu0.b32.cont [5/16] 0.0, 128
      %458 = vxpose.xlu0.b32.cont [6/16] 0.0, 128
      %459 = vxpose.xlu0.b32.cont [7/16] 0.0, 128
      %460 = vxpose.xlu0.b32.cont [8/16] 0.0, 128
      %461 = vxpose.xlu0.b32.cont [9/16] 0.0, 128
      %462 = vxpose.xlu0.b32.cont [10/16] 0.0, 128
      %463 = vxpose.xlu0.b32.cont [11/16] 0.0, 128
      %464 = vxpose.xlu0.b32.cont [12/16] 0.0, 128
      %465 = vxpose.xlu0.b32.cont [13/16] 0.0, 128
      %466 = vxpose.xlu0.b32.cont [14/16] 0.0, 128
      %467 = vxpose.xlu0.b32.cont [15/16] 0.0, 128
      %468 = vxpose.xlu0.b32.end [16/16] 0.0, 128
      %v469 = vpop.trf.xlu0
      %v470 = vpop.trf.xlu0
      %v471 = vpop.trf.xlu0
      %v472 = vpop.trf.xlu0
      %v473 = vpop.trf.xlu0
      %v474 = vpop.trf.xlu0
      %v475 = vpop.trf.xlu0
      %v476 = vpop.trf.xlu0
      %v477 = vpop.trf.xlu0
      %v478 = vpop.trf.xlu0
      %v479 = vpop.trf.xlu0
      %v480 = vpop.trf.xlu0
      %v481 = vpop.trf.xlu0
      %v482 = vpop.trf.xlu0
      %v483 = vpop.trf.xlu0
      %v484 = vpop.trf.xlu0
      %485 = vxpose.xlu0.b32.start [1/16] %v417, 128
      %486 = vxpose.xlu0.b32.cont [2/16] %v420, 128
      %487 = vxpose.xlu0.b32.cont [3/16] 0.0, 128
      %488 = vxpose.xlu0.b32.cont [4/16] 0.0, 128
      %489 = vxpose.xlu0.b32.cont [5/16] 0.0, 128
      %490 = vxpose.xlu0.b32.cont [6/16] 0.0, 128
      %491 = vxpose.xlu0.b32.cont [7/16] 0.0, 128
      %492 = vxpose.xlu0.b32.cont [8/16] 0.0, 128
      %493 = vxpose.xlu0.b32.cont [9/16] 0.0, 128
      %494 = vxpose.xlu0.b32.cont [10/16] 0.0, 128
      %495 = vxpose.xlu0.b32.cont [11/16] 0.0, 128
      %496 = vxpose.xlu0.b32.cont [12/16] 0.0, 128
      %497 = vxpose.xlu0.b32.cont [13/16] 0.0, 128
      %498 = vxpose.xlu0.b32.cont [14/16] 0.0, 128
      %499 = vxpose.xlu0.b32.cont [15/16] 0.0, 128
      %500 = vxpose.xlu0.b32.end [16/16] 0.0, 128
      %v501 = vpop.trf.xlu0
      %v502 = vpop.trf.xlu0
      %v503 = vpop.trf.xlu0
      %v504 = vpop.trf.xlu0
      %v505 = vpop.trf.xlu0
      %v506 = vpop.trf.xlu0
      %v507 = vpop.trf.xlu0
      %v508 = vpop.trf.xlu0
      %v509 = vpop.trf.xlu0
      %v510 = vpop.trf.xlu0
      %v511 = vpop.trf.xlu0
      %v512 = vpop.trf.xlu0
      %v513 = vpop.trf.xlu0
      %v514 = vpop.trf.xlu0
      %v515 = vpop.trf.xlu0
      %v516 = vpop.trf.xlu0
      %vm517 = vcmask 97280
      %518 = vst.msk [vmem:[#allocation2] sm:$0xff] %vm517, %v437
      %519 = vst.msk [vmem:[#allocation2 + $0x8] sm:$0xff] %vm517, %v438
      %520 = vst.msk [vmem:[#allocation2 + $0x10] sm:$0xff] %vm517, %v439
      %521 = vst.msk [vmem:[#allocation2 + $0x18] sm:$0xff] %vm517, %v440
      %522 = vst.msk [vmem:[#allocation2 + $0x20] sm:$0xff] %vm517, %v441
      %523 = vst.msk [vmem:[#allocation2 + $0x28] sm:$0xff] %vm517, %v442
      %524 = vst.msk [vmem:[#allocation2 + $0x30] sm:$0xff] %vm517, %v443
      %525 = vst.msk [vmem:[#allocation2 + $0x38] sm:$0xff] %vm517, %v444
      %526 = vst.msk [vmem:[#allocation2 + $0x40] sm:$0xff] %vm517, %v445
      %527 = vst.msk [vmem:[#allocation2 + $0x48] sm:$0xff] %vm517, %v446
      %528 = vst.msk [vmem:[#allocation2 + $0x50] sm:$0xff] %vm517, %v447
      %529 = vst.msk [vmem:[#allocation2 + $0x58] sm:$0xff] %vm517, %v448
      %530 = vst.msk [vmem:[#allocation2 + $0x60] sm:$0xff] %vm517, %v449
      %531 = vst.msk [vmem:[#allocation2 + $0x68] sm:$0xff] %vm517, %v450
      %532 = vst.msk [vmem:[#allocation2 + $0x70] sm:$0xff] %vm517, %v451
      %533 = vst.msk [vmem:[#allocation2 + $0x78] sm:$0xff] %vm517, %v452
      %534 = vst.msk [vmem:[#allocation2 + $0x80] sm:$0xff] %vm517, %v469
      %535 = vst.msk [vmem:[#allocation2 + $0x88] sm:$0xff] %vm517, %v470
      %536 = vst.msk [vmem:[#allocation2 + $0x90] sm:$0xff] %vm517, %v471
      %537 = vst.msk [vmem:[#allocation2 + $0x98] sm:$0xff] %vm517, %v472
      %538 = vst.msk [vmem:[#allocation2 + $0xa0] sm:$0xff] %vm517, %v473
      %539 = vst.msk [vmem:[#allocation2 + $0xa8] sm:$0xff] %vm517, %v474
      %540 = vst.msk [vmem:[#allocation2 + $0xb0] sm:$0xff] %vm517, %v475
      %541 = vst.msk [vmem:[#allocation2 + $0xb8] sm:$0xff] %vm517, %v476
      %542 = vst.msk [vmem:[#allocation2 + $0xc0] sm:$0xff] %vm517, %v477
      %543 = vst.msk [vmem:[#allocation2 + $0xc8] sm:$0xff] %vm517, %v478
      %544 = vst.msk [vmem:[#allocation2 + $0xd0] sm:$0xff] %vm517, %v479
      %545 = vst.msk [vmem:[#allocation2 + $0xd8] sm:$0xff] %vm517, %v480
      %546 = vst.msk [vmem:[#allocation2 + $0xe0] sm:$0xff] %vm517, %v481
      %547 = vst.msk [vmem:[#allocation2 + $0xe8] sm:$0xff] %vm517, %v482
      %548 = vst.msk [vmem:[#allocation2 + $0xf0] sm:$0xff] %vm517, %v483
      %549 = vst.msk [vmem:[#allocation2 + $0xf8] sm:$0xff] %vm517, %v484
      %550 = vst.msk [vmem:[#allocation2 + $0x100] sm:$0xff] %vm517, %v501
      %551 = vst.msk [vmem:[#allocation2 + $0x108] sm:$0xff] %vm517, %v502
      %552 = vst.msk [vmem:[#allocation2 + $0x110] sm:$0xff] %vm517, %v503
      %553 = vst.msk [vmem:[#allocation2 + $0x118] sm:$0xff] %vm517, %v504
      %554 = vst.msk [vmem:[#allocation2 + $0x120] sm:$0xff] %vm517, %v505
      %555 = vst.msk [vmem:[#allocation2 + $0x128] sm:$0xff] %vm517, %v506
      %556 = vst.msk [vmem:[#allocation2 + $0x130] sm:$0xff] %vm517, %v507
      %557 = vst.msk [vmem:[#allocation2 + $0x138] sm:$0xff] %vm517, %v508
      %vm558 = vcmask 93184
      %559 = vst.msk [vmem:[#allocation2 + $0x140] sm:$0xf] %vm558, %v509
      %601 = vrot.lane.b32.xlu0 %v439, 12
      %v602 = vpop.permute.xlu0 %601
      %603 = vrot.lane.b32.xlu0 %v440, 12
      %v604 = vpop.permute.xlu0 %603
      %605 = vrot.lane.b32.xlu0 %v441, 12
      %v606 = vpop.permute.xlu0 %605
      %607 = vrot.lane.b32.xlu0 %v442, 12
      %v608 = vpop.permute.xlu0 %607
      %609 = vrot.lane.b32.xlu0 %v443, 12
      %v610 = vpop.permute.xlu0 %609
      %611 = vrot.lane.b32.xlu0 %v444, 12
      %v612 = vpop.permute.xlu0 %611
      %613 = vrot.lane.b32.xlu0 %v445, 12
      %v614 = vpop.permute.xlu0 %613
      %615 = vrot.lane.b32.xlu0 %v446, 12
      %v616 = vpop.permute.xlu0 %615
      %617 = vrot.lane.b32.xlu0 %v447, 12
      %v618 = vpop.permute.xlu0 %617
      %619 = vrot.lane.b32.xlu0 %v448, 12
      %v620 = vpop.permute.xlu0 %619
      %621 = vrot.lane.b32.xlu0 %v449, 12
      %v622 = vpop.permute.xlu0 %621
      %623 = vrot.lane.b32.xlu0 %v450, 12
      %v624 = vpop.permute.xlu0 %623
      %625 = vrot.lane.b32.xlu0 %v451, 12
      %v626 = vpop.permute.xlu0 %625
      %627 = vrot.lane.b32.xlu0 %v452, 12
      %v628 = vpop.permute.xlu0 %627
      %629 = vrot.lane.b32.xlu0 %v469, 12
      %v630 = vpop.permute.xlu0 %629
      %631 = vrot.lane.b32.xlu0 %v470, 12
      %v632 = vpop.permute.xlu0 %631
      %633 = vrot.lane.b32.xlu0 %v471, 12
      %v634 = vpop.permute.xlu0 %633
      %635 = vrot.lane.b32.xlu0 %v472, 12
      %v636 = vpop.permute.xlu0 %635
      %637 = vrot.lane.b32.xlu0 %v473, 12
      %v638 = vpop.permute.xlu0 %637
      %639 = vrot.lane.b32.xlu0 %v474, 12
      %v640 = vpop.permute.xlu0 %639
      %641 = vrot.lane.b32.xlu0 %v475, 12
      %v642 = vpop.permute.xlu0 %641
      %643 = vrot.lane.b32.xlu0 %v476, 12
      %v644 = vpop.permute.xlu0 %643
      %645 = vrot.lane.b32.xlu0 %v477, 12
      %v646 = vpop.permute.xlu0 %645
      %647 = vrot.lane.b32.xlu0 %v478, 12
      %v648 = vpop.permute.xlu0 %647
      %649 = vrot.lane.b32.xlu0 %v479, 12
      %v650 = vpop.permute.xlu0 %649
      %651 = vrot.lane.b32.xlu0 %v480, 12
      %v652 = vpop.permute.xlu0 %651
      %653 = vrot.lane.b32.xlu0 %v481, 12
      %v654 = vpop.permute.xlu0 %653
      %655 = vrot.lane.b32.xlu0 %v482, 12
      %v656 = vpop.permute.xlu0 %655
      %657 = vrot.lane.b32.xlu0 %v483, 12
      %v658 = vpop.permute.xlu0 %657
      %659 = vrot.lane.b32.xlu0 %v484, 12
      %v660 = vpop.permute.xlu0 %659
      %661 = vrot.lane.b32.xlu0 %v501, 12
      %v662 = vpop.permute.xlu0 %661
      %663 = vrot.lane.b32.xlu0 %v502, 12
      %v664 = vpop.permute.xlu0 %663
      %665 = vrot.lane.b32.xlu0 %v503, 12
      %v666 = vpop.permute.xlu0 %665
      %667 = vrot.lane.b32.xlu0 %v504, 12
      %v668 = vpop.permute.xlu0 %667
      %669 = vrot.lane.b32.xlu0 %v505, 12
      %v670 = vpop.permute.xlu0 %669
      %671 = vrot.lane.b32.xlu0 %v506, 12
      %v672 = vpop.permute.xlu0 %671
      %673 = vrot.lane.b32.xlu0 %v507, 12
      %v674 = vpop.permute.xlu0 %673
      %675 = vrot.lane.b32.xlu0 %v508, 12
      %v676 = vpop.permute.xlu0 %675
      %677 = vrot.lane.b32.xlu0 %v509, 12
      %v678 = vpop.permute.xlu0 %677
      %679 = vrot.lane.b32.xlu0 %v510, 12
      %v680 = vpop.permute.xlu0 %679
      %681 = vrot.lane.b32.xlu0 %v511, 12
      %v682 = vpop.permute.xlu0 %681
      %vm724 = vcmask 195682
      %725 = vst.msk [vmem:[#allocation2 - $0x2] sm:$0xfc] %vm724, %v602
      %vm726 = vcmask 195680
      %727 = vst.msk [vmem:[#allocation2 + $0x6] sm:$0xff] %vm726, %v604
      %728 = vst.msk [vmem:[#allocation2 + $0xe] sm:$0xff] %vm726, %v606
      %729 = vst.msk [vmem:[#allocation2 + $0x16] sm:$0xff] %vm726, %v608
      %730 = vst.msk [vmem:[#allocation2 + $0x1e] sm:$0xff] %vm726, %v610
      %731 = vst.msk [vmem:[#allocation2 + $0x26] sm:$0xff] %vm726, %v612
      %732 = vst.msk [vmem:[#allocation2 + $0x2e] sm:$0xff] %vm726, %v614
      %733 = vst.msk [vmem:[#allocation2 + $0x36] sm:$0xff] %vm726, %v616
      %734 = vst.msk [vmem:[#allocation2 + $0x3e] sm:$0xff] %vm726, %v618
      %735 = vst.msk [vmem:[#allocation2 + $0x46] sm:$0xff] %vm726, %v620
      %736 = vst.msk [vmem:[#allocation2 + $0x4e] sm:$0xff] %vm726, %v622
      %737 = vst.msk [vmem:[#allocation2 + $0x56] sm:$0xff] %vm726, %v624
      %738 = vst.msk [vmem:[#allocation2 + $0x5e] sm:$0xff] %vm726, %v626
      %739 = vst.msk [vmem:[#allocation2 + $0x66] sm:$0xff] %vm726, %v628
      %740 = vst.msk [vmem:[#allocation2 + $0x6e] sm:$0xff] %vm726, %v630
      %741 = vst.msk [vmem:[#allocation2 + $0x76] sm:$0xff] %vm726, %v632
      %742 = vst.msk [vmem:[#allocation2 + $0x7e] sm:$0xff] %vm726, %v634
      %743 = vst.msk [vmem:[#allocation2 + $0x86] sm:$0xff] %vm726, %v636
      %744 = vst.msk [vmem:[#allocation2 + $0x8e] sm:$0xff] %vm726, %v638
      %745 = vst.msk [vmem:[#allocation2 + $0x96] sm:$0xff] %vm726, %v640
      %746 = vst.msk [vmem:[#allocation2 + $0x9e] sm:$0xff] %vm726, %v642
      %747 = vst.msk [vmem:[#allocation2 + $0xa6] sm:$0xff] %vm726, %v644
      %748 = vst.msk [vmem:[#allocation2 + $0xae] sm:$0xff] %vm726, %v646
      %749 = vst.msk [vmem:[#allocation2 + $0xb6] sm:$0xff] %vm726, %v648
      %750 = vst.msk [vmem:[#allocation2 + $0xbe] sm:$0xff] %vm726, %v650
      %751 = vst.msk [vmem:[#allocation2 + $0xc6] sm:$0xff] %vm726, %v652
      %752 = vst.msk [vmem:[#allocation2 + $0xce] sm:$0xff] %vm726, %v654
      %753 = vst.msk [vmem:[#allocation2 + $0xd6] sm:$0xff] %vm726, %v656
      %754 = vst.msk [vmem:[#allocation2 + $0xde] sm:$0xff] %vm726, %v658
      %755 = vst.msk [vmem:[#allocation2 + $0xe6] sm:$0xff] %vm726, %v660
      %756 = vst.msk [vmem:[#allocation2 + $0xee] sm:$0xff] %vm726, %v662
      %757 = vst.msk [vmem:[#allocation2 + $0xf6] sm:$0xff] %vm726, %v664
      %758 = vst.msk [vmem:[#allocation2 + $0xfe] sm:$0xff] %vm726, %v666
      %759 = vst.msk [vmem:[#allocation2 + $0x106] sm:$0xff] %vm726, %v668
      %760 = vst.msk [vmem:[#allocation2 + $0x10e] sm:$0xff] %vm726, %v670
      %761 = vst.msk [vmem:[#allocation2 + $0x116] sm:$0xff] %vm726, %v672
      %762 = vst.msk [vmem:[#allocation2 + $0x11e] sm:$0xff] %vm726, %v674
      %763 = vst.msk [vmem:[#allocation2 + $0x126] sm:$0xff] %vm726, %v676
      %764 = vst.msk [vmem:[#allocation2 + $0x12e] sm:$0xff] %vm726, %v678
      %765 = vst.msk [vmem:[#allocation2 + $0x136] sm:$0xff] %vm726, %v680
      %vm766 = vcmask 193632
      %767 = vst.msk [vmem:[#allocation2 + $0x13e] sm:$0x3f] %vm766, %v682
      %770 = vrot.lane.b32.xlu0 %v441, 24
      %v771 = vpop.permute.xlu0 %770
      %772 = vrot.lane.b32.xlu0 %v442, 24
      %v773 = vpop.permute.xlu0 %772
      %774 = vrot.lane.b32.xlu0 %v443, 24
      %v775 = vpop.permute.xlu0 %774
      %776 = vrot.lane.b32.xlu0 %v444, 24
      %v777 = vpop.permute.xlu0 %776
      %778 = vrot.lane.b32.xlu0 %v445, 24
      %v779 = vpop.permute.xlu0 %778
      %780 = vrot.lane.b32.xlu0 %v446, 24
      %v781 = vpop.permute.xlu0 %780
      %782 = vrot.lane.b32.xlu0 %v447, 24
      %v783 = vpop.permute.xlu0 %782
      %784 = vrot.lane.b32.xlu0 %v448, 24
      %v785 = vpop.permute.xlu0 %784
      %786 = vrot.lane.b32.xlu0 %v449, 24
      %v787 = vpop.permute.xlu0 %786
      %788 = vrot.lane.b32.xlu0 %v450, 24
      %v789 = vpop.permute.xlu0 %788
      %790 = vrot.lane.b32.xlu0 %v451, 24
      %v791 = vpop.permute.xlu0 %790
      %792 = vrot.lane.b32.xlu0 %v452, 24
      %v793 = vpop.permute.xlu0 %792
      %794 = vrot.lane.b32.xlu0 %v469, 24
      %v795 = vpop.permute.xlu0 %794
      %796 = vrot.lane.b32.xlu0 %v470, 24
      %v797 = vpop.permute.xlu0 %796
      %798 = vrot.lane.b32.xlu0 %v471, 24
      %v799 = vpop.permute.xlu0 %798
      %800 = vrot.lane.b32.xlu0 %v472, 24
      %v801 = vpop.permute.xlu0 %800
      %802 = vrot.lane.b32.xlu0 %v473, 24
      %v803 = vpop.permute.xlu0 %802
      %804 = vrot.lane.b32.xlu0 %v474, 24
      %v805 = vpop.permute.xlu0 %804
      %806 = vrot.lane.b32.xlu0 %v475, 24
      %v807 = vpop.permute.xlu0 %806
      %808 = vrot.lane.b32.xlu0 %v476, 24
      %v809 = vpop.permute.xlu0 %808
      %810 = vrot.lane.b32.xlu0 %v477, 24
      %v811 = vpop.permute.xlu0 %810
      %812 = vrot.lane.b32.xlu0 %v478, 24
      %v813 = vpop.permute.xlu0 %812
      %814 = vrot.lane.b32.xlu0 %v479, 24
      %v815 = vpop.permute.xlu0 %814
      %816 = vrot.lane.b32.xlu0 %v480, 24
      %v817 = vpop.permute.xlu0 %816
      %818 = vrot.lane.b32.xlu0 %v481, 24
      %v819 = vpop.permute.xlu0 %818
      %820 = vrot.lane.b32.xlu0 %v482, 24
      %v821 = vpop.permute.xlu0 %820
      %822 = vrot.lane.b32.xlu0 %v483, 24
      %v823 = vpop.permute.xlu0 %822
      %824 = vrot.lane.b32.xlu0 %v484, 24
      %v825 = vpop.permute.xlu0 %824
      %826 = vrot.lane.b32.xlu0 %v501, 24
      %v827 = vpop.permute.xlu0 %826
      %828 = vrot.lane.b32.xlu0 %v502, 24
      %v829 = vpop.permute.xlu0 %828
      %830 = vrot.lane.b32.xlu0 %v503, 24
      %v831 = vpop.permute.xlu0 %830
      %832 = vrot.lane.b32.xlu0 %v504, 24
      %v833 = vpop.permute.xlu0 %832
      %834 = vrot.lane.b32.xlu0 %v505, 24
      %v835 = vpop.permute.xlu0 %834
      %836 = vrot.lane.b32.xlu0 %v506, 24
      %v837 = vpop.permute.xlu0 %836
      %838 = vrot.lane.b32.xlu0 %v507, 24
      %v839 = vpop.permute.xlu0 %838
      %840 = vrot.lane.b32.xlu0 %v508, 24
      %v841 = vpop.permute.xlu0 %840
      %842 = vrot.lane.b32.xlu0 %v509, 24
      %v843 = vpop.permute.xlu0 %842
      %844 = vrot.lane.b32.xlu0 %v510, 24
      %v845 = vpop.permute.xlu0 %844
      %846 = vrot.lane.b32.xlu0 %v511, 24
      %v847 = vpop.permute.xlu0 %846
      %848 = vrot.lane.b32.xlu0 %v512, 24
      %v849 = vpop.permute.xlu0 %848
      %850 = vrot.lane.b32.xlu0 %v513, 24
      %v851 = vpop.permute.xlu0 %850
      %vm893 = vcmask 294084
      %894 = vst.msk [vmem:[#allocation2 - $0x4] sm:$0xf0] %vm893, %v771
      %vm895 = vcmask 294080
      %896 = vst.msk [vmem:[#allocation2 + $0x4] sm:$0xff] %vm895, %v773
      %897 = vst.msk [vmem:[#allocation2 + $0xc] sm:$0xff] %vm895, %v775
      %898 = vst.msk [vmem:[#allocation2 + $0x14] sm:$0xff] %vm895, %v777
      %899 = vst.msk [vmem:[#allocation2 + $0x1c] sm:$0xff] %vm895, %v779
      %900 = vst.msk [vmem:[#allocation2 + $0x24] sm:$0xff] %vm895, %v781
      %901 = vst.msk [vmem:[#allocation2 + $0x2c] sm:$0xff] %vm895, %v783
      %902 = vst.msk [vmem:[#allocation2 + $0x34] sm:$0xff] %vm895, %v785
      %903 = vst.msk [vmem:[#allocation2 + $0x3c] sm:$0xff] %vm895, %v787
      %904 = vst.msk [vmem:[#allocation2 + $0x44] sm:$0xff] %vm895, %v789
      %905 = vst.msk [vmem:[#allocation2 + $0x4c] sm:$0xff] %vm895, %v791
      %906 = vst.msk [vmem:[#allocation2 + $0x54] sm:$0xff] %vm895, %v793
      %907 = vst.msk [vmem:[#allocation2 + $0x5c] sm:$0xff] %vm895, %v795
      %908 = vst.msk [vmem:[#allocation2 + $0x64] sm:$0xff] %vm895, %v797
      %909 = vst.msk [vmem:[#allocation2 + $0x6c] sm:$0xff] %vm895, %v799
      %910 = vst.msk [vmem:[#allocation2 + $0x74] sm:$0xff] %vm895, %v801
      %911 = vst.msk [vmem:[#allocation2 + $0x7c] sm:$0xff] %vm895, %v803
      %912 = vst.msk [vmem:[#allocation2 + $0x84] sm:$0xff] %vm895, %v805
      %913 = vst.msk [vmem:[#allocation2 + $0x8c] sm:$0xff] %vm895, %v807
      %914 = vst.msk [vmem:[#allocation2 + $0x94] sm:$0xff] %vm895, %v809
      %915 = vst.msk [vmem:[#allocation2 + $0x9c] sm:$0xff] %vm895, %v811
      %916 = vst.msk [vmem:[#allocation2 + $0xa4] sm:$0xff] %vm895, %v813
      %917 = vst.msk [vmem:[#allocation2 + $0xac] sm:$0xff] %vm895, %v815
      %918 = vst.msk [vmem:[#allocation2 + $0xb4] sm:$0xff] %vm895, %v817
      %919 = vst.msk [vmem:[#allocation2 + $0xbc] sm:$0xff] %vm895, %v819
      %920 = vst.msk [vmem:[#allocation2 + $0xc4] sm:$0xff] %vm895, %v821
      %921 = vst.msk [vmem:[#allocation2 + $0xcc] sm:$0xff] %vm895, %v823
      %922 = vst.msk [vmem:[#allocation2 + $0xd4] sm:$0xff] %vm895, %v825
      %923 = vst.msk [vmem:[#allocation2 + $0xdc] sm:$0xff] %vm895, %v827
      %924 = vst.msk [vmem:[#allocation2 + $0xe4] sm:$0xff] %vm895, %v829
      %925 = vst.msk [vmem:[#allocation2 + $0xec] sm:$0xff] %vm895, %v831
      %926 = vst.msk [vmem:[#allocation2 + $0xf4] sm:$0xff] %vm895, %v833
      %927 = vst.msk [vmem:[#allocation2 + $0xfc] sm:$0xff] %vm895, %v835
      %928 = vst.msk [vmem:[#allocation2 + $0x104] sm:$0xff] %vm895, %v837
      %929 = vst.msk [vmem:[#allocation2 + $0x10c] sm:$0xff] %vm895, %v839
      %930 = vst.msk [vmem:[#allocation2 + $0x114] sm:$0xff] %vm895, %v841
      %931 = vst.msk [vmem:[#allocation2 + $0x11c] sm:$0xff] %vm895, %v843
      %932 = vst.msk [vmem:[#allocation2 + $0x124] sm:$0xff] %vm895, %v845
      %933 = vst.msk [vmem:[#allocation2 + $0x12c] sm:$0xff] %vm895, %v847
      %934 = vst.msk [vmem:[#allocation2 + $0x134] sm:$0xff] %vm895, %v849
      %935 = vst.msk [vmem:[#allocation2 + $0x13c] sm:$0xff] %vm895, %v851
      %v936 = vld [vmem:[#allocation2] sm:$0xff]
      %v937 = vld [vmem:[#allocation2 + $0x8] sm:$0xff]
      %v938 = vld [vmem:[#allocation2 + $0x10] sm:$0xff]
      %v939 = vld [vmem:[#allocation2 + $0x18] sm:$0xff]
      %v940 = vld [vmem:[#allocation2 + $0x20] sm:$0xff]
      %v941 = vld [vmem:[#allocation2 + $0x28] sm:$0xff]
      %v942 = vld [vmem:[#allocation2 + $0x30] sm:$0xff]
      %v943 = vld [vmem:[#allocation2 + $0x38] sm:$0xff]
      %v944 = vld [vmem:[#allocation2 + $0x40] sm:$0xff]
      %v945 = vld [vmem:[#allocation2 + $0x48] sm:$0xff]
      %v946 = vld [vmem:[#allocation2 + $0x50] sm:$0xff]
      %v947 = vld [vmem:[#allocation2 + $0x58] sm:$0xff]
      %v948 = vld [vmem:[#allocation2 + $0x60] sm:$0xff]
      %v949 = vld [vmem:[#allocation2 + $0x68] sm:$0xff]
      %v950 = vld [vmem:[#allocation2 + $0x70] sm:$0xff]
      %v951 = vld [vmem:[#allocation2 + $0x78] sm:$0xff]
      %v952 = vld [vmem:[#allocation2 + $0x80] sm:$0xff]
      %v953 = vld [vmem:[#allocation2 + $0x88] sm:$0xff]
      %v954 = vld [vmem:[#allocation2 + $0x90] sm:$0xff]
      %v955 = vld [vmem:[#allocation2 + $0x98] sm:$0xff]
      %v956 = vld [vmem:[#allocation2 + $0xa0] sm:$0xff]
      %v957 = vld [vmem:[#allocation2 + $0xa8] sm:$0xff]
      %v958 = vld [vmem:[#allocation2 + $0xb0] sm:$0xff]
      %v959 = vld [vmem:[#allocation2 + $0xb8] sm:$0xff]
      %v960 = vld [vmem:[#allocation2 + $0xc0] sm:$0xff]
      %v961 = vld [vmem:[#allocation2 + $0xc8] sm:$0xff]
      %v962 = vld [vmem:[#allocation2 + $0xd0] sm:$0xff]
      %v963 = vld [vmem:[#allocation2 + $0xd8] sm:$0xff]
      %v964 = vld [vmem:[#allocation2 + $0xe0] sm:$0xff]
      %v965 = vld [vmem:[#allocation2 + $0xe8] sm:$0xff]
      %v966 = vld [vmem:[#allocation2 + $0xf0] sm:$0xff]
      %v967 = vld [vmem:[#allocation2 + $0xf8] sm:$0xff]
      %v968 = vld [vmem:[#allocation2 + $0x100] sm:$0xff]
      %v969 = vld [vmem:[#allocation2 + $0x108] sm:$0xff]
      %v970 = vld [vmem:[#allocation2 + $0x110] sm:$0xff]
      %v971 = vld [vmem:[#allocation2 + $0x118] sm:$0xff]
      %v972 = vld [vmem:[#allocation2 + $0x120] sm:$0xff]
      %v973 = vld [vmem:[#allocation2 + $0x128] sm:$0xff]
      %v974 = vld [vmem:[#allocation2 + $0x130] sm:$0xff]
      %v975 = vld [vmem:[#allocation2 + $0x138] sm:$0xff]
      %v976 = vld [vmem:[#allocation2 + $0x140] sm:$0xf]
      %vm977 = vcmask 293888
      %v978 = vsel %vm977, %v936, 0.0
      %979 = vadd.xlane.f32.xlu0 %v978
      %v980 = vpop.xlane.xlu0 %979
      %v981 = vsel %vm977, %v937, 0.0
      %982 = vadd.xlane.f32.xlu0 %v981
      %v983 = vpop.xlane.xlu0 %982
      %v984 = vsel %vm977, %v938, 0.0
      %985 = vadd.xlane.f32.xlu0 %v984
      %v986 = vpop.xlane.xlu0 %985
      %v987 = vsel %vm977, %v939, 0.0
      %988 = vadd.xlane.f32.xlu0 %v987
      %v989 = vpop.xlane.xlu0 %988
      %v990 = vsel %vm977, %v940, 0.0
      %991 = vadd.xlane.f32.xlu0 %v990
      %v992 = vpop.xlane.xlu0 %991
      %v993 = vsel %vm977, %v941, 0.0
      %994 = vadd.xlane.f32.xlu0 %v993
      %v995 = vpop.xlane.xlu0 %994
      %v996 = vsel %vm977, %v942, 0.0
      %997 = vadd.xlane.f32.xlu0 %v996
      %v998 = vpop.xlane.xlu0 %997
      %v999 = vsel %vm977, %v943, 0.0
      %1000 = vadd.xlane.f32.xlu0 %v999
      %v1001 = vpop.xlane.xlu0 %1000
      %v1002 = vsel %vm977, %v944, 0.0
      %1003 = vadd.xlane.f32.xlu0 %v1002
      %v1004 = vpop.xlane.xlu0 %1003
      %v1005 = vsel %vm977, %v945, 0.0
      %1006 = vadd.xlane.f32.xlu0 %v1005
      %v1007 = vpop.xlane.xlu0 %1006
      %v1008 = vsel %vm977, %v946, 0.0
      %1009 = vadd.xlane.f32.xlu0 %v1008
      %v1010 = vpop.xlane.xlu0 %1009
      %v1011 = vsel %vm977, %v947, 0.0
      %1012 = vadd.xlane.f32.xlu0 %v1011
      %v1013 = vpop.xlane.xlu0 %1012
      %v1014 = vsel %vm977, %v948, 0.0
      %1015 = vadd.xlane.f32.xlu0 %v1014
      %v1016 = vpop.xlane.xlu0 %1015
      %v1017 = vsel %vm977, %v949, 0.0
      %1018 = vadd.xlane.f32.xlu0 %v1017
      %v1019 = vpop.xlane.xlu0 %1018
      %v1020 = vsel %vm977, %v950, 0.0
      %1021 = vadd.xlane.f32.xlu0 %v1020
      %v1022 = vpop.xlane.xlu0 %1021
      %v1023 = vsel %vm977, %v951, 0.0
      %1024 = vadd.xlane.f32.xlu0 %v1023
      %v1025 = vpop.xlane.xlu0 %1024
      %v1026 = vsel %vm977, %v952, 0.0
      %1027 = vadd.xlane.f32.xlu0 %v1026
      %v1028 = vpop.xlane.xlu0 %1027
      %v1029 = vsel %vm977, %v953, 0.0
      %1030 = vadd.xlane.f32.xlu0 %v1029
      %v1031 = vpop.xlane.xlu0 %1030
      %v1032 = vsel %vm977, %v954, 0.0
      %1033 = vadd.xlane.f32.xlu0 %v1032
      %v1034 = vpop.xlane.xlu0 %1033
      %v1035 = vsel %vm977, %v955, 0.0
      %1036 = vadd.xlane.f32.xlu0 %v1035
      %v1037 = vpop.xlane.xlu0 %1036
      %v1038 = vsel %vm977, %v956, 0.0
      %1039 = vadd.xlane.f32.xlu0 %v1038
      %v1040 = vpop.xlane.xlu0 %1039
      %v1041 = vsel %vm977, %v957, 0.0
      %1042 = vadd.xlane.f32.xlu0 %v1041
      %v1043 = vpop.xlane.xlu0 %1042
      %v1044 = vsel %vm977, %v958, 0.0
      %1045 = vadd.xlane.f32.xlu0 %v1044
      %v1046 = vpop.xlane.xlu0 %1045
      %v1047 = vsel %vm977, %v959, 0.0
      %1048 = vadd.xlane.f32.xlu0 %v1047
      %v1049 = vpop.xlane.xlu0 %1048
      %v1050 = vsel %vm977, %v960, 0.0
      %1051 = vadd.xlane.f32.xlu0 %v1050
      %v1052 = vpop.xlane.xlu0 %1051
      %v1053 = vsel %vm977, %v961, 0.0
      %1054 = vadd.xlane.f32.xlu0 %v1053
      %v1055 = vpop.xlane.xlu0 %1054
      %v1056 = vsel %vm977, %v962, 0.0
      %1057 = vadd.xlane.f32.xlu0 %v1056
      %v1058 = vpop.xlane.xlu0 %1057
      %v1059 = vsel %vm977, %v963, 0.0
      %1060 = vadd.xlane.f32.xlu0 %v1059
      %v1061 = vpop.xlane.xlu0 %1060
      %v1062 = vsel %vm977, %v964, 0.0
      %1063 = vadd.xlane.f32.xlu0 %v1062
      %v1064 = vpop.xlane.xlu0 %1063
      %v1065 = vsel %vm977, %v965, 0.0
      %1066 = vadd.xlane.f32.xlu0 %v1065
      %v1067 = vpop.xlane.xlu0 %1066
      %v1068 = vsel %vm977, %v966, 0.0
      %1069 = vadd.xlane.f32.xlu0 %v1068
      %v1070 = vpop.xlane.xlu0 %1069
      %v1071 = vsel %vm977, %v967, 0.0
      %1072 = vadd.xlane.f32.xlu0 %v1071
      %v1073 = vpop.xlane.xlu0 %1072
      %v1074 = vsel %vm977, %v968, 0.0
      %1075 = vadd.xlane.f32.xlu0 %v1074
      %v1076 = vpop.xlane.xlu0 %1075
      %v1077 = vsel %vm977, %v969, 0.0
      %1078 = vadd.xlane.f32.xlu0 %v1077
      %v1079 = vpop.xlane.xlu0 %1078
      %v1080 = vsel %vm977, %v970, 0.0
      %1081 = vadd.xlane.f32.xlu0 %v1080
      %v1082 = vpop.xlane.xlu0 %1081
      %v1083 = vsel %vm977, %v971, 0.0
      %1084 = vadd.xlane.f32.xlu0 %v1083
      %v1085 = vpop.xlane.xlu0 %1084
      %v1086 = vsel %vm977, %v972, 0.0
      %1087 = vadd.xlane.f32.xlu0 %v1086
      %v1088 = vpop.xlane.xlu0 %1087
      %v1089 = vsel %vm977, %v973, 0.0
      %1090 = vadd.xlane.f32.xlu0 %v1089
      %v1091 = vpop.xlane.xlu0 %1090
      %v1092 = vsel %vm977, %v974, 0.0
      %1093 = vadd.xlane.f32.xlu0 %v1092
      %v1094 = vpop.xlane.xlu0 %1093
      %v1095 = vsel %vm977, %v975, 0.0
      %1096 = vadd.xlane.f32.xlu0 %v1095
      %v1097 = vpop.xlane.xlu0 %1096
      %vm1098 = vcmask 289792
      %v1099 = vsel %vm1098, %v976, 0.0
      %1100 = vadd.xlane.f32.xlu0 %v1099
      %v1101 = vpop.xlane.xlu0 %1100
      %v1102 = vrcp.pop 36.0
      %v1103 = vmul.f32 %v980, %v1102
      %v1104 = vmul.f32 %v983, %v1102
      %v1105 = vmul.f32 %v986, %v1102
      %v1106 = vmul.f32 %v989, %v1102
      %v1107 = vmul.f32 %v992, %v1102
      %v1108 = vmul.f32 %v995, %v1102
      %v1109 = vmul.f32 %v998, %v1102
      %v1110 = vmul.f32 %v1001, %v1102
      %v1111 = vmul.f32 %v1004, %v1102
      %v1112 = vmul.f32 %v1007, %v1102
      %v1113 = vmul.f32 %v1010, %v1102
      %v1114 = vmul.f32 %v1013, %v1102
      %v1115 = vmul.f32 %v1016, %v1102
      %v1116 = vmul.f32 %v1019, %v1102
      %v1117 = vmul.f32 %v1022, %v1102
      %v1118 = vmul.f32 %v1025, %v1102
      %v1119 = vmul.f32 %v1028, %v1102
      %v1120 = vmul.f32 %v1031, %v1102
      %v1121 = vmul.f32 %v1034, %v1102
      %v1122 = vmul.f32 %v1037, %v1102
      %v1123 = vmul.f32 %v1040, %v1102
      %v1124 = vmul.f32 %v1043, %v1102
      %v1125 = vmul.f32 %v1046, %v1102
      %v1126 = vmul.f32 %v1049, %v1102
      %v1127 = vmul.f32 %v1052, %v1102
      %v1128 = vmul.f32 %v1055, %v1102
      %v1129 = vmul.f32 %v1058, %v1102
      %v1130 = vmul.f32 %v1061, %v1102
      %v1131 = vmul.f32 %v1064, %v1102
      %v1132 = vmul.f32 %v1067, %v1102
      %v1133 = vmul.f32 %v1070, %v1102
      %v1134 = vmul.f32 %v1073, %v1102
      %v1135 = vmul.f32 %v1076, %v1102
      %v1136 = vmul.f32 %v1079, %v1102
      %v1137 = vmul.f32 %v1082, %v1102
      %v1138 = vmul.f32 %v1085, %v1102
      %v1139 = vmul.f32 %v1088, %v1102
      %v1140 = vmul.f32 %v1091, %v1102
      %v1141 = vmul.f32 %v1094, %v1102
      %v1142 = vmul.f32 %v1097, %v1102
      %v1143 = vmul.f32 %v1101, %v1102
      %v1144 = vsub.f32 %v936, %v1103
      %v1145 = vsub.f32 %v937, %v1104
      %v1146 = vsub.f32 %v938, %v1105
      %v1147 = vsub.f32 %v939, %v1106
      %v1148 = vsub.f32 %v940, %v1107
      %v1149 = vsub.f32 %v941, %v1108
      %v1150 = vsub.f32 %v942, %v1109
      %v1151 = vsub.f32 %v943, %v1110
      %v1152 = vsub.f32 %v944, %v1111
      %v1153 = vsub.f32 %v945, %v1112
      %v1154 = vsub.f32 %v946, %v1113
      %v1155 = vsub.f32 %v947, %v1114
      %v1156 = vsub.f32 %v948, %v1115
      %v1157 = vsub.f32 %v949, %v1116
      %v1158 = vsub.f32 %v950, %v1117
      %v1159 = vsub.f32 %v951, %v1118
      %v1160 = vsub.f32 %v952, %v1119
      %v1161 = vsub.f32 %v953, %v1120
      %v1162 = vsub.f32 %v954, %v1121
      %v1163 = vsub.f32 %v955, %v1122
      %v1164 = vsub.f32 %v956, %v1123
      %v1165 = vsub.f32 %v957, %v1124
      %v1166 = vsub.f32 %v958, %v1125
      %v1167 = vsub.f32 %v959, %v1126
      %v1168 = vsub.f32 %v960, %v1127
      %v1169 = vsub.f32 %v961, %v1128
      %v1170 = vsub.f32 %v962, %v1129
      %v1171 = vsub.f32 %v963, %v1130
      %v1172 = vsub.f32 %v964, %v1131
      %v1173 = vsub.f32 %v965, %v1132
      %v1174 = vsub.f32 %v966, %v1133
      %v1175 = vsub.f32 %v967, %v1134
      %v1176 = vsub.f32 %v968, %v1135
      %v1177 = vsub.f32 %v969, %v1136
      %v1178 = vsub.f32 %v970, %v1137
      %v1179 = vsub.f32 %v971, %v1138
      %v1180 = vsub.f32 %v972, %v1139
      %v1181 = vsub.f32 %v973, %v1140
      %v1182 = vsub.f32 %v974, %v1141
      %v1183 = vsub.f32 %v975, %v1142
      %v1184 = vsub.f32 %v976, %v1143
      %v1185 = vmul.f32 %v1144, %v1144
      %v1186 = vmul.f32 %v1145, %v1145
      %v1187 = vmul.f32 %v1146, %v1146
      %v1188 = vmul.f32 %v1147, %v1147
      %v1189 = vmul.f32 %v1148, %v1148
      %v1190 = vmul.f32 %v1149, %v1149
      %v1191 = vmul.f32 %v1150, %v1150
      %v1192 = vmul.f32 %v1151, %v1151
      %v1193 = vmul.f32 %v1152, %v1152
      %v1194 = vmul.f32 %v1153, %v1153
      %v1195 = vmul.f32 %v1154, %v1154
      %v1196 = vmul.f32 %v1155, %v1155
      %v1197 = vmul.f32 %v1156, %v1156
      %v1198 = vmul.f32 %v1157, %v1157
      %v1199 = vmul.f32 %v1158, %v1158
      %v1200 = vmul.f32 %v1159, %v1159
      %v1201 = vmul.f32 %v1160, %v1160
      %v1202 = vmul.f32 %v1161, %v1161
      %v1203 = vmul.f32 %v1162, %v1162
      %v1204 = vmul.f32 %v1163, %v1163
      %v1205 = vmul.f32 %v1164, %v1164
      %v1206 = vmul.f32 %v1165, %v1165
      %v1207 = vmul.f32 %v1166, %v1166
      %v1208 = vmul.f32 %v1167, %v1167
      %v1209 = vmul.f32 %v1168, %v1168
      %v1210 = vmul.f32 %v1169, %v1169
      %v1211 = vmul.f32 %v1170, %v1170
      %v1212 = vmul.f32 %v1171, %v1171
      %v1213 = vmul.f32 %v1172, %v1172
      %v1214 = vmul.f32 %v1173, %v1173
      %v1215 = vmul.f32 %v1174, %v1174
      %v1216 = vmul.f32 %v1175, %v1175
      %v1217 = vmul.f32 %v1176, %v1176
      %v1218 = vmul.f32 %v1177, %v1177
      %v1219 = vmul.f32 %v1178, %v1178
      %v1220 = vmul.f32 %v1179, %v1179
      %v1221 = vmul.f32 %v1180, %v1180
      %v1222 = vmul.f32 %v1181, %v1181
      %v1223 = vmul.f32 %v1182, %v1182
      %v1224 = vmul.f32 %v1183, %v1183
      %v1225 = vmul.f32 %v1184, %v1184
      %v1226 = vsel %vm977, %v1185, 0.0
      %1227 = vadd.xlane.f32.xlu0 %v1226
      %v1228 = vpop.xlane.xlu0 %1227
      %v1229 = vsel %vm977, %v1186, 0.0
      %1230 = vadd.xlane.f32.xlu0 %v1229
      %v1231 = vpop.xlane.xlu0 %1230
      %v1232 = vsel %vm977, %v1187, 0.0
      %1233 = vadd.xlane.f32.xlu0 %v1232
      %v1234 = vpop.xlane.xlu0 %1233
      %v1235 = vsel %vm977, %v1188, 0.0
      %1236 = vadd.xlane.f32.xlu0 %v1235
      %v1237 = vpop.xlane.xlu0 %1236
      %v1238 = vsel %vm977, %v1189, 0.0
      %1239 = vadd.xlane.f32.xlu0 %v1238
      %v1240 = vpop.xlane.xlu0 %1239
      %v1241 = vsel %vm977, %v1190, 0.0
      %1242 = vadd.xlane.f32.xlu0 %v1241
      %v1243 = vpop.xlane.xlu0 %1242
      %v1244 = vsel %vm977, %v1191, 0.0
      %1245 = vadd.xlane.f32.xlu0 %v1244
      %v1246 = vpop.xlane.xlu0 %1245
      %v1247 = vsel %vm977, %v1192, 0.0
      %1248 = vadd.xlane.f32.xlu0 %v1247
      %v1249 = vpop.xlane.xlu0 %1248
      %v1250 = vsel %vm977, %v1193, 0.0
      %1251 = vadd.xlane.f32.xlu0 %v1250
      %v1252 = vpop.xlane.xlu0 %1251
      %v1253 = vsel %vm977, %v1194, 0.0
      %1254 = vadd.xlane.f32.xlu0 %v1253
      %v1255 = vpop.xlane.xlu0 %1254
      %v1256 = vsel %vm977, %v1195, 0.0
      %1257 = vadd.xlane.f32.xlu0 %v1256
      %v1258 = vpop.xlane.xlu0 %1257
      %v1259 = vsel %vm977, %v1196, 0.0
      %1260 = vadd.xlane.f32.xlu0 %v1259
      %v1261 = vpop.xlane.xlu0 %1260
      %v1262 = vsel %vm977, %v1197, 0.0
      %1263 = vadd.xlane.f32.xlu0 %v1262
      %v1264 = vpop.xlane.xlu0 %1263
      %v1265 = vsel %vm977, %v1198, 0.0
      %1266 = vadd.xlane.f32.xlu0 %v1265
      %v1267 = vpop.xlane.xlu0 %1266
      %v1268 = vsel %vm977, %v1199, 0.0
      %1269 = vadd.xlane.f32.xlu0 %v1268
      %v1270 = vpop.xlane.xlu0 %1269
      %v1271 = vsel %vm977, %v1200, 0.0
      %1272 = vadd.xlane.f32.xlu0 %v1271
      %v1273 = vpop.xlane.xlu0 %1272
      %v1274 = vsel %vm977, %v1201, 0.0
      %1275 = vadd.xlane.f32.xlu0 %v1274
      %v1276 = vpop.xlane.xlu0 %1275
      %v1277 = vsel %vm977, %v1202, 0.0
      %1278 = vadd.xlane.f32.xlu0 %v1277
      %v1279 = vpop.xlane.xlu0 %1278
      %v1280 = vsel %vm977, %v1203, 0.0
      %1281 = vadd.xlane.f32.xlu0 %v1280
      %v1282 = vpop.xlane.xlu0 %1281
      %v1283 = vsel %vm977, %v1204, 0.0
      %1284 = vadd.xlane.f32.xlu0 %v1283
      %v1285 = vpop.xlane.xlu0 %1284
      %v1286 = vsel %vm977, %v1205, 0.0
      %1287 = vadd.xlane.f32.xlu0 %v1286
      %v1288 = vpop.xlane.xlu0 %1287
      %v1289 = vsel %vm977, %v1206, 0.0
      %1290 = vadd.xlane.f32.xlu0 %v1289
      %v1291 = vpop.xlane.xlu0 %1290
      %v1292 = vsel %vm977, %v1207, 0.0
      %1293 = vadd.xlane.f32.xlu0 %v1292
      %v1294 = vpop.xlane.xlu0 %1293
      %v1295 = vsel %vm977, %v1208, 0.0
      %1296 = vadd.xlane.f32.xlu0 %v1295
      %v1297 = vpop.xlane.xlu0 %1296
      %v1298 = vsel %vm977, %v1209, 0.0
      %1299 = vadd.xlane.f32.xlu0 %v1298
      %v1300 = vpop.xlane.xlu0 %1299
      %v1301 = vsel %vm977, %v1210, 0.0
      %1302 = vadd.xlane.f32.xlu0 %v1301
      %v1303 = vpop.xlane.xlu0 %1302
      %v1304 = vsel %vm977, %v1211, 0.0
      %1305 = vadd.xlane.f32.xlu0 %v1304
      %v1306 = vpop.xlane.xlu0 %1305
      %v1307 = vsel %vm977, %v1212, 0.0
      %1308 = vadd.xlane.f32.xlu0 %v1307
      %v1309 = vpop.xlane.xlu0 %1308
      %v1310 = vsel %vm977, %v1213, 0.0
      %1311 = vadd.xlane.f32.xlu0 %v1310
      %v1312 = vpop.xlane.xlu0 %1311
      %v1313 = vsel %vm977, %v1214, 0.0
      %1314 = vadd.xlane.f32.xlu0 %v1313
      %v1315 = vpop.xlane.xlu0 %1314
      %v1316 = vsel %vm977, %v1215, 0.0
      %1317 = vadd.xlane.f32.xlu0 %v1316
      %v1318 = vpop.xlane.xlu0 %1317
      %v1319 = vsel %vm977, %v1216, 0.0
      %1320 = vadd.xlane.f32.xlu0 %v1319
      %v1321 = vpop.xlane.xlu0 %1320
      %v1322 = vsel %vm977, %v1217, 0.0
      %1323 = vadd.xlane.f32.xlu0 %v1322
      %v1324 = vpop.xlane.xlu0 %1323
      %v1325 = vsel %vm977, %v1218, 0.0
      %1326 = vadd.xlane.f32.xlu0 %v1325
      %v1327 = vpop.xlane.xlu0 %1326
      %v1328 = vsel %vm977, %v1219, 0.0
      %1329 = vadd.xlane.f32.xlu0 %v1328
      %v1330 = vpop.xlane.xlu0 %1329
      %v1331 = vsel %vm977, %v1220, 0.0
      %1332 = vadd.xlane.f32.xlu0 %v1331
      %v1333 = vpop.xlane.xlu0 %1332
      %v1334 = vsel %vm977, %v1221, 0.0
      %1335 = vadd.xlane.f32.xlu0 %v1334
      %v1336 = vpop.xlane.xlu0 %1335
      %v1337 = vsel %vm977, %v1222, 0.0
      %1338 = vadd.xlane.f32.xlu0 %v1337
      %v1339 = vpop.xlane.xlu0 %1338
      %v1340 = vsel %vm977, %v1223, 0.0
      %1341 = vadd.xlane.f32.xlu0 %v1340
      %v1342 = vpop.xlane.xlu0 %1341
      %v1343 = vsel %vm977, %v1224, 0.0
      %1344 = vadd.xlane.f32.xlu0 %v1343
      %v1345 = vpop.xlane.xlu0 %1344
      %v1346 = vsel %vm1098, %v1225, 0.0
      %1347 = vadd.xlane.f32.xlu0 %v1346
      %v1348 = vpop.xlane.xlu0 %1347
      %v1349 = vmul.f32 %v1228, %v1102
      %v1350 = vmul.f32 %v1231, %v1102
      %v1351 = vmul.f32 %v1234, %v1102
      %v1352 = vmul.f32 %v1237, %v1102
      %v1353 = vmul.f32 %v1240, %v1102
      %v1354 = vmul.f32 %v1243, %v1102
      %v1355 = vmul.f32 %v1246, %v1102
      %v1356 = vmul.f32 %v1249, %v1102
      %v1357 = vmul.f32 %v1252, %v1102
      %v1358 = vmul.f32 %v1255, %v1102
      %v1359 = vmul.f32 %v1258, %v1102
      %v1360 = vmul.f32 %v1261, %v1102
      %v1361 = vmul.f32 %v1264, %v1102
      %v1362 = vmul.f32 %v1267, %v1102
      %v1363 = vmul.f32 %v1270, %v1102
      %v1364 = vmul.f32 %v1273, %v1102
      %v1365 = vmul.f32 %v1276, %v1102
      %v1366 = vmul.f32 %v1279, %v1102
      %v1367 = vmul.f32 %v1282, %v1102
      %v1368 = vmul.f32 %v1285, %v1102
      %v1369 = vmul.f32 %v1288, %v1102
      %v1370 = vmul.f32 %v1291, %v1102
      %v1371 = vmul.f32 %v1294, %v1102
      %v1372 = vmul.f32 %v1297, %v1102
      %v1373 = vmul.f32 %v1300, %v1102
      %v1374 = vmul.f32 %v1303, %v1102
      %v1375 = vmul.f32 %v1306, %v1102
      %v1376 = vmul.f32 %v1309, %v1102
      %v1377 = vmul.f32 %v1312, %v1102
      %v1378 = vmul.f32 %v1315, %v1102
      %v1379 = vmul.f32 %v1318, %v1102
      %v1380 = vmul.f32 %v1321, %v1102
      %v1381 = vmul.f32 %v1324, %v1102
      %v1382 = vmul.f32 %v1327, %v1102
      %v1383 = vmul.f32 %v1330, %v1102
      %v1384 = vmul.f32 %v1333, %v1102
      %v1385 = vmul.f32 %v1336, %v1102
      %v1386 = vmul.f32 %v1339, %v1102
      %v1387 = vmul.f32 %v1342, %v1102
      %v1388 = vmul.f32 %v1345, %v1102
      %v1389 = vmul.f32 %v1348, %v1102
      %v1390 = vadd.f32 %v1349, 1e-05
      %v1391 = vadd.f32 %v1350, 1e-05
      %v1392 = vadd.f32 %v1351, 1e-05
      %v1393 = vadd.f32 %v1352, 1e-05
      %v1394 = vadd.f32 %v1353, 1e-05
      %v1395 = vadd.f32 %v1354, 1e-05
      %v1396 = vadd.f32 %v1355, 1e-05
      %v1397 = vadd.f32 %v1356, 1e-05
      %v1398 = vadd.f32 %v1357, 1e-05
      %v1399 = vadd.f32 %v1358, 1e-05
      %v1400 = vadd.f32 %v1359, 1e-05
      %v1401 = vadd.f32 %v1360, 1e-05
      %v1402 = vadd.f32 %v1361, 1e-05
      %v1403 = vadd.f32 %v1362, 1e-05
      %v1404 = vadd.f32 %v1363, 1e-05
      %v1405 = vadd.f32 %v1364, 1e-05
      %v1406 = vadd.f32 %v1365, 1e-05
      %v1407 = vadd.f32 %v1366, 1e-05
      %v1408 = vadd.f32 %v1367, 1e-05
      %v1409 = vadd.f32 %v1368, 1e-05
      %v1410 = vadd.f32 %v1369, 1e-05
      %v1411 = vadd.f32 %v1370, 1e-05
      %v1412 = vadd.f32 %v1371, 1e-05
      %v1413 = vadd.f32 %v1372, 1e-05
      %v1414 = vadd.f32 %v1373, 1e-05
      %v1415 = vadd.f32 %v1374, 1e-05
      %v1416 = vadd.f32 %v1375, 1e-05
      %v1417 = vadd.f32 %v1376, 1e-05
      %v1418 = vadd.f32 %v1377, 1e-05
      %v1419 = vadd.f32 %v1378, 1e-05
      %v1420 = vadd.f32 %v1379, 1e-05
      %v1421 = vadd.f32 %v1380, 1e-05
      %v1422 = vadd.f32 %v1381, 1e-05
      %v1423 = vadd.f32 %v1382, 1e-05
      %v1424 = vadd.f32 %v1383, 1e-05
      %v1425 = vadd.f32 %v1384, 1e-05
      %v1426 = vadd.f32 %v1385, 1e-05
      %v1427 = vadd.f32 %v1386, 1e-05
      %v1428 = vadd.f32 %v1387, 1e-05
      %v1429 = vadd.f32 %v1388, 1e-05
      %v1430 = vadd.f32 %v1389, 1e-05
      %v1431 = vrsqrt.pop %v1390
      %v1432 = vrsqrt.pop %v1391
      %v1433 = vrsqrt.pop %v1392
      %v1434 = vrsqrt.pop %v1393
      %v1435 = vrsqrt.pop %v1394
      %v1436 = vrsqrt.pop %v1395
      %v1437 = vrsqrt.pop %v1396
      %v1438 = vrsqrt.pop %v1397
      %v1439 = vrsqrt.pop %v1398
      %v1440 = vrsqrt.pop %v1399
      %v1441 = vrsqrt.pop %v1400
      %v1442 = vrsqrt.pop %v1401
      %v1443 = vrsqrt.pop %v1402
      %v1444 = vrsqrt.pop %v1403
      %v1445 = vrsqrt.pop %v1404
      %v1446 = vrsqrt.pop %v1405
      %v1447 = vrsqrt.pop %v1406
      %v1448 = vrsqrt.pop %v1407
      %v1449 = vrsqrt.pop %v1408
      %v1450 = vrsqrt.pop %v1409
      %v1451 = vrsqrt.pop %v1410
      %v1452 = vrsqrt.pop %v1411
      %v1453 = vrsqrt.pop %v1412
      %v1454 = vrsqrt.pop %v1413
      %v1455 = vrsqrt.pop %v1414
      %v1456 = vrsqrt.pop %v1415
      %v1457 = vrsqrt.pop %v1416
      %v1458 = vrsqrt.pop %v1417
      %v1459 = vrsqrt.pop %v1418
      %v1460 = vrsqrt.pop %v1419
      %v1461 = vrsqrt.pop %v1420
      %v1462 = vrsqrt.pop %v1421
      %v1463 = vrsqrt.pop %v1422
      %v1464 = vrsqrt.pop %v1423
      %v1465 = vrsqrt.pop %v1424
      %v1466 = vrsqrt.pop %v1425
      %v1467 = vrsqrt.pop %v1426
      %v1468 = vrsqrt.pop %v1427
      %v1469 = vrsqrt.pop %v1428
      %v1470 = vrsqrt.pop %v1429
      %v1471 = vrsqrt.pop %v1430
      %v1472 = vmul.f32 %v1144, %v1431
      %v1473 = vmul.f32 %v1145, %v1432
      %v1474 = vmul.f32 %v1146, %v1433
      %v1475 = vmul.f32 %v1147, %v1434
      %v1476 = vmul.f32 %v1148, %v1435
      %v1477 = vmul.f32 %v1149, %v1436
      %v1478 = vmul.f32 %v1150, %v1437
      %v1479 = vmul.f32 %v1151, %v1438
      %v1480 = vmul.f32 %v1152, %v1439
      %v1481 = vmul.f32 %v1153, %v1440
      %v1482 = vmul.f32 %v1154, %v1441
      %v1483 = vmul.f32 %v1155, %v1442
      %v1484 = vmul.f32 %v1156, %v1443
      %v1485 = vmul.f32 %v1157, %v1444
      %v1486 = vmul.f32 %v1158, %v1445
      %v1487 = vmul.f32 %v1159, %v1446
      %v1488 = vmul.f32 %v1160, %v1447
      %v1489 = vmul.f32 %v1161, %v1448
      %v1490 = vmul.f32 %v1162, %v1449
      %v1491 = vmul.f32 %v1163, %v1450
      %v1492 = vmul.f32 %v1164, %v1451
      %v1493 = vmul.f32 %v1165, %v1452
      %v1494 = vmul.f32 %v1166, %v1453
      %v1495 = vmul.f32 %v1167, %v1454
      %v1496 = vmul.f32 %v1168, %v1455
      %v1497 = vmul.f32 %v1169, %v1456
      %v1498 = vmul.f32 %v1170, %v1457
      %v1499 = vmul.f32 %v1171, %v1458
      %v1500 = vmul.f32 %v1172, %v1459
      %v1501 = vmul.f32 %v1173, %v1460
      %v1502 = vmul.f32 %v1174, %v1461
      %v1503 = vmul.f32 %v1175, %v1462
      %v1504 = vmul.f32 %v1176, %v1463
      %v1505 = vmul.f32 %v1177, %v1464
      %v1506 = vmul.f32 %v1178, %v1465
      %v1507 = vmul.f32 %v1179, %v1466
      %v1508 = vmul.f32 %v1180, %v1467
      %v1509 = vmul.f32 %v1181, %v1468
      %v1510 = vmul.f32 %v1182, %v1469
      %v1511 = vmul.f32 %v1183, %v1470
      %v1512 = vmul.f32 %v1184, %v1471
      %v1513 = vld [vmem:[%s1] sm:$0x1]
      %v1515 = vlaneseq
      %v1516 = vshrl.u32 %v1515, 7
      %v1517 = vsub.s32 0, %v1516
      %v1518 = vrot.slane %v1513, %v1517
      %v1520 = vmul.f32 %v1472, %v1518
      %v1521 = vmul.f32 %v1473, %v1518
      %v1522 = vmul.f32 %v1474, %v1518
      %v1523 = vmul.f32 %v1475, %v1518
      %v1524 = vmul.f32 %v1476, %v1518
      %v1525 = vmul.f32 %v1477, %v1518
      %v1526 = vmul.f32 %v1478, %v1518
      %v1527 = vmul.f32 %v1479, %v1518
      %v1528 = vmul.f32 %v1480, %v1518
      %v1529 = vmul.f32 %v1481, %v1518
      %v1530 = vmul.f32 %v1482, %v1518
      %v1531 = vmul.f32 %v1483, %v1518
      %v1532 = vmul.f32 %v1484, %v1518
      %v1533 = vmul.f32 %v1485, %v1518
      %v1534 = vmul.f32 %v1486, %v1518
      %v1535 = vmul.f32 %v1487, %v1518
      %v1536 = vmul.f32 %v1488, %v1518
      %v1537 = vmul.f32 %v1489, %v1518
      %v1538 = vmul.f32 %v1490, %v1518
      %v1539 = vmul.f32 %v1491, %v1518
      %v1540 = vmul.f32 %v1492, %v1518
      %v1541 = vmul.f32 %v1493, %v1518
      %v1542 = vmul.f32 %v1494, %v1518
      %v1543 = vmul.f32 %v1495, %v1518
      %v1544 = vmul.f32 %v1496, %v1518
      %v1545 = vmul.f32 %v1497, %v1518
      %v1546 = vmul.f32 %v1498, %v1518
      %v1547 = vmul.f32 %v1499, %v1518
      %v1548 = vmul.f32 %v1500, %v1518
      %v1549 = vmul.f32 %v1501, %v1518
      %v1550 = vmul.f32 %v1502, %v1518
      %v1551 = vmul.f32 %v1503, %v1518
      %v1552 = vmul.f32 %v1504, %v1518
      %v1553 = vmul.f32 %v1505, %v1518
      %v1554 = vmul.f32 %v1506, %v1518
      %v1555 = vmul.f32 %v1507, %v1518
      %v1556 = vmul.f32 %v1508, %v1518
      %v1557 = vmul.f32 %v1509, %v1518
      %v1558 = vmul.f32 %v1510, %v1518
      %v1559 = vmul.f32 %v1511, %v1518
      %v1560 = vmul.f32 %v1512, %v1518
      %v1561 = vld [vmem:[%s2] sm:$0x1]
      %v1563 = vlaneseq
      %v1564 = vshrl.u32 %v1563, 7
      %v1565 = vsub.s32 0, %v1564
      %v1566 = vrot.slane %v1561, %v1565
      %v1568 = vadd.f32 %v1520, %v1566
      %v1569 = vadd.f32 %v1521, %v1566
      %v1570 = vadd.f32 %v1522, %v1566
      %v1571 = vadd.f32 %v1523, %v1566
      %v1572 = vadd.f32 %v1524, %v1566
      %v1573 = vadd.f32 %v1525, %v1566
      %v1574 = vadd.f32 %v1526, %v1566
      %v1575 = vadd.f32 %v1527, %v1566
      %v1576 = vadd.f32 %v1528, %v1566
      %v1577 = vadd.f32 %v1529, %v1566
      %v1578 = vadd.f32 %v1530, %v1566
      %v1579 = vadd.f32 %v1531, %v1566
      %v1580 = vadd.f32 %v1532, %v1566
      %v1581 = vadd.f32 %v1533, %v1566
      %v1582 = vadd.f32 %v1534, %v1566
      %v1583 = vadd.f32 %v1535, %v1566
      %v1584 = vadd.f32 %v1536, %v1566
      %v1585 = vadd.f32 %v1537, %v1566
      %v1586 = vadd.f32 %v1538, %v1566
      %v1587 = vadd.f32 %v1539, %v1566
      %v1588 = vadd.f32 %v1540, %v1566
      %v1589 = vadd.f32 %v1541, %v1566
      %v1590 = vadd.f32 %v1542, %v1566
      %v1591 = vadd.f32 %v1543, %v1566
      %v1592 = vadd.f32 %v1544, %v1566
      %v1593 = vadd.f32 %v1545, %v1566
      %v1594 = vadd.f32 %v1546, %v1566
      %v1595 = vadd.f32 %v1547, %v1566
      %v1596 = vadd.f32 %v1548, %v1566
      %v1597 = vadd.f32 %v1549, %v1566
      %v1598 = vadd.f32 %v1550, %v1566
      %v1599 = vadd.f32 %v1551, %v1566
      %v1600 = vadd.f32 %v1552, %v1566
      %v1601 = vadd.f32 %v1553, %v1566
      %v1602 = vadd.f32 %v1554, %v1566
      %v1603 = vadd.f32 %v1555, %v1566
      %v1604 = vadd.f32 %v1556, %v1566
      %v1605 = vadd.f32 %v1557, %v1566
      %v1606 = vadd.f32 %v1558, %v1566
      %v1607 = vadd.f32 %v1559, %v1566
      %v1608 = vadd.f32 %v1560, %v1566
      %v1609 = vpack.c.bf16 %v1569, %v1568
      %v1610 = vpack.c.bf16 %v1571, %v1570
      %v1611 = vpack.c.bf16 %v1573, %v1572
      %v1612 = vpack.c.bf16 %v1575, %v1574
      %v1613 = vpack.c.bf16 %v1577, %v1576
      %v1614 = vpack.c.bf16 %v1579, %v1578
      %v1615 = vpack.c.bf16 %v1581, %v1580
      %v1616 = vpack.c.bf16 %v1583, %v1582
      %v1617 = vpack.c.bf16 %v1585, %v1584
      %v1618 = vpack.c.bf16 %v1587, %v1586
      %v1619 = vpack.c.bf16 %v1589, %v1588
      %v1620 = vpack.c.bf16 %v1591, %v1590
      %v1621 = vpack.c.bf16 %v1593, %v1592
      %v1622 = vpack.c.bf16 %v1595, %v1594
      %v1623 = vpack.c.bf16 %v1597, %v1596
      %v1624 = vpack.c.bf16 %v1599, %v1598
      %v1625 = vpack.c.bf16 %v1601, %v1600
      %v1626 = vpack.c.bf16 %v1603, %v1602
      %v1627 = vpack.c.bf16 %v1605, %v1604
      %v1628 = vpack.c.bf16 %v1607, %v1606
      %v1629 = vpack.c.bf16 %v1608, %v1608
      %v1630 = vld [vmem:[%s3] sm:$0xff]
      %v1631 = vld [vmem:[%s3 + $0x8] sm:$0xf]
      %v1632 = vld [vmem:[%s3 + $0xc] sm:$0xff]
      %v1633 = vld [vmem:[%s3 + $0x14] sm:$0xf]
      %v1634 = vld [vmem:[%s3 + $0x18] sm:$0xff]
      %v1635 = vld [vmem:[%s3 + $0x20] sm:$0xf]
      %v1636 = vld [vmem:[%s3 + $0x24] sm:$0xff]
      %v1637 = vld [vmem:[%s3 + $0x2c] sm:$0xf]
      %v1638 = vld [vmem:[%s3 + $0x30] sm:$0x33]
      %v1639 = vld [vmem:[%s3 + $0x38] sm:$0x3]
      %v1650 = vunpack.c.l.b16 %v1630
      %v1651 = vunpack.c.h.b16 %v1630
      %v1652 = vunpack.c.l.b16 %v1631
      %v1653 = vunpack.c.l.b16 %v1632
      %v1654 = vunpack.c.h.b16 %v1632
      %v1655 = vunpack.c.l.b16 %v1633
      %v1656 = vunpack.c.l.b16 %v1634
      %v1657 = vunpack.c.h.b16 %v1634
      %v1658 = vunpack.c.l.b16 %v1635
      %v1659 = vunpack.c.l.b16 %v1636
      %v1660 = vunpack.c.h.b16 %v1636
      %v1661 = vunpack.c.l.b16 %v1637
      %v1662 = vunpack.c.l.b16 %v1638
      %v1663 = vunpack.c.h.b16 %v1638
      %v1664 = vunpack.c.l.b16 %v1639
      %v1665 = vpack.c.b16 %v1653, %v1650
      %v1666 = vpack.c.b16 %v1654, %v1651
      %v1667 = vpack.c.b16 %v1655, %v1652
      %v1668 = vpack.c.b16 %v1659, %v1656
      %v1669 = vpack.c.b16 %v1660, %v1657
      %v1670 = vpack.c.b16 %v1661, %v1658
      %v1671 = vpack.c.b16 %v1662, %v1662
      %v1672 = vpack.c.b16 %v1663, %v1663
      %v1673 = vpack.c.b16 %v1664, %v1664
      %v1681 = vsel %vm977, %v1609, 0
      %v1684 = vsel %vm977, %v1610, 0
      %v1687 = vsel %vm977, %v1611, 0
      %v1690 = vsel %vm977, %v1612, 0
      %v1693 = vsel %vm977, %v1613, 0
      %v1696 = vsel %vm977, %v1614, 0
      %v1699 = vsel %vm977, %v1615, 0
      %v1702 = vsel %vm977, %v1616, 0
      %v1705 = vsel %vm977, %v1617, 0
      %v1708 = vsel %vm977, %v1618, 0
      %v1711 = vsel %vm977, %v1619, 0
      %v1714 = vsel %vm977, %v1620, 0
      %v1717 = vsel %vm977, %v1621, 0
      %v1720 = vsel %vm977, %v1622, 0
      %v1723 = vsel %vm977, %v1623, 0
      %v1726 = vsel %vm977, %v1624, 0
      %v1729 = vsel %vm977, %v1625, 0
      %v1732 = vsel %vm977, %v1626, 0
      %v1735 = vsel %vm977, %v1627, 0
      %v1738 = vsel %vm977, %v1628, 0
      %v1741 = vsel %vm977, %v1629, 0
      %vm1743 = vcmask 1041408
      %v1745 = vsel %vm1743, %v1671, 0
      %v1748 = vsel %vm1743, %v1672, 0
      %v1751 = vsel %vm1743, %v1673, 0
      %1753 = vmatprep.subr.bf16.mxu0 %v1666
      %1754 = vmatpush1.bf16.msra.mxu0 %v1665
      %1755 = vmatprep.subr.bf16.mxu0 %v1669
      %1756 = vmatpush1.bf16.msra.mxu0 %v1668
      %1757 = vmatprep.subr.bf16.mxu0 %v1748
      %1758 = vmatpush1.bf16.msra.mxu0 %v1745
      %1759 = vmatprep.subr.bf16.mxu0 0
      %1760 = vmatpush1.bf16.msra.mxu0 0
      %1761 = vmatprep.subr.bf16.mxu0 0
      %1762 = vmatpush1.bf16.msra.mxu0 0
      %1763 = vmatprep.subr.bf16.mxu0 0
      %1764 = vmatpush1.bf16.msra.mxu0 0
      %1765 = vmatprep.subr.bf16.mxu0 0
      %1766 = vmatpush1.bf16.msra.mxu0 0
      %1767 = vmatprep.subr.bf16.mxu0 0
      %1768 = vmatpush1.bf16.msra.mxu0 0
      %1769 = vmatprep.subr.bf16.mxu0 0
      %1770 = vmatpush1.bf16.msra.mxu0 0
      %1771 = vmatprep.subr.bf16.mxu0 0
      %1772 = vmatpush1.bf16.msra.mxu0 0
      %1773 = vmatprep.subr.bf16.mxu0 0
      %1774 = vmatpush1.bf16.msra.mxu0 0
      %1775 = vmatprep.subr.bf16.mxu0 0
      %1776 = vmatpush1.bf16.msra.mxu0 0
      %1777 = vmatprep.subr.bf16.mxu0 0
      %1778 = vmatpush1.bf16.msra.mxu0 0
      %1779 = vmatprep.subr.bf16.mxu0 0
      %1780 = vmatpush1.bf16.msra.mxu0 0
      %1781 = vmatprep.subr.bf16.mxu0 0
      %1782 = vmatpush1.bf16.msra.mxu0 0
      %1783 = vmatprep.subr.bf16.mxu0 0
      %1784 = vmatpush1.bf16.msra.mxu0 0
      %1785 = vmatprep.mubr.bf16.mxu0 0
      %1786 = vmatmul.mubr.bf16.gmra.mrb[0].mxu0 %v1681
      %v1787 = vpop.f32.mrb[0].mxu0
      %v1788 = vadd.f32 0.0, %v1787
      %v1789 = vpop.f32.mrb[0].mxu0
      %v1790 = vadd.f32 0.0, %v1789
      %v1791 = vpop.f32.mrb[0].mxu0
      %v1792 = vadd.f32 0.0, %v1791
      %v1793 = vpop.f32.mrb[0].mxu0
      %v1794 = vadd.f32 0.0, %v1793
      %1795 = vmatprep.mubr.bf16.mxu0 0
      %1796 = vmatmul.mubr.bf16.gmra.mrb[0].mxu0 %v1684
      %v1797 = vpop.f32.mrb[0].mxu0
      %v1798 = vadd.f32 0.0, %v1797
      %v1799 = vpop.f32.mrb[0].mxu0
      %v1800 = vadd.f32 0.0, %v1799
      %v1801 = vpop.f32.mrb[0].mxu0
      %v1802 = vadd.f32 0.0, %v1801
      %v1803 = vpop.f32.mrb[0].mxu0
      %v1804 = vadd.f32 0.0, %v1803
      %1805 = vmatprep.mubr.bf16.mxu0 0
      %1806 = vmatmul.mubr.bf16.gmra.mrb[0].mxu0 %v1687
      %v1807 = vpop.f32.mrb[0].mxu0
      %v1808 = vadd.f32 0.0, %v1807
      %v1809 = vpop.f32.mrb[0].mxu0
      %v1810 = vadd.f32 0.0, %v1809
      %v1811 = vpop.f32.mrb[0].mxu0
      %v1812 = vadd.f32 0.0, %v1811
      %v1813 = vpop.f32.mrb[0].mxu0
      %v1814 = vadd.f32 0.0, %v1813
      %1815 = vmatprep.mubr.bf16.mxu0 0
      %1816 = vmatmul.mubr.bf16.gmra.mrb[0].mxu0 %v1690
      %v1817 = vpop.f32.mrb[0].mxu0
      %v1818 = vadd.f32 0.0, %v1817
      %v1819 = vpop.f32.mrb[0].mxu0
      %v1820 = vadd.f32 0.0, %v1819
      %v1821 = vpop.f32.mrb[0].mxu0
      %v1822 = vadd.f32 0.0, %v1821
      %v1823 = vpop.f32.mrb[0].mxu0
      %v1824 = vadd.f32 0.0, %v1823
      %1825 = vmatprep.mubr.bf16.mxu0 0
      %1826 = vmatmul.mubr.bf16.gmra.mrb[0].mxu0 %v1693
      %v1827 = vpop.f32.mrb[0].mxu0
      %v1828 = vadd.f32 0.0, %v1827
      %v1829 = vpop.f32.mrb[0].mxu0
      %v1830 = vadd.f32 0.0, %v1829
      %v1831 = vpop.f32.mrb[0].mxu0
      %v1832 = vadd.f32 0.0, %v1831
      %v1833 = vpop.f32.mrb[0].mxu0
      %v1834 = vadd.f32 0.0, %v1833
      %1835 = vmatprep.mubr.bf16.mxu0 0
      %1836 = vmatmul.mubr.bf16.gmra.mrb[0].mxu0 %v1696
      %v1837 = vpop.f32.mrb[0].mxu0
      %v1838 = vadd.f32 0.0, %v1837
      %v1839 = vpop.f32.mrb[0].mxu0
      %v1840 = vadd.f32 0.0, %v1839
      %v1841 = vpop.f32.mrb[0].mxu0
      %v1842 = vadd.f32 0.0, %v1841
      %v1843 = vpop.f32.mrb[0].mxu0
      %v1844 = vadd.f32 0.0, %v1843
      %1845 = vmatprep.mubr.bf16.mxu0 0
      %1846 = vmatmul.mubr.bf16.gmra.mrb[0].mxu0 %v1699
      %v1847 = vpop.f32.mrb[0].mxu0
      %v1848 = vadd.f32 0.0, %v1847
      %v1849 = vpop.f32.mrb[0].mxu0
      %v1850 = vadd.f32 0.0, %v1849
      %v1851 = vpop.f32.mrb[0].mxu0
      %v1852 = vadd.f32 0.0, %v1851
      %v1853 = vpop.f32.mrb[0].mxu0
      %v1854 = vadd.f32 0.0, %v1853
      %1855 = vmatprep.mubr.bf16.mxu0 0
      %1856 = vmatmul.mubr.bf16.gmra.mrb[0].mxu0 %v1702
      %v1857 = vpop.f32.mrb[0].mxu0
      %v1858 = vadd.f32 0.0, %v1857
      %v1859 = vpop.f32.mrb[0].mxu0
      %v1860 = vadd.f32 0.0, %v1859
      %v1861 = vpop.f32.mrb[0].mxu0
      %v1862 = vadd.f32 0.0, %v1861
      %v1863 = vpop.f32.mrb[0].mxu0
      %v1864 = vadd.f32 0.0, %v1863
      %1865 = vmatprep.mubr.bf16.mxu0 0
      %1866 = vmatmul.mubr.bf16.gmra.mrb[0].mxu0 %v1705
      %v1867 = vpop.f32.mrb[0].mxu0
      %v1868 = vadd.f32 0.0, %v1867
      %v1869 = vpop.f32.mrb[0].mxu0
      %v1870 = vadd.f32 0.0, %v1869
      %v1871 = vpop.f32.mrb[0].mxu0
      %v1872 = vadd.f32 0.0, %v1871
      %v1873 = vpop.f32.mrb[0].mxu0
      %v1874 = vadd.f32 0.0, %v1873
      %1875 = vmatprep.mubr.bf16.mxu0 0
      %1876 = vmatmul.mubr.bf16.gmra.mrb[0].mxu0 %v1708
      %v1877 = vpop.f32.mrb[0].mxu0
      %v1878 = vadd.f32 0.0, %v1877
      %v1879 = vpop.f32.mrb[0].mxu0
      %v1880 = vadd.f32 0.0, %v1879
      %v1881 = vpop.f32.mrb[0].mxu0
      %v1882 = vadd.f32 0.0, %v1881
      %v1883 = vpop.f32.mrb[0].mxu0
      %v1884 = vadd.f32 0.0, %v1883
      %1885 = vmatprep.mubr.bf16.mxu0 0
      %1886 = vmatmul.mubr.bf16.gmra.mrb[0].mxu0 %v1711
      %v1887 = vpop.f32.mrb[0].mxu0
      %v1888 = vadd.f32 0.0, %v1887
      %v1889 = vpop.f32.mrb[0].mxu0
      %v1890 = vadd.f32 0.0, %v1889
      %v1891 = vpop.f32.mrb[0].mxu0
      %v1892 = vadd.f32 0.0, %v1891
      %v1893 = vpop.f32.mrb[0].mxu0
      %v1894 = vadd.f32 0.0, %v1893
      %1895 = vmatprep.mubr.bf16.mxu0 0
      %1896 = vmatmul.mubr.bf16.gmra.mrb[0].mxu0 %v1714
      %v1897 = vpop.f32.mrb[0].mxu0
      %v1898 = vadd.f32 0.0, %v1897
      %v1899 = vpop.f32.mrb[0].mxu0
      %v1900 = vadd.f32 0.0, %v1899
      %v1901 = vpop.f32.mrb[0].mxu0
      %v1902 = vadd.f32 0.0, %v1901
      %v1903 = vpop.f32.mrb[0].mxu0
      %v1904 = vadd.f32 0.0, %v1903
      %1905 = vmatprep.mubr.bf16.mxu0 0
      %1906 = vmatmul.mubr.bf16.gmra.mrb[0].mxu0 %v1717
      %v1907 = vpop.f32.mrb[0].mxu0
      %v1908 = vadd.f32 0.0, %v1907
      %v1909 = vpop.f32.mrb[0].mxu0
      %v1910 = vadd.f32 0.0, %v1909
      %v1911 = vpop.f32.mrb[0].mxu0
      %v1912 = vadd.f32 0.0, %v1911
      %v1913 = vpop.f32.mrb[0].mxu0
      %v1914 = vadd.f32 0.0, %v1913
      %1915 = vmatprep.mubr.bf16.mxu0 0
      %1916 = vmatmul.mubr.bf16.gmra.mrb[0].mxu0 %v1720
      %v1917 = vpop.f32.mrb[0].mxu0
      %v1918 = vadd.f32 0.0, %v1917
      %v1919 = vpop.f32.mrb[0].mxu0
      %v1920 = vadd.f32 0.0, %v1919
      %v1921 = vpop.f32.mrb[0].mxu0
      %v1922 = vadd.f32 0.0, %v1921
      %v1923 = vpop.f32.mrb[0].mxu0
      %v1924 = vadd.f32 0.0, %v1923
      %1925 = vmatprep.mubr.bf16.mxu0 0
      %1926 = vmatmul.mubr.bf16.gmra.mrb[0].mxu0 %v1723
      %v1927 = vpop.f32.mrb[0].mxu0
      %v1928 = vadd.f32 0.0, %v1927
      %v1929 = vpop.f32.mrb[0].mxu0
      %v1930 = vadd.f32 0.0, %v1929
      %v1931 = vpop.f32.mrb[0].mxu0
      %v1932 = vadd.f32 0.0, %v1931
      %v1933 = vpop.f32.mrb[0].mxu0
      %v1934 = vadd.f32 0.0, %v1933
      %1935 = vmatprep.mubr.bf16.mxu0 0
      %1936 = vmatmul.mubr.bf16.gmra.mrb[0].mxu0 %v1726
      %v1937 = vpop.f32.mrb[0].mxu0
      %v1938 = vadd.f32 0.0, %v1937
      %v1939 = vpop.f32.mrb[0].mxu0
      %v1940 = vadd.f32 0.0, %v1939
      %v1941 = vpop.f32.mrb[0].mxu0
      %v1942 = vadd.f32 0.0, %v1941
      %v1943 = vpop.f32.mrb[0].mxu0
      %v1944 = vadd.f32 0.0, %v1943
      %1945 = vmatprep.mubr.bf16.mxu0 0
      %1946 = vmatmul.mubr.bf16.gmra.mrb[0].mxu0 %v1729
      %v1947 = vpop.f32.mrb[0].mxu0
      %v1948 = vadd.f32 0.0, %v1947
      %v1949 = vpop.f32.mrb[0].mxu0
      %v1950 = vadd.f32 0.0, %v1949
      %v1951 = vpop.f32.mrb[0].mxu0
      %v1952 = vadd.f32 0.0, %v1951
      %v1953 = vpop.f32.mrb[0].mxu0
      %v1954 = vadd.f32 0.0, %v1953
      %1955 = vmatprep.mubr.bf16.mxu0 0
      %1956 = vmatmul.mubr.bf16.gmra.mrb[0].mxu0 %v1732
      %v1957 = vpop.f32.mrb[0].mxu0
      %v1958 = vadd.f32 0.0, %v1957
      %v1959 = vpop.f32.mrb[0].mxu0
      %v1960 = vadd.f32 0.0, %v1959
      %v1961 = vpop.f32.mrb[0].mxu0
      %v1962 = vadd.f32 0.0, %v1961
      %v1963 = vpop.f32.mrb[0].mxu0
      %v1964 = vadd.f32 0.0, %v1963
      %1965 = vmatprep.mubr.bf16.mxu0 0
      %1966 = vmatmul.mubr.bf16.gmra.mrb[0].mxu0 %v1735
      %v1967 = vpop.f32.mrb[0].mxu0
      %v1968 = vadd.f32 0.0, %v1967
      %v1969 = vpop.f32.mrb[0].mxu0
      %v1970 = vadd.f32 0.0, %v1969
      %v1971 = vpop.f32.mrb[0].mxu0
      %v1972 = vadd.f32 0.0, %v1971
      %v1973 = vpop.f32.mrb[0].mxu0
      %v1974 = vadd.f32 0.0, %v1973
      %1975 = vmatprep.mubr.bf16.mxu0 0
      %1976 = vmatmul.mubr.bf16.gmra.mrb[0].mxu0 %v1738
      %v1977 = vpop.f32.mrb[0].mxu0
      %v1978 = vadd.f32 0.0, %v1977
      %v1979 = vpop.f32.mrb[0].mxu0
      %v1980 = vadd.f32 0.0, %v1979
      %v1981 = vpop.f32.mrb[0].mxu0
      %v1982 = vadd.f32 0.0, %v1981
      %v1983 = vpop.f32.mrb[0].mxu0
      %v1984 = vadd.f32 0.0, %v1983
      %1985 = vmatprep.mubr.bf16.mxu0 0
      %1986 = vmatmul.mubr.bf16.gmra.mrb[0].mxu0 %v1741
      %v1987 = vpop.f32.mrb[0].mxu0
      %v1988 = vadd.f32 0.0, %v1987
      %v1989 = vpop.f32.mrb[0].mxu0
      %v1990 = vadd.f32 0.0, %v1989
      %v1991 = vpop.f32.mrb[0].mxu0
      %v1992 = vpop.f32.mrb[0].mxu0
      %1993 = vdwg.mxu0
      %1994 = vmatprep.subr.bf16.mxu0 0
      %1995 = vmatpush1.bf16.msra.mxu0 %v1667
      %1996 = vmatprep.subr.bf16.mxu0 0
      %1997 = vmatpush1.bf16.msra.mxu0 %v1670
      %1998 = vmatprep.subr.bf16.mxu0 0
      %1999 = vmatpush1.bf16.msra.mxu0 %v1751
      %2000 = vmatprep.subr.bf16.mxu0 0
      %2001 = vmatpush1.bf16.msra.mxu0 0
      %2002 = vmatprep.subr.bf16.mxu0 0
      %2003 = vmatpush1.bf16.msra.mxu0 0
      %2004 = vmatprep.subr.bf16.mxu0 0
      %2005 = vmatpush1.bf16.msra.mxu0 0
      %2006 = vmatprep.subr.bf16.mxu0 0
      %2007 = vmatpush1.bf16.msra.mxu0 0
      %2008 = vmatprep.subr.bf16.mxu0 0
      %2009 = vmatpush1.bf16.msra.mxu0 0
      %2010 = vmatprep.subr.bf16.mxu0 0
      %2011 = vmatpush1.bf16.msra.mxu0 0
      %2012 = vmatprep.subr.bf16.mxu0 0
      %2013 = vmatpush1.bf16.msra.mxu0 0
      %2014 = vmatprep.subr.bf16.mxu0 0
      %2015 = vmatpush1.bf16.msra.mxu0 0
      %2016 = vmatprep.subr.bf16.mxu0 0
      %2017 = vmatpush1.bf16.msra.mxu0 0
      %2018 = vmatprep.subr.bf16.mxu0 0
      %2019 = vmatpush1.bf16.msra.mxu0 0
      %2020 = vmatprep.subr.bf16.mxu0 0
      %2021 = vmatpush1.bf16.msra.mxu0 0
      %2022 = vmatprep.subr.bf16.mxu0 0
      %2023 = vmatpush1.bf16.msra.mxu0 0
      %2024 = vmatprep.subr.bf16.mxu0 0
      %2025 = vmatpush1.bf16.msra.mxu0 0
      %2026 = vmatprep.mubr.bf16.mxu0 0
      %2027 = vmatmul.mubr.bf16.gmra.mrb[0].mxu0 %v1681
      %v2028 = vpop.f32.mrb[0].mxu0
      %v2029 = vadd.f32 0.0, %v2028
      %v2030 = vpop.f32.mrb[0].mxu0
      %v2031 = vpop.f32.mrb[0].mxu0
      %v2032 = vadd.f32 0.0, %v2031
      %v2033 = vpop.f32.mrb[0].mxu0
      %2034 = vmatprep.mubr.bf16.mxu0 0
      %2035 = vmatmul.mubr.bf16.gmra.mrb[0].mxu0 %v1684
      %v2036 = vpop.f32.mrb[0].mxu0
      %v2037 = vadd.f32 0.0, %v2036
      %v2038 = vpop.f32.mrb[0].mxu0
      %v2039 = vpop.f32.mrb[0].mxu0
      %v2040 = vadd.f32 0.0, %v2039
      %v2041 = vpop.f32.mrb[0].mxu0
      %2042 = vmatprep.mubr.bf16.mxu0 0
      %2043 = vmatmul.mubr.bf16.gmra.mrb[0].mxu0 %v1687
      %v2044 = vpop.f32.mrb[0].mxu0
      %v2045 = vadd.f32 0.0, %v2044
      %v2046 = vpop.f32.mrb[0].mxu0
      %v2047 = vpop.f32.mrb[0].mxu0
      %v2048 = vadd.f32 0.0, %v2047
      %v2049 = vpop.f32.mrb[0].mxu0
      %2050 = vmatprep.mubr.bf16.mxu0 0
      %2051 = vmatmul.mubr.bf16.gmra.mrb[0].mxu0 %v1690
      %v2052 = vpop.f32.mrb[0].mxu0
      %v2053 = vadd.f32 0.0, %v2052
      %v2054 = vpop.f32.mrb[0].mxu0
      %v2055 = vpop.f32.mrb[0].mxu0
      %v2056 = vadd.f32 0.0, %v2055
      %v2057 = vpop.f32.mrb[0].mxu0
      %2058 = vmatprep.mubr.bf16.mxu0 0
      %2059 = vmatmul.mubr.bf16.gmra.mrb[0].mxu0 %v1693
      %v2060 = vpop.f32.mrb[0].mxu0
      %v2061 = vadd.f32 0.0, %v2060
      %v2062 = vpop.f32.mrb[0].mxu0
      %v2063 = vpop.f32.mrb[0].mxu0
      %v2064 = vadd.f32 0.0, %v2063
      %v2065 = vpop.f32.mrb[0].mxu0
      %2066 = vmatprep.mubr.bf16.mxu0 0
      %2067 = vmatmul.mubr.bf16.gmra.mrb[0].mxu0 %v1696
      %v2068 = vpop.f32.mrb[0].mxu0
      %v2069 = vadd.f32 0.0, %v2068
      %v2070 = vpop.f32.mrb[0].mxu0
      %v2071 = vpop.f32.mrb[0].mxu0
      %v2072 = vadd.f32 0.0, %v2071
      %v2073 = vpop.f32.mrb[0].mxu0
      %2074 = vmatprep.mubr.bf16.mxu0 0
      %2075 = vmatmul.mubr.bf16.gmra.mrb[0].mxu0 %v1699
      %v2076 = vpop.f32.mrb[0].mxu0
      %v2077 = vadd.f32 0.0, %v2076
      %v2078 = vpop.f32.mrb[0].mxu0
      %v2079 = vpop.f32.mrb[0].mxu0
      %v2080 = vadd.f32 0.0, %v2079
      %v2081 = vpop.f32.mrb[0].mxu0
      %2082 = vmatprep.mubr.bf16.mxu0 0
      %2083 = vmatmul.mubr.bf16.gmra.mrb[0].mxu0 %v1702
      %v2084 = vpop.f32.mrb[0].mxu0
      %v2085 = vadd.f32 0.0, %v2084
      %v2086 = vpop.f32.mrb[0].mxu0
      %v2087 = vpop.f32.mrb[0].mxu0
      %v2088 = vadd.f32 0.0, %v2087
      %v2089 = vpop.f32.mrb[0].mxu0
      %2090 = vmatprep.mubr.bf16.mxu0 0
      %2091 = vmatmul.mubr.bf16.gmra.mrb[0].mxu0 %v1705
      %v2092 = vpop.f32.mrb[0].mxu0
      %v2093 = vadd.f32 0.0, %v2092
      %v2094 = vpop.f32.mrb[0].mxu0
      %v2095 = vpop.f32.mrb[0].mxu0
      %v2096 = vadd.f32 0.0, %v2095
      %v2097 = vpop.f32.mrb[0].mxu0
      %2098 = vmatprep.mubr.bf16.mxu0 0
      %2099 = vmatmul.mubr.bf16.gmra.mrb[0].mxu0 %v1708
      %v2100 = vpop.f32.mrb[0].mxu0
      %v2101 = vadd.f32 0.0, %v2100
      %v2102 = vpop.f32.mrb[0].mxu0
      %v2103 = vpop.f32.mrb[0].mxu0
      %v2104 = vadd.f32 0.0, %v2103
      %v2105 = vpop.f32.mrb[0].mxu0
      %2106 = vmatprep.mubr.bf16.mxu0 0
      %2107 = vmatmul.mubr.bf16.gmra.mrb[0].mxu0 %v1711
      %v2108 = vpop.f32.mrb[0].mxu0
      %v2109 = vadd.f32 0.0, %v2108
      %v2110 = vpop.f32.mrb[0].mxu0
      %v2111 = vpop.f32.mrb[0].mxu0
      %v2112 = vadd.f32 0.0, %v2111
      %v2113 = vpop.f32.mrb[0].mxu0
      %2114 = vmatprep.mubr.bf16.mxu0 0
      %2115 = vmatmul.mubr.bf16.gmra.mrb[0].mxu0 %v1714
      %v2116 = vpop.f32.mrb[0].mxu0
      %v2117 = vadd.f32 0.0, %v2116
      %v2118 = vpop.f32.mrb[0].mxu0
      %v2119 = vpop.f32.mrb[0].mxu0
      %v2120 = vadd.f32 0.0, %v2119
      %v2121 = vpop.f32.mrb[0].mxu0
      %2122 = vmatprep.mubr.bf16.mxu0 0
      %2123 = vmatmul.mubr.bf16.gmra.mrb[0].mxu0 %v1717
      %v2124 = vpop.f32.mrb[0].mxu0
      %v2125 = vadd.f32 0.0, %v2124
      %v2126 = vpop.f32.mrb[0].mxu0
      %v2127 = vpop.f32.mrb[0].mxu0
      %v2128 = vadd.f32 0.0, %v2127
      %v2129 = vpop.f32.mrb[0].mxu0
      %2130 = vmatprep.mubr.bf16.mxu0 0
      %2131 = vmatmul.mubr.bf16.gmra.mrb[0].mxu0 %v1720
      %v2132 = vpop.f32.mrb[0].mxu0
      %v2133 = vadd.f32 0.0, %v2132
      %v2134 = vpop.f32.mrb[0].mxu0
      %v2135 = vpop.f32.mrb[0].mxu0
      %v2136 = vadd.f32 0.0, %v2135
      %v2137 = vpop.f32.mrb[0].mxu0
      %2138 = vmatprep.mubr.bf16.mxu0 0
      %2139 = vmatmul.mubr.bf16.gmra.mrb[0].mxu0 %v1723
      %v2140 = vpop.f32.mrb[0].mxu0
      %v2141 = vadd.f32 0.0, %v2140
      %v2142 = vpop.f32.mrb[0].mxu0
      %v2143 = vpop.f32.mrb[0].mxu0
      %v2144 = vadd.f32 0.0, %v2143
      %v2145 = vpop.f32.mrb[0].mxu0
      %2146 = vmatprep.mubr.bf16.mxu0 0
      %2147 = vmatmul.mubr.bf16.gmra.mrb[0].mxu0 %v1726
      %v2148 = vpop.f32.mrb[0].mxu0
      %v2149 = vadd.f32 0.0, %v2148
      %v2150 = vpop.f32.mrb[0].mxu0
      %v2151 = vpop.f32.mrb[0].mxu0
      %v2152 = vadd.f32 0.0, %v2151
      %v2153 = vpop.f32.mrb[0].mxu0
      %2154 = vmatprep.mubr.bf16.mxu0 0
      %2155 = vmatmul.mubr.bf16.gmra.mrb[0].mxu0 %v1729
      %v2156 = vpop.f32.mrb[0].mxu0
      %v2157 = vadd.f32 0.0, %v2156
      %v2158 = vpop.f32.mrb[0].mxu0
      %v2159 = vpop.f32.mrb[0].mxu0
      %v2160 = vadd.f32 0.0, %v2159
      %v2161 = vpop.f32.mrb[0].mxu0
      %2162 = vmatprep.mubr.bf16.mxu0 0
      %2163 = vmatmul.mubr.bf16.gmra.mrb[0].mxu0 %v1732
      %v2164 = vpop.f32.mrb[0].mxu0
      %v2165 = vadd.f32 0.0, %v2164
      %v2166 = vpop.f32.mrb[0].mxu0
      %v2167 = vpop.f32.mrb[0].mxu0
      %v2168 = vadd.f32 0.0, %v2167
      %v2169 = vpop.f32.mrb[0].mxu0
      %2170 = vmatprep.mubr.bf16.mxu0 0
      %2171 = vmatmul.mubr.bf16.gmra.mrb[0].mxu0 %v1735
      %v2172 = vpop.f32.mrb[0].mxu0
      %v2173 = vadd.f32 0.0, %v2172
      %v2174 = vpop.f32.mrb[0].mxu0
      %v2175 = vpop.f32.mrb[0].mxu0
      %v2176 = vadd.f32 0.0, %v2175
      %v2177 = vpop.f32.mrb[0].mxu0
      %2178 = vmatprep.mubr.bf16.mxu0 0
      %2179 = vmatmul.mubr.bf16.gmra.mrb[0].mxu0 %v1738
      %v2180 = vpop.f32.mrb[0].mxu0
      %v2181 = vadd.f32 0.0, %v2180
      %v2182 = vpop.f32.mrb[0].mxu0
      %v2183 = vpop.f32.mrb[0].mxu0
      %v2184 = vadd.f32 0.0, %v2183
      %v2185 = vpop.f32.mrb[0].mxu0
      %2186 = vmatprep.mubr.bf16.mxu0 0
      %2187 = vmatmul.mubr.bf16.gmra.mrb[0].mxu0 %v1741
      %v2188 = vpop.f32.mrb[0].mxu0
      %v2189 = vadd.f32 0.0, %v2188
      %v2190 = vpop.f32.mrb[0].mxu0
      %v2191 = vpop.f32.mrb[0].mxu0
      %v2192 = vpop.f32.mrb[0].mxu0
      %2193 = vdwg.mxu0
      %v2194 = vpack.c.bf16 %v1792, %v1788
      %v2195 = vpack.c.bf16 %v1802, %v1798
      %v2196 = vpack.c.bf16 %v1812, %v1808
      %v2197 = vpack.c.bf16 %v1822, %v1818
      %v2198 = vpack.c.bf16 %v1832, %v1828
      %v2199 = vpack.c.bf16 %v1842, %v1838
      %v2200 = vpack.c.bf16 %v1852, %v1848
      %v2201 = vpack.c.bf16 %v1862, %v1858
      %v2202 = vpack.c.bf16 %v1872, %v1868
      %v2203 = vpack.c.bf16 %v1882, %v1878
      %v2204 = vpack.c.bf16 %v1892, %v1888
      %v2205 = vpack.c.bf16 %v1902, %v1898
      %v2206 = vpack.c.bf16 %v1912, %v1908
      %v2207 = vpack.c.bf16 %v1922, %v1918
      %v2208 = vpack.c.bf16 %v1932, %v1928
      %v2209 = vpack.c.bf16 %v1942, %v1938
      %v2210 = vpack.c.bf16 %v1952, %v1948
      %v2211 = vpack.c.bf16 %v1962, %v1958
      %v2212 = vpack.c.bf16 %v1972, %v1968
      %v2213 = vpack.c.bf16 %v1982, %v1978
      %v2214 = vpack.c.bf16 %v1988, %v1988
      %v2215 = vpack.c.bf16 %v1794, %v1790
      %v2216 = vpack.c.bf16 %v1804, %v1800
      %v2217 = vpack.c.bf16 %v1814, %v1810
      %v2218 = vpack.c.bf16 %v1824, %v1820
      %v2219 = vpack.c.bf16 %v1834, %v1830
      %v2220 = vpack.c.bf16 %v1844, %v1840
      %v2221 = vpack.c.bf16 %v1854, %v1850
      %v2222 = vpack.c.bf16 %v1864, %v1860
      %v2223 = vpack.c.bf16 %v1874, %v1870
      %v2224 = vpack.c.bf16 %v1884, %v1880
      %v2225 = vpack.c.bf16 %v1894, %v1890
      %v2226 = vpack.c.bf16 %v1904, %v1900
      %v2227 = vpack.c.bf16 %v1914, %v1910
      %v2228 = vpack.c.bf16 %v1924, %v1920
      %v2229 = vpack.c.bf16 %v1934, %v1930
      %v2230 = vpack.c.bf16 %v1944, %v1940
      %v2231 = vpack.c.bf16 %v1954, %v1950
      %v2232 = vpack.c.bf16 %v1964, %v1960
      %v2233 = vpack.c.bf16 %v1974, %v1970
      %v2234 = vpack.c.bf16 %v1984, %v1980
      %v2235 = vpack.c.bf16 %v1990, %v1990
      %v2236 = vpack.c.bf16 %v2032, %v2029
      %v2237 = vpack.c.bf16 %v2040, %v2037
      %v2238 = vpack.c.bf16 %v2048, %v2045
      %v2239 = vpack.c.bf16 %v2056, %v2053
      %v2240 = vpack.c.bf16 %v2064, %v2061
      %v2241 = vpack.c.bf16 %v2072, %v2069
      %v2242 = vpack.c.bf16 %v2080, %v2077
      %v2243 = vpack.c.bf16 %v2088, %v2085
      %v2244 = vpack.c.bf16 %v2096, %v2093
      %v2245 = vpack.c.bf16 %v2104, %v2101
      %v2246 = vpack.c.bf16 %v2112, %v2109
      %v2247 = vpack.c.bf16 %v2120, %v2117
      %v2248 = vpack.c.bf16 %v2128, %v2125
      %v2249 = vpack.c.bf16 %v2136, %v2133
      %v2250 = vpack.c.bf16 %v2144, %v2141
      %v2251 = vpack.c.bf16 %v2152, %v2149
      %v2252 = vpack.c.bf16 %v2160, %v2157
      %v2253 = vpack.c.bf16 %v2168, %v2165
      %v2254 = vpack.c.bf16 %v2176, %v2173
      %v2255 = vpack.c.bf16 %v2184, %v2181
      %v2256 = vpack.c.bf16 %v2189, %v2189
      %2257 = vmatprep.subr.bf16.mxu0 0
      %2258 = vmatpush1.bf16.xpose.msra.mxu0 %v2215
      %2259 = vmatprep.subr.bf16.mxu0 0
      %2260 = vmatpush1.bf16.xpose.msra.mxu0 %v2216
      %2261 = vmatprep.subr.bf16.mxu0 0
      %2262 = vmatpush1.bf16.xpose.msra.mxu0 %v2217
      %2263 = vmatprep.subr.bf16.mxu0 0
      %2264 = vmatpush1.bf16.xpose.msra.mxu0 %v2218
      %2265 = vmatprep.subr.bf16.mxu0 0
      %2266 = vmatpush1.bf16.xpose.msra.mxu0 %v2219
      %2267 = vmatprep.subr.bf16.mxu0 0
      %2268 = vmatpush1.bf16.xpose.msra.mxu0 %v2220
      %2269 = vmatprep.subr.bf16.mxu0 0
      %2270 = vmatpush1.bf16.xpose.msra.mxu0 %v2221
      %2271 = vmatprep.subr.bf16.mxu0 0
      %2272 = vmatpush1.bf16.xpose.msra.mxu0 %v2222
      %2273 = vmatprep.subr.bf16.mxu0 0
      %2274 = vmatpush1.bf16.xpose.msra.mxu0 0
      %2275 = vmatprep.subr.bf16.mxu0 0
      %2276 = vmatpush1.bf16.xpose.msra.mxu0 0
      %2277 = vmatprep.subr.bf16.mxu0 0
      %2278 = vmatpush1.bf16.xpose.msra.mxu0 0
      %2279 = vmatprep.subr.bf16.mxu0 0
      %2280 = vmatpush1.bf16.xpose.msra.mxu0 0
      %2281 = vmatprep.subr.bf16.mxu0 0
      %2282 = vmatpush1.bf16.xpose.msra.mxu0 0
      %2283 = vmatprep.subr.bf16.mxu0 0
      %2284 = vmatpush1.bf16.xpose.msra.mxu0 0
      %2285 = vmatprep.subr.bf16.mxu0 0
      %2286 = vmatpush1.bf16.xpose.msra.mxu0 0
      %2287 = vmatprep.subr.bf16.mxu0 0
      %2288 = vmatpush1.bf16.xpose.msra.mxu0 0
      %2289 = vmatprep.mubr.bf16.mxu0 0
      %2290 = vmatmul.mubr.bf16.gmra.mrb[0].mxu0 %v2194
      %v2291 = vpop.f32.mrb[0].mxu0
      %v2292 = vadd.f32 0.0, %v2291
      %v2293 = vpop.f32.mrb[0].mxu0
      %v2294 = vpop.f32.mrb[0].mxu0
      %v2295 = vadd.f32 0.0, %v2294
      %v2296 = vpop.f32.mrb[0].mxu0
      %2297 = vmatprep.mubr.bf16.mxu0 0
      %2298 = vmatmul.mubr.bf16.gmra.mrb[0].mxu0 %v2195
      %v2299 = vpop.f32.mrb[0].mxu0
      %v2300 = vadd.f32 0.0, %v2299
      %v2301 = vpop.f32.mrb[0].mxu0
      %v2302 = vpop.f32.mrb[0].mxu0
      %v2303 = vadd.f32 0.0, %v2302
      %v2304 = vpop.f32.mrb[0].mxu0
      %2305 = vmatprep.mubr.bf16.mxu0 0
      %2306 = vmatmul.mubr.bf16.gmra.mrb[0].mxu0 %v2196
      %v2307 = vpop.f32.mrb[0].mxu0
      %v2308 = vadd.f32 0.0, %v2307
      %v2309 = vpop.f32.mrb[0].mxu0
      %v2310 = vpop.f32.mrb[0].mxu0
      %v2311 = vadd.f32 0.0, %v2310
      %v2312 = vpop.f32.mrb[0].mxu0
      %2313 = vmatprep.mubr.bf16.mxu0 0
      %2314 = vmatmul.mubr.bf16.gmra.mrb[0].mxu0 %v2197
      %v2315 = vpop.f32.mrb[0].mxu0
      %v2316 = vadd.f32 0.0, %v2315
      %v2317 = vpop.f32.mrb[0].mxu0
      %v2318 = vpop.f32.mrb[0].mxu0
      %v2319 = vadd.f32 0.0, %v2318
      %v2320 = vpop.f32.mrb[0].mxu0
      %2321 = vmatprep.mubr.bf16.mxu0 0
      %2322 = vmatmul.mubr.bf16.gmra.mrb[0].mxu0 %v2198
      %v2323 = vpop.f32.mrb[0].mxu0
      %v2324 = vadd.f32 0.0, %v2323
      %v2325 = vpop.f32.mrb[0].mxu0
      %v2326 = vpop.f32.mrb[0].mxu0
      %v2327 = vadd.f32 0.0, %v2326
      %v2328 = vpop.f32.mrb[0].mxu0
      %2329 = vmatprep.mubr.bf16.mxu0 0
      %2330 = vmatmul.mubr.bf16.gmra.mrb[0].mxu0 %v2199
      %v2331 = vpop.f32.mrb[0].mxu0
      %v2332 = vadd.f32 0.0, %v2331
      %v2333 = vpop.f32.mrb[0].mxu0
      %v2334 = vpop.f32.mrb[0].mxu0
      %v2335 = vadd.f32 0.0, %v2334
      %v2336 = vpop.f32.mrb[0].mxu0
      %2337 = vmatprep.mubr.bf16.mxu0 0
      %2338 = vmatmul.mubr.bf16.gmra.mrb[0].mxu0 %v2200
      %v2339 = vpop.f32.mrb[0].mxu0
      %v2340 = vadd.f32 0.0, %v2339
      %v2341 = vpop.f32.mrb[0].mxu0
      %v2342 = vpop.f32.mrb[0].mxu0
      %v2343 = vadd.f32 0.0, %v2342
      %v2344 = vpop.f32.mrb[0].mxu0
      %2345 = vmatprep.mubr.bf16.mxu0 0
      %2346 = vmatmul.mubr.bf16.gmra.mrb[0].mxu0 %v2201
      %v2347 = vpop.f32.mrb[0].mxu0
      %v2348 = vadd.f32 0.0, %v2347
      %v2349 = vpop.f32.mrb[0].mxu0
      %v2350 = vpop.f32.mrb[0].mxu0
      %v2351 = vadd.f32 0.0, %v2350
      %v2352 = vpop.f32.mrb[0].mxu0
      %2353 = vdwg.mxu0
      %2354 = vmax.xlane.f32.xlu0 %v2292
      %v2355 = vpop.xlane.xlu0 %2354
      %2356 = vmax.xlane.f32.xlu0 %v2295
      %v2357 = vpop.xlane.xlu0 %2356
      %2358 = vmax.xlane.f32.xlu0 %v2300
      %v2359 = vpop.xlane.xlu0 %2358
      %2360 = vmax.xlane.f32.xlu0 %v2303
      %v2361 = vpop.xlane.xlu0 %2360
      %2362 = vmax.xlane.f32.xlu0 %v2308
      %v2363 = vpop.xlane.xlu0 %2362
      %2364 = vmax.xlane.f32.xlu0 %v2311
      %v2365 = vpop.xlane.xlu0 %2364
      %2366 = vmax.xlane.f32.xlu0 %v2316
      %v2367 = vpop.xlane.xlu0 %2366
      %2368 = vmax.xlane.f32.xlu0 %v2319
      %v2369 = vpop.xlane.xlu0 %2368
      %2370 = vmax.xlane.f32.xlu0 %v2324
      %v2371 = vpop.xlane.xlu0 %2370
      %2372 = vmax.xlane.f32.xlu0 %v2327
      %v2373 = vpop.xlane.xlu0 %2372
      %2374 = vmax.xlane.f32.xlu0 %v2332
      %v2375 = vpop.xlane.xlu0 %2374
      %2376 = vmax.xlane.f32.xlu0 %v2335
      %v2377 = vpop.xlane.xlu0 %2376
      %2378 = vmax.xlane.f32.xlu0 %v2340
      %v2379 = vpop.xlane.xlu0 %2378
      %2380 = vmax.xlane.f32.xlu0 %v2343
      %v2381 = vpop.xlane.xlu0 %2380
      %2382 = vmax.xlane.f32.xlu0 %v2348
      %v2383 = vpop.xlane.xlu0 %2382
      %2384 = vmax.xlane.f32.xlu0 %v2351
      %v2385 = vpop.xlane.xlu0 %2384
      %v2386 = vsub.f32 -inf, %v2355
      %v2387 = vsub.f32 -inf, %v2357
      %v2388 = vsub.f32 -inf, %v2359
      %v2389 = vsub.f32 -inf, %v2361
      %v2390 = vsub.f32 -inf, %v2363
      %v2391 = vsub.f32 -inf, %v2365
      %v2392 = vsub.f32 -inf, %v2367
      %v2393 = vsub.f32 -inf, %v2369
      %v2394 = vsub.f32 -inf, %v2371
      %v2395 = vsub.f32 -inf, %v2373
      %v2396 = vsub.f32 -inf, %v2375
      %v2397 = vsub.f32 -inf, %v2377
      %v2398 = vsub.f32 -inf, %v2379
      %v2399 = vsub.f32 -inf, %v2381
      %v2400 = vsub.f32 -inf, %v2383
      %v2401 = vsub.f32 -inf, %v2385
      %v2402 = vmul.f32 %v2386, 1.442695
      %v2403 = vpow.pop %v2402
      %v2404 = vmul.f32 %v2387, 1.442695
      %v2405 = vpow.pop %v2404
      %v2406 = vmul.f32 %v2388, 1.442695
      %v2407 = vpow.pop %v2406
      %v2408 = vmul.f32 %v2389, 1.442695
      %v2409 = vpow.pop %v2408
      %v2410 = vmul.f32 %v2390, 1.442695
      %v2411 = vpow.pop %v2410
      %v2412 = vmul.f32 %v2391, 1.442695
      %v2413 = vpow.pop %v2412
      %v2414 = vmul.f32 %v2392, 1.442695
      %v2415 = vpow.pop %v2414
      %v2416 = vmul.f32 %v2393, 1.442695
      %v2417 = vpow.pop %v2416
      %v2418 = vmul.f32 %v2394, 1.442695
      %v2419 = vpow.pop %v2418
      %v2420 = vmul.f32 %v2395, 1.442695
      %v2421 = vpow.pop %v2420
      %v2422 = vmul.f32 %v2396, 1.442695
      %v2423 = vpow.pop %v2422
      %v2424 = vmul.f32 %v2397, 1.442695
      %v2425 = vpow.pop %v2424
      %v2426 = vmul.f32 %v2398, 1.442695
      %v2427 = vpow.pop %v2426
      %v2428 = vmul.f32 %v2399, 1.442695
      %v2429 = vpow.pop %v2428
      %v2430 = vmul.f32 %v2400, 1.442695
      %v2431 = vpow.pop %v2430
      %v2432 = vmul.f32 %v2401, 1.442695
      %v2433 = vpow.pop %v2432
      %v2434 = vsub.f32 %v2292, %v2355
      %v2435 = vsub.f32 %v2295, %v2357
      %v2436 = vsub.f32 %v2300, %v2359
      %v2437 = vsub.f32 %v2303, %v2361
      %v2438 = vsub.f32 %v2308, %v2363
      %v2439 = vsub.f32 %v2311, %v2365
      %v2440 = vsub.f32 %v2316, %v2367
      %v2441 = vsub.f32 %v2319, %v2369
      %v2442 = vsub.f32 %v2324, %v2371
      %v2443 = vsub.f32 %v2327, %v2373
      %v2444 = vsub.f32 %v2332, %v2375
      %v2445 = vsub.f32 %v2335, %v2377
      %v2446 = vsub.f32 %v2340, %v2379
      %v2447 = vsub.f32 %v2343, %v2381
      %v2448 = vsub.f32 %v2348, %v2383
      %v2449 = vsub.f32 %v2351, %v2385
      %v2450 = vmul.f32 %v2434, 1.442695
      %v2451 = vpow.pop %v2450
      %v2452 = vmul.f32 %v2435, 1.442695
      %v2453 = vpow.pop %v2452
      %v2454 = vmul.f32 %v2436, 1.442695
      %v2455 = vpow.pop %v2454
      %v2456 = vmul.f32 %v2437, 1.442695
      %v2457 = vpow.pop %v2456
      %v2458 = vmul.f32 %v2438, 1.442695
      %v2459 = vpow.pop %v2458
      %v2460 = vmul.f32 %v2439, 1.442695
      %v2461 = vpow.pop %v2460
      %v2462 = vmul.f32 %v2440, 1.442695
      %v2463 = vpow.pop %v2462
      %v2464 = vmul.f32 %v2441, 1.442695
      %v2465 = vpow.pop %v2464
      %v2466 = vmul.f32 %v2442, 1.442695
      %v2467 = vpow.pop %v2466
      %v2468 = vmul.f32 %v2443, 1.442695
      %v2469 = vpow.pop %v2468
      %v2470 = vmul.f32 %v2444, 1.442695
      %v2471 = vpow.pop %v2470
      %v2472 = vmul.f32 %v2445, 1.442695
      %v2473 = vpow.pop %v2472
      %v2474 = vmul.f32 %v2446, 1.442695
      %v2475 = vpow.pop %v2474
      %v2476 = vmul.f32 %v2447, 1.442695
      %v2477 = vpow.pop %v2476
      %v2478 = vmul.f32 %v2448, 1.442695
      %v2479 = vpow.pop %v2478
      %v2480 = vmul.f32 %v2449, 1.442695
      %v2481 = vpow.pop %v2480
      %v2482 = vmul.f32 %v2403, 0.0
      %v2483 = vmul.f32 %v2405, 0.0
      %v2484 = vmul.f32 %v2407, 0.0
      %v2485 = vmul.f32 %v2409, 0.0
      %v2486 = vmul.f32 %v2411, 0.0
      %v2487 = vmul.f32 %v2413, 0.0
      %v2488 = vmul.f32 %v2415, 0.0
      %v2489 = vmul.f32 %v2417, 0.0
      %v2490 = vmul.f32 %v2419, 0.0
      %v2491 = vmul.f32 %v2421, 0.0
      %v2492 = vmul.f32 %v2423, 0.0
      %v2493 = vmul.f32 %v2425, 0.0
      %v2494 = vmul.f32 %v2427, 0.0
      %v2495 = vmul.f32 %v2429, 0.0
      %v2496 = vmul.f32 %v2431, 0.0
      %v2497 = vmul.f32 %v2433, 0.0
      %2498 = vadd.xlane.f32.xlu0 %v2451
      %v2499 = vpop.xlane.xlu0 %2498
      %2500 = vadd.xlane.f32.xlu0 %v2453
      %v2501 = vpop.xlane.xlu0 %2500
      %2502 = vadd.xlane.f32.xlu0 %v2455
      %v2503 = vpop.xlane.xlu0 %2502
      %2504 = vadd.xlane.f32.xlu0 %v2457
      %v2505 = vpop.xlane.xlu0 %2504
      %2506 = vadd.xlane.f32.xlu0 %v2459
      %v2507 = vpop.xlane.xlu0 %2506
      %2508 = vadd.xlane.f32.xlu0 %v2461
      %v2509 = vpop.xlane.xlu0 %2508
      %2510 = vadd.xlane.f32.xlu0 %v2463
      %v2511 = vpop.xlane.xlu0 %2510
      %2512 = vadd.xlane.f32.xlu0 %v2465
      %v2513 = vpop.xlane.xlu0 %2512
      %2514 = vadd.xlane.f32.xlu0 %v2467
      %v2515 = vpop.xlane.xlu0 %2514
      %2516 = vadd.xlane.f32.xlu0 %v2469
      %v2517 = vpop.xlane.xlu0 %2516
      %2518 = vadd.xlane.f32.xlu0 %v2471
      %v2519 = vpop.xlane.xlu0 %2518
      %2520 = vadd.xlane.f32.xlu0 %v2473
      %v2521 = vpop.xlane.xlu0 %2520
      %2522 = vadd.xlane.f32.xlu0 %v2475
      %v2523 = vpop.xlane.xlu0 %2522
      %2524 = vadd.xlane.f32.xlu0 %v2477
      %v2525 = vpop.xlane.xlu0 %2524
      %2526 = vadd.xlane.f32.xlu0 %v2479
      %v2527 = vpop.xlane.xlu0 %2526
      %2528 = vadd.xlane.f32.xlu0 %v2481
      %v2529 = vpop.xlane.xlu0 %2528
      %v2530 = vadd.f32 %v2482, %v2499
      %v2531 = vadd.f32 %v2483, %v2501
      %v2532 = vadd.f32 %v2484, %v2503
      %v2533 = vadd.f32 %v2485, %v2505
      %v2534 = vadd.f32 %v2486, %v2507
      %v2535 = vadd.f32 %v2487, %v2509
      %v2536 = vadd.f32 %v2488, %v2511
      %v2537 = vadd.f32 %v2489, %v2513
      %v2538 = vadd.f32 %v2490, %v2515
      %v2539 = vadd.f32 %v2491, %v2517
      %v2540 = vadd.f32 %v2492, %v2519
      %v2541 = vadd.f32 %v2493, %v2521
      %v2542 = vadd.f32 %v2494, %v2523
      %v2543 = vadd.f32 %v2495, %v2525
      %v2544 = vadd.f32 %v2496, %v2527
      %v2545 = vadd.f32 %v2497, %v2529
      %v2546 = vpack.c.bf16 %v2453, %v2451
      %v2547 = vpack.c.bf16 %v2457, %v2455
      %v2548 = vpack.c.bf16 %v2461, %v2459
      %v2549 = vpack.c.bf16 %v2465, %v2463
      %v2550 = vpack.c.bf16 %v2469, %v2467
      %v2551 = vpack.c.bf16 %v2473, %v2471
      %v2552 = vpack.c.bf16 %v2477, %v2475
      %v2553 = vpack.c.bf16 %v2481, %v2479
      %2554 = vmatprep.subr.bf16.mxu0 0
      %2555 = vmatpush1.bf16.msra.mxu0 %v2236
      %2556 = vmatprep.subr.bf16.mxu0 0
      %2557 = vmatpush1.bf16.msra.mxu0 %v2237
      %2558 = vmatprep.subr.bf16.mxu0 0
      %2559 = vmatpush1.bf16.msra.mxu0 %v2238
      %2560 = vmatprep.subr.bf16.mxu0 0
      %2561 = vmatpush1.bf16.msra.mxu0 %v2239
      %2562 = vmatprep.subr.bf16.mxu0 0
      %2563 = vmatpush1.bf16.msra.mxu0 %v2240
      %2564 = vmatprep.subr.bf16.mxu0 0
      %2565 = vmatpush1.bf16.msra.mxu0 %v2241
      %2566 = vmatprep.subr.bf16.mxu0 0
      %2567 = vmatpush1.bf16.msra.mxu0 %v2242
      %2568 = vmatprep.subr.bf16.mxu0 0
      %2569 = vmatpush1.bf16.msra.mxu0 %v2243
      %2570 = vmatprep.subr.bf16.mxu0 0
      %2571 = vmatpush1.bf16.msra.mxu0 0
      %2572 = vmatprep.subr.bf16.mxu0 0
      %2573 = vmatpush1.bf16.msra.mxu0 0
      %2574 = vmatprep.subr.bf16.mxu0 0
      %2575 = vmatpush1.bf16.msra.mxu0 0
      %2576 = vmatprep.subr.bf16.mxu0 0
      %2577 = vmatpush1.bf16.msra.mxu0 0
      %2578 = vmatprep.subr.bf16.mxu0 0
      %2579 = vmatpush1.bf16.msra.mxu0 0
      %2580 = vmatprep.subr.bf16.mxu0 0
      %2581 = vmatpush1.bf16.msra.mxu0 0
      %2582 = vmatprep.subr.bf16.mxu0 0
      %2583 = vmatpush1.bf16.msra.mxu0 0
      %2584 = vmatprep.subr.bf16.mxu0 0
      %2585 = vmatpush1.bf16.msra.mxu0 0
      %2586 = vmatprep.mubr.bf16.mxu0 0
      %2587 = vmatmul.mubr.bf16.gmra.mrb[0].mxu0 %v2546
      %v2588 = vpop.f32.mrb[0].mxu0
      %v2589 = vadd.f32 0.0, %v2588
      %v2590 = vpop.f32.mrb[0].mxu0
      %v2591 = vpop.f32.mrb[0].mxu0
      %v2592 = vadd.f32 0.0, %v2591
      %v2593 = vpop.f32.mrb[0].mxu0
      %2594 = vmatprep.mubr.bf16.mxu0 0
      %2595 = vmatmul.mubr.bf16.gmra.mrb[0].mxu0 %v2547
      %v2596 = vpop.f32.mrb[0].mxu0
      %v2597 = vadd.f32 0.0, %v2596
      %v2598 = vpop.f32.mrb[0].mxu0
      %v2599 = vpop.f32.mrb[0].mxu0
      %v2600 = vadd.f32 0.0, %v2599
      %v2601 = vpop.f32.mrb[0].mxu0
      %2602 = vmatprep.mubr.bf16.mxu0 0
      %2603 = vmatmul.mubr.bf16.gmra.mrb[0].mxu0 %v2548
      %v2604 = vpop.f32.mrb[0].mxu0
      %v2605 = vadd.f32 0.0, %v2604
      %v2606 = vpop.f32.mrb[0].mxu0
      %v2607 = vpop.f32.mrb[0].mxu0
      %v2608 = vadd.f32 0.0, %v2607
      %v2609 = vpop.f32.mrb[0].mxu0
      %2610 = vmatprep.mubr.bf16.mxu0 0
      %2611 = vmatmul.mubr.bf16.gmra.mrb[0].mxu0 %v2549
      %v2612 = vpop.f32.mrb[0].mxu0
      %v2613 = vadd.f32 0.0, %v2612
      %v2614 = vpop.f32.mrb[0].mxu0
      %v2615 = vpop.f32.mrb[0].mxu0
      %v2616 = vadd.f32 0.0, %v2615
      %v2617 = vpop.f32.mrb[0].mxu0
      %2618 = vmatprep.mubr.bf16.mxu0 0
      %2619 = vmatmul.mubr.bf16.gmra.mrb[0].mxu0 %v2550
      %v2620 = vpop.f32.mrb[0].mxu0
      %v2621 = vadd.f32 0.0, %v2620
      %v2622 = vpop.f32.mrb[0].mxu0
      %v2623 = vpop.f32.mrb[0].mxu0
      %v2624 = vadd.f32 0.0, %v2623
      %v2625 = vpop.f32.mrb[0].mxu0
      %2626 = vmatprep.mubr.bf16.mxu0 0
      %2627 = vmatmul.mubr.bf16.gmra.mrb[0].mxu0 %v2551
      %v2628 = vpop.f32.mrb[0].mxu0
      %v2629 = vadd.f32 0.0, %v2628
      %v2630 = vpop.f32.mrb[0].mxu0
      %v2631 = vpop.f32.mrb[0].mxu0
      %v2632 = vadd.f32 0.0, %v2631
      %v2633 = vpop.f32.mrb[0].mxu0
      %2634 = vmatprep.mubr.bf16.mxu0 0
      %2635 = vmatmul.mubr.bf16.gmra.mrb[0].mxu0 %v2552
      %v2636 = vpop.f32.mrb[0].mxu0
      %v2637 = vadd.f32 0.0, %v2636
      %v2638 = vpop.f32.mrb[0].mxu0
      %v2639 = vpop.f32.mrb[0].mxu0
      %v2640 = vadd.f32 0.0, %v2639
      %v2641 = vpop.f32.mrb[0].mxu0
      %2642 = vmatprep.mubr.bf16.mxu0 0
      %2643 = vmatmul.mubr.bf16.gmra.mrb[0].mxu0 %v2553
      %v2644 = vpop.f32.mrb[0].mxu0
      %v2645 = vadd.f32 0.0, %v2644
      %v2646 = vpop.f32.mrb[0].mxu0
      %v2647 = vpop.f32.mrb[0].mxu0
      %v2648 = vadd.f32 0.0, %v2647
      %v2649 = vpop.f32.mrb[0].mxu0
      %2650 = vdwg.mxu0
      %v2651 = vadd.f32 %v2482, %v2589
      %v2652 = vadd.f32 %v2483, %v2592
      %v2653 = vadd.f32 %v2484, %v2597
      %v2654 = vadd.f32 %v2485, %v2600
      %v2655 = vadd.f32 %v2486, %v2605
      %v2656 = vadd.f32 %v2487, %v2608
      %v2657 = vadd.f32 %v2488, %v2613
      %v2658 = vadd.f32 %v2489, %v2616
      %v2659 = vadd.f32 %v2490, %v2621
      %v2660 = vadd.f32 %v2491, %v2624
      %v2661 = vadd.f32 %v2492, %v2629
      %v2662 = vadd.f32 %v2493, %v2632
      %v2663 = vadd.f32 %v2494, %v2637
      %v2664 = vadd.f32 %v2495, %v2640
      %v2665 = vadd.f32 %v2496, %v2645
      %v2666 = vadd.f32 %v2497, %v2648
      %2667 = vmatprep.subr.bf16.mxu0 0
      %2668 = vmatpush1.bf16.xpose.msra.mxu0 %v2223
      %2669 = vmatprep.subr.bf16.mxu0 0
      %2670 = vmatpush1.bf16.xpose.msra.mxu0 %v2224
      %2671 = vmatprep.subr.bf16.mxu0 0
      %2672 = vmatpush1.bf16.xpose.msra.mxu0 %v2225
      %2673 = vmatprep.subr.bf16.mxu0 0
      %2674 = vmatpush1.bf16.xpose.msra.mxu0 %v2226
      %2675 = vmatprep.subr.bf16.mxu0 0
      %2676 = vmatpush1.bf16.xpose.msra.mxu0 %v2227
      %2677 = vmatprep.subr.bf16.mxu0 0
      %2678 = vmatpush1.bf16.xpose.msra.mxu0 %v2228
      %2679 = vmatprep.subr.bf16.mxu0 0
      %2680 = vmatpush1.bf16.xpose.msra.mxu0 %v2229
      %2681 = vmatprep.subr.bf16.mxu0 0
      %2682 = vmatpush1.bf16.xpose.msra.mxu0 %v2230
      %2683 = vmatprep.subr.bf16.mxu0 0
      %2684 = vmatpush1.bf16.xpose.msra.mxu0 0
      %2685 = vmatprep.subr.bf16.mxu0 0
      %2686 = vmatpush1.bf16.xpose.msra.mxu0 0
      %2687 = vmatprep.subr.bf16.mxu0 0
      %2688 = vmatpush1.bf16.xpose.msra.mxu0 0
      %2689 = vmatprep.subr.bf16.mxu0 0
      %2690 = vmatpush1.bf16.xpose.msra.mxu0 0
      %2691 = vmatprep.subr.bf16.mxu0 0
      %2692 = vmatpush1.bf16.xpose.msra.mxu0 0
      %2693 = vmatprep.subr.bf16.mxu0 0
      %2694 = vmatpush1.bf16.xpose.msra.mxu0 0
      %2695 = vmatprep.subr.bf16.mxu0 0
      %2696 = vmatpush1.bf16.xpose.msra.mxu0 0
      %2697 = vmatprep.subr.bf16.mxu0 0
      %2698 = vmatpush1.bf16.xpose.msra.mxu0 0
      %2699 = vmatprep.mubr.bf16.mxu0 0
      %2700 = vmatmul.mubr.bf16.gmra.mrb[0].mxu0 %v2194
      %v2701 = vpop.f32.mrb[0].mxu0
      %v2702 = vadd.f32 0.0, %v2701
      %v2703 = vpop.f32.mrb[0].mxu0
      %v2704 = vpop.f32.mrb[0].mxu0
      %v2705 = vadd.f32 0.0, %v2704
      %v2706 = vpop.f32.mrb[0].mxu0
      %2707 = vmatprep.mubr.bf16.mxu0 0
      %2708 = vmatmul.mubr.bf16.gmra.mrb[0].mxu0 %v2195
      %v2709 = vpop.f32.mrb[0].mxu0
      %v2710 = vadd.f32 0.0, %v2709
      %v2711 = vpop.f32.mrb[0].mxu0
      %v2712 = vpop.f32.mrb[0].mxu0
      %v2713 = vadd.f32 0.0, %v2712
      %v2714 = vpop.f32.mrb[0].mxu0
      %2715 = vmatprep.mubr.bf16.mxu0 0
      %2716 = vmatmul.mubr.bf16.gmra.mrb[0].mxu0 %v2196
      %v2717 = vpop.f32.mrb[0].mxu0
      %v2718 = vadd.f32 0.0, %v2717
      %v2719 = vpop.f32.mrb[0].mxu0
      %v2720 = vpop.f32.mrb[0].mxu0
      %v2721 = vadd.f32 0.0, %v2720
      %v2722 = vpop.f32.mrb[0].mxu0
      %2723 = vmatprep.mubr.bf16.mxu0 0
      %2724 = vmatmul.mubr.bf16.gmra.mrb[0].mxu0 %v2197
      %v2725 = vpop.f32.mrb[0].mxu0
      %v2726 = vadd.f32 0.0, %v2725
      %v2727 = vpop.f32.mrb[0].mxu0
      %v2728 = vpop.f32.mrb[0].mxu0
      %v2729 = vadd.f32 0.0, %v2728
      %v2730 = vpop.f32.mrb[0].mxu0
      %2731 = vmatprep.mubr.bf16.mxu0 0
      %2732 = vmatmul.mubr.bf16.gmra.mrb[0].mxu0 %v2198
      %v2733 = vpop.f32.mrb[0].mxu0
      %v2734 = vadd.f32 0.0, %v2733
      %v2735 = vpop.f32.mrb[0].mxu0
      %v2736 = vpop.f32.mrb[0].mxu0
      %v2737 = vadd.f32 0.0, %v2736
      %v2738 = vpop.f32.mrb[0].mxu0
      %2739 = vmatprep.mubr.bf16.mxu0 0
      %2740 = vmatmul.mubr.bf16.gmra.mrb[0].mxu0 %v2199
      %v2741 = vpop.f32.mrb[0].mxu0
      %v2742 = vadd.f32 0.0, %v2741
      %v2743 = vpop.f32.mrb[0].mxu0
      %v2744 = vpop.f32.mrb[0].mxu0
      %v2745 = vadd.f32 0.0, %v2744
      %v2746 = vpop.f32.mrb[0].mxu0
      %2747 = vmatprep.mubr.bf16.mxu0 0
      %2748 = vmatmul.mubr.bf16.gmra.mrb[0].mxu0 %v2200
      %v2749 = vpop.f32.mrb[0].mxu0
      %v2750 = vadd.f32 0.0, %v2749
      %v2751 = vpop.f32.mrb[0].mxu0
      %v2752 = vpop.f32.mrb[0].mxu0
      %v2753 = vadd.f32 0.0, %v2752
      %v2754 = vpop.f32.mrb[0].mxu0
      %2755 = vmatprep.mubr.bf16.mxu0 0
      %2756 = vmatmul.mubr.bf16.gmra.mrb[0].mxu0 %v2201
      %v2757 = vpop.f32.mrb[0].mxu0
      %v2758 = vadd.f32 0.0, %v2757
      %v2759 = vpop.f32.mrb[0].mxu0
      %v2760 = vpop.f32.mrb[0].mxu0
      %v2761 = vadd.f32 0.0, %v2760
      %v2762 = vpop.f32.mrb[0].mxu0
      %2763 = vdwg.mxu0
      %2764 = vmax.xlane.f32.xlu0 %v2702
      %v2765 = vpop.xlane.xlu0 %2764
      %2766 = vmax.xlane.f32.xlu0 %v2705
      %v2767 = vpop.xlane.xlu0 %2766
      %2768 = vmax.xlane.f32.xlu0 %v2710
      %v2769 = vpop.xlane.xlu0 %2768
      %2770 = vmax.xlane.f32.xlu0 %v2713
      %v2771 = vpop.xlane.xlu0 %2770
      %2772 = vmax.xlane.f32.xlu0 %v2718
      %v2773 = vpop.xlane.xlu0 %2772
      %2774 = vmax.xlane.f32.xlu0 %v2721
      %v2775 = vpop.xlane.xlu0 %2774
      %2776 = vmax.xlane.f32.xlu0 %v2726
      %v2777 = vpop.xlane.xlu0 %2776
      %2778 = vmax.xlane.f32.xlu0 %v2729
      %v2779 = vpop.xlane.xlu0 %2778
      %2780 = vmax.xlane.f32.xlu0 %v2734
      %v2781 = vpop.xlane.xlu0 %2780
      %2782 = vmax.xlane.f32.xlu0 %v2737
      %v2783 = vpop.xlane.xlu0 %2782
      %2784 = vmax.xlane.f32.xlu0 %v2742
      %v2785 = vpop.xlane.xlu0 %2784
      %2786 = vmax.xlane.f32.xlu0 %v2745
      %v2787 = vpop.xlane.xlu0 %2786
      %2788 = vmax.xlane.f32.xlu0 %v2750
      %v2789 = vpop.xlane.xlu0 %2788
      %2790 = vmax.xlane.f32.xlu0 %v2753
      %v2791 = vpop.xlane.xlu0 %2790
      %2792 = vmax.xlane.f32.xlu0 %v2758
      %v2793 = vpop.xlane.xlu0 %2792
      %2794 = vmax.xlane.f32.xlu0 %v2761
      %v2795 = vpop.xlane.xlu0 %2794
      %v2796 = vmax.f32 %v2355, %v2765
      %v2797 = vmax.f32 %v2357, %v2767
      %v2798 = vmax.f32 %v2359, %v2769
      %v2799 = vmax.f32 %v2361, %v2771
      %v2800 = vmax.f32 %v2363, %v2773
      %v2801 = vmax.f32 %v2365, %v2775
      %v2802 = vmax.f32 %v2367, %v2777
      %v2803 = vmax.f32 %v2369, %v2779
      %v2804 = vmax.f32 %v2371, %v2781
      %v2805 = vmax.f32 %v2373, %v2783
      %v2806 = vmax.f32 %v2375, %v2785
      %v2807 = vmax.f32 %v2377, %v2787
      %v2808 = vmax.f32 %v2379, %v2789
      %v2809 = vmax.f32 %v2381, %v2791
      %v2810 = vmax.f32 %v2383, %v2793
      %v2811 = vmax.f32 %v2385, %v2795
      %v2812 = vsub.f32 %v2355, %v2796
      %v2813 = vsub.f32 %v2357, %v2797
      %v2814 = vsub.f32 %v2359, %v2798
      %v2815 = vsub.f32 %v2361, %v2799
      %v2816 = vsub.f32 %v2363, %v2800
      %v2817 = vsub.f32 %v2365, %v2801
      %v2818 = vsub.f32 %v2367, %v2802
      %v2819 = vsub.f32 %v2369, %v2803
      %v2820 = vsub.f32 %v2371, %v2804
      %v2821 = vsub.f32 %v2373, %v2805
      %v2822 = vsub.f32 %v2375, %v2806
      %v2823 = vsub.f32 %v2377, %v2807
      %v2824 = vsub.f32 %v2379, %v2808
      %v2825 = vsub.f32 %v2381, %v2809
      %v2826 = vsub.f32 %v2383, %v2810
      %v2827 = vsub.f32 %v2385, %v2811
      %v2828 = vmul.f32 %v2812, 1.442695
      %v2829 = vpow.pop %v2828
      %v2830 = vmul.f32 %v2813, 1.442695
      %v2831 = vpow.pop %v2830
      %v2832 = vmul.f32 %v2814, 1.442695
      %v2833 = vpow.pop %v2832
      %v2834 = vmul.f32 %v2815, 1.442695
      %v2835 = vpow.pop %v2834
      %v2836 = vmul.f32 %v2816, 1.442695
      %v2837 = vpow.pop %v2836
      %v2838 = vmul.f32 %v2817, 1.442695
      %v2839 = vpow.pop %v2838
      %v2840 = vmul.f32 %v2818, 1.442695
      %v2841 = vpow.pop %v2840
      %v2842 = vmul.f32 %v2819, 1.442695
      %v2843 = vpow.pop %v2842
      %v2844 = vmul.f32 %v2820, 1.442695
      %v2845 = vpow.pop %v2844
      %v2846 = vmul.f32 %v2821, 1.442695
      %v2847 = vpow.pop %v2846
      %v2848 = vmul.f32 %v2822, 1.442695
      %v2849 = vpow.pop %v2848
      %v2850 = vmul.f32 %v2823, 1.442695
      %v2851 = vpow.pop %v2850
      %v2852 = vmul.f32 %v2824, 1.442695
      %v2853 = vpow.pop %v2852
      %v2854 = vmul.f32 %v2825, 1.442695
      %v2855 = vpow.pop %v2854
      %v2856 = vmul.f32 %v2826, 1.442695
      %v2857 = vpow.pop %v2856
      %v2858 = vmul.f32 %v2827, 1.442695
      %v2859 = vpow.pop %v2858
      %v2860 = vsub.f32 %v2702, %v2796
      %v2861 = vsub.f32 %v2705, %v2797
      %v2862 = vsub.f32 %v2710, %v2798
      %v2863 = vsub.f32 %v2713, %v2799
      %v2864 = vsub.f32 %v2718, %v2800
      %v2865 = vsub.f32 %v2721, %v2801
      %v2866 = vsub.f32 %v2726, %v2802
      %v2867 = vsub.f32 %v2729, %v2803
      %v2868 = vsub.f32 %v2734, %v2804
      %v2869 = vsub.f32 %v2737, %v2805
      %v2870 = vsub.f32 %v2742, %v2806
      %v2871 = vsub.f32 %v2745, %v2807
      %v2872 = vsub.f32 %v2750, %v2808
      %v2873 = vsub.f32 %v2753, %v2809
      %v2874 = vsub.f32 %v2758, %v2810
      %v2875 = vsub.f32 %v2761, %v2811
      %v2876 = vmul.f32 %v2860, 1.442695
      %v2877 = vpow.pop %v2876
      %v2878 = vmul.f32 %v2861, 1.442695
      %v2879 = vpow.pop %v2878
      %v2880 = vmul.f32 %v2862, 1.442695
      %v2881 = vpow.pop %v2880
      %v2882 = vmul.f32 %v2863, 1.442695
      %v2883 = vpow.pop %v2882
      %v2884 = vmul.f32 %v2864, 1.442695
      %v2885 = vpow.pop %v2884
      %v2886 = vmul.f32 %v2865, 1.442695
      %v2887 = vpow.pop %v2886
      %v2888 = vmul.f32 %v2866, 1.442695
      %v2889 = vpow.pop %v2888
      %v2890 = vmul.f32 %v2867, 1.442695
      %v2891 = vpow.pop %v2890
      %v2892 = vmul.f32 %v2868, 1.442695
      %v2893 = vpow.pop %v2892
      %v2894 = vmul.f32 %v2869, 1.442695
      %v2895 = vpow.pop %v2894
      %v2896 = vmul.f32 %v2870, 1.442695
      %v2897 = vpow.pop %v2896
      %v2898 = vmul.f32 %v2871, 1.442695
      %v2899 = vpow.pop %v2898
      %v2900 = vmul.f32 %v2872, 1.442695
      %v2901 = vpow.pop %v2900
      %v2902 = vmul.f32 %v2873, 1.442695
      %v2903 = vpow.pop %v2902
      %v2904 = vmul.f32 %v2874, 1.442695
      %v2905 = vpow.pop %v2904
      %v2906 = vmul.f32 %v2875, 1.442695
      %v2907 = vpow.pop %v2906
      %v2908 = vmul.f32 %v2829, %v2530
      %v2909 = vmul.f32 %v2831, %v2531
      %v2910 = vmul.f32 %v2833, %v2532
      %v2911 = vmul.f32 %v2835, %v2533
      %v2912 = vmul.f32 %v2837, %v2534
      %v2913 = vmul.f32 %v2839, %v2535
      %v2914 = vmul.f32 %v2841, %v2536
      %v2915 = vmul.f32 %v2843, %v2537
      %v2916 = vmul.f32 %v2845, %v2538
      %v2917 = vmul.f32 %v2847, %v2539
      %v2918 = vmul.f32 %v2849, %v2540
      %v2919 = vmul.f32 %v2851, %v2541
      %v2920 = vmul.f32 %v2853, %v2542
      %v2921 = vmul.f32 %v2855, %v2543
      %v2922 = vmul.f32 %v2857, %v2544
      %v2923 = vmul.f32 %v2859, %v2545
      %2924 = vadd.xlane.f32.xlu0 %v2877
      %v2925 = vpop.xlane.xlu0 %2924
      %2926 = vadd.xlane.f32.xlu0 %v2879
      %v2927 = vpop.xlane.xlu0 %2926
      %2928 = vadd.xlane.f32.xlu0 %v2881
      %v2929 = vpop.xlane.xlu0 %2928
      %2930 = vadd.xlane.f32.xlu0 %v2883
      %v2931 = vpop.xlane.xlu0 %2930
      %2932 = vadd.xlane.f32.xlu0 %v2885
      %v2933 = vpop.xlane.xlu0 %2932
      %2934 = vadd.xlane.f32.xlu0 %v2887
      %v2935 = vpop.xlane.xlu0 %2934
      %2936 = vadd.xlane.f32.xlu0 %v2889
      %v2937 = vpop.xlane.xlu0 %2936
      %2938 = vadd.xlane.f32.xlu0 %v2891
      %v2939 = vpop.xlane.xlu0 %2938
      %2940 = vadd.xlane.f32.xlu0 %v2893
      %v2941 = vpop.xlane.xlu0 %2940
      %2942 = vadd.xlane.f32.xlu0 %v2895
      %v2943 = vpop.xlane.xlu0 %2942
      %2944 = vadd.xlane.f32.xlu0 %v2897
      %v2945 = vpop.xlane.xlu0 %2944
      %2946 = vadd.xlane.f32.xlu0 %v2899
      %v2947 = vpop.xlane.xlu0 %2946
      %2948 = vadd.xlane.f32.xlu0 %v2901
      %v2949 = vpop.xlane.xlu0 %2948
      %2950 = vadd.xlane.f32.xlu0 %v2903
      %v2951 = vpop.xlane.xlu0 %2950
      %2952 = vadd.xlane.f32.xlu0 %v2905
      %v2953 = vpop.xlane.xlu0 %2952
      %2954 = vadd.xlane.f32.xlu0 %v2907
      %v2955 = vpop.xlane.xlu0 %2954
      %v2956 = vadd.f32 %v2908, %v2925
      %v2957 = vadd.f32 %v2909, %v2927
      %v2958 = vadd.f32 %v2910, %v2929
      %v2959 = vadd.f32 %v2911, %v2931
      %v2960 = vadd.f32 %v2912, %v2933
      %v2961 = vadd.f32 %v2913, %v2935
      %v2962 = vadd.f32 %v2914, %v2937
      %v2963 = vadd.f32 %v2915, %v2939
      %v2964 = vadd.f32 %v2916, %v2941
      %v2965 = vadd.f32 %v2917, %v2943
      %v2966 = vadd.f32 %v2918, %v2945
      %v2967 = vadd.f32 %v2919, %v2947
      %v2968 = vadd.f32 %v2920, %v2949
      %v2969 = vadd.f32 %v2921, %v2951
      %v2970 = vadd.f32 %v2922, %v2953
      %v2971 = vadd.f32 %v2923, %v2955
      %v2972 = vmul.f32 %v2829, %v2651
      %v2973 = vmul.f32 %v2831, %v2652
      %v2974 = vmul.f32 %v2833, %v2653
      %v2975 = vmul.f32 %v2835, %v2654
      %v2976 = vmul.f32 %v2837, %v2655
      %v2977 = vmul.f32 %v2839, %v2656
      %v2978 = vmul.f32 %v2841, %v2657
      %v2979 = vmul.f32 %v2843, %v2658
      %v2980 = vmul.f32 %v2845, %v2659
      %v2981 = vmul.f32 %v2847, %v2660
      %v2982 = vmul.f32 %v2849, %v2661
      %v2983 = vmul.f32 %v2851, %v2662
      %v2984 = vmul.f32 %v2853, %v2663
      %v2985 = vmul.f32 %v2855, %v2664
      %v2986 = vmul.f32 %v2857, %v2665
      %v2987 = vmul.f32 %v2859, %v2666
      %v2988 = vpack.c.bf16 %v2879, %v2877
      %v2989 = vpack.c.bf16 %v2883, %v2881
      %v2990 = vpack.c.bf16 %v2887, %v2885
      %v2991 = vpack.c.bf16 %v2891, %v2889
      %v2992 = vpack.c.bf16 %v2895, %v2893
      %v2993 = vpack.c.bf16 %v2899, %v2897
      %v2994 = vpack.c.bf16 %v2903, %v2901
      %v2995 = vpack.c.bf16 %v2907, %v2905
      %2996 = vmatprep.subr.bf16.mxu0 0
      %2997 = vmatpush1.bf16.msra.mxu0 %v2244
      %2998 = vmatprep.subr.bf16.mxu0 0
      %2999 = vmatpush1.bf16.msra.mxu0 %v2245
      %3000 = vmatprep.subr.bf16.mxu0 0
      %3001 = vmatpush1.bf16.msra.mxu0 %v2246
      %3002 = vmatprep.subr.bf16.mxu0 0
      %3003 = vmatpush1.bf16.msra.mxu0 %v2247
      %3004 = vmatprep.subr.bf16.mxu0 0
      %3005 = vmatpush1.bf16.msra.mxu0 %v2248
      %3006 = vmatprep.subr.bf16.mxu0 0
      %3007 = vmatpush1.bf16.msra.mxu0 %v2249
      %3008 = vmatprep.subr.bf16.mxu0 0
      %3009 = vmatpush1.bf16.msra.mxu0 %v2250
      %3010 = vmatprep.subr.bf16.mxu0 0
      %3011 = vmatpush1.bf16.msra.mxu0 %v2251
      %3012 = vmatprep.subr.bf16.mxu0 0
      %3013 = vmatpush1.bf16.msra.mxu0 0
      %3014 = vmatprep.subr.bf16.mxu0 0
      %3015 = vmatpush1.bf16.msra.mxu0 0
      %3016 = vmatprep.subr.bf16.mxu0 0
      %3017 = vmatpush1.bf16.msra.mxu0 0
      %3018 = vmatprep.subr.bf16.mxu0 0
      %3019 = vmatpush1.bf16.msra.mxu0 0
      %3020 = vmatprep.subr.bf16.mxu0 0
      %3021 = vmatpush1.bf16.msra.mxu0 0
      %3022 = vmatprep.subr.bf16.mxu0 0
      %3023 = vmatpush1.bf16.msra.mxu0 0
      %3024 = vmatprep.subr.bf16.mxu0 0
      %3025 = vmatpush1.bf16.msra.mxu0 0
      %3026 = vmatprep.subr.bf16.mxu0 0
      %3027 = vmatpush1.bf16.msra.mxu0 0
      %3028 = vmatprep.mubr.bf16.mxu0 0
      %3029 = vmatmul.mubr.bf16.gmra.mrb[0].mxu0 %v2988
      %v3030 = vpop.f32.mrb[0].mxu0
      %v3031 = vadd.f32 0.0, %v3030
      %v3032 = vpop.f32.mrb[0].mxu0
      %v3033 = vpop.f32.mrb[0].mxu0
      %v3034 = vadd.f32 0.0, %v3033
      %v3035 = vpop.f32.mrb[0].mxu0
      %3036 = vmatprep.mubr.bf16.mxu0 0
      %3037 = vmatmul.mubr.bf16.gmra.mrb[0].mxu0 %v2989
      %v3038 = vpop.f32.mrb[0].mxu0
      %v3039 = vadd.f32 0.0, %v3038
      %v3040 = vpop.f32.mrb[0].mxu0
      %v3041 = vpop.f32.mrb[0].mxu0
      %v3042 = vadd.f32 0.0, %v3041
      %v3043 = vpop.f32.mrb[0].mxu0
      %3044 = vmatprep.mubr.bf16.mxu0 0
      %3045 = vmatmul.mubr.bf16.gmra.mrb[0].mxu0 %v2990
      %v3046 = vpop.f32.mrb[0].mxu0
      %v3047 = vadd.f32 0.0, %v3046
      %v3048 = vpop.f32.mrb[0].mxu0
      %v3049 = vpop.f32.mrb[0].mxu0
      %v3050 = vadd.f32 0.0, %v3049
      %v3051 = vpop.f32.mrb[0].mxu0
      %3052 = vmatprep.mubr.bf16.mxu0 0
      %3053 = vmatmul.mubr.bf16.gmra.mrb[0].mxu0 %v2991
      %v3054 = vpop.f32.mrb[0].mxu0
      %v3055 = vadd.f32 0.0, %v3054
      %v3056 = vpop.f32.mrb[0].mxu0
      %v3057 = vpop.f32.mrb[0].mxu0
      %v3058 = vadd.f32 0.0, %v3057
      %v3059 = vpop.f32.mrb[0].mxu0
      %3060 = vmatprep.mubr.bf16.mxu0 0
      %3061 = vmatmul.mubr.bf16.gmra.mrb[0].mxu0 %v2992
      %v3062 = vpop.f32.mrb[0].mxu0
      %v3063 = vadd.f32 0.0, %v3062
      %v3064 = vpop.f32.mrb[0].mxu0
      %v3065 = vpop.f32.mrb[0].mxu0
      %v3066 = vadd.f32 0.0, %v3065
      %v3067 = vpop.f32.mrb[0].mxu0
      %3068 = vmatprep.mubr.bf16.mxu0 0
      %3069 = vmatmul.mubr.bf16.gmra.mrb[0].mxu0 %v2993
      %v3070 = vpop.f32.mrb[0].mxu0
      %v3071 = vadd.f32 0.0, %v3070
      %v3072 = vpop.f32.mrb[0].mxu0
      %v3073 = vpop.f32.mrb[0].mxu0
      %v3074 = vadd.f32 0.0, %v3073
      %v3075 = vpop.f32.mrb[0].mxu0
      %3076 = vmatprep.mubr.bf16.mxu0 0
      %3077 = vmatmul.mubr.bf16.gmra.mrb[0].mxu0 %v2994
      %v3078 = vpop.f32.mrb[0].mxu0
      %v3079 = vadd.f32 0.0, %v3078
      %v3080 = vpop.f32.mrb[0].mxu0
      %v3081 = vpop.f32.mrb[0].mxu0
      %v3082 = vadd.f32 0.0, %v3081
      %v3083 = vpop.f32.mrb[0].mxu0
      %3084 = vmatprep.mubr.bf16.mxu0 0
      %3085 = vmatmul.mubr.bf16.gmra.mrb[0].mxu0 %v2995
      %v3086 = vpop.f32.mrb[0].mxu0
      %v3087 = vadd.f32 0.0, %v3086
      %v3088 = vpop.f32.mrb[0].mxu0
      %v3089 = vpop.f32.mrb[0].mxu0
      %v3090 = vadd.f32 0.0, %v3089
      %v3091 = vpop.f32.mrb[0].mxu0
      %3092 = vdwg.mxu0
      %v3093 = vadd.f32 %v2972, %v3031
      %v3094 = vadd.f32 %v2973, %v3034
      %v3095 = vadd.f32 %v2974, %v3039
      %v3096 = vadd.f32 %v2975, %v3042
      %v3097 = vadd.f32 %v2976, %v3047
      %v3098 = vadd.f32 %v2977, %v3050
      %v3099 = vadd.f32 %v2978, %v3055
      %v3100 = vadd.f32 %v2979, %v3058
      %v3101 = vadd.f32 %v2980, %v3063
      %v3102 = vadd.f32 %v2981, %v3066
      %v3103 = vadd.f32 %v2982, %v3071
      %v3104 = vadd.f32 %v2983, %v3074
      %v3105 = vadd.f32 %v2984, %v3079
      %v3106 = vadd.f32 %v2985, %v3082
      %v3107 = vadd.f32 %v2986, %v3087
      %v3108 = vadd.f32 %v2987, %v3090
      %3109 = vmatprep.subr.bf16.mxu0 0
      %3110 = vmatpush1.bf16.xpose.msra.mxu0 %v2231
      %3111 = vmatprep.subr.bf16.mxu0 0
      %3112 = vmatpush1.bf16.xpose.msra.mxu0 %v2232
      %3113 = vmatprep.subr.bf16.mxu0 0
      %3114 = vmatpush1.bf16.xpose.msra.mxu0 %v2233
      %3115 = vmatprep.subr.bf16.mxu0 0
      %3116 = vmatpush1.bf16.xpose.msra.mxu0 %v2234
      %3117 = vmatprep.subr.bf16.mxu0 0
      %3118 = vmatpush1.bf16.xpose.msra.mxu0 %v2235
      %3119 = vmatprep.subr.bf16.mxu0 0
      %3120 = vmatpush1.bf16.xpose.msra.mxu0 0
      %3121 = vmatprep.subr.bf16.mxu0 0
      %3122 = vmatpush1.bf16.xpose.msra.mxu0 0
      %3123 = vmatprep.subr.bf16.mxu0 0
      %3124 = vmatpush1.bf16.xpose.msra.mxu0 0
      %3125 = vmatprep.subr.bf16.mxu0 0
      %3126 = vmatpush1.bf16.xpose.msra.mxu0 0
      %3127 = vmatprep.subr.bf16.mxu0 0
      %3128 = vmatpush1.bf16.xpose.msra.mxu0 0
      %3129 = vmatprep.subr.bf16.mxu0 0
      %3130 = vmatpush1.bf16.xpose.msra.mxu0 0
      %3131 = vmatprep.subr.bf16.mxu0 0
      %3132 = vmatpush1.bf16.xpose.msra.mxu0 0
      %3133 = vmatprep.subr.bf16.mxu0 0
      %3134 = vmatpush1.bf16.xpose.msra.mxu0 0
      %3135 = vmatprep.subr.bf16.mxu0 0
      %3136 = vmatpush1.bf16.xpose.msra.mxu0 0
      %3137 = vmatprep.subr.bf16.mxu0 0
      %3138 = vmatpush1.bf16.xpose.msra.mxu0 0
      %3139 = vmatprep.subr.bf16.mxu0 0
      %3140 = vmatpush1.bf16.xpose.msra.mxu0 0
      %3141 = vmatprep.mubr.bf16.mxu0 0
      %3142 = vmatmul.mubr.bf16.gmra.mrb[0].mxu0 %v2194
      %v3143 = vpop.f32.mrb[0].mxu0
      %v3144 = vadd.f32 0.0, %v3143
      %v3145 = vpop.f32.mrb[0].mxu0
      %v3146 = vpop.f32.mrb[0].mxu0
      %v3147 = vadd.f32 0.0, %v3146
      %v3148 = vpop.f32.mrb[0].mxu0
      %3149 = vmatprep.mubr.bf16.mxu0 0
      %3150 = vmatmul.mubr.bf16.gmra.mrb[0].mxu0 %v2195
      %v3151 = vpop.f32.mrb[0].mxu0
      %v3152 = vadd.f32 0.0, %v3151
      %v3153 = vpop.f32.mrb[0].mxu0
      %v3154 = vpop.f32.mrb[0].mxu0
      %v3155 = vadd.f32 0.0, %v3154
      %v3156 = vpop.f32.mrb[0].mxu0
      %3157 = vmatprep.mubr.bf16.mxu0 0
      %3158 = vmatmul.mubr.bf16.gmra.mrb[0].mxu0 %v2196
      %v3159 = vpop.f32.mrb[0].mxu0
      %v3160 = vadd.f32 0.0, %v3159
      %v3161 = vpop.f32.mrb[0].mxu0
      %v3162 = vpop.f32.mrb[0].mxu0
      %v3163 = vadd.f32 0.0, %v3162
      %v3164 = vpop.f32.mrb[0].mxu0
      %3165 = vmatprep.mubr.bf16.mxu0 0
      %3166 = vmatmul.mubr.bf16.gmra.mrb[0].mxu0 %v2197
      %v3167 = vpop.f32.mrb[0].mxu0
      %v3168 = vadd.f32 0.0, %v3167
      %v3169 = vpop.f32.mrb[0].mxu0
      %v3170 = vpop.f32.mrb[0].mxu0
      %v3171 = vadd.f32 0.0, %v3170
      %v3172 = vpop.f32.mrb[0].mxu0
      %3173 = vmatprep.mubr.bf16.mxu0 0
      %3174 = vmatmul.mubr.bf16.gmra.mrb[0].mxu0 %v2198
      %v3175 = vpop.f32.mrb[0].mxu0
      %v3176 = vadd.f32 0.0, %v3175
      %v3177 = vpop.f32.mrb[0].mxu0
      %v3178 = vpop.f32.mrb[0].mxu0
      %v3179 = vadd.f32 0.0, %v3178
      %v3180 = vpop.f32.mrb[0].mxu0
      %3181 = vmatprep.mubr.bf16.mxu0 0
      %3182 = vmatmul.mubr.bf16.gmra.mrb[0].mxu0 %v2199
      %v3183 = vpop.f32.mrb[0].mxu0
      %v3184 = vadd.f32 0.0, %v3183
      %v3185 = vpop.f32.mrb[0].mxu0
      %v3186 = vpop.f32.mrb[0].mxu0
      %v3187 = vadd.f32 0.0, %v3186
      %v3188 = vpop.f32.mrb[0].mxu0
      %3189 = vmatprep.mubr.bf16.mxu0 0
      %3190 = vmatmul.mubr.bf16.gmra.mrb[0].mxu0 %v2200
      %v3191 = vpop.f32.mrb[0].mxu0
      %v3192 = vadd.f32 0.0, %v3191
      %v3193 = vpop.f32.mrb[0].mxu0
      %v3194 = vpop.f32.mrb[0].mxu0
      %v3195 = vadd.f32 0.0, %v3194
      %v3196 = vpop.f32.mrb[0].mxu0
      %3197 = vmatprep.mubr.bf16.mxu0 0
      %3198 = vmatmul.mubr.bf16.gmra.mrb[0].mxu0 %v2201
      %v3199 = vpop.f32.mrb[0].mxu0
      %v3200 = vadd.f32 0.0, %v3199
      %v3201 = vpop.f32.mrb[0].mxu0
      %v3202 = vpop.f32.mrb[0].mxu0
      %v3203 = vadd.f32 0.0, %v3202
      %v3204 = vpop.f32.mrb[0].mxu0
      %3205 = vdwg.mxu0
      %vm3206 = vcmask 556032
      %v3207 = vsel %vm3206, %v3144, -inf
      %3208 = vmax.xlane.f32.xlu0 %v3207
      %v3209 = vpop.xlane.xlu0 %3208
      %v3210 = vsel %vm3206, %v3147, -inf
      %3211 = vmax.xlane.f32.xlu0 %v3210
      %v3212 = vpop.xlane.xlu0 %3211
      %v3213 = vsel %vm3206, %v3152, -inf
      %3214 = vmax.xlane.f32.xlu0 %v3213
      %v3215 = vpop.xlane.xlu0 %3214
      %v3216 = vsel %vm3206, %v3155, -inf
      %3217 = vmax.xlane.f32.xlu0 %v3216
      %v3218 = vpop.xlane.xlu0 %3217
      %v3219 = vsel %vm3206, %v3160, -inf
      %3220 = vmax.xlane.f32.xlu0 %v3219
      %v3221 = vpop.xlane.xlu0 %3220
      %v3222 = vsel %vm3206, %v3163, -inf
      %3223 = vmax.xlane.f32.xlu0 %v3222
      %v3224 = vpop.xlane.xlu0 %3223
      %v3225 = vsel %vm3206, %v3168, -inf
      %3226 = vmax.xlane.f32.xlu0 %v3225
      %v3227 = vpop.xlane.xlu0 %3226
      %v3228 = vsel %vm3206, %v3171, -inf
      %3229 = vmax.xlane.f32.xlu0 %v3228
      %v3230 = vpop.xlane.xlu0 %3229
      %v3231 = vsel %vm3206, %v3176, -inf
      %3232 = vmax.xlane.f32.xlu0 %v3231
      %v3233 = vpop.xlane.xlu0 %3232
      %v3234 = vsel %vm3206, %v3179, -inf
      %3235 = vmax.xlane.f32.xlu0 %v3234
      %v3236 = vpop.xlane.xlu0 %3235
      %v3237 = vsel %vm3206, %v3184, -inf
      %3238 = vmax.xlane.f32.xlu0 %v3237
      %v3239 = vpop.xlane.xlu0 %3238
      %v3240 = vsel %vm3206, %v3187, -inf
      %3241 = vmax.xlane.f32.xlu0 %v3240
      %v3242 = vpop.xlane.xlu0 %3241
      %v3243 = vsel %vm3206, %v3192, -inf
      %3244 = vmax.xlane.f32.xlu0 %v3243
      %v3245 = vpop.xlane.xlu0 %3244
      %v3246 = vsel %vm3206, %v3195, -inf
      %3247 = vmax.xlane.f32.xlu0 %v3246
      %v3248 = vpop.xlane.xlu0 %3247
      %v3249 = vsel %vm3206, %v3200, -inf
      %3250 = vmax.xlane.f32.xlu0 %v3249
      %v3251 = vpop.xlane.xlu0 %3250
      %v3252 = vsel %vm3206, %v3203, -inf
      %3253 = vmax.xlane.f32.xlu0 %v3252
      %v3254 = vpop.xlane.xlu0 %3253
      %v3255 = vmax.f32 %v2796, %v3209
      %v3256 = vmax.f32 %v2797, %v3212
      %v3257 = vmax.f32 %v2798, %v3215
      %v3258 = vmax.f32 %v2799, %v3218
      %v3259 = vmax.f32 %v2800, %v3221
      %v3260 = vmax.f32 %v2801, %v3224
      %v3261 = vmax.f32 %v2802, %v3227
      %v3262 = vmax.f32 %v2803, %v3230
      %v3263 = vmax.f32 %v2804, %v3233
      %v3264 = vmax.f32 %v2805, %v3236
      %v3265 = vmax.f32 %v2806, %v3239
      %v3266 = vmax.f32 %v2807, %v3242
      %v3267 = vmax.f32 %v2808, %v3245
      %v3268 = vmax.f32 %v2809, %v3248
      %v3269 = vmax.f32 %v2810, %v3251
      %v3270 = vmax.f32 %v2811, %v3254
      %v3271 = vsub.f32 %v2796, %v3255
      %v3272 = vsub.f32 %v2797, %v3256
      %v3273 = vsub.f32 %v2798, %v3257
      %v3274 = vsub.f32 %v2799, %v3258
      %v3275 = vsub.f32 %v2800, %v3259
      %v3276 = vsub.f32 %v2801, %v3260
      %v3277 = vsub.f32 %v2802, %v3261
      %v3278 = vsub.f32 %v2803, %v3262
      %v3279 = vsub.f32 %v2804, %v3263
      %v3280 = vsub.f32 %v2805, %v3264
      %v3281 = vsub.f32 %v2806, %v3265
      %v3282 = vsub.f32 %v2807, %v3266
      %v3283 = vsub.f32 %v2808, %v3267
      %v3284 = vsub.f32 %v2809, %v3268
      %v3285 = vsub.f32 %v2810, %v3269
      %v3286 = vsub.f32 %v2811, %v3270
      %v3287 = vmul.f32 %v3271, 1.442695
      %v3288 = vpow.pop %v3287
      %v3289 = vmul.f32 %v3272, 1.442695
      %v3290 = vpow.pop %v3289
      %v3291 = vmul.f32 %v3273, 1.442695
      %v3292 = vpow.pop %v3291
      %v3293 = vmul.f32 %v3274, 1.442695
      %v3294 = vpow.pop %v3293
      %v3295 = vmul.f32 %v3275, 1.442695
      %v3296 = vpow.pop %v3295
      %v3297 = vmul.f32 %v3276, 1.442695
      %v3298 = vpow.pop %v3297
      %v3299 = vmul.f32 %v3277, 1.442695
      %v3300 = vpow.pop %v3299
      %v3301 = vmul.f32 %v3278, 1.442695
      %v3302 = vpow.pop %v3301
      %v3303 = vmul.f32 %v3279, 1.442695
      %v3304 = vpow.pop %v3303
      %v3305 = vmul.f32 %v3280, 1.442695
      %v3306 = vpow.pop %v3305
      %v3307 = vmul.f32 %v3281, 1.442695
      %v3308 = vpow.pop %v3307
      %v3309 = vmul.f32 %v3282, 1.442695
      %v3310 = vpow.pop %v3309
      %v3311 = vmul.f32 %v3283, 1.442695
      %v3312 = vpow.pop %v3311
      %v3313 = vmul.f32 %v3284, 1.442695
      %v3314 = vpow.pop %v3313
      %v3315 = vmul.f32 %v3285, 1.442695
      %v3316 = vpow.pop %v3315
      %v3317 = vmul.f32 %v3286, 1.442695
      %v3318 = vpow.pop %v3317
      %v3319 = vsub.f32 %v3144, %v3255
      %v3320 = vsub.f32 %v3147, %v3256
      %v3321 = vsub.f32 %v3152, %v3257
      %v3322 = vsub.f32 %v3155, %v3258
      %v3323 = vsub.f32 %v3160, %v3259
      %v3324 = vsub.f32 %v3163, %v3260
      %v3325 = vsub.f32 %v3168, %v3261
      %v3326 = vsub.f32 %v3171, %v3262
      %v3327 = vsub.f32 %v3176, %v3263
      %v3328 = vsub.f32 %v3179, %v3264
      %v3329 = vsub.f32 %v3184, %v3265
      %v3330 = vsub.f32 %v3187, %v3266
      %v3331 = vsub.f32 %v3192, %v3267
      %v3332 = vsub.f32 %v3195, %v3268
      %v3333 = vsub.f32 %v3200, %v3269
      %v3334 = vsub.f32 %v3203, %v3270
      %v3335 = vmul.f32 %v3319, 1.442695
      %v3336 = vpow.pop %v3335
      %v3337 = vmul.f32 %v3320, 1.442695
      %v3338 = vpow.pop %v3337
      %v3339 = vmul.f32 %v3321, 1.442695
      %v3340 = vpow.pop %v3339
      %v3341 = vmul.f32 %v3322, 1.442695
      %v3342 = vpow.pop %v3341
      %v3343 = vmul.f32 %v3323, 1.442695
      %v3344 = vpow.pop %v3343
      %v3345 = vmul.f32 %v3324, 1.442695
      %v3346 = vpow.pop %v3345
      %v3347 = vmul.f32 %v3325, 1.442695
      %v3348 = vpow.pop %v3347
      %v3349 = vmul.f32 %v3326, 1.442695
      %v3350 = vpow.pop %v3349
      %v3351 = vmul.f32 %v3327, 1.442695
      %v3352 = vpow.pop %v3351
      %v3353 = vmul.f32 %v3328, 1.442695
      %v3354 = vpow.pop %v3353
      %v3355 = vmul.f32 %v3329, 1.442695
      %v3356 = vpow.pop %v3355
      %v3357 = vmul.f32 %v3330, 1.442695
      %v3358 = vpow.pop %v3357
      %v3359 = vmul.f32 %v3331, 1.442695
      %v3360 = vpow.pop %v3359
      %v3361 = vmul.f32 %v3332, 1.442695
      %v3362 = vpow.pop %v3361
      %v3363 = vmul.f32 %v3333, 1.442695
      %v3364 = vpow.pop %v3363
      %v3365 = vmul.f32 %v3334, 1.442695
      %v3366 = vpow.pop %v3365
      %v3367 = vmul.f32 %v3288, %v2956
      %v3368 = vmul.f32 %v3290, %v2957
      %v3369 = vmul.f32 %v3292, %v2958
      %v3370 = vmul.f32 %v3294, %v2959
      %v3371 = vmul.f32 %v3296, %v2960
      %v3372 = vmul.f32 %v3298, %v2961
      %v3373 = vmul.f32 %v3300, %v2962
      %v3374 = vmul.f32 %v3302, %v2963
      %v3375 = vmul.f32 %v3304, %v2964
      %v3376 = vmul.f32 %v3306, %v2965
      %v3377 = vmul.f32 %v3308, %v2966
      %v3378 = vmul.f32 %v3310, %v2967
      %v3379 = vmul.f32 %v3312, %v2968
      %v3380 = vmul.f32 %v3314, %v2969
      %v3381 = vmul.f32 %v3316, %v2970
      %v3382 = vmul.f32 %v3318, %v2971
      %v3383 = vsel %vm3206, %v3336, 0.0
      %3384 = vadd.xlane.f32.xlu0 %v3383
      %v3385 = vpop.xlane.xlu0 %3384
      %v3386 = vsel %vm3206, %v3338, 0.0
      %3387 = vadd.xlane.f32.xlu0 %v3386
      %v3388 = vpop.xlane.xlu0 %3387
      %v3389 = vsel %vm3206, %v3340, 0.0
      %3390 = vadd.xlane.f32.xlu0 %v3389
      %v3391 = vpop.xlane.xlu0 %3390
      %v3392 = vsel %vm3206, %v3342, 0.0
      %3393 = vadd.xlane.f32.xlu0 %v3392
      %v3394 = vpop.xlane.xlu0 %3393
      %v3395 = vsel %vm3206, %v3344, 0.0
      %3396 = vadd.xlane.f32.xlu0 %v3395
      %v3397 = vpop.xlane.xlu0 %3396
      %v3398 = vsel %vm3206, %v3346, 0.0
      %3399 = vadd.xlane.f32.xlu0 %v3398
      %v3400 = vpop.xlane.xlu0 %3399
      %v3401 = vsel %vm3206, %v3348, 0.0
      %3402 = vadd.xlane.f32.xlu0 %v3401
      %v3403 = vpop.xlane.xlu0 %3402
      %v3404 = vsel %vm3206, %v3350, 0.0
      %3405 = vadd.xlane.f32.xlu0 %v3404
      %v3406 = vpop.xlane.xlu0 %3405
      %v3407 = vsel %vm3206, %v3352, 0.0
      %3408 = vadd.xlane.f32.xlu0 %v3407
      %v3409 = vpop.xlane.xlu0 %3408
      %v3410 = vsel %vm3206, %v3354, 0.0
      %3411 = vadd.xlane.f32.xlu0 %v3410
      %v3412 = vpop.xlane.xlu0 %3411
      %v3413 = vsel %vm3206, %v3356, 0.0
      %3414 = vadd.xlane.f32.xlu0 %v3413
      %v3415 = vpop.xlane.xlu0 %3414
      %v3416 = vsel %vm3206, %v3358, 0.0
      %3417 = vadd.xlane.f32.xlu0 %v3416
      %v3418 = vpop.xlane.xlu0 %3417
      %v3419 = vsel %vm3206, %v3360, 0.0
      %3420 = vadd.xlane.f32.xlu0 %v3419
      %v3421 = vpop.xlane.xlu0 %3420
      %v3422 = vsel %vm3206, %v3362, 0.0
      %3423 = vadd.xlane.f32.xlu0 %v3422
      %v3424 = vpop.xlane.xlu0 %3423
      %v3425 = vsel %vm3206, %v3364, 0.0
      %3426 = vadd.xlane.f32.xlu0 %v3425
      %v3427 = vpop.xlane.xlu0 %3426
      %v3428 = vsel %vm3206, %v3366, 0.0
      %3429 = vadd.xlane.f32.xlu0 %v3428
      %v3430 = vpop.xlane.xlu0 %3429
      %v3431 = vadd.f32 %v3367, %v3385
      %v3432 = vadd.f32 %v3368, %v3388
      %v3433 = vadd.f32 %v3369, %v3391
      %v3434 = vadd.f32 %v3370, %v3394
      %v3435 = vadd.f32 %v3371, %v3397
      %v3436 = vadd.f32 %v3372, %v3400
      %v3437 = vadd.f32 %v3373, %v3403
      %v3438 = vadd.f32 %v3374, %v3406
      %v3439 = vadd.f32 %v3375, %v3409
      %v3440 = vadd.f32 %v3376, %v3412
      %v3441 = vadd.f32 %v3377, %v3415
      %v3442 = vadd.f32 %v3378, %v3418
      %v3443 = vadd.f32 %v3379, %v3421
      %v3444 = vadd.f32 %v3380, %v3424
      %v3445 = vadd.f32 %v3381, %v3427
      %v3446 = vadd.f32 %v3382, %v3430
      %v3447 = vmul.f32 %v3288, %v3093
      %v3448 = vmul.f32 %v3290, %v3094
      %v3449 = vmul.f32 %v3292, %v3095
      %v3450 = vmul.f32 %v3294, %v3096
      %v3451 = vmul.f32 %v3296, %v3097
      %v3452 = vmul.f32 %v3298, %v3098
      %v3453 = vmul.f32 %v3300, %v3099
      %v3454 = vmul.f32 %v3302, %v3100
      %v3455 = vmul.f32 %v3304, %v3101
      %v3456 = vmul.f32 %v3306, %v3102
      %v3457 = vmul.f32 %v3308, %v3103
      %v3458 = vmul.f32 %v3310, %v3104
      %v3459 = vmul.f32 %v3312, %v3105
      %v3460 = vmul.f32 %v3314, %v3106
      %v3461 = vmul.f32 %v3316, %v3107
      %v3462 = vmul.f32 %v3318, %v3108
      %v3463 = vpack.c.bf16 %v3338, %v3336
      %v3464 = vpack.c.bf16 %v3342, %v3340
      %v3465 = vpack.c.bf16 %v3346, %v3344
      %v3466 = vpack.c.bf16 %v3350, %v3348
      %v3467 = vpack.c.bf16 %v3354, %v3352
      %v3468 = vpack.c.bf16 %v3358, %v3356
      %v3469 = vpack.c.bf16 %v3362, %v3360
      %v3470 = vpack.c.bf16 %v3366, %v3364
      %v3472 = vsel %vm3206, %v3463, 0
      %v3475 = vsel %vm3206, %v3464, 0
      %v3478 = vsel %vm3206, %v3465, 0
      %v3481 = vsel %vm3206, %v3466, 0
      %v3484 = vsel %vm3206, %v3467, 0
      %v3487 = vsel %vm3206, %v3468, 0
      %v3490 = vsel %vm3206, %v3469, 0
      %v3493 = vsel %vm3206, %v3470, 0
      %v3496 = vsel %vm1743, %v2256, 0
      %3498 = vmatprep.subr.bf16.mxu0 0
      %3499 = vmatpush1.bf16.msra.mxu0 %v2252
      %3500 = vmatprep.subr.bf16.mxu0 0
      %3501 = vmatpush1.bf16.msra.mxu0 %v2253
      %3502 = vmatprep.subr.bf16.mxu0 0
      %3503 = vmatpush1.bf16.msra.mxu0 %v2254
      %3504 = vmatprep.subr.bf16.mxu0 0
      %3505 = vmatpush1.bf16.msra.mxu0 %v2255
      %3506 = vmatprep.subr.bf16.mxu0 0
      %3507 = vmatpush1.bf16.msra.mxu0 %v3496
      %3508 = vmatprep.subr.bf16.mxu0 0
      %3509 = vmatpush1.bf16.msra.mxu0 0
      %3510 = vmatprep.subr.bf16.mxu0 0
      %3511 = vmatpush1.bf16.msra.mxu0 0
      %3512 = vmatprep.subr.bf16.mxu0 0
      %3513 = vmatpush1.bf16.msra.mxu0 0
      %3514 = vmatprep.subr.bf16.mxu0 0
      %3515 = vmatpush1.bf16.msra.mxu0 0
      %3516 = vmatprep.subr.bf16.mxu0 0
      %3517 = vmatpush1.bf16.msra.mxu0 0
      %3518 = vmatprep.subr.bf16.mxu0 0
      %3519 = vmatpush1.bf16.msra.mxu0 0
      %3520 = vmatprep.subr.bf16.mxu0 0
      %3521 = vmatpush1.bf16.msra.mxu0 0
      %3522 = vmatprep.subr.bf16.mxu0 0
      %3523 = vmatpush1.bf16.msra.mxu0 0
      %3524 = vmatprep.subr.bf16.mxu0 0
      %3525 = vmatpush1.bf16.msra.mxu0 0
      %3526 = vmatprep.subr.bf16.mxu0 0
      %3527 = vmatpush1.bf16.msra.mxu0 0
      %3528 = vmatprep.subr.bf16.mxu0 0
      %3529 = vmatpush1.bf16.msra.mxu0 0
      %3530 = vmatprep.mubr.bf16.mxu0 0
      %3531 = vmatmul.mubr.bf16.gmra.mrb[0].mxu0 %v3472
      %v3532 = vpop.f32.mrb[0].mxu0
      %v3533 = vadd.f32 0.0, %v3532
      %v3534 = vpop.f32.mrb[0].mxu0
      %v3535 = vpop.f32.mrb[0].mxu0
      %v3536 = vadd.f32 0.0, %v3535
      %v3537 = vpop.f32.mrb[0].mxu0
      %3538 = vmatprep.mubr.bf16.mxu0 0
      %3539 = vmatmul.mubr.bf16.gmra.mrb[0].mxu0 %v3475
      %v3540 = vpop.f32.mrb[0].mxu0
      %v3541 = vadd.f32 0.0, %v3540
      %v3542 = vpop.f32.mrb[0].mxu0
      %v3543 = vpop.f32.mrb[0].mxu0
      %v3544 = vadd.f32 0.0, %v3543
      %v3545 = vpop.f32.mrb[0].mxu0
      %3546 = vmatprep.mubr.bf16.mxu0 0
      %3547 = vmatmul.mubr.bf16.gmra.mrb[0].mxu0 %v3478
      %v3548 = vpop.f32.mrb[0].mxu0
      %v3549 = vadd.f32 0.0, %v3548
      %v3550 = vpop.f32.mrb[0].mxu0
      %v3551 = vpop.f32.mrb[0].mxu0
      %v3552 = vadd.f32 0.0, %v3551
      %v3553 = vpop.f32.mrb[0].mxu0
      %3554 = vmatprep.mubr.bf16.mxu0 0
      %3555 = vmatmul.mubr.bf16.gmra.mrb[0].mxu0 %v3481
      %v3556 = vpop.f32.mrb[0].mxu0
      %v3557 = vadd.f32 0.0, %v3556
      %v3558 = vpop.f32.mrb[0].mxu0
      %v3559 = vpop.f32.mrb[0].mxu0
      %v3560 = vadd.f32 0.0, %v3559
      %v3561 = vpop.f32.mrb[0].mxu0
      %3562 = vmatprep.mubr.bf16.mxu0 0
      %3563 = vmatmul.mubr.bf16.gmra.mrb[0].mxu0 %v3484
      %v3564 = vpop.f32.mrb[0].mxu0
      %v3565 = vadd.f32 0.0, %v3564
      %v3566 = vpop.f32.mrb[0].mxu0
      %v3567 = vpop.f32.mrb[0].mxu0
      %v3568 = vadd.f32 0.0, %v3567
      %v3569 = vpop.f32.mrb[0].mxu0
      %3570 = vmatprep.mubr.bf16.mxu0 0
      %3571 = vmatmul.mubr.bf16.gmra.mrb[0].mxu0 %v3487
      %v3572 = vpop.f32.mrb[0].mxu0
      %v3573 = vadd.f32 0.0, %v3572
      %v3574 = vpop.f32.mrb[0].mxu0
      %v3575 = vpop.f32.mrb[0].mxu0
      %v3576 = vadd.f32 0.0, %v3575
      %v3577 = vpop.f32.mrb[0].mxu0
      %3578 = vmatprep.mubr.bf16.mxu0 0
      %3579 = vmatmul.mubr.bf16.gmra.mrb[0].mxu0 %v3490
      %v3580 = vpop.f32.mrb[0].mxu0
      %v3581 = vadd.f32 0.0, %v3580
      %v3582 = vpop.f32.mrb[0].mxu0
      %v3583 = vpop.f32.mrb[0].mxu0
      %v3584 = vadd.f32 0.0, %v3583
      %v3585 = vpop.f32.mrb[0].mxu0
      %3586 = vmatprep.mubr.bf16.mxu0 0
      %3587 = vmatmul.mubr.bf16.gmra.mrb[0].mxu0 %v3493
      %v3588 = vpop.f32.mrb[0].mxu0
      %v3589 = vadd.f32 0.0, %v3588
      %v3590 = vpop.f32.mrb[0].mxu0
      %v3591 = vpop.f32.mrb[0].mxu0
      %v3592 = vadd.f32 0.0, %v3591
      %v3593 = vpop.f32.mrb[0].mxu0
      %3594 = vdwg.mxu0
      %v3595 = vadd.f32 %v3447, %v3533
      %v3596 = vadd.f32 %v3448, %v3536
      %v3597 = vadd.f32 %v3449, %v3541
      %v3598 = vadd.f32 %v3450, %v3544
      %v3599 = vadd.f32 %v3451, %v3549
      %v3600 = vadd.f32 %v3452, %v3552
      %v3601 = vadd.f32 %v3453, %v3557
      %v3602 = vadd.f32 %v3454, %v3560
      %v3603 = vadd.f32 %v3455, %v3565
      %v3604 = vadd.f32 %v3456, %v3568
      %v3605 = vadd.f32 %v3457, %v3573
      %v3606 = vadd.f32 %v3458, %v3576
      %v3607 = vadd.f32 %v3459, %v3581
      %v3608 = vadd.f32 %v3460, %v3584
      %v3609 = vadd.f32 %v3461, %v3589
      %v3610 = vadd.f32 %v3462, %v3592
      %v3611 = vrcp.pop %v3431
      %v3612 = vmul.f32 %v3595, %v3611
      %v3613 = vrcp.pop %v3432
      %v3614 = vmul.f32 %v3596, %v3613
      %v3615 = vrcp.pop %v3433
      %v3616 = vmul.f32 %v3597, %v3615
      %v3617 = vrcp.pop %v3434
      %v3618 = vmul.f32 %v3598, %v3617
      %v3619 = vrcp.pop %v3435
      %v3620 = vmul.f32 %v3599, %v3619
      %v3621 = vrcp.pop %v3436
      %v3622 = vmul.f32 %v3600, %v3621
      %v3623 = vrcp.pop %v3437
      %v3624 = vmul.f32 %v3601, %v3623
      %v3625 = vrcp.pop %v3438
      %v3626 = vmul.f32 %v3602, %v3625
      %v3627 = vrcp.pop %v3439
      %v3628 = vmul.f32 %v3603, %v3627
      %v3629 = vrcp.pop %v3440
      %v3630 = vmul.f32 %v3604, %v3629
      %v3631 = vrcp.pop %v3441
      %v3632 = vmul.f32 %v3605, %v3631
      %v3633 = vrcp.pop %v3442
      %v3634 = vmul.f32 %v3606, %v3633
      %v3635 = vrcp.pop %v3443
      %v3636 = vmul.f32 %v3607, %v3635
      %v3637 = vrcp.pop %v3444
      %v3638 = vmul.f32 %v3608, %v3637
      %v3639 = vrcp.pop %v3445
      %v3640 = vmul.f32 %v3609, %v3639
      %v3641 = vrcp.pop %v3446
      %v3642 = vmul.f32 %v3610, %v3641
      %v3643 = vpack.c.bf16 %v3614, %v3612
      %v3644 = vpack.c.bf16 %v3618, %v3616
      %v3645 = vpack.c.bf16 %v3622, %v3620
      %v3646 = vpack.c.bf16 %v3626, %v3624
      %v3647 = vpack.c.bf16 %v3630, %v3628
      %v3648 = vpack.c.bf16 %v3634, %v3632
      %v3649 = vpack.c.bf16 %v3638, %v3636
      %v3650 = vpack.c.bf16 %v3642, %v3640
      %v3651 = vld [vmem:[%s4] sm:$0xf]
      %v3652 = vld [vmem:[%s4 + $0x4] sm:$0xf]
      %v3653 = vld [vmem:[%s4 + $0x8] sm:$0xf]
      %v3654 = vld [vmem:[%s4 + $0xc] sm:$0xf]
      %v3655 = vld [vmem:[%s4 + $0x10] sm:$0xf]
      %v3656 = vld [vmem:[%s4 + $0x14] sm:$0xf]
      %v3657 = vld [vmem:[%s4 + $0x18] sm:$0xf]
      %v3658 = vld [vmem:[%s4 + $0x1c] sm:$0xf]
      %v3659 = vld [vmem:[%s4 + $0x20] sm:$0xf]
      %v3660 = vld [vmem:[%s4 + $0x24] sm:$0xf]
      %v3661 = vld [vmem:[%s4 + $0x28] sm:$0xf]
      %v3662 = vld [vmem:[%s4 + $0x2c] sm:$0xf]
      %v3663 = vld [vmem:[%s4 + $0x30] sm:$0xf]
      %v3664 = vld [vmem:[%s4 + $0x34] sm:$0xf]
      %v3665 = vld [vmem:[%s4 + $0x38] sm:$0xf]
      %v3666 = vld [vmem:[%s4 + $0x3c] sm:$0xf]
      %v3667 = vld [vmem:[%s5] sm:$0x1]
      %v3669 = vlaneseq
      %v3670 = vshrl.u32 %v3669, 7
      %v3671 = vsub.s32 0, %v3670
      %v3672 = vrot.slane %v3667, %v3671
      %v3690 = vunpack.c.l.b16 %v3651
      %v3691 = vunpack.c.l.b16 %v3652
      %v3692 = vunpack.c.l.b16 %v3653
      %v3693 = vunpack.c.l.b16 %v3654
      %v3694 = vunpack.c.l.b16 %v3655
      %v3695 = vunpack.c.l.b16 %v3656
      %v3696 = vunpack.c.l.b16 %v3657
      %v3697 = vunpack.c.l.b16 %v3658
      %v3698 = vunpack.c.l.b16 %v3659
      %v3699 = vunpack.c.l.b16 %v3660
      %v3700 = vunpack.c.l.b16 %v3661
      %v3701 = vunpack.c.l.b16 %v3662
      %v3702 = vunpack.c.l.b16 %v3663
      %v3703 = vunpack.c.l.b16 %v3664
      %v3704 = vunpack.c.l.b16 %v3665
      %v3705 = vunpack.c.l.b16 %v3666
      %v3706 = vpack.c.b16 %v3691, %v3690
      %v3707 = vpack.c.b16 %v3693, %v3692
      %v3708 = vpack.c.b16 %v3695, %v3694
      %v3709 = vpack.c.b16 %v3697, %v3696
      %v3710 = vpack.c.b16 %v3699, %v3698
      %v3711 = vpack.c.b16 %v3701, %v3700
      %v3712 = vpack.c.b16 %v3703, %v3702
      %v3713 = vpack.c.b16 %v3705, %v3704
      %3722 = vmatprep.subr.bf16.mxu0 0
      %3723 = vmatpush1.bf16.msra.mxu0 %v3706
      %3724 = vmatprep.subr.bf16.mxu0 0
      %3725 = vmatpush1.bf16.msra.mxu0 %v3707
      %3726 = vmatprep.subr.bf16.mxu0 0
      %3727 = vmatpush1.bf16.msra.mxu0 %v3708
      %3728 = vmatprep.subr.bf16.mxu0 0
      %3729 = vmatpush1.bf16.msra.mxu0 %v3709
      %3730 = vmatprep.subr.bf16.mxu0 0
      %3731 = vmatpush1.bf16.msra.mxu0 %v3710
      %3732 = vmatprep.subr.bf16.mxu0 0
      %3733 = vmatpush1.bf16.msra.mxu0 %v3711
      %3734 = vmatprep.subr.bf16.mxu0 0
      %3735 = vmatpush1.bf16.msra.mxu0 %v3712
      %3736 = vmatprep.subr.bf16.mxu0 0
      %3737 = vmatpush1.bf16.msra.mxu0 %v3713
      %3738 = vmatprep.subr.bf16.mxu0 0
      %3739 = vmatpush1.bf16.msra.mxu0 0
      %3740 = vmatprep.subr.bf16.mxu0 0
      %3741 = vmatpush1.bf16.msra.mxu0 0
      %3742 = vmatprep.subr.bf16.mxu0 0
      %3743 = vmatpush1.bf16.msra.mxu0 0
      %3744 = vmatprep.subr.bf16.mxu0 0
      %3745 = vmatpush1.bf16.msra.mxu0 0
      %3746 = vmatprep.subr.bf16.mxu0 0
      %3747 = vmatpush1.bf16.msra.mxu0 0
      %3748 = vmatprep.subr.bf16.mxu0 0
      %3749 = vmatpush1.bf16.msra.mxu0 0
      %3750 = vmatprep.subr.bf16.mxu0 0
      %3751 = vmatpush1.bf16.msra.mxu0 0
      %3752 = vmatprep.subr.bf16.mxu0 0
      %3753 = vmatpush1.bf16.msra.mxu0 0
      %3754 = vmatprep.mubr.bf16.mxu0 0
      %3755 = vmatmul.mubr.bf16.gmra.mrb[0].mxu0 %v3643
      %v3756 = vpop.f32.mrb[0].mxu0
      %v3757 = vadd.f32 %v3672, %v3756
      %v3758 = vpop.f32.mrb[0].mxu0
      %v3759 = vpop.f32.mrb[0].mxu0
      %v3760 = vadd.f32 %v3672, %v3759
      %v3761 = vpop.f32.mrb[0].mxu0
      %3762 = vmatprep.mubr.bf16.mxu0 0
      %3763 = vmatmul.mubr.bf16.gmra.mrb[0].mxu0 %v3644
      %v3764 = vpop.f32.mrb[0].mxu0
      %v3765 = vadd.f32 %v3672, %v3764
      %v3766 = vpop.f32.mrb[0].mxu0
      %v3767 = vpop.f32.mrb[0].mxu0
      %v3768 = vadd.f32 %v3672, %v3767
      %v3769 = vpop.f32.mrb[0].mxu0
      %3770 = vmatprep.mubr.bf16.mxu0 0
      %3771 = vmatmul.mubr.bf16.gmra.mrb[0].mxu0 %v3645
      %v3772 = vpop.f32.mrb[0].mxu0
      %v3773 = vadd.f32 %v3672, %v3772
      %v3774 = vpop.f32.mrb[0].mxu0
      %v3775 = vpop.f32.mrb[0].mxu0
      %v3776 = vadd.f32 %v3672, %v3775
      %v3777 = vpop.f32.mrb[0].mxu0
      %3778 = vmatprep.mubr.bf16.mxu0 0
      %3779 = vmatmul.mubr.bf16.gmra.mrb[0].mxu0 %v3646
      %v3780 = vpop.f32.mrb[0].mxu0
      %v3781 = vadd.f32 %v3672, %v3780
      %v3782 = vpop.f32.mrb[0].mxu0
      %v3783 = vpop.f32.mrb[0].mxu0
      %v3784 = vadd.f32 %v3672, %v3783
      %v3785 = vpop.f32.mrb[0].mxu0
      %3786 = vmatprep.mubr.bf16.mxu0 0
      %3787 = vmatmul.mubr.bf16.gmra.mrb[0].mxu0 %v3647
      %v3788 = vpop.f32.mrb[0].mxu0
      %v3789 = vadd.f32 %v3672, %v3788
      %v3790 = vpop.f32.mrb[0].mxu0
      %v3791 = vpop.f32.mrb[0].mxu0
      %v3792 = vadd.f32 %v3672, %v3791
      %v3793 = vpop.f32.mrb[0].mxu0
      %3794 = vmatprep.mubr.bf16.mxu0 0
      %3795 = vmatmul.mubr.bf16.gmra.mrb[0].mxu0 %v3648
      %v3796 = vpop.f32.mrb[0].mxu0
      %v3797 = vadd.f32 %v3672, %v3796
      %v3798 = vpop.f32.mrb[0].mxu0
      %v3799 = vpop.f32.mrb[0].mxu0
      %v3800 = vadd.f32 %v3672, %v3799
      %v3801 = vpop.f32.mrb[0].mxu0
      %3802 = vmatprep.mubr.bf16.mxu0 0
      %3803 = vmatmul.mubr.bf16.gmra.mrb[0].mxu0 %v3649
      %v3804 = vpop.f32.mrb[0].mxu0
      %v3805 = vadd.f32 %v3672, %v3804
      %v3806 = vpop.f32.mrb[0].mxu0
      %v3807 = vpop.f32.mrb[0].mxu0
      %v3808 = vadd.f32 %v3672, %v3807
      %v3809 = vpop.f32.mrb[0].mxu0
      %3810 = vmatprep.mubr.bf16.mxu0 0
      %3811 = vmatmul.mubr.bf16.gmra.mrb[0].mxu0 %v3650
      %v3812 = vpop.f32.mrb[0].mxu0
      %v3813 = vadd.f32 %v3672, %v3812
      %v3814 = vpop.f32.mrb[0].mxu0
      %v3815 = vpop.f32.mrb[0].mxu0
      %v3816 = vadd.f32 %v3672, %v3815
      %v3817 = vpop.f32.mrb[0].mxu0
      %3818 = vdwg.mxu0
      %v3819 = vadd.f32 %v2029, %v3757
      %v3820 = vadd.f32 %v2032, %v3760
      %v3821 = vadd.f32 %v2037, %v3765
      %v3822 = vadd.f32 %v2040, %v3768
      %v3823 = vadd.f32 %v2045, %v3773
      %v3824 = vadd.f32 %v2048, %v3776
      %v3825 = vadd.f32 %v2053, %v3781
      %v3826 = vadd.f32 %v2056, %v3784
      %v3827 = vadd.f32 %v2061, %v3789
      %v3828 = vadd.f32 %v2064, %v3792
      %v3829 = vadd.f32 %v2069, %v3797
      %v3830 = vadd.f32 %v2072, %v3800
      %v3831 = vadd.f32 %v2077, %v3805
      %v3832 = vadd.f32 %v2080, %v3808
      %v3833 = vadd.f32 %v2085, %v3813
      %v3834 = vadd.f32 %v2088, %v3816
      %3835 = vadd.xlane.f32.xlu0 %v3819
      %v3836 = vpop.xlane.xlu0 %3835
      %3837 = vadd.xlane.f32.xlu0 %v3820
      %v3838 = vpop.xlane.xlu0 %3837
      %3839 = vadd.xlane.f32.xlu0 %v3821
      %v3840 = vpop.xlane.xlu0 %3839
      %3841 = vadd.xlane.f32.xlu0 %v3822
      %v3842 = vpop.xlane.xlu0 %3841
      %3843 = vadd.xlane.f32.xlu0 %v3823
      %v3844 = vpop.xlane.xlu0 %3843
      %3845 = vadd.xlane.f32.xlu0 %v3824
      %v3846 = vpop.xlane.xlu0 %3845
      %3847 = vadd.xlane.f32.xlu0 %v3825
      %v3848 = vpop.xlane.xlu0 %3847
      %3849 = vadd.xlane.f32.xlu0 %v3826
      %v3850 = vpop.xlane.xlu0 %3849
      %3851 = vadd.xlane.f32.xlu0 %v3827
      %v3852 = vpop.xlane.xlu0 %3851
      %3853 = vadd.xlane.f32.xlu0 %v3828
      %v3854 = vpop.xlane.xlu0 %3853
      %3855 = vadd.xlane.f32.xlu0 %v3829
      %v3856 = vpop.xlane.xlu0 %3855
      %3857 = vadd.xlane.f32.xlu0 %v3830
      %v3858 = vpop.xlane.xlu0 %3857
      %3859 = vadd.xlane.f32.xlu0 %v3831
      %v3860 = vpop.xlane.xlu0 %3859
      %3861 = vadd.xlane.f32.xlu0 %v3832
      %v3862 = vpop.xlane.xlu0 %3861
      %3863 = vadd.xlane.f32.xlu0 %v3833
      %v3864 = vpop.xlane.xlu0 %3863
      %3865 = vadd.xlane.f32.xlu0 %v3834
      %v3866 = vpop.xlane.xlu0 %3865
      %v3867 = vrcp.pop 128.0
      %v3868 = vmul.f32 %v3836, %v3867
      %v3869 = vmul.f32 %v3838, %v3867
      %v3870 = vmul.f32 %v3840, %v3867
      %v3871 = vmul.f32 %v3842, %v3867
      %v3872 = vmul.f32 %v3844, %v3867
      %v3873 = vmul.f32 %v3846, %v3867
      %v3874 = vmul.f32 %v3848, %v3867
      %v3875 = vmul.f32 %v3850, %v3867
      %v3876 = vmul.f32 %v3852, %v3867
      %v3877 = vmul.f32 %v3854, %v3867
      %v3878 = vmul.f32 %v3856, %v3867
      %v3879 = vmul.f32 %v3858, %v3867
      %v3880 = vmul.f32 %v3860, %v3867
      %v3881 = vmul.f32 %v3862, %v3867
      %v3882 = vmul.f32 %v3864, %v3867
      %v3883 = vmul.f32 %v3866, %v3867
      %v3884 = vsub.f32 %v3819, %v3868
      %v3885 = vsub.f32 %v3820, %v3869
      %v3886 = vsub.f32 %v3821, %v3870
      %v3887 = vsub.f32 %v3822, %v3871
      %v3888 = vsub.f32 %v3823, %v3872
      %v3889 = vsub.f32 %v3824, %v3873
      %v3890 = vsub.f32 %v3825, %v3874
      %v3891 = vsub.f32 %v3826, %v3875
      %v3892 = vsub.f32 %v3827, %v3876
      %v3893 = vsub.f32 %v3828, %v3877
      %v3894 = vsub.f32 %v3829, %v3878
      %v3895 = vsub.f32 %v3830, %v3879
      %v3896 = vsub.f32 %v3831, %v3880
      %v3897 = vsub.f32 %v3832, %v3881
      %v3898 = vsub.f32 %v3833, %v3882
      %v3899 = vsub.f32 %v3834, %v3883
      %v3900 = vmul.f32 %v3884, %v3884
      %v3901 = vmul.f32 %v3885, %v3885
      %v3902 = vmul.f32 %v3886, %v3886
      %v3903 = vmul.f32 %v3887, %v3887
      %v3904 = vmul.f32 %v3888, %v3888
      %v3905 = vmul.f32 %v3889, %v3889
      %v3906 = vmul.f32 %v3890, %v3890
      %v3907 = vmul.f32 %v3891, %v3891
      %v3908 = vmul.f32 %v3892, %v3892
      %v3909 = vmul.f32 %v3893, %v3893
      %v3910 = vmul.f32 %v3894, %v3894
      %v3911 = vmul.f32 %v3895, %v3895
      %v3912 = vmul.f32 %v3896, %v3896
      %v3913 = vmul.f32 %v3897, %v3897
      %v3914 = vmul.f32 %v3898, %v3898
      %v3915 = vmul.f32 %v3899, %v3899
      %3916 = vadd.xlane.f32.xlu0 %v3900
      %v3917 = vpop.xlane.xlu0 %3916
      %3918 = vadd.xlane.f32.xlu0 %v3901
      %v3919 = vpop.xlane.xlu0 %3918
      %3920 = vadd.xlane.f32.xlu0 %v3902
      %v3921 = vpop.xlane.xlu0 %3920
      %3922 = vadd.xlane.f32.xlu0 %v3903
      %v3923 = vpop.xlane.xlu0 %3922
      %3924 = vadd.xlane.f32.xlu0 %v3904
      %v3925 = vpop.xlane.xlu0 %3924
      %3926 = vadd.xlane.f32.xlu0 %v3905
      %v3927 = vpop.xlane.xlu0 %3926
      %3928 = vadd.xlane.f32.xlu0 %v3906
      %v3929 = vpop.xlane.xlu0 %3928
      %3930 = vadd.xlane.f32.xlu0 %v3907
      %v3931 = vpop.xlane.xlu0 %3930
      %3932 = vadd.xlane.f32.xlu0 %v3908
      %v3933 = vpop.xlane.xlu0 %3932
      %3934 = vadd.xlane.f32.xlu0 %v3909
      %v3935 = vpop.xlane.xlu0 %3934
      %3936 = vadd.xlane.f32.xlu0 %v3910
      %v3937 = vpop.xlane.xlu0 %3936
      %3938 = vadd.xlane.f32.xlu0 %v3911
      %v3939 = vpop.xlane.xlu0 %3938
      %3940 = vadd.xlane.f32.xlu0 %v3912
      %v3941 = vpop.xlane.xlu0 %3940
      %3942 = vadd.xlane.f32.xlu0 %v3913
      %v3943 = vpop.xlane.xlu0 %3942
      %3944 = vadd.xlane.f32.xlu0 %v3914
      %v3945 = vpop.xlane.xlu0 %3944
      %3946 = vadd.xlane.f32.xlu0 %v3915
      %v3947 = vpop.xlane.xlu0 %3946
      %v3948 = vmul.f32 %v3917, %v3867
      %v3949 = vmul.f32 %v3919, %v3867
      %v3950 = vmul.f32 %v3921, %v3867
      %v3951 = vmul.f32 %v3923, %v3867
      %v3952 = vmul.f32 %v3925, %v3867
      %v3953 = vmul.f32 %v3927, %v3867
      %v3954 = vmul.f32 %v3929, %v3867
      %v3955 = vmul.f32 %v3931, %v3867
      %v3956 = vmul.f32 %v3933, %v3867
      %v3957 = vmul.f32 %v3935, %v3867
      %v3958 = vmul.f32 %v3937, %v3867
      %v3959 = vmul.f32 %v3939, %v3867
      %v3960 = vmul.f32 %v3941, %v3867
      %v3961 = vmul.f32 %v3943, %v3867
      %v3962 = vmul.f32 %v3945, %v3867
      %v3963 = vmul.f32 %v3947, %v3867
      %v3964 = vadd.f32 %v3948, 1e-05
      %v3965 = vadd.f32 %v3949, 1e-05
      %v3966 = vadd.f32 %v3950, 1e-05
      %v3967 = vadd.f32 %v3951, 1e-05
      %v3968 = vadd.f32 %v3952, 1e-05
      %v3969 = vadd.f32 %v3953, 1e-05
      %v3970 = vadd.f32 %v3954, 1e-05
      %v3971 = vadd.f32 %v3955, 1e-05
      %v3972 = vadd.f32 %v3956, 1e-05
      %v3973 = vadd.f32 %v3957, 1e-05
      %v3974 = vadd.f32 %v3958, 1e-05
      %v3975 = vadd.f32 %v3959, 1e-05
      %v3976 = vadd.f32 %v3960, 1e-05
      %v3977 = vadd.f32 %v3961, 1e-05
      %v3978 = vadd.f32 %v3962, 1e-05
      %v3979 = vadd.f32 %v3963, 1e-05
      %v3980 = vrsqrt.pop %v3964
      %v3981 = vrsqrt.pop %v3965
      %v3982 = vrsqrt.pop %v3966
      %v3983 = vrsqrt.pop %v3967
      %v3984 = vrsqrt.pop %v3968
      %v3985 = vrsqrt.pop %v3969
      %v3986 = vrsqrt.pop %v3970
      %v3987 = vrsqrt.pop %v3971
      %v3988 = vrsqrt.pop %v3972
      %v3989 = vrsqrt.pop %v3973
      %v3990 = vrsqrt.pop %v3974
      %v3991 = vrsqrt.pop %v3975
      %v3992 = vrsqrt.pop %v3976
      %v3993 = vrsqrt.pop %v3977
      %v3994 = vrsqrt.pop %v3978
      %v3995 = vrsqrt.pop %v3979
      %v3996 = vmul.f32 %v3884, %v3980
      %v3997 = vmul.f32 %v3885, %v3981
      %v3998 = vmul.f32 %v3886, %v3982
      %v3999 = vmul.f32 %v3887, %v3983
      %v4000 = vmul.f32 %v3888, %v3984
      %v4001 = vmul.f32 %v3889, %v3985
      %v4002 = vmul.f32 %v3890, %v3986
      %v4003 = vmul.f32 %v3891, %v3987
      %v4004 = vmul.f32 %v3892, %v3988
      %v4005 = vmul.f32 %v3893, %v3989
      %v4006 = vmul.f32 %v3894, %v3990
      %v4007 = vmul.f32 %v3895, %v3991
      %v4008 = vmul.f32 %v3896, %v3992
      %v4009 = vmul.f32 %v3897, %v3993
      %v4010 = vmul.f32 %v3898, %v3994
      %v4011 = vmul.f32 %v3899, %v3995
      %v4012 = vld [vmem:[%s6] sm:$0x1]
      %v4014 = vlaneseq
      %v4015 = vshrl.u32 %v4014, 7
      %v4016 = vsub.s32 0, %v4015
      %v4017 = vrot.slane %v4012, %v4016
      %v4019 = vmul.f32 %v3996, %v4017
      %v4020 = vmul.f32 %v3997, %v4017
      %v4021 = vmul.f32 %v3998, %v4017
      %v4022 = vmul.f32 %v3999, %v4017
      %v4023 = vmul.f32 %v4000, %v4017
      %v4024 = vmul.f32 %v4001, %v4017
      %v4025 = vmul.f32 %v4002, %v4017
      %v4026 = vmul.f32 %v4003, %v4017
      %v4027 = vmul.f32 %v4004, %v4017
      %v4028 = vmul.f32 %v4005, %v4017
      %v4029 = vmul.f32 %v4006, %v4017
      %v4030 = vmul.f32 %v4007, %v4017
      %v4031 = vmul.f32 %v4008, %v4017
      %v4032 = vmul.f32 %v4009, %v4017
      %v4033 = vmul.f32 %v4010, %v4017
      %v4034 = vmul.f32 %v4011, %v4017
      %v4035 = vld [vmem:[%s7] sm:$0x1]
      %v4037 = vlaneseq
      %v4038 = vshrl.u32 %v4037, 7
      %v4039 = vsub.s32 0, %v4038
      %v4040 = vrot.slane %v4035, %v4039
      %v4042 = vadd.f32 %v4019, %v4040
      %v4043 = vadd.f32 %v4020, %v4040
      %v4044 = vadd.f32 %v4021, %v4040
      %v4045 = vadd.f32 %v4022, %v4040
      %v4046 = vadd.f32 %v4023, %v4040
      %v4047 = vadd.f32 %v4024, %v4040
      %v4048 = vadd.f32 %v4025, %v4040
      %v4049 = vadd.f32 %v4026, %v4040
      %v4050 = vadd.f32 %v4027, %v4040
      %v4051 = vadd.f32 %v4028, %v4040
      %v4052 = vadd.f32 %v4029, %v4040
      %v4053 = vadd.f32 %v4030, %v4040
      %v4054 = vadd.f32 %v4031, %v4040
      %v4055 = vadd.f32 %v4032, %v4040
      %v4056 = vadd.f32 %v4033, %v4040
      %v4057 = vadd.f32 %v4034, %v4040
      %v4058 = vpack.c.bf16 %v4043, %v4042
      %v4059 = vpack.c.bf16 %v4045, %v4044
      %v4060 = vpack.c.bf16 %v4047, %v4046
      %v4061 = vpack.c.bf16 %v4049, %v4048
      %v4062 = vpack.c.bf16 %v4051, %v4050
      %v4063 = vpack.c.bf16 %v4053, %v4052
      %v4064 = vpack.c.bf16 %v4055, %v4054
      %v4065 = vpack.c.bf16 %v4057, %v4056
      %v4066 = vld [vmem:[%s8] sm:$0xf]
      %v4067 = vld [vmem:[%s8 + $0x4] sm:$0xf]
      %v4068 = vld [vmem:[%s8 + $0x8] sm:$0xf]
      %v4069 = vld [vmem:[%s8 + $0xc] sm:$0xf]
      %v4070 = vld [vmem:[%s8 + $0x10] sm:$0xf]
      %v4071 = vld [vmem:[%s8 + $0x14] sm:$0xf]
      %v4072 = vld [vmem:[%s8 + $0x18] sm:$0xf]
      %v4073 = vld [vmem:[%s8 + $0x1c] sm:$0xf]
      %v4074 = vld [vmem:[%s8 + $0x20] sm:$0xf]
      %v4075 = vld [vmem:[%s8 + $0x24] sm:$0xf]
      %v4076 = vld [vmem:[%s8 + $0x28] sm:$0xf]
      %v4077 = vld [vmem:[%s8 + $0x2c] sm:$0xf]
      %v4078 = vld [vmem:[%s8 + $0x30] sm:$0xf]
      %v4079 = vld [vmem:[%s8 + $0x34] sm:$0xf]
      %v4080 = vld [vmem:[%s8 + $0x38] sm:$0xf]
      %v4081 = vld [vmem:[%s8 + $0x3c] sm:$0xf]
      %v4082 = vld [vmem:[%s9] sm:$0x1]
      %v4084 = vlaneseq
      %v4085 = vshrl.u32 %v4084, 7
      %v4086 = vsub.s32 0, %v4085
      %v4087 = vrot.slane %v4082, %v4086
      %v4105 = vunpack.c.l.b16 %v4066
      %v4106 = vunpack.c.l.b16 %v4067
      %v4107 = vunpack.c.l.b16 %v4068
      %v4108 = vunpack.c.l.b16 %v4069
      %v4109 = vunpack.c.l.b16 %v4070
      %v4110 = vunpack.c.l.b16 %v4071
      %v4111 = vunpack.c.l.b16 %v4072
      %v4112 = vunpack.c.l.b16 %v4073
      %v4113 = vunpack.c.l.b16 %v4074
      %v4114 = vunpack.c.l.b16 %v4075
      %v4115 = vunpack.c.l.b16 %v4076
      %v4116 = vunpack.c.l.b16 %v4077
      %v4117 = vunpack.c.l.b16 %v4078
      %v4118 = vunpack.c.l.b16 %v4079
      %v4119 = vunpack.c.l.b16 %v4080
      %v4120 = vunpack.c.l.b16 %v4081
      %v4121 = vpack.c.b16 %v4106, %v4105
      %v4122 = vpack.c.b16 %v4108, %v4107
      %v4123 = vpack.c.b16 %v4110, %v4109
      %v4124 = vpack.c.b16 %v4112, %v4111
      %v4125 = vpack.c.b16 %v4114, %v4113
      %v4126 = vpack.c.b16 %v4116, %v4115
      %v4127 = vpack.c.b16 %v4118, %v4117
      %v4128 = vpack.c.b16 %v4120, %v4119
      %4137 = vmatprep.subr.bf16.mxu0 0
      %4138 = vmatpush1.bf16.msra.mxu0 %v4121
      %4139 = vmatprep.subr.bf16.mxu0 0
      %4140 = vmatpush1.bf16.msra.mxu0 %v4122
      %4141 = vmatprep.subr.bf16.mxu0 0
      %4142 = vmatpush1.bf16.msra.mxu0 %v4123
      %4143 = vmatprep.subr.bf16.mxu0 0
      %4144 = vmatpush1.bf16.msra.mxu0 %v4124
      %4145 = vmatprep.subr.bf16.mxu0 0
      %4146 = vmatpush1.bf16.msra.mxu0 %v4125
      %4147 = vmatprep.subr.bf16.mxu0 0
      %4148 = vmatpush1.bf16.msra.mxu0 %v4126
      %4149 = vmatprep.subr.bf16.mxu0 0
      %4150 = vmatpush1.bf16.msra.mxu0 %v4127
      %4151 = vmatprep.subr.bf16.mxu0 0
      %4152 = vmatpush1.bf16.msra.mxu0 %v4128
      %4153 = vmatprep.subr.bf16.mxu0 0
      %4154 = vmatpush1.bf16.msra.mxu0 0
      %4155 = vmatprep.subr.bf16.mxu0 0
      %4156 = vmatpush1.bf16.msra.mxu0 0
      %4157 = vmatprep.subr.bf16.mxu0 0
      %4158 = vmatpush1.bf16.msra.mxu0 0
      %4159 = vmatprep.subr.bf16.mxu0 0
      %4160 = vmatpush1.bf16.msra.mxu0 0
      %4161 = vmatprep.subr.bf16.mxu0 0
      %4162 = vmatpush1.bf16.msra.mxu0 0
      %4163 = vmatprep.subr.bf16.mxu0 0
      %4164 = vmatpush1.bf16.msra.mxu0 0
      %4165 = vmatprep.subr.bf16.mxu0 0
      %4166 = vmatpush1.bf16.msra.mxu0 0
      %4167 = vmatprep.subr.bf16.mxu0 0
      %4168 = vmatpush1.bf16.msra.mxu0 0
      %4169 = vmatprep.mubr.bf16.mxu0 0
      %4170 = vmatmul.mubr.bf16.gmra.mrb[0].mxu0 %v4058
      %v4171 = vpop.f32.mrb[0].mxu0
      %v4172 = vadd.f32 %v4087, %v4171
      %v4173 = vpop.f32.mrb[0].mxu0
      %v4174 = vpop.f32.mrb[0].mxu0
      %v4175 = vadd.f32 %v4087, %v4174
      %v4176 = vpop.f32.mrb[0].mxu0
      %4177 = vmatprep.mubr.bf16.mxu0 0
      %4178 = vmatmul.mubr.bf16.gmra.mrb[0].mxu0 %v4059
      %v4179 = vpop.f32.mrb[0].mxu0
      %v4180 = vadd.f32 %v4087, %v4179
      %v4181 = vpop.f32.mrb[0].mxu0
      %v4182 = vpop.f32.mrb[0].mxu0
      %v4183 = vadd.f32 %v4087, %v4182
      %v4184 = vpop.f32.mrb[0].mxu0
      %4185 = vmatprep.mubr.bf16.mxu0 0
      %4186 = vmatmul.mubr.bf16.gmra.mrb[0].mxu0 %v4060
      %v4187 = vpop.f32.mrb[0].mxu0
      %v4188 = vadd.f32 %v4087, %v4187
      %v4189 = vpop.f32.mrb[0].mxu0
      %v4190 = vpop.f32.mrb[0].mxu0
      %v4191 = vadd.f32 %v4087, %v4190
      %v4192 = vpop.f32.mrb[0].mxu0
      %4193 = vmatprep.mubr.bf16.mxu0 0
      %4194 = vmatmul.mubr.bf16.gmra.mrb[0].mxu0 %v4061
      %v4195 = vpop.f32.mrb[0].mxu0
      %v4196 = vadd.f32 %v4087, %v4195
      %v4197 = vpop.f32.mrb[0].mxu0
      %v4198 = vpop.f32.mrb[0].mxu0
      %v4199 = vadd.f32 %v4087, %v4198
      %v4200 = vpop.f32.mrb[0].mxu0
      %4201 = vmatprep.mubr.bf16.mxu0 0
      %4202 = vmatmul.mubr.bf16.gmra.mrb[0].mxu0 %v4062
      %v4203 = vpop.f32.mrb[0].mxu0
      %v4204 = vadd.f32 %v4087, %v4203
      %v4205 = vpop.f32.mrb[0].mxu0
      %v4206 = vpop.f32.mrb[0].mxu0
      %v4207 = vadd.f32 %v4087, %v4206
      %v4208 = vpop.f32.mrb[0].mxu0
      %4209 = vmatprep.mubr.bf16.mxu0 0
      %4210 = vmatmul.mubr.bf16.gmra.mrb[0].mxu0 %v4063
      %v4211 = vpop.f32.mrb[0].mxu0
      %v4212 = vadd.f32 %v4087, %v4211
      %v4213 = vpop.f32.mrb[0].mxu0
      %v4214 = vpop.f32.mrb[0].mxu0
      %v4215 = vadd.f32 %v4087, %v4214
      %v4216 = vpop.f32.mrb[0].mxu0
      %4217 = vmatprep.mubr.bf16.mxu0 0
      %4218 = vmatmul.mubr.bf16.gmra.mrb[0].mxu0 %v4064
      %v4219 = vpop.f32.mrb[0].mxu0
      %v4220 = vadd.f32 %v4087, %v4219
      %v4221 = vpop.f32.mrb[0].mxu0
      %v4222 = vpop.f32.mrb[0].mxu0
      %v4223 = vadd.f32 %v4087, %v4222
      %v4224 = vpop.f32.mrb[0].mxu0
      %4225 = vmatprep.mubr.bf16.mxu0 0
      %4226 = vmatmul.mubr.bf16.gmra.mrb[0].mxu0 %v4065
      %v4227 = vpop.f32.mrb[0].mxu0
      %v4228 = vadd.f32 %v4087, %v4227
      %v4229 = vpop.f32.mrb[0].mxu0
      %v4230 = vpop.f32.mrb[0].mxu0
      %v4231 = vadd.f32 %v4087, %v4230
      %v4232 = vpop.f32.mrb[0].mxu0
      %4233 = vdwg.mxu0
      %v4234 = vmul.f32 %v4172, 0.5
      %v4235 = vmul.f32 %v4175, 0.5
      %v4236 = vmul.f32 %v4180, 0.5
      %v4237 = vmul.f32 %v4183, 0.5
      %v4238 = vmul.f32 %v4188, 0.5
      %v4239 = vmul.f32 %v4191, 0.5
      %v4240 = vmul.f32 %v4196, 0.5
      %v4241 = vmul.f32 %v4199, 0.5
      %v4242 = vmul.f32 %v4204, 0.5
      %v4243 = vmul.f32 %v4207, 0.5
      %v4244 = vmul.f32 %v4212, 0.5
      %v4245 = vmul.f32 %v4215, 0.5
      %v4246 = vmul.f32 %v4220, 0.5
      %v4247 = vmul.f32 %v4223, 0.5
      %v4248 = vmul.f32 %v4228, 0.5
      %v4249 = vmul.f32 %v4231, 0.5
      %v4250 = vmul.f32 %v4172, 0.70710677
      %v4251 = vmul.f32 %v4175, 0.70710677
      %v4252 = vmul.f32 %v4180, 0.70710677
      %v4253 = vmul.f32 %v4183, 0.70710677
      %v4254 = vmul.f32 %v4188, 0.70710677
      %v4255 = vmul.f32 %v4191, 0.70710677
      %v4256 = vmul.f32 %v4196, 0.70710677
      %v4257 = vmul.f32 %v4199, 0.70710677
      %v4258 = vmul.f32 %v4204, 0.70710677
      %v4259 = vmul.f32 %v4207, 0.70710677
      %v4260 = vmul.f32 %v4212, 0.70710677
      %v4261 = vmul.f32 %v4215, 0.70710677
      %v4262 = vmul.f32 %v4220, 0.70710677
      %v4263 = vmul.f32 %v4223, 0.70710677
      %v4264 = vmul.f32 %v4228, 0.70710677
      %v4265 = vmul.f32 %v4231, 0.70710677
      %v4266 = verf.f32.pop %v4250
      %v4267 = verf.f32.pop %v4251
      %v4268 = verf.f32.pop %v4252
      %v4269 = verf.f32.pop %v4253
      %v4270 = verf.f32.pop %v4254
      %v4271 = verf.f32.pop %v4255
      %v4272 = verf.f32.pop %v4256
      %v4273 = verf.f32.pop %v4257
      %v4274 = verf.f32.pop %v4258
      %v4275 = verf.f32.pop %v4259
      %v4276 = verf.f32.pop %v4260
      %v4277 = verf.f32.pop %v4261
      %v4278 = verf.f32.pop %v4262
      %v4279 = verf.f32.pop %v4263
      %v4280 = verf.f32.pop %v4264
      %v4281 = verf.f32.pop %v4265
      %v4282 = vadd.f32 %v4266, 1.0
      %v4283 = vadd.f32 %v4267, 1.0
      %v4284 = vadd.f32 %v4268, 1.0
      %v4285 = vadd.f32 %v4269, 1.0
      %v4286 = vadd.f32 %v4270, 1.0
      %v4287 = vadd.f32 %v4271, 1.0
      %v4288 = vadd.f32 %v4272, 1.0
      %v4289 = vadd.f32 %v4273, 1.0
      %v4290 = vadd.f32 %v4274, 1.0
      %v4291 = vadd.f32 %v4275, 1.0
      %v4292 = vadd.f32 %v4276, 1.0
      %v4293 = vadd.f32 %v4277, 1.0
      %v4294 = vadd.f32 %v4278, 1.0
      %v4295 = vadd.f32 %v4279, 1.0
      %v4296 = vadd.f32 %v4280, 1.0
      %v4297 = vadd.f32 %v4281, 1.0
      %v4298 = vmul.f32 %v4234, %v4282
      %v4299 = vmul.f32 %v4235, %v4283
      %v4300 = vmul.f32 %v4236, %v4284
      %v4301 = vmul.f32 %v4237, %v4285
      %v4302 = vmul.f32 %v4238, %v4286
      %v4303 = vmul.f32 %v4239, %v4287
      %v4304 = vmul.f32 %v4240, %v4288
      %v4305 = vmul.f32 %v4241, %v4289
      %v4306 = vmul.f32 %v4242, %v4290
      %v4307 = vmul.f32 %v4243, %v4291
      %v4308 = vmul.f32 %v4244, %v4292
      %v4309 = vmul.f32 %v4245, %v4293
      %v4310 = vmul.f32 %v4246, %v4294
      %v4311 = vmul.f32 %v4247, %v4295
      %v4312 = vmul.f32 %v4248, %v4296
      %v4313 = vmul.f32 %v4249, %v4297
      %v4314 = vpack.c.bf16 %v4299, %v4298
      %v4315 = vpack.c.bf16 %v4301, %v4300
      %v4316 = vpack.c.bf16 %v4303, %v4302
      %v4317 = vpack.c.bf16 %v4305, %v4304
      %v4318 = vpack.c.bf16 %v4307, %v4306
      %v4319 = vpack.c.bf16 %v4309, %v4308
      %v4320 = vpack.c.bf16 %v4311, %v4310
      %v4321 = vpack.c.bf16 %v4313, %v4312
      %v4322 = vld [vmem:[%s10] sm:$0xf]
      %v4323 = vld [vmem:[%s10 + $0x4] sm:$0xf]
      %v4324 = vld [vmem:[%s10 + $0x8] sm:$0xf]
      %v4325 = vld [vmem:[%s10 + $0xc] sm:$0xf]
      %v4326 = vld [vmem:[%s10 + $0x10] sm:$0xf]
      %v4327 = vld [vmem:[%s10 + $0x14] sm:$0xf]
      %v4328 = vld [vmem:[%s10 + $0x18] sm:$0xf]
      %v4329 = vld [vmem:[%s10 + $0x1c] sm:$0xf]
      %v4330 = vld [vmem:[%s10 + $0x20] sm:$0xf]
      %v4331 = vld [vmem:[%s10 + $0x24] sm:$0xf]
      %v4332 = vld [vmem:[%s10 + $0x28] sm:$0xf]
      %v4333 = vld [vmem:[%s10 + $0x2c] sm:$0xf]
      %v4334 = vld [vmem:[%s10 + $0x30] sm:$0xf]
      %v4335 = vld [vmem:[%s10 + $0x34] sm:$0xf]
      %v4336 = vld [vmem:[%s10 + $0x38] sm:$0xf]
      %v4337 = vld [vmem:[%s10 + $0x3c] sm:$0xf]
      %v4338 = vld [vmem:[%s11] sm:$0x1]
      %v4340 = vlaneseq
      %v4341 = vshrl.u32 %v4340, 7
      %v4342 = vsub.s32 0, %v4341
      %v4343 = vrot.slane %v4338, %v4342
      %v4361 = vunpack.c.l.b16 %v4322
      %v4362 = vunpack.c.l.b16 %v4323
      %v4363 = vunpack.c.l.b16 %v4324
      %v4364 = vunpack.c.l.b16 %v4325
      %v4365 = vunpack.c.l.b16 %v4326
      %v4366 = vunpack.c.l.b16 %v4327
      %v4367 = vunpack.c.l.b16 %v4328
      %v4368 = vunpack.c.l.b16 %v4329
      %v4369 = vunpack.c.l.b16 %v4330
      %v4370 = vunpack.c.l.b16 %v4331
      %v4371 = vunpack.c.l.b16 %v4332
      %v4372 = vunpack.c.l.b16 %v4333
      %v4373 = vunpack.c.l.b16 %v4334
      %v4374 = vunpack.c.l.b16 %v4335
      %v4375 = vunpack.c.l.b16 %v4336
      %v4376 = vunpack.c.l.b16 %v4337
      %v4377 = vpack.c.b16 %v4362, %v4361
      %v4378 = vpack.c.b16 %v4364, %v4363
      %v4379 = vpack.c.b16 %v4366, %v4365
      %v4380 = vpack.c.b16 %v4368, %v4367
      %v4381 = vpack.c.b16 %v4370, %v4369
      %v4382 = vpack.c.b16 %v4372, %v4371
      %v4383 = vpack.c.b16 %v4374, %v4373
      %v4384 = vpack.c.b16 %v4376, %v4375
      %4393 = vmatprep.subr.bf16.mxu0 0
      %4394 = vmatpush1.bf16.msra.mxu0 %v4377
      %4395 = vmatprep.subr.bf16.mxu0 0
      %4396 = vmatpush1.bf16.msra.mxu0 %v4378
      %4397 = vmatprep.subr.bf16.mxu0 0
      %4398 = vmatpush1.bf16.msra.mxu0 %v4379
      %4399 = vmatprep.subr.bf16.mxu0 0
      %4400 = vmatpush1.bf16.msra.mxu0 %v4380
      %4401 = vmatprep.subr.bf16.mxu0 0
      %4402 = vmatpush1.bf16.msra.mxu0 %v4381
      %4403 = vmatprep.subr.bf16.mxu0 0
      %4404 = vmatpush1.bf16.msra.mxu0 %v4382
      %4405 = vmatprep.subr.bf16.mxu0 0
      %4406 = vmatpush1.bf16.msra.mxu0 %v4383
      %4407 = vmatprep.subr.bf16.mxu0 0
      %4408 = vmatpush1.bf16.msra.mxu0 %v4384
      %4409 = vmatprep.subr.bf16.mxu0 0
      %4410 = vmatpush1.bf16.msra.mxu0 0
      %4411 = vmatprep.subr.bf16.mxu0 0
      %4412 = vmatpush1.bf16.msra.mxu0 0
      %4413 = vmatprep.subr.bf16.mxu0 0
      %4414 = vmatpush1.bf16.msra.mxu0 0
      %4415 = vmatprep.subr.bf16.mxu0 0
      %4416 = vmatpush1.bf16.msra.mxu0 0
      %4417 = vmatprep.subr.bf16.mxu0 0
      %4418 = vmatpush1.bf16.msra.mxu0 0
      %4419 = vmatprep.subr.bf16.mxu0 0
      %4420 = vmatpush1.bf16.msra.mxu0 0
      %4421 = vmatprep.subr.bf16.mxu0 0
      %4422 = vmatpush1.bf16.msra.mxu0 0
      %4423 = vmatprep.subr.bf16.mxu0 0
      %4424 = vmatpush1.bf16.msra.mxu0 0
      %4425 = vmatprep.mubr.bf16.mxu0 0
      %4426 = vmatmul.mubr.bf16.gmra.mrb[0].mxu0 %v4314
      %v4427 = vpop.f32.mrb[0].mxu0
      %v4428 = vadd.f32 %v4343, %v4427
      %v4429 = vpop.f32.mrb[0].mxu0
      %v4430 = vpop.f32.mrb[0].mxu0
      %v4431 = vadd.f32 %v4343, %v4430
      %v4432 = vpop.f32.mrb[0].mxu0
      %4433 = vmatprep.mubr.bf16.mxu0 0
      %4434 = vmatmul.mubr.bf16.gmra.mrb[0].mxu0 %v4315
      %v4435 = vpop.f32.mrb[0].mxu0
      %v4436 = vadd.f32 %v4343, %v4435
      %v4437 = vpop.f32.mrb[0].mxu0
      %v4438 = vpop.f32.mrb[0].mxu0
      %v4439 = vadd.f32 %v4343, %v4438
      %v4440 = vpop.f32.mrb[0].mxu0
      %4441 = vmatprep.mubr.bf16.mxu0 0
      %4442 = vmatmul.mubr.bf16.gmra.mrb[0].mxu0 %v4316
      %v4443 = vpop.f32.mrb[0].mxu0
      %v4444 = vadd.f32 %v4343, %v4443
      %v4445 = vpop.f32.mrb[0].mxu0
      %v4446 = vpop.f32.mrb[0].mxu0
      %v4447 = vadd.f32 %v4343, %v4446
      %v4448 = vpop.f32.mrb[0].mxu0
      %4449 = vmatprep.mubr.bf16.mxu0 0
      %4450 = vmatmul.mubr.bf16.gmra.mrb[0].mxu0 %v4317
      %v4451 = vpop.f32.mrb[0].mxu0
      %v4452 = vadd.f32 %v4343, %v4451
      %v4453 = vpop.f32.mrb[0].mxu0
      %v4454 = vpop.f32.mrb[0].mxu0
      %v4455 = vadd.f32 %v4343, %v4454
      %v4456 = vpop.f32.mrb[0].mxu0
      %4457 = vmatprep.mubr.bf16.mxu0 0
      %4458 = vmatmul.mubr.bf16.gmra.mrb[0].mxu0 %v4318
      %v4459 = vpop.f32.mrb[0].mxu0
      %v4460 = vadd.f32 %v4343, %v4459
      %v4461 = vpop.f32.mrb[0].mxu0
      %v4462 = vpop.f32.mrb[0].mxu0
      %v4463 = vadd.f32 %v4343, %v4462
      %v4464 = vpop.f32.mrb[0].mxu0
      %4465 = vmatprep.mubr.bf16.mxu0 0
      %4466 = vmatmul.mubr.bf16.gmra.mrb[0].mxu0 %v4319
      %v4467 = vpop.f32.mrb[0].mxu0
      %v4468 = vadd.f32 %v4343, %v4467
      %v4469 = vpop.f32.mrb[0].mxu0
      %v4470 = vpop.f32.mrb[0].mxu0
      %v4471 = vadd.f32 %v4343, %v4470
      %v4472 = vpop.f32.mrb[0].mxu0
      %4473 = vmatprep.mubr.bf16.mxu0 0
      %4474 = vmatmul.mubr.bf16.gmra.mrb[0].mxu0 %v4320
      %v4475 = vpop.f32.mrb[0].mxu0
      %v4476 = vadd.f32 %v4343, %v4475
      %v4477 = vpop.f32.mrb[0].mxu0
      %v4478 = vpop.f32.mrb[0].mxu0
      %v4479 = vadd.f32 %v4343, %v4478
      %v4480 = vpop.f32.mrb[0].mxu0
      %4481 = vmatprep.mubr.bf16.mxu0 0
      %4482 = vmatmul.mubr.bf16.gmra.mrb[0].mxu0 %v4321
      %v4483 = vpop.f32.mrb[0].mxu0
      %v4484 = vadd.f32 %v4343, %v4483
      %v4485 = vpop.f32.mrb[0].mxu0
      %v4486 = vpop.f32.mrb[0].mxu0
      %v4487 = vadd.f32 %v4343, %v4486
      %v4488 = vpop.f32.mrb[0].mxu0
      %4489 = vdwg.mxu0
      %v4490 = vadd.f32 %v3819, %v4428
      %v4491 = vadd.f32 %v3820, %v4431
      %v4492 = vadd.f32 %v3821, %v4436
      %v4493 = vadd.f32 %v3822, %v4439
      %v4494 = vadd.f32 %v3823, %v4444
      %v4495 = vadd.f32 %v3824, %v4447
      %v4496 = vadd.f32 %v3825, %v4452
      %v4497 = vadd.f32 %v3826, %v4455
      %v4498 = vadd.f32 %v3827, %v4460
      %v4499 = vadd.f32 %v3828, %v4463
      %v4500 = vadd.f32 %v3829, %v4468
      %v4501 = vadd.f32 %v3830, %v4471
      %v4502 = vadd.f32 %v3831, %v4476
      %v4503 = vadd.f32 %v3832, %v4479
      %v4504 = vadd.f32 %v3833, %v4484
      %v4505 = vadd.f32 %v3834, %v4487
      %4506 = vst [vmem:[%s413] sm:$0xff] %v4490
      %4507 = vst [vmem:[%s413 + $0x8] sm:$0xff] %v4491
      %4508 = vst [vmem:[%s413 + $0x10] sm:$0xff] %v4492
      %4509 = vst [vmem:[%s413 + $0x18] sm:$0xff] %v4493
      %4510 = vst [vmem:[%s413 + $0x20] sm:$0xff] %v4494
      %4511 = vst [vmem:[%s413 + $0x28] sm:$0xff] %v4495
      %4512 = vst [vmem:[%s413 + $0x30] sm:$0xff] %v4496
      %4513 = vst [vmem:[%s413 + $0x38] sm:$0xff] %v4497
      %4514 = vst [vmem:[%s413 + $0x40] sm:$0xff] %v4498
      %4515 = vst [vmem:[%s413 + $0x48] sm:$0xff] %v4499
      %4516 = vst [vmem:[%s413 + $0x50] sm:$0xff] %v4500
      %4517 = vst [vmem:[%s413 + $0x58] sm:$0xff] %v4501
      %4518 = vst [vmem:[%s413 + $0x60] sm:$0xff] %v4502
      %4519 = vst [vmem:[%s413 + $0x68] sm:$0xff] %v4503
      %4520 = vst [vmem:[%s413 + $0x70] sm:$0xff] %v4504
      %4521 = vst [vmem:[%s413 + $0x78] sm:$0xff] %v4505
      %4522 = vmatprep.subr.bf16.mxu0 0
      %4523 = vmatpush1.bf16.xpose.msra.mxu0 %v2215
      %4524 = vmatprep.subr.bf16.mxu0 0
      %4525 = vmatpush1.bf16.xpose.msra.mxu0 %v2216
      %4526 = vmatprep.subr.bf16.mxu0 0
      %4527 = vmatpush1.bf16.xpose.msra.mxu0 %v2217
      %4528 = vmatprep.subr.bf16.mxu0 0
      %4529 = vmatpush1.bf16.xpose.msra.mxu0 %v2218
      %4530 = vmatprep.subr.bf16.mxu0 0
      %4531 = vmatpush1.bf16.xpose.msra.mxu0 %v2219
      %4532 = vmatprep.subr.bf16.mxu0 0
      %4533 = vmatpush1.bf16.xpose.msra.mxu0 %v2220
      %4534 = vmatprep.subr.bf16.mxu0 0
      %4535 = vmatpush1.bf16.xpose.msra.mxu0 %v2221
      %4536 = vmatprep.subr.bf16.mxu0 0
      %4537 = vmatpush1.bf16.xpose.msra.mxu0 %v2222
      %4538 = vmatprep.subr.bf16.mxu0 0
      %4539 = vmatpush1.bf16.xpose.msra.mxu0 0
      %4540 = vmatprep.subr.bf16.mxu0 0
      %4541 = vmatpush1.bf16.xpose.msra.mxu0 0
      %4542 = vmatprep.subr.bf16.mxu0 0
      %4543 = vmatpush1.bf16.xpose.msra.mxu0 0
      %4544 = vmatprep.subr.bf16.mxu0 0
      %4545 = vmatpush1.bf16.xpose.msra.mxu0 0
      %4546 = vmatprep.subr.bf16.mxu0 0
      %4547 = vmatpush1.bf16.xpose.msra.mxu0 0
      %4548 = vmatprep.subr.bf16.mxu0 0
      %4549 = vmatpush1.bf16.xpose.msra.mxu0 0
      %4550 = vmatprep.subr.bf16.mxu0 0
      %4551 = vmatpush1.bf16.xpose.msra.mxu0 0
      %4552 = vmatprep.subr.bf16.mxu0 0
      %4553 = vmatpush1.bf16.xpose.msra.mxu0 0
      %4554 = vmatprep.mubr.bf16.mxu0 0
      %4555 = vmatmul.mubr.bf16.gmra.mrb[0].mxu0 %v2202
      %v4556 = vpop.f32.mrb[0].mxu0
      %v4557 = vadd.f32 0.0, %v4556
      %v4558 = vpop.f32.mrb[0].mxu0
      %v4559 = vpop.f32.mrb[0].mxu0
      %v4560 = vadd.f32 0.0, %v4559
      %v4561 = vpop.f32.mrb[0].mxu0
      %4562 = vmatprep.mubr.bf16.mxu0 0
      %4563 = vmatmul.mubr.bf16.gmra.mrb[0].mxu0 %v2203
      %v4564 = vpop.f32.mrb[0].mxu0
      %v4565 = vadd.f32 0.0, %v4564
      %v4566 = vpop.f32.mrb[0].mxu0
      %v4567 = vpop.f32.mrb[0].mxu0
      %v4568 = vadd.f32 0.0, %v4567
      %v4569 = vpop.f32.mrb[0].mxu0
      %4570 = vmatprep.mubr.bf16.mxu0 0
      %4571 = vmatmul.mubr.bf16.gmra.mrb[0].mxu0 %v2204
      %v4572 = vpop.f32.mrb[0].mxu0
      %v4573 = vadd.f32 0.0, %v4572
      %v4574 = vpop.f32.mrb[0].mxu0
      %v4575 = vpop.f32.mrb[0].mxu0
      %v4576 = vadd.f32 0.0, %v4575
      %v4577 = vpop.f32.mrb[0].mxu0
      %4578 = vmatprep.mubr.bf16.mxu0 0
      %4579 = vmatmul.mubr.bf16.gmra.mrb[0].mxu0 %v2205
      %v4580 = vpop.f32.mrb[0].mxu0
      %v4581 = vadd.f32 0.0, %v4580
      %v4582 = vpop.f32.mrb[0].mxu0
      %v4583 = vpop.f32.mrb[0].mxu0
      %v4584 = vadd.f32 0.0, %v4583
      %v4585 = vpop.f32.mrb[0].mxu0
      %4586 = vmatprep.mubr.bf16.mxu0 0
      %4587 = vmatmul.mubr.bf16.gmra.mrb[0].mxu0 %v2206
      %v4588 = vpop.f32.mrb[0].mxu0
      %v4589 = vadd.f32 0.0, %v4588
      %v4590 = vpop.f32.mrb[0].mxu0
      %v4591 = vpop.f32.mrb[0].mxu0
      %v4592 = vadd.f32 0.0, %v4591
      %v4593 = vpop.f32.mrb[0].mxu0
      %4594 = vmatprep.mubr.bf16.mxu0 0
      %4595 = vmatmul.mubr.bf16.gmra.mrb[0].mxu0 %v2207
      %v4596 = vpop.f32.mrb[0].mxu0
      %v4597 = vadd.f32 0.0, %v4596
      %v4598 = vpop.f32.mrb[0].mxu0
      %v4599 = vpop.f32.mrb[0].mxu0
      %v4600 = vadd.f32 0.0, %v4599
      %v4601 = vpop.f32.mrb[0].mxu0
      %4602 = vmatprep.mubr.bf16.mxu0 0
      %4603 = vmatmul.mubr.bf16.gmra.mrb[0].mxu0 %v2208
      %v4604 = vpop.f32.mrb[0].mxu0
      %v4605 = vadd.f32 0.0, %v4604
      %v4606 = vpop.f32.mrb[0].mxu0
      %v4607 = vpop.f32.mrb[0].mxu0
      %v4608 = vadd.f32 0.0, %v4607
      %v4609 = vpop.f32.mrb[0].mxu0
      %4610 = vmatprep.mubr.bf16.mxu0 0
      %4611 = vmatmul.mubr.bf16.gmra.mrb[0].mxu0 %v2209
      %v4612 = vpop.f32.mrb[0].mxu0
      %v4613 = vadd.f32 0.0, %v4612
      %v4614 = vpop.f32.mrb[0].mxu0
      %v4615 = vpop.f32.mrb[0].mxu0
      %v4616 = vadd.f32 0.0, %v4615
      %v4617 = vpop.f32.mrb[0].mxu0
      %4618 = vdwg.mxu0
      %4619 = vmax.xlane.f32.xlu0 %v4557
      %v4620 = vpop.xlane.xlu0 %4619
      %4621 = vmax.xlane.f32.xlu0 %v4560
      %v4622 = vpop.xlane.xlu0 %4621
      %4623 = vmax.xlane.f32.xlu0 %v4565
      %v4624 = vpop.xlane.xlu0 %4623
      %4625 = vmax.xlane.f32.xlu0 %v4568
      %v4626 = vpop.xlane.xlu0 %4625
      %4627 = vmax.xlane.f32.xlu0 %v4573
      %v4628 = vpop.xlane.xlu0 %4627
      %4629 = vmax.xlane.f32.xlu0 %v4576
      %v4630 = vpop.xlane.xlu0 %4629
      %4631 = vmax.xlane.f32.xlu0 %v4581
      %v4632 = vpop.xlane.xlu0 %4631
      %4633 = vmax.xlane.f32.xlu0 %v4584
      %v4634 = vpop.xlane.xlu0 %4633
      %4635 = vmax.xlane.f32.xlu0 %v4589
      %v4636 = vpop.xlane.xlu0 %4635
      %4637 = vmax.xlane.f32.xlu0 %v4592
      %v4638 = vpop.xlane.xlu0 %4637
      %4639 = vmax.xlane.f32.xlu0 %v4597
      %v4640 = vpop.xlane.xlu0 %4639
      %4641 = vmax.xlane.f32.xlu0 %v4600
      %v4642 = vpop.xlane.xlu0 %4641
      %4643 = vmax.xlane.f32.xlu0 %v4605
      %v4644 = vpop.xlane.xlu0 %4643
      %4645 = vmax.xlane.f32.xlu0 %v4608
      %v4646 = vpop.xlane.xlu0 %4645
      %4647 = vmax.xlane.f32.xlu0 %v4613
      %v4648 = vpop.xlane.xlu0 %4647
      %4649 = vmax.xlane.f32.xlu0 %v4616
      %v4650 = vpop.xlane.xlu0 %4649
      %v4651 = vsub.f32 -inf, %v4620
      %v4652 = vsub.f32 -inf, %v4622
      %v4653 = vsub.f32 -inf, %v4624
      %v4654 = vsub.f32 -inf, %v4626
      %v4655 = vsub.f32 -inf, %v4628
      %v4656 = vsub.f32 -inf, %v4630
      %v4657 = vsub.f32 -inf, %v4632
      %v4658 = vsub.f32 -inf, %v4634
      %v4659 = vsub.f32 -inf, %v4636
      %v4660 = vsub.f32 -inf, %v4638
      %v4661 = vsub.f32 -inf, %v4640
      %v4662 = vsub.f32 -inf, %v4642
      %v4663 = vsub.f32 -inf, %v4644
      %v4664 = vsub.f32 -inf, %v4646
      %v4665 = vsub.f32 -inf, %v4648
      %v4666 = vsub.f32 -inf, %v4650
      %v4667 = vmul.f32 %v4651, 1.442695
      %v4668 = vpow.pop %v4667
      %v4669 = vmul.f32 %v4652, 1.442695
      %v4670 = vpow.pop %v4669
      %v4671 = vmul.f32 %v4653, 1.442695
      %v4672 = vpow.pop %v4671
      %v4673 = vmul.f32 %v4654, 1.442695
      %v4674 = vpow.pop %v4673
      %v4675 = vmul.f32 %v4655, 1.442695
      %v4676 = vpow.pop %v4675
      %v4677 = vmul.f32 %v4656, 1.442695
      %v4678 = vpow.pop %v4677
      %v4679 = vmul.f32 %v4657, 1.442695
      %v4680 = vpow.pop %v4679
      %v4681 = vmul.f32 %v4658, 1.442695
      %v4682 = vpow.pop %v4681
      %v4683 = vmul.f32 %v4659, 1.442695
      %v4684 = vpow.pop %v4683
      %v4685 = vmul.f32 %v4660, 1.442695
      %v4686 = vpow.pop %v4685
      %v4687 = vmul.f32 %v4661, 1.442695
      %v4688 = vpow.pop %v4687
      %v4689 = vmul.f32 %v4662, 1.442695
      %v4690 = vpow.pop %v4689
      %v4691 = vmul.f32 %v4663, 1.442695
      %v4692 = vpow.pop %v4691
      %v4693 = vmul.f32 %v4664, 1.442695
      %v4694 = vpow.pop %v4693
      %v4695 = vmul.f32 %v4665, 1.442695
      %v4696 = vpow.pop %v4695
      %v4697 = vmul.f32 %v4666, 1.442695
      %v4698 = vpow.pop %v4697
      %v4699 = vsub.f32 %v4557, %v4620
      %v4700 = vsub.f32 %v4560, %v4622
      %v4701 = vsub.f32 %v4565, %v4624
      %v4702 = vsub.f32 %v4568, %v4626
      %v4703 = vsub.f32 %v4573, %v4628
      %v4704 = vsub.f32 %v4576, %v4630
      %v4705 = vsub.f32 %v4581, %v4632
      %v4706 = vsub.f32 %v4584, %v4634
      %v4707 = vsub.f32 %v4589, %v4636
      %v4708 = vsub.f32 %v4592, %v4638
      %v4709 = vsub.f32 %v4597, %v4640
      %v4710 = vsub.f32 %v4600, %v4642
      %v4711 = vsub.f32 %v4605, %v4644
      %v4712 = vsub.f32 %v4608, %v4646
      %v4713 = vsub.f32 %v4613, %v4648
      %v4714 = vsub.f32 %v4616, %v4650
      %v4715 = vmul.f32 %v4699, 1.442695
      %v4716 = vpow.pop %v4715
      %v4717 = vmul.f32 %v4700, 1.442695
      %v4718 = vpow.pop %v4717
      %v4719 = vmul.f32 %v4701, 1.442695
      %v4720 = vpow.pop %v4719
      %v4721 = vmul.f32 %v4702, 1.442695
      %v4722 = vpow.pop %v4721
      %v4723 = vmul.f32 %v4703, 1.442695
      %v4724 = vpow.pop %v4723
      %v4725 = vmul.f32 %v4704, 1.442695
      %v4726 = vpow.pop %v4725
      %v4727 = vmul.f32 %v4705, 1.442695
      %v4728 = vpow.pop %v4727
      %v4729 = vmul.f32 %v4706, 1.442695
      %v4730 = vpow.pop %v4729
      %v4731 = vmul.f32 %v4707, 1.442695
      %v4732 = vpow.pop %v4731
      %v4733 = vmul.f32 %v4708, 1.442695
      %v4734 = vpow.pop %v4733
      %v4735 = vmul.f32 %v4709, 1.442695
      %v4736 = vpow.pop %v4735
      %v4737 = vmul.f32 %v4710, 1.442695
      %v4738 = vpow.pop %v4737
      %v4739 = vmul.f32 %v4711, 1.442695
      %v4740 = vpow.pop %v4739
      %v4741 = vmul.f32 %v4712, 1.442695
      %v4742 = vpow.pop %v4741
      %v4743 = vmul.f32 %v4713, 1.442695
      %v4744 = vpow.pop %v4743
      %v4745 = vmul.f32 %v4714, 1.442695
      %v4746 = vpow.pop %v4745
      %v4747 = vmul.f32 %v4668, 0.0
      %v4748 = vmul.f32 %v4670, 0.0
      %v4749 = vmul.f32 %v4672, 0.0
      %v4750 = vmul.f32 %v4674, 0.0
      %v4751 = vmul.f32 %v4676, 0.0
      %v4752 = vmul.f32 %v4678, 0.0
      %v4753 = vmul.f32 %v4680, 0.0
      %v4754 = vmul.f32 %v4682, 0.0
      %v4755 = vmul.f32 %v4684, 0.0
      %v4756 = vmul.f32 %v4686, 0.0
      %v4757 = vmul.f32 %v4688, 0.0
      %v4758 = vmul.f32 %v4690, 0.0
      %v4759 = vmul.f32 %v4692, 0.0
      %v4760 = vmul.f32 %v4694, 0.0
      %v4761 = vmul.f32 %v4696, 0.0
      %v4762 = vmul.f32 %v4698, 0.0
      %4763 = vadd.xlane.f32.xlu0 %v4716
      %v4764 = vpop.xlane.xlu0 %4763
      %4765 = vadd.xlane.f32.xlu0 %v4718
      %v4766 = vpop.xlane.xlu0 %4765
      %4767 = vadd.xlane.f32.xlu0 %v4720
      %v4768 = vpop.xlane.xlu0 %4767
      %4769 = vadd.xlane.f32.xlu0 %v4722
      %v4770 = vpop.xlane.xlu0 %4769
      %4771 = vadd.xlane.f32.xlu0 %v4724
      %v4772 = vpop.xlane.xlu0 %4771
      %4773 = vadd.xlane.f32.xlu0 %v4726
      %v4774 = vpop.xlane.xlu0 %4773
      %4775 = vadd.xlane.f32.xlu0 %v4728
      %v4776 = vpop.xlane.xlu0 %4775
      %4777 = vadd.xlane.f32.xlu0 %v4730
      %v4778 = vpop.xlane.xlu0 %4777
      %4779 = vadd.xlane.f32.xlu0 %v4732
      %v4780 = vpop.xlane.xlu0 %4779
      %4781 = vadd.xlane.f32.xlu0 %v4734
      %v4782 = vpop.xlane.xlu0 %4781
      %4783 = vadd.xlane.f32.xlu0 %v4736
      %v4784 = vpop.xlane.xlu0 %4783
      %4785 = vadd.xlane.f32.xlu0 %v4738
      %v4786 = vpop.xlane.xlu0 %4785
      %4787 = vadd.xlane.f32.xlu0 %v4740
      %v4788 = vpop.xlane.xlu0 %4787
      %4789 = vadd.xlane.f32.xlu0 %v4742
      %v4790 = vpop.xlane.xlu0 %4789
      %4791 = vadd.xlane.f32.xlu0 %v4744
      %v4792 = vpop.xlane.xlu0 %4791
      %4793 = vadd.xlane.f32.xlu0 %v4746
      %v4794 = vpop.xlane.xlu0 %4793
      %v4795 = vadd.f32 %v4747, %v4764
      %v4796 = vadd.f32 %v4748, %v4766
      %v4797 = vadd.f32 %v4749, %v4768
      %v4798 = vadd.f32 %v4750, %v4770
      %v4799 = vadd.f32 %v4751, %v4772
      %v4800 = vadd.f32 %v4752, %v4774
      %v4801 = vadd.f32 %v4753, %v4776
      %v4802 = vadd.f32 %v4754, %v4778
      %v4803 = vadd.f32 %v4755, %v4780
      %v4804 = vadd.f32 %v4756, %v4782
      %v4805 = vadd.f32 %v4757, %v4784
      %v4806 = vadd.f32 %v4758, %v4786
      %v4807 = vadd.f32 %v4759, %v4788
      %v4808 = vadd.f32 %v4760, %v4790
      %v4809 = vadd.f32 %v4761, %v4792
      %v4810 = vadd.f32 %v4762, %v4794
      %v4811 = vpack.c.bf16 %v4718, %v4716
      %v4812 = vpack.c.bf16 %v4722, %v4720
      %v4813 = vpack.c.bf16 %v4726, %v4724
      %v4814 = vpack.c.bf16 %v4730, %v4728
      %v4815 = vpack.c.bf16 %v4734, %v4732
      %v4816 = vpack.c.bf16 %v4738, %v4736
      %v4817 = vpack.c.bf16 %v4742, %v4740
      %v4818 = vpack.c.bf16 %v4746, %v4744
      %4819 = vmatprep.subr.bf16.mxu0 0
      %4820 = vmatpush1.bf16.msra.mxu0 %v2236
      %4821 = vmatprep.subr.bf16.mxu0 0
      %4822 = vmatpush1.bf16.msra.mxu0 %v2237
      %4823 = vmatprep.subr.bf16.mxu0 0
      %4824 = vmatpush1.bf16.msra.mxu0 %v2238
      %4825 = vmatprep.subr.bf16.mxu0 0
      %4826 = vmatpush1.bf16.msra.mxu0 %v2239
      %4827 = vmatprep.subr.bf16.mxu0 0
      %4828 = vmatpush1.bf16.msra.mxu0 %v2240
      %4829 = vmatprep.subr.bf16.mxu0 0
      %4830 = vmatpush1.bf16.msra.mxu0 %v2241
      %4831 = vmatprep.subr.bf16.mxu0 0
      %4832 = vmatpush1.bf16.msra.mxu0 %v2242
      %4833 = vmatprep.subr.bf16.mxu0 0
      %4834 = vmatpush1.bf16.msra.mxu0 %v2243
      %4835 = vmatprep.subr.bf16.mxu0 0
      %4836 = vmatpush1.bf16.msra.mxu0 0
      %4837 = vmatprep.subr.bf16.mxu0 0
      %4838 = vmatpush1.bf16.msra.mxu0 0
      %4839 = vmatprep.subr.bf16.mxu0 0
      %4840 = vmatpush1.bf16.msra.mxu0 0
      %4841 = vmatprep.subr.bf16.mxu0 0
      %4842 = vmatpush1.bf16.msra.mxu0 0
      %4843 = vmatprep.subr.bf16.mxu0 0
      %4844 = vmatpush1.bf16.msra.mxu0 0
      %4845 = vmatprep.subr.bf16.mxu0 0
      %4846 = vmatpush1.bf16.msra.mxu0 0
      %4847 = vmatprep.subr.bf16.mxu0 0
      %4848 = vmatpush1.bf16.msra.mxu0 0
      %4849 = vmatprep.subr.bf16.mxu0 0
      %4850 = vmatpush1.bf16.msra.mxu0 0
      %4851 = vmatprep.mubr.bf16.mxu0 0
      %4852 = vmatmul.mubr.bf16.gmra.mrb[0].mxu0 %v4811
      %v4853 = vpop.f32.mrb[0].mxu0
      %v4854 = vadd.f32 0.0, %v4853
      %v4855 = vpop.f32.mrb[0].mxu0
      %v4856 = vpop.f32.mrb[0].mxu0
      %v4857 = vadd.f32 0.0, %v4856
      %v4858 = vpop.f32.mrb[0].mxu0
      %4859 = vmatprep.mubr.bf16.mxu0 0
      %4860 = vmatmul.mubr.bf16.gmra.mrb[0].mxu0 %v4812
      %v4861 = vpop.f32.mrb[0].mxu0
      %v4862 = vadd.f32 0.0, %v4861
      %v4863 = vpop.f32.mrb[0].mxu0
      %v4864 = vpop.f32.mrb[0].mxu0
      %v4865 = vadd.f32 0.0, %v4864
      %v4866 = vpop.f32.mrb[0].mxu0
      %4867 = vmatprep.mubr.bf16.mxu0 0
      %4868 = vmatmul.mubr.bf16.gmra.mrb[0].mxu0 %v4813
      %v4869 = vpop.f32.mrb[0].mxu0
      %v4870 = vadd.f32 0.0, %v4869
      %v4871 = vpop.f32.mrb[0].mxu0
      %v4872 = vpop.f32.mrb[0].mxu0
      %v4873 = vadd.f32 0.0, %v4872
      %v4874 = vpop.f32.mrb[0].mxu0
      %4875 = vmatprep.mubr.bf16.mxu0 0
      %4876 = vmatmul.mubr.bf16.gmra.mrb[0].mxu0 %v4814
      %v4877 = vpop.f32.mrb[0].mxu0
      %v4878 = vadd.f32 0.0, %v4877
      %v4879 = vpop.f32.mrb[0].mxu0
      %v4880 = vpop.f32.mrb[0].mxu0
      %v4881 = vadd.f32 0.0, %v4880
      %v4882 = vpop.f32.mrb[0].mxu0
      %4883 = vmatprep.mubr.bf16.mxu0 0
      %4884 = vmatmul.mubr.bf16.gmra.mrb[0].mxu0 %v4815
      %v4885 = vpop.f32.mrb[0].mxu0
      %v4886 = vadd.f32 0.0, %v4885
      %v4887 = vpop.f32.mrb[0].mxu0
      %v4888 = vpop.f32.mrb[0].mxu0
      %v4889 = vadd.f32 0.0, %v4888
      %v4890 = vpop.f32.mrb[0].mxu0
      %4891 = vmatprep.mubr.bf16.mxu0 0
      %4892 = vmatmul.mubr.bf16.gmra.mrb[0].mxu0 %v4816
      %v4893 = vpop.f32.mrb[0].mxu0
      %v4894 = vadd.f32 0.0, %v4893
      %v4895 = vpop.f32.mrb[0].mxu0
      %v4896 = vpop.f32.mrb[0].mxu0
      %v4897 = vadd.f32 0.0, %v4896
      %v4898 = vpop.f32.mrb[0].mxu0
      %4899 = vmatprep.mubr.bf16.mxu0 0
      %4900 = vmatmul.mubr.bf16.gmra.mrb[0].mxu0 %v4817
      %v4901 = vpop.f32.mrb[0].mxu0
      %v4902 = vadd.f32 0.0, %v4901
      %v4903 = vpop.f32.mrb[0].mxu0
      %v4904 = vpop.f32.mrb[0].mxu0
      %v4905 = vadd.f32 0.0, %v4904
      %v4906 = vpop.f32.mrb[0].mxu0
      %4907 = vmatprep.mubr.bf16.mxu0 0
      %4908 = vmatmul.mubr.bf16.gmra.mrb[0].mxu0 %v4818
      %v4909 = vpop.f32.mrb[0].mxu0
      %v4910 = vadd.f32 0.0, %v4909
      %v4911 = vpop.f32.mrb[0].mxu0
      %v4912 = vpop.f32.mrb[0].mxu0
      %v4913 = vadd.f32 0.0, %v4912
      %v4914 = vpop.f32.mrb[0].mxu0
      %4915 = vdwg.mxu0
      %v4916 = vadd.f32 %v4747, %v4854
      %v4917 = vadd.f32 %v4748, %v4857
      %v4918 = vadd.f32 %v4749, %v4862
      %v4919 = vadd.f32 %v4750, %v4865
      %v4920 = vadd.f32 %v4751, %v4870
      %v4921 = vadd.f32 %v4752, %v4873
      %v4922 = vadd.f32 %v4753, %v4878
      %v4923 = vadd.f32 %v4754, %v4881
      %v4924 = vadd.f32 %v4755, %v4886
      %v4925 = vadd.f32 %v4756, %v4889
      %v4926 = vadd.f32 %v4757, %v4894
      %v4927 = vadd.f32 %v4758, %v4897
      %v4928 = vadd.f32 %v4759, %v4902
      %v4929 = vadd.f32 %v4760, %v4905
      %v4930 = vadd.f32 %v4761, %v4910
      %v4931 = vadd.f32 %v4762, %v4913
      %4932 = vmatprep.subr.bf16.mxu0 0
      %4933 = vmatpush1.bf16.xpose.msra.mxu0 %v2223
      %4934 = vmatprep.subr.bf16.mxu0 0
      %4935 = vmatpush1.bf16.xpose.msra.mxu0 %v2224
      %4936 = vmatprep.subr.bf16.mxu0 0
      %4937 = vmatpush1.bf16.xpose.msra.mxu0 %v2225
      %4938 = vmatprep.subr.bf16.mxu0 0
      %4939 = vmatpush1.bf16.xpose.msra.mxu0 %v2226
      %4940 = vmatprep.subr.bf16.mxu0 0
      %4941 = vmatpush1.bf16.xpose.msra.mxu0 %v2227
      %4942 = vmatprep.subr.bf16.mxu0 0
      %4943 = vmatpush1.bf16.xpose.msra.mxu0 %v2228
      %4944 = vmatprep.subr.bf16.mxu0 0
      %4945 = vmatpush1.bf16.xpose.msra.mxu0 %v2229
      %4946 = vmatprep.subr.bf16.mxu0 0
      %4947 = vmatpush1.bf16.xpose.msra.mxu0 %v2230
      %4948 = vmatprep.subr.bf16.mxu0 0
      %4949 = vmatpush1.bf16.xpose.msra.mxu0 0
      %4950 = vmatprep.subr.bf16.mxu0 0
      %4951 = vmatpush1.bf16.xpose.msra.mxu0 0
      %4952 = vmatprep.subr.bf16.mxu0 0
      %4953 = vmatpush1.bf16.xpose.msra.mxu0 0
      %4954 = vmatprep.subr.bf16.mxu0 0
      %4955 = vmatpush1.bf16.xpose.msra.mxu0 0
      %4956 = vmatprep.subr.bf16.mxu0 0
      %4957 = vmatpush1.bf16.xpose.msra.mxu0 0
      %4958 = vmatprep.subr.bf16.mxu0 0
      %4959 = vmatpush1.bf16.xpose.msra.mxu0 0
      %4960 = vmatprep.subr.bf16.mxu0 0
      %4961 = vmatpush1.bf16.xpose.msra.mxu0 0
      %4962 = vmatprep.subr.bf16.mxu0 0
      %4963 = vmatpush1.bf16.xpose.msra.mxu0 0
      %4964 = vmatprep.mubr.bf16.mxu0 0
      %4965 = vmatmul.mubr.bf16.gmra.mrb[0].mxu0 %v2202
      %v4966 = vpop.f32.mrb[0].mxu0
      %v4967 = vadd.f32 0.0, %v4966
      %v4968 = vpop.f32.mrb[0].mxu0
      %v4969 = vpop.f32.mrb[0].mxu0
      %v4970 = vadd.f32 0.0, %v4969
      %v4971 = vpop.f32.mrb[0].mxu0
      %4972 = vmatprep.mubr.bf16.mxu0 0
      %4973 = vmatmul.mubr.bf16.gmra.mrb[0].mxu0 %v2203
      %v4974 = vpop.f32.mrb[0].mxu0
      %v4975 = vadd.f32 0.0, %v4974
      %v4976 = vpop.f32.mrb[0].mxu0
      %v4977 = vpop.f32.mrb[0].mxu0
      %v4978 = vadd.f32 0.0, %v4977
      %v4979 = vpop.f32.mrb[0].mxu0
      %4980 = vmatprep.mubr.bf16.mxu0 0
      %4981 = vmatmul.mubr.bf16.gmra.mrb[0].mxu0 %v2204
      %v4982 = vpop.f32.mrb[0].mxu0
      %v4983 = vadd.f32 0.0, %v4982
      %v4984 = vpop.f32.mrb[0].mxu0
      %v4985 = vpop.f32.mrb[0].mxu0
      %v4986 = vadd.f32 0.0, %v4985
      %v4987 = vpop.f32.mrb[0].mxu0
      %4988 = vmatprep.mubr.bf16.mxu0 0
      %4989 = vmatmul.mubr.bf16.gmra.mrb[0].mxu0 %v2205
      %v4990 = vpop.f32.mrb[0].mxu0
      %v4991 = vadd.f32 0.0, %v4990
      %v4992 = vpop.f32.mrb[0].mxu0
      %v4993 = vpop.f32.mrb[0].mxu0
      %v4994 = vadd.f32 0.0, %v4993
      %v4995 = vpop.f32.mrb[0].mxu0
      %4996 = vmatprep.mubr.bf16.mxu0 0
      %4997 = vmatmul.mubr.bf16.gmra.mrb[0].mxu0 %v2206
      %v4998 = vpop.f32.mrb[0].mxu0
      %v4999 = vadd.f32 0.0, %v4998
      %v5000 = vpop.f32.mrb[0].mxu0
      %v5001 = vpop.f32.mrb[0].mxu0
      %v5002 = vadd.f32 0.0, %v5001
      %v5003 = vpop.f32.mrb[0].mxu0
      %5004 = vmatprep.mubr.bf16.mxu0 0
      %5005 = vmatmul.mubr.bf16.gmra.mrb[0].mxu0 %v2207
      %v5006 = vpop.f32.mrb[0].mxu0
      %v5007 = vadd.f32 0.0, %v5006
      %v5008 = vpop.f32.mrb[0].mxu0
      %v5009 = vpop.f32.mrb[0].mxu0
      %v5010 = vadd.f32 0.0, %v5009
      %v5011 = vpop.f32.mrb[0].mxu0
      %5012 = vmatprep.mubr.bf16.mxu0 0
      %5013 = vmatmul.mubr.bf16.gmra.mrb[0].mxu0 %v2208
      %v5014 = vpop.f32.mrb[0].mxu0
      %v5015 = vadd.f32 0.0, %v5014
      %v5016 = vpop.f32.mrb[0].mxu0
      %v5017 = vpop.f32.mrb[0].mxu0
      %v5018 = vadd.f32 0.0, %v5017
      %v5019 = vpop.f32.mrb[0].mxu0
      %5020 = vmatprep.mubr.bf16.mxu0 0
      %5021 = vmatmul.mubr.bf16.gmra.mrb[0].mxu0 %v2209
      %v5022 = vpop.f32.mrb[0].mxu0
      %v5023 = vadd.f32 0.0, %v5022
      %v5024 = vpop.f32.mrb[0].mxu0
      %v5025 = vpop.f32.mrb[0].mxu0
      %v5026 = vadd.f32 0.0, %v5025
      %v5027 = vpop.f32.mrb[0].mxu0
      %5028 = vdwg.mxu0
      %5029 = vmax.xlane.f32.xlu0 %v4967
      %v5030 = vpop.xlane.xlu0 %5029
      %5031 = vmax.xlane.f32.xlu0 %v4970
      %v5032 = vpop.xlane.xlu0 %5031
      %5033 = vmax.xlane.f32.xlu0 %v4975
      %v5034 = vpop.xlane.xlu0 %5033
      %5035 = vmax.xlane.f32.xlu0 %v4978
      %v5036 = vpop.xlane.xlu0 %5035
      %5037 = vmax.xlane.f32.xlu0 %v4983
      %v5038 = vpop.xlane.xlu0 %5037
      %5039 = vmax.xlane.f32.xlu0 %v4986
      %v5040 = vpop.xlane.xlu0 %5039
      %5041 = vmax.xlane.f32.xlu0 %v4991
      %v5042 = vpop.xlane.xlu0 %5041
      %5043 = vmax.xlane.f32.xlu0 %v4994
      %v5044 = vpop.xlane.xlu0 %5043
      %5045 = vmax.xlane.f32.xlu0 %v4999
      %v5046 = vpop.xlane.xlu0 %5045
      %5047 = vmax.xlane.f32.xlu0 %v5002
      %v5048 = vpop.xlane.xlu0 %5047
      %5049 = vmax.xlane.f32.xlu0 %v5007
      %v5050 = vpop.xlane.xlu0 %5049
      %5051 = vmax.xlane.f32.xlu0 %v5010
      %v5052 = vpop.xlane.xlu0 %5051
      %5053 = vmax.xlane.f32.xlu0 %v5015
      %v5054 = vpop.xlane.xlu0 %5053
      %5055 = vmax.xlane.f32.xlu0 %v5018
      %v5056 = vpop.xlane.xlu0 %5055
      %5057 = vmax.xlane.f32.xlu0 %v5023
      %v5058 = vpop.xlane.xlu0 %5057
      %5059 = vmax.xlane.f32.xlu0 %v5026
      %v5060 = vpop.xlane.xlu0 %5059
      %v5061 = vmax.f32 %v4620, %v5030
      %v5062 = vmax.f32 %v4622, %v5032
      %v5063 = vmax.f32 %v4624, %v5034
      %v5064 = vmax.f32 %v4626, %v5036
      %v5065 = vmax.f32 %v4628, %v5038
      %v5066 = vmax.f32 %v4630, %v5040
      %v5067 = vmax.f32 %v4632, %v5042
      %v5068 = vmax.f32 %v4634, %v5044
      %v5069 = vmax.f32 %v4636, %v5046
      %v5070 = vmax.f32 %v4638, %v5048
      %v5071 = vmax.f32 %v4640, %v5050
      %v5072 = vmax.f32 %v4642, %v5052
      %v5073 = vmax.f32 %v4644, %v5054
      %v5074 = vmax.f32 %v4646, %v5056
      %v5075 = vmax.f32 %v4648, %v5058
      %v5076 = vmax.f32 %v4650, %v5060
      %v5077 = vsub.f32 %v4620, %v5061
      %v5078 = vsub.f32 %v4622, %v5062
      %v5079 = vsub.f32 %v4624, %v5063
      %v5080 = vsub.f32 %v4626, %v5064
      %v5081 = vsub.f32 %v4628, %v5065
      %v5082 = vsub.f32 %v4630, %v5066
      %v5083 = vsub.f32 %v4632, %v5067
      %v5084 = vsub.f32 %v4634, %v5068
      %v5085 = vsub.f32 %v4636, %v5069
      %v5086 = vsub.f32 %v4638, %v5070
      %v5087 = vsub.f32 %v4640, %v5071
      %v5088 = vsub.f32 %v4642, %v5072
      %v5089 = vsub.f32 %v4644, %v5073
      %v5090 = vsub.f32 %v4646, %v5074
      %v5091 = vsub.f32 %v4648, %v5075
      %v5092 = vsub.f32 %v4650, %v5076
      %v5093 = vmul.f32 %v5077, 1.442695
      %v5094 = vpow.pop %v5093
      %v5095 = vmul.f32 %v5078, 1.442695
      %v5096 = vpow.pop %v5095
      %v5097 = vmul.f32 %v5079, 1.442695
      %v5098 = vpow.pop %v5097
      %v5099 = vmul.f32 %v5080, 1.442695
      %v5100 = vpow.pop %v5099
      %v5101 = vmul.f32 %v5081, 1.442695
      %v5102 = vpow.pop %v5101
      %v5103 = vmul.f32 %v5082, 1.442695
      %v5104 = vpow.pop %v5103
      %v5105 = vmul.f32 %v5083, 1.442695
      %v5106 = vpow.pop %v5105
      %v5107 = vmul.f32 %v5084, 1.442695
      %v5108 = vpow.pop %v5107
      %v5109 = vmul.f32 %v5085, 1.442695
      %v5110 = vpow.pop %v5109
      %v5111 = vmul.f32 %v5086, 1.442695
      %v5112 = vpow.pop %v5111
      %v5113 = vmul.f32 %v5087, 1.442695
      %v5114 = vpow.pop %v5113
      %v5115 = vmul.f32 %v5088, 1.442695
      %v5116 = vpow.pop %v5115
      %v5117 = vmul.f32 %v5089, 1.442695
      %v5118 = vpow.pop %v5117
      %v5119 = vmul.f32 %v5090, 1.442695
      %v5120 = vpow.pop %v5119
      %v5121 = vmul.f32 %v5091, 1.442695
      %v5122 = vpow.pop %v5121
      %v5123 = vmul.f32 %v5092, 1.442695
      %v5124 = vpow.pop %v5123
      %v5125 = vsub.f32 %v4967, %v5061
      %v5126 = vsub.f32 %v4970, %v5062
      %v5127 = vsub.f32 %v4975, %v5063
      %v5128 = vsub.f32 %v4978, %v5064
      %v5129 = vsub.f32 %v4983, %v5065
      %v5130 = vsub.f32 %v4986, %v5066
      %v5131 = vsub.f32 %v4991, %v5067
      %v5132 = vsub.f32 %v4994, %v5068
      %v5133 = vsub.f32 %v4999, %v5069
      %v5134 = vsub.f32 %v5002, %v5070
      %v5135 = vsub.f32 %v5007, %v5071
      %v5136 = vsub.f32 %v5010, %v5072
      %v5137 = vsub.f32 %v5015, %v5073
      %v5138 = vsub.f32 %v5018, %v5074
      %v5139 = vsub.f32 %v5023, %v5075
      %v5140 = vsub.f32 %v5026, %v5076
      %v5141 = vmul.f32 %v5125, 1.442695
      %v5142 = vpow.pop %v5141
      %v5143 = vmul.f32 %v5126, 1.442695
      %v5144 = vpow.pop %v5143
      %v5145 = vmul.f32 %v5127, 1.442695
      %v5146 = vpow.pop %v5145
      %v5147 = vmul.f32 %v5128, 1.442695
      %v5148 = vpow.pop %v5147
      %v5149 = vmul.f32 %v5129, 1.442695
      %v5150 = vpow.pop %v5149
      %v5151 = vmul.f32 %v5130, 1.442695
      %v5152 = vpow.pop %v5151
      %v5153 = vmul.f32 %v5131, 1.442695
      %v5154 = vpow.pop %v5153
      %v5155 = vmul.f32 %v5132, 1.442695
      %v5156 = vpow.pop %v5155
      %v5157 = vmul.f32 %v5133, 1.442695
      %v5158 = vpow.pop %v5157
      %v5159 = vmul.f32 %v5134, 1.442695
      %v5160 = vpow.pop %v5159
      %v5161 = vmul.f32 %v5135, 1.442695
      %v5162 = vpow.pop %v5161
      %v5163 = vmul.f32 %v5136, 1.442695
      %v5164 = vpow.pop %v5163
      %v5165 = vmul.f32 %v5137, 1.442695
      %v5166 = vpow.pop %v5165
      %v5167 = vmul.f32 %v5138, 1.442695
      %v5168 = vpow.pop %v5167
      %v5169 = vmul.f32 %v5139, 1.442695
      %v5170 = vpow.pop %v5169
      %v5171 = vmul.f32 %v5140, 1.442695
      %v5172 = vpow.pop %v5171
      %v5173 = vmul.f32 %v5094, %v4795
      %v5174 = vmul.f32 %v5096, %v4796
      %v5175 = vmul.f32 %v5098, %v4797
      %v5176 = vmul.f32 %v5100, %v4798
      %v5177 = vmul.f32 %v5102, %v4799
      %v5178 = vmul.f32 %v5104, %v4800
      %v5179 = vmul.f32 %v5106, %v4801
      %v5180 = vmul.f32 %v5108, %v4802
      %v5181 = vmul.f32 %v5110, %v4803
      %v5182 = vmul.f32 %v5112, %v4804
      %v5183 = vmul.f32 %v5114, %v4805
      %v5184 = vmul.f32 %v5116, %v4806
      %v5185 = vmul.f32 %v5118, %v4807
      %v5186 = vmul.f32 %v5120, %v4808
      %v5187 = vmul.f32 %v5122, %v4809
      %v5188 = vmul.f32 %v5124, %v4810
      %5189 = vadd.xlane.f32.xlu0 %v5142
      %v5190 = vpop.xlane.xlu0 %5189
      %5191 = vadd.xlane.f32.xlu0 %v5144
      %v5192 = vpop.xlane.xlu0 %5191
      %5193 = vadd.xlane.f32.xlu0 %v5146
      %v5194 = vpop.xlane.xlu0 %5193
      %5195 = vadd.xlane.f32.xlu0 %v5148
      %v5196 = vpop.xlane.xlu0 %5195
      %5197 = vadd.xlane.f32.xlu0 %v5150
      %v5198 = vpop.xlane.xlu0 %5197
      %5199 = vadd.xlane.f32.xlu0 %v5152
      %v5200 = vpop.xlane.xlu0 %5199
      %5201 = vadd.xlane.f32.xlu0 %v5154
      %v5202 = vpop.xlane.xlu0 %5201
      %5203 = vadd.xlane.f32.xlu0 %v5156
      %v5204 = vpop.xlane.xlu0 %5203
      %5205 = vadd.xlane.f32.xlu0 %v5158
      %v5206 = vpop.xlane.xlu0 %5205
      %5207 = vadd.xlane.f32.xlu0 %v5160
      %v5208 = vpop.xlane.xlu0 %5207
      %5209 = vadd.xlane.f32.xlu0 %v5162
      %v5210 = vpop.xlane.xlu0 %5209
      %5211 = vadd.xlane.f32.xlu0 %v5164
      %v5212 = vpop.xlane.xlu0 %5211
      %5213 = vadd.xlane.f32.xlu0 %v5166
      %v5214 = vpop.xlane.xlu0 %5213
      %5215 = vadd.xlane.f32.xlu0 %v5168
      %v5216 = vpop.xlane.xlu0 %5215
      %5217 = vadd.xlane.f32.xlu0 %v5170
      %v5218 = vpop.xlane.xlu0 %5217
      %5219 = vadd.xlane.f32.xlu0 %v5172
      %v5220 = vpop.xlane.xlu0 %5219
      %v5221 = vadd.f32 %v5173, %v5190
      %v5222 = vadd.f32 %v5174, %v5192
      %v5223 = vadd.f32 %v5175, %v5194
      %v5224 = vadd.f32 %v5176, %v5196
      %v5225 = vadd.f32 %v5177, %v5198
      %v5226 = vadd.f32 %v5178, %v5200
      %v5227 = vadd.f32 %v5179, %v5202
      %v5228 = vadd.f32 %v5180, %v5204
      %v5229 = vadd.f32 %v5181, %v5206
      %v5230 = vadd.f32 %v5182, %v5208
      %v5231 = vadd.f32 %v5183, %v5210
      %v5232 = vadd.f32 %v5184, %v5212
      %v5233 = vadd.f32 %v5185, %v5214
      %v5234 = vadd.f32 %v5186, %v5216
      %v5235 = vadd.f32 %v5187, %v5218
      %v5236 = vadd.f32 %v5188, %v5220
      %v5237 = vmul.f32 %v5094, %v4916
      %v5238 = vmul.f32 %v5096, %v4917
      %v5239 = vmul.f32 %v5098, %v4918
      %v5240 = vmul.f32 %v5100, %v4919
      %v5241 = vmul.f32 %v5102, %v4920
      %v5242 = vmul.f32 %v5104, %v4921
      %v5243 = vmul.f32 %v5106, %v4922
      %v5244 = vmul.f32 %v5108, %v4923
      %v5245 = vmul.f32 %v5110, %v4924
      %v5246 = vmul.f32 %v5112, %v4925
      %v5247 = vmul.f32 %v5114, %v4926
      %v5248 = vmul.f32 %v5116, %v4927
      %v5249 = vmul.f32 %v5118, %v4928
      %v5250 = vmul.f32 %v5120, %v4929
      %v5251 = vmul.f32 %v5122, %v4930
      %v5252 = vmul.f32 %v5124, %v4931
      %v5253 = vpack.c.bf16 %v5144, %v5142
      %v5254 = vpack.c.bf16 %v5148, %v5146
      %v5255 = vpack.c.bf16 %v5152, %v5150
      %v5256 = vpack.c.bf16 %v5156, %v5154
      %v5257 = vpack.c.bf16 %v5160, %v5158
      %v5258 = vpack.c.bf16 %v5164, %v5162
      %v5259 = vpack.c.bf16 %v5168, %v5166
      %v5260 = vpack.c.bf16 %v5172, %v5170
      %5261 = vmatprep.subr.bf16.mxu0 0
      %5262 = vmatpush1.bf16.msra.mxu0 %v2244
      %5263 = vmatprep.subr.bf16.mxu0 0
      %5264 = vmatpush1.bf16.msra.mxu0 %v2245
      %5265 = vmatprep.subr.bf16.mxu0 0
      %5266 = vmatpush1.bf16.msra.mxu0 %v2246
      %5267 = vmatprep.subr.bf16.mxu0 0
      %5268 = vmatpush1.bf16.msra.mxu0 %v2247
      %5269 = vmatprep.subr.bf16.mxu0 0
      %5270 = vmatpush1.bf16.msra.mxu0 %v2248
      %5271 = vmatprep.subr.bf16.mxu0 0
      %5272 = vmatpush1.bf16.msra.mxu0 %v2249
      %5273 = vmatprep.subr.bf16.mxu0 0
      %5274 = vmatpush1.bf16.msra.mxu0 %v2250
      %5275 = vmatprep.subr.bf16.mxu0 0
      %5276 = vmatpush1.bf16.msra.mxu0 %v2251
      %5277 = vmatprep.subr.bf16.mxu0 0
      %5278 = vmatpush1.bf16.msra.mxu0 0
      %5279 = vmatprep.subr.bf16.mxu0 0
      %5280 = vmatpush1.bf16.msra.mxu0 0
      %5281 = vmatprep.subr.bf16.mxu0 0
      %5282 = vmatpush1.bf16.msra.mxu0 0
      %5283 = vmatprep.subr.bf16.mxu0 0
      %5284 = vmatpush1.bf16.msra.mxu0 0
      %5285 = vmatprep.subr.bf16.mxu0 0
      %5286 = vmatpush1.bf16.msra.mxu0 0
      %5287 = vmatprep.subr.bf16.mxu0 0
      %5288 = vmatpush1.bf16.msra.mxu0 0
      %5289 = vmatprep.subr.bf16.mxu0 0
      %5290 = vmatpush1.bf16.msra.mxu0 0
      %5291 = vmatprep.subr.bf16.mxu0 0
      %5292 = vmatpush1.bf16.msra.mxu0 0
      %5293 = vmatprep.mubr.bf16.mxu0 0
      %5294 = vmatmul.mubr.bf16.gmra.mrb[0].mxu0 %v5253
      %v5295 = vpop.f32.mrb[0].mxu0
      %v5296 = vadd.f32 0.0, %v5295
      %v5297 = vpop.f32.mrb[0].mxu0
      %v5298 = vpop.f32.mrb[0].mxu0
      %v5299 = vadd.f32 0.0, %v5298
      %v5300 = vpop.f32.mrb[0].mxu0
      %5301 = vmatprep.mubr.bf16.mxu0 0
      %5302 = vmatmul.mubr.bf16.gmra.mrb[0].mxu0 %v5254
      %v5303 = vpop.f32.mrb[0].mxu0
      %v5304 = vadd.f32 0.0, %v5303
      %v5305 = vpop.f32.mrb[0].mxu0
      %v5306 = vpop.f32.mrb[0].mxu0
      %v5307 = vadd.f32 0.0, %v5306
      %v5308 = vpop.f32.mrb[0].mxu0
      %5309 = vmatprep.mubr.bf16.mxu0 0
      %5310 = vmatmul.mubr.bf16.gmra.mrb[0].mxu0 %v5255
      %v5311 = vpop.f32.mrb[0].mxu0
      %v5312 = vadd.f32 0.0, %v5311
      %v5313 = vpop.f32.mrb[0].mxu0
      %v5314 = vpop.f32.mrb[0].mxu0
      %v5315 = vadd.f32 0.0, %v5314
      %v5316 = vpop.f32.mrb[0].mxu0
      %5317 = vmatprep.mubr.bf16.mxu0 0
      %5318 = vmatmul.mubr.bf16.gmra.mrb[0].mxu0 %v5256
      %v5319 = vpop.f32.mrb[0].mxu0
      %v5320 = vadd.f32 0.0, %v5319
      %v5321 = vpop.f32.mrb[0].mxu0
      %v5322 = vpop.f32.mrb[0].mxu0
      %v5323 = vadd.f32 0.0, %v5322
      %v5324 = vpop.f32.mrb[0].mxu0
      %5325 = vmatprep.mubr.bf16.mxu0 0
      %5326 = vmatmul.mubr.bf16.gmra.mrb[0].mxu0 %v5257
      %v5327 = vpop.f32.mrb[0].mxu0
      %v5328 = vadd.f32 0.0, %v5327
      %v5329 = vpop.f32.mrb[0].mxu0
      %v5330 = vpop.f32.mrb[0].mxu0
      %v5331 = vadd.f32 0.0, %v5330
      %v5332 = vpop.f32.mrb[0].mxu0
      %5333 = vmatprep.mubr.bf16.mxu0 0
      %5334 = vmatmul.mubr.bf16.gmra.mrb[0].mxu0 %v5258
      %v5335 = vpop.f32.mrb[0].mxu0
      %v5336 = vadd.f32 0.0, %v5335
      %v5337 = vpop.f32.mrb[0].mxu0
      %v5338 = vpop.f32.mrb[0].mxu0
      %v5339 = vadd.f32 0.0, %v5338
      %v5340 = vpop.f32.mrb[0].mxu0
      %5341 = vmatprep.mubr.bf16.mxu0 0
      %5342 = vmatmul.mubr.bf16.gmra.mrb[0].mxu0 %v5259
      %v5343 = vpop.f32.mrb[0].mxu0
      %v5344 = vadd.f32 0.0, %v5343
      %v5345 = vpop.f32.mrb[0].mxu0
      %v5346 = vpop.f32.mrb[0].mxu0
      %v5347 = vadd.f32 0.0, %v5346
      %v5348 = vpop.f32.mrb[0].mxu0
      %5349 = vmatprep.mubr.bf16.mxu0 0
      %5350 = vmatmul.mubr.bf16.gmra.mrb[0].mxu0 %v5260
      %v5351 = vpop.f32.mrb[0].mxu0
      %v5352 = vadd.f32 0.0, %v5351
      %v5353 = vpop.f32.mrb[0].mxu0
      %v5354 = vpop.f32.mrb[0].mxu0
      %v5355 = vadd.f32 0.0, %v5354
      %v5356 = vpop.f32.mrb[0].mxu0
      %5357 = vdwg.mxu0
      %v5358 = vadd.f32 %v5237, %v5296
      %v5359 = vadd.f32 %v5238, %v5299
      %v5360 = vadd.f32 %v5239, %v5304
      %v5361 = vadd.f32 %v5240, %v5307
      %v5362 = vadd.f32 %v5241, %v5312
      %v5363 = vadd.f32 %v5242, %v5315
      %v5364 = vadd.f32 %v5243, %v5320
      %v5365 = vadd.f32 %v5244, %v5323
      %v5366 = vadd.f32 %v5245, %v5328
      %v5367 = vadd.f32 %v5246, %v5331
      %v5368 = vadd.f32 %v5247, %v5336
      %v5369 = vadd.f32 %v5248, %v5339
      %v5370 = vadd.f32 %v5249, %v5344
      %v5371 = vadd.f32 %v5250, %v5347
      %v5372 = vadd.f32 %v5251, %v5352
      %v5373 = vadd.f32 %v5252, %v5355
      %5374 = vmatprep.subr.bf16.mxu0 0
      %5375 = vmatpush1.bf16.xpose.msra.mxu0 %v2231
      %5376 = vmatprep.subr.bf16.mxu0 0
      %5377 = vmatpush1.bf16.xpose.msra.mxu0 %v2232
      %5378 = vmatprep.subr.bf16.mxu0 0
      %5379 = vmatpush1.bf16.xpose.msra.mxu0 %v2233
      %5380 = vmatprep.subr.bf16.mxu0 0
      %5381 = vmatpush1.bf16.xpose.msra.mxu0 %v2234
      %5382 = vmatprep.subr.bf16.mxu0 0
      %5383 = vmatpush1.bf16.xpose.msra.mxu0 %v2235
      %5384 = vmatprep.subr.bf16.mxu0 0
      %5385 = vmatpush1.bf16.xpose.msra.mxu0 0
      %5386 = vmatprep.subr.bf16.mxu0 0
      %5387 = vmatpush1.bf16.xpose.msra.mxu0 0
      %5388 = vmatprep.subr.bf16.mxu0 0
      %5389 = vmatpush1.bf16.xpose.msra.mxu0 0
      %5390 = vmatprep.subr.bf16.mxu0 0
      %5391 = vmatpush1.bf16.xpose.msra.mxu0 0
      %5392 = vmatprep.subr.bf16.mxu0 0
      %5393 = vmatpush1.bf16.xpose.msra.mxu0 0
      %5394 = vmatprep.subr.bf16.mxu0 0
      %5395 = vmatpush1.bf16.xpose.msra.mxu0 0
      %5396 = vmatprep.subr.bf16.mxu0 0
      %5397 = vmatpush1.bf16.xpose.msra.mxu0 0
      %5398 = vmatprep.subr.bf16.mxu0 0
      %5399 = vmatpush1.bf16.xpose.msra.mxu0 0
      %5400 = vmatprep.subr.bf16.mxu0 0
      %5401 = vmatpush1.bf16.xpose.msra.mxu0 0
      %5402 = vmatprep.subr.bf16.mxu0 0
      %5403 = vmatpush1.bf16.xpose.msra.mxu0 0
      %5404 = vmatprep.subr.bf16.mxu0 0
      %5405 = vmatpush1.bf16.xpose.msra.mxu0 0
      %5406 = vmatprep.mubr.bf16.mxu0 0
      %5407 = vmatmul.mubr.bf16.gmra.mrb[0].mxu0 %v2202
      %v5408 = vpop.f32.mrb[0].mxu0
      %v5409 = vadd.f32 0.0, %v5408
      %v5410 = vpop.f32.mrb[0].mxu0
      %v5411 = vpop.f32.mrb[0].mxu0
      %v5412 = vadd.f32 0.0, %v5411
      %v5413 = vpop.f32.mrb[0].mxu0
      %5414 = vmatprep.mubr.bf16.mxu0 0
      %5415 = vmatmul.mubr.bf16.gmra.mrb[0].mxu0 %v2203
      %v5416 = vpop.f32.mrb[0].mxu0
      %v5417 = vadd.f32 0.0, %v5416
      %v5418 = vpop.f32.mrb[0].mxu0
      %v5419 = vpop.f32.mrb[0].mxu0
      %v5420 = vadd.f32 0.0, %v5419
      %v5421 = vpop.f32.mrb[0].mxu0
      %5422 = vmatprep.mubr.bf16.mxu0 0
      %5423 = vmatmul.mubr.bf16.gmra.mrb[0].mxu0 %v2204
      %v5424 = vpop.f32.mrb[0].mxu0
      %v5425 = vadd.f32 0.0, %v5424
      %v5426 = vpop.f32.mrb[0].mxu0
      %v5427 = vpop.f32.mrb[0].mxu0
      %v5428 = vadd.f32 0.0, %v5427
      %v5429 = vpop.f32.mrb[0].mxu0
      %5430 = vmatprep.mubr.bf16.mxu0 0
      %5431 = vmatmul.mubr.bf16.gmra.mrb[0].mxu0 %v2205
      %v5432 = vpop.f32.mrb[0].mxu0
      %v5433 = vadd.f32 0.0, %v5432
      %v5434 = vpop.f32.mrb[0].mxu0
      %v5435 = vpop.f32.mrb[0].mxu0
      %v5436 = vadd.f32 0.0, %v5435
      %v5437 = vpop.f32.mrb[0].mxu0
      %5438 = vmatprep.mubr.bf16.mxu0 0
      %5439 = vmatmul.mubr.bf16.gmra.mrb[0].mxu0 %v2206
      %v5440 = vpop.f32.mrb[0].mxu0
      %v5441 = vadd.f32 0.0, %v5440
      %v5442 = vpop.f32.mrb[0].mxu0
      %v5443 = vpop.f32.mrb[0].mxu0
      %v5444 = vadd.f32 0.0, %v5443
      %v5445 = vpop.f32.mrb[0].mxu0
      %5446 = vmatprep.mubr.bf16.mxu0 0
      %5447 = vmatmul.mubr.bf16.gmra.mrb[0].mxu0 %v2207
      %v5448 = vpop.f32.mrb[0].mxu0
      %v5449 = vadd.f32 0.0, %v5448
      %v5450 = vpop.f32.mrb[0].mxu0
      %v5451 = vpop.f32.mrb[0].mxu0
      %v5452 = vadd.f32 0.0, %v5451
      %v5453 = vpop.f32.mrb[0].mxu0
      %5454 = vmatprep.mubr.bf16.mxu0 0
      %5455 = vmatmul.mubr.bf16.gmra.mrb[0].mxu0 %v2208
      %v5456 = vpop.f32.mrb[0].mxu0
      %v5457 = vadd.f32 0.0, %v5456
      %v5458 = vpop.f32.mrb[0].mxu0
      %v5459 = vpop.f32.mrb[0].mxu0
      %v5460 = vadd.f32 0.0, %v5459
      %v5461 = vpop.f32.mrb[0].mxu0
      %5462 = vmatprep.mubr.bf16.mxu0 0
      %5463 = vmatmul.mubr.bf16.gmra.mrb[0].mxu0 %v2209
      %v5464 = vpop.f32.mrb[0].mxu0
      %v5465 = vadd.f32 0.0, %v5464
      %v5466 = vpop.f32.mrb[0].mxu0
      %v5467 = vpop.f32.mrb[0].mxu0
      %v5468 = vadd.f32 0.0, %v5467
      %v5469 = vpop.f32.mrb[0].mxu0
      %5470 = vdwg.mxu0
      %v5471 = vsel %vm3206, %v5409, -inf
      %5472 = vmax.xlane.f32.xlu0 %v5471
      %v5473 = vpop.xlane.xlu0 %5472
      %v5474 = vsel %vm3206, %v5412, -inf
      %5475 = vmax.xlane.f32.xlu0 %v5474
      %v5476 = vpop.xlane.xlu0 %5475
      %v5477 = vsel %vm3206, %v5417, -inf
      %5478 = vmax.xlane.f32.xlu0 %v5477
      %v5479 = vpop.xlane.xlu0 %5478
      %v5480 = vsel %vm3206, %v5420, -inf
      %5481 = vmax.xlane.f32.xlu0 %v5480
      %v5482 = vpop.xlane.xlu0 %5481
      %v5483 = vsel %vm3206, %v5425, -inf
      %5484 = vmax.xlane.f32.xlu0 %v5483
      %v5485 = vpop.xlane.xlu0 %5484
      %v5486 = vsel %vm3206, %v5428, -inf
      %5487 = vmax.xlane.f32.xlu0 %v5486
      %v5488 = vpop.xlane.xlu0 %5487
      %v5489 = vsel %vm3206, %v5433, -inf
      %5490 = vmax.xlane.f32.xlu0 %v5489
      %v5491 = vpop.xlane.xlu0 %5490
      %v5492 = vsel %vm3206, %v5436, -inf
      %5493 = vmax.xlane.f32.xlu0 %v5492
      %v5494 = vpop.xlane.xlu0 %5493
      %v5495 = vsel %vm3206, %v5441, -inf
      %5496 = vmax.xlane.f32.xlu0 %v5495
      %v5497 = vpop.xlane.xlu0 %5496
      %v5498 = vsel %vm3206, %v5444, -inf
      %5499 = vmax.xlane.f32.xlu0 %v5498
      %v5500 = vpop.xlane.xlu0 %5499
      %v5501 = vsel %vm3206, %v5449, -inf
      %5502 = vmax.xlane.f32.xlu0 %v5501
      %v5503 = vpop.xlane.xlu0 %5502
      %v5504 = vsel %vm3206, %v5452, -inf
      %5505 = vmax.xlane.f32.xlu0 %v5504
      %v5506 = vpop.xlane.xlu0 %5505
      %v5507 = vsel %vm3206, %v5457, -inf
      %5508 = vmax.xlane.f32.xlu0 %v5507
      %v5509 = vpop.xlane.xlu0 %5508
      %v5510 = vsel %vm3206, %v5460, -inf
      %5511 = vmax.xlane.f32.xlu0 %v5510
      %v5512 = vpop.xlane.xlu0 %5511
      %v5513 = vsel %vm3206, %v5465, -inf
      %5514 = vmax.xlane.f32.xlu0 %v5513
      %v5515 = vpop.xlane.xlu0 %5514
      %v5516 = vsel %vm3206, %v5468, -inf
      %5517 = vmax.xlane.f32.xlu0 %v5516
      %v5518 = vpop.xlane.xlu0 %5517
      %v5519 = vmax.f32 %v5061, %v5473
      %v5520 = vmax.f32 %v5062, %v5476
      %v5521 = vmax.f32 %v5063, %v5479
      %v5522 = vmax.f32 %v5064, %v5482
      %v5523 = vmax.f32 %v5065, %v5485
      %v5524 = vmax.f32 %v5066, %v5488
      %v5525 = vmax.f32 %v5067, %v5491
      %v5526 = vmax.f32 %v5068, %v5494
      %v5527 = vmax.f32 %v5069, %v5497
      %v5528 = vmax.f32 %v5070, %v5500
      %v5529 = vmax.f32 %v5071, %v5503
      %v5530 = vmax.f32 %v5072, %v5506
      %v5531 = vmax.f32 %v5073, %v5509
      %v5532 = vmax.f32 %v5074, %v5512
      %v5533 = vmax.f32 %v5075, %v5515
      %v5534 = vmax.f32 %v5076, %v5518
      %v5535 = vsub.f32 %v5061, %v5519
      %v5536 = vsub.f32 %v5062, %v5520
      %v5537 = vsub.f32 %v5063, %v5521
      %v5538 = vsub.f32 %v5064, %v5522
      %v5539 = vsub.f32 %v5065, %v5523
      %v5540 = vsub.f32 %v5066, %v5524
      %v5541 = vsub.f32 %v5067, %v5525
      %v5542 = vsub.f32 %v5068, %v5526
      %v5543 = vsub.f32 %v5069, %v5527
      %v5544 = vsub.f32 %v5070, %v5528
      %v5545 = vsub.f32 %v5071, %v5529
      %v5546 = vsub.f32 %v5072, %v5530
      %v5547 = vsub.f32 %v5073, %v5531
      %v5548 = vsub.f32 %v5074, %v5532
      %v5549 = vsub.f32 %v5075, %v5533
      %v5550 = vsub.f32 %v5076, %v5534
      %v5551 = vmul.f32 %v5535, 1.442695
      %v5552 = vpow.pop %v5551
      %v5553 = vmul.f32 %v5536, 1.442695
      %v5554 = vpow.pop %v5553
      %v5555 = vmul.f32 %v5537, 1.442695
      %v5556 = vpow.pop %v5555
      %v5557 = vmul.f32 %v5538, 1.442695
      %v5558 = vpow.pop %v5557
      %v5559 = vmul.f32 %v5539, 1.442695
      %v5560 = vpow.pop %v5559
      %v5561 = vmul.f32 %v5540, 1.442695
      %v5562 = vpow.pop %v5561
      %v5563 = vmul.f32 %v5541, 1.442695
      %v5564 = vpow.pop %v5563
      %v5565 = vmul.f32 %v5542, 1.442695
      %v5566 = vpow.pop %v5565
      %v5567 = vmul.f32 %v5543, 1.442695
      %v5568 = vpow.pop %v5567
      %v5569 = vmul.f32 %v5544, 1.442695
      %v5570 = vpow.pop %v5569
      %v5571 = vmul.f32 %v5545, 1.442695
      %v5572 = vpow.pop %v5571
      %v5573 = vmul.f32 %v5546, 1.442695
      %v5574 = vpow.pop %v5573
      %v5575 = vmul.f32 %v5547, 1.442695
      %v5576 = vpow.pop %v5575
      %v5577 = vmul.f32 %v5548, 1.442695
      %v5578 = vpow.pop %v5577
      %v5579 = vmul.f32 %v5549, 1.442695
      %v5580 = vpow.pop %v5579
      %v5581 = vmul.f32 %v5550, 1.442695
      %v5582 = vpow.pop %v5581
      %v5583 = vsub.f32 %v5409, %v5519
      %v5584 = vsub.f32 %v5412, %v5520
      %v5585 = vsub.f32 %v5417, %v5521
      %v5586 = vsub.f32 %v5420, %v5522
      %v5587 = vsub.f32 %v5425, %v5523
      %v5588 = vsub.f32 %v5428, %v5524
      %v5589 = vsub.f32 %v5433, %v5525
      %v5590 = vsub.f32 %v5436, %v5526
      %v5591 = vsub.f32 %v5441, %v5527
      %v5592 = vsub.f32 %v5444, %v5528
      %v5593 = vsub.f32 %v5449, %v5529
      %v5594 = vsub.f32 %v5452, %v5530
      %v5595 = vsub.f32 %v5457, %v5531
      %v5596 = vsub.f32 %v5460, %v5532
      %v5597 = vsub.f32 %v5465, %v5533
      %v5598 = vsub.f32 %v5468, %v5534
      %v5599 = vmul.f32 %v5583, 1.442695
      %v5600 = vpow.pop %v5599
      %v5601 = vmul.f32 %v5584, 1.442695
      %v5602 = vpow.pop %v5601
      %v5603 = vmul.f32 %v5585, 1.442695
      %v5604 = vpow.pop %v5603
      %v5605 = vmul.f32 %v5586, 1.442695
      %v5606 = vpow.pop %v5605
      %v5607 = vmul.f32 %v5587, 1.442695
      %v5608 = vpow.pop %v5607
      %v5609 = vmul.f32 %v5588, 1.442695
      %v5610 = vpow.pop %v5609
      %v5611 = vmul.f32 %v5589, 1.442695
      %v5612 = vpow.pop %v5611
      %v5613 = vmul.f32 %v5590, 1.442695
      %v5614 = vpow.pop %v5613
      %v5615 = vmul.f32 %v5591, 1.442695
      %v5616 = vpow.pop %v5615
      %v5617 = vmul.f32 %v5592, 1.442695
      %v5618 = vpow.pop %v5617
      %v5619 = vmul.f32 %v5593, 1.442695
      %v5620 = vpow.pop %v5619
      %v5621 = vmul.f32 %v5594, 1.442695
      %v5622 = vpow.pop %v5621
      %v5623 = vmul.f32 %v5595, 1.442695
      %v5624 = vpow.pop %v5623
      %v5625 = vmul.f32 %v5596, 1.442695
      %v5626 = vpow.pop %v5625
      %v5627 = vmul.f32 %v5597, 1.442695
      %v5628 = vpow.pop %v5627
      %v5629 = vmul.f32 %v5598, 1.442695
      %v5630 = vpow.pop %v5629
      %v5631 = vmul.f32 %v5552, %v5221
      %v5632 = vmul.f32 %v5554, %v5222
      %v5633 = vmul.f32 %v5556, %v5223
      %v5634 = vmul.f32 %v5558, %v5224
      %v5635 = vmul.f32 %v5560, %v5225
      %v5636 = vmul.f32 %v5562, %v5226
      %v5637 = vmul.f32 %v5564, %v5227
      %v5638 = vmul.f32 %v5566, %v5228
      %v5639 = vmul.f32 %v5568, %v5229
      %v5640 = vmul.f32 %v5570, %v5230
      %v5641 = vmul.f32 %v5572, %v5231
      %v5642 = vmul.f32 %v5574, %v5232
      %v5643 = vmul.f32 %v5576, %v5233
      %v5644 = vmul.f32 %v5578, %v5234
      %v5645 = vmul.f32 %v5580, %v5235
      %v5646 = vmul.f32 %v5582, %v5236
      %v5647 = vsel %vm3206, %v5600, 0.0
      %5648 = vadd.xlane.f32.xlu0 %v5647
      %v5649 = vpop.xlane.xlu0 %5648
      %v5650 = vsel %vm3206, %v5602, 0.0
      %5651 = vadd.xlane.f32.xlu0 %v5650
      %v5652 = vpop.xlane.xlu0 %5651
      %v5653 = vsel %vm3206, %v5604, 0.0
      %5654 = vadd.xlane.f32.xlu0 %v5653
      %v5655 = vpop.xlane.xlu0 %5654
      %v5656 = vsel %vm3206, %v5606, 0.0
      %5657 = vadd.xlane.f32.xlu0 %v5656
      %v5658 = vpop.xlane.xlu0 %5657
      %v5659 = vsel %vm3206, %v5608, 0.0
      %5660 = vadd.xlane.f32.xlu0 %v5659
      %v5661 = vpop.xlane.xlu0 %5660
      %v5662 = vsel %vm3206, %v5610, 0.0
      %5663 = vadd.xlane.f32.xlu0 %v5662
      %v5664 = vpop.xlane.xlu0 %5663
      %v5665 = vsel %vm3206, %v5612, 0.0
      %5666 = vadd.xlane.f32.xlu0 %v5665
      %v5667 = vpop.xlane.xlu0 %5666
      %v5668 = vsel %vm3206, %v5614, 0.0
      %5669 = vadd.xlane.f32.xlu0 %v5668
      %v5670 = vpop.xlane.xlu0 %5669
      %v5671 = vsel %vm3206, %v5616, 0.0
      %5672 = vadd.xlane.f32.xlu0 %v5671
      %v5673 = vpop.xlane.xlu0 %5672
      %v5674 = vsel %vm3206, %v5618, 0.0
      %5675 = vadd.xlane.f32.xlu0 %v5674
      %v5676 = vpop.xlane.xlu0 %5675
      %v5677 = vsel %vm3206, %v5620, 0.0
      %5678 = vadd.xlane.f32.xlu0 %v5677
      %v5679 = vpop.xlane.xlu0 %5678
      %v5680 = vsel %vm3206, %v5622, 0.0
      %5681 = vadd.xlane.f32.xlu0 %v5680
      %v5682 = vpop.xlane.xlu0 %5681
      %v5683 = vsel %vm3206, %v5624, 0.0
      %5684 = vadd.xlane.f32.xlu0 %v5683
      %v5685 = vpop.xlane.xlu0 %5684
      %v5686 = vsel %vm3206, %v5626, 0.0
      %5687 = vadd.xlane.f32.xlu0 %v5686
      %v5688 = vpop.xlane.xlu0 %5687
      %v5689 = vsel %vm3206, %v5628, 0.0
      %5690 = vadd.xlane.f32.xlu0 %v5689
      %v5691 = vpop.xlane.xlu0 %5690
      %v5692 = vsel %vm3206, %v5630, 0.0
      %5693 = vadd.xlane.f32.xlu0 %v5692
      %v5694 = vpop.xlane.xlu0 %5693
      %v5695 = vadd.f32 %v5631, %v5649
      %v5696 = vadd.f32 %v5632, %v5652
      %v5697 = vadd.f32 %v5633, %v5655
      %v5698 = vadd.f32 %v5634, %v5658
      %v5699 = vadd.f32 %v5635, %v5661
      %v5700 = vadd.f32 %v5636, %v5664
      %v5701 = vadd.f32 %v5637, %v5667
      %v5702 = vadd.f32 %v5638, %v5670
      %v5703 = vadd.f32 %v5639, %v5673
      %v5704 = vadd.f32 %v5640, %v5676
      %v5705 = vadd.f32 %v5641, %v5679
      %v5706 = vadd.f32 %v5642, %v5682
      %v5707 = vadd.f32 %v5643, %v5685
      %v5708 = vadd.f32 %v5644, %v5688
      %v5709 = vadd.f32 %v5645, %v5691
      %v5710 = vadd.f32 %v5646, %v5694
      %v5711 = vmul.f32 %v5552, %v5358
      %v5712 = vmul.f32 %v5554, %v5359
      %v5713 = vmul.f32 %v5556, %v5360
      %v5714 = vmul.f32 %v5558, %v5361
      %v5715 = vmul.f32 %v5560, %v5362
      %v5716 = vmul.f32 %v5562, %v5363
      %v5717 = vmul.f32 %v5564, %v5364
      %v5718 = vmul.f32 %v5566, %v5365
      %v5719 = vmul.f32 %v5568, %v5366
      %v5720 = vmul.f32 %v5570, %v5367
      %v5721 = vmul.f32 %v5572, %v5368
      %v5722 = vmul.f32 %v5574, %v5369
      %v5723 = vmul.f32 %v5576, %v5370
      %v5724 = vmul.f32 %v5578, %v5371
      %v5725 = vmul.f32 %v5580, %v5372
      %v5726 = vmul.f32 %v5582, %v5373
      %v5727 = vpack.c.bf16 %v5602, %v5600
      %v5728 = vpack.c.bf16 %v5606, %v5604
      %v5729 = vpack.c.bf16 %v5610, %v5608
      %v5730 = vpack.c.bf16 %v5614, %v5612
      %v5731 = vpack.c.bf16 %v5618, %v5616
      %v5732 = vpack.c.bf16 %v5622, %v5620
      %v5733 = vpack.c.bf16 %v5626, %v5624
      %v5734 = vpack.c.bf16 %v5630, %v5628
      %v5736 = vsel %vm3206, %v5727, 0
      %v5739 = vsel %vm3206, %v5728, 0
      %v5742 = vsel %vm3206, %v5729, 0
      %v5745 = vsel %vm3206, %v5730, 0
      %v5748 = vsel %vm3206, %v5731, 0
      %v5751 = vsel %vm3206, %v5732, 0
      %v5754 = vsel %vm3206, %v5733, 0
      %v5757 = vsel %vm3206, %v5734, 0
      %5759 = vmatprep.subr.bf16.mxu0 0
      %5760 = vmatpush1.bf16.msra.mxu0 %v2252
      %5761 = vmatprep.subr.bf16.mxu0 0
      %5762 = vmatpush1.bf16.msra.mxu0 %v2253
      %5763 = vmatprep.subr.bf16.mxu0 0
      %5764 = vmatpush1.bf16.msra.mxu0 %v2254
      %5765 = vmatprep.subr.bf16.mxu0 0
      %5766 = vmatpush1.bf16.msra.mxu0 %v2255
      %5767 = vmatprep.subr.bf16.mxu0 0
      %5768 = vmatpush1.bf16.msra.mxu0 %v3496
      %5769 = vmatprep.subr.bf16.mxu0 0
      %5770 = vmatpush1.bf16.msra.mxu0 0
      %5771 = vmatprep.subr.bf16.mxu0 0
      %5772 = vmatpush1.bf16.msra.mxu0 0
      %5773 = vmatprep.subr.bf16.mxu0 0
      %5774 = vmatpush1.bf16.msra.mxu0 0
      %5775 = vmatprep.subr.bf16.mxu0 0
      %5776 = vmatpush1.bf16.msra.mxu0 0
      %5777 = vmatprep.subr.bf16.mxu0 0
      %5778 = vmatpush1.bf16.msra.mxu0 0
      %5779 = vmatprep.subr.bf16.mxu0 0
      %5780 = vmatpush1.bf16.msra.mxu0 0
      %5781 = vmatprep.subr.bf16.mxu0 0
      %5782 = vmatpush1.bf16.msra.mxu0 0
      %5783 = vmatprep.subr.bf16.mxu0 0
      %5784 = vmatpush1.bf16.msra.mxu0 0
      %5785 = vmatprep.subr.bf16.mxu0 0
      %5786 = vmatpush1.bf16.msra.mxu0 0
      %5787 = vmatprep.subr.bf16.mxu0 0
      %5788 = vmatpush1.bf16.msra.mxu0 0
      %5789 = vmatprep.subr.bf16.mxu0 0
      %5790 = vmatpush1.bf16.msra.mxu0 0
      %5791 = vmatprep.mubr.bf16.mxu0 0
      %5792 = vmatmul.mubr.bf16.gmra.mrb[0].mxu0 %v5736
      %v5793 = vpop.f32.mrb[0].mxu0
      %v5794 = vadd.f32 0.0, %v5793
      %v5795 = vpop.f32.mrb[0].mxu0
      %v5796 = vpop.f32.mrb[0].mxu0
      %v5797 = vadd.f32 0.0, %v5796
      %v5798 = vpop.f32.mrb[0].mxu0
      %5799 = vmatprep.mubr.bf16.mxu0 0
      %5800 = vmatmul.mubr.bf16.gmra.mrb[0].mxu0 %v5739
      %v5801 = vpop.f32.mrb[0].mxu0
      %v5802 = vadd.f32 0.0, %v5801
      %v5803 = vpop.f32.mrb[0].mxu0
      %v5804 = vpop.f32.mrb[0].mxu0
      %v5805 = vadd.f32 0.0, %v5804
      %v5806 = vpop.f32.mrb[0].mxu0
      %5807 = vmatprep.mubr.bf16.mxu0 0
      %5808 = vmatmul.mubr.bf16.gmra.mrb[0].mxu0 %v5742
      %v5809 = vpop.f32.mrb[0].mxu0
      %v5810 = vadd.f32 0.0, %v5809
      %v5811 = vpop.f32.mrb[0].mxu0
      %v5812 = vpop.f32.mrb[0].mxu0
      %v5813 = vadd.f32 0.0, %v5812
      %v5814 = vpop.f32.mrb[0].mxu0
      %5815 = vmatprep.mubr.bf16.mxu0 0
      %5816 = vmatmul.mubr.bf16.gmra.mrb[0].mxu0 %v5745
      %v5817 = vpop.f32.mrb[0].mxu0
      %v5818 = vadd.f32 0.0, %v5817
      %v5819 = vpop.f32.mrb[0].mxu0
      %v5820 = vpop.f32.mrb[0].mxu0
      %v5821 = vadd.f32 0.0, %v5820
      %v5822 = vpop.f32.mrb[0].mxu0
      %5823 = vmatprep.mubr.bf16.mxu0 0
      %5824 = vmatmul.mubr.bf16.gmra.mrb[0].mxu0 %v5748
      %v5825 = vpop.f32.mrb[0].mxu0
      %v5826 = vadd.f32 0.0, %v5825
      %v5827 = vpop.f32.mrb[0].mxu0
      %v5828 = vpop.f32.mrb[0].mxu0
      %v5829 = vadd.f32 0.0, %v5828
      %v5830 = vpop.f32.mrb[0].mxu0
      %5831 = vmatprep.mubr.bf16.mxu0 0
      %5832 = vmatmul.mubr.bf16.gmra.mrb[0].mxu0 %v5751
      %v5833 = vpop.f32.mrb[0].mxu0
      %v5834 = vadd.f32 0.0, %v5833
      %v5835 = vpop.f32.mrb[0].mxu0
      %v5836 = vpop.f32.mrb[0].mxu0
      %v5837 = vadd.f32 0.0, %v5836
      %v5838 = vpop.f32.mrb[0].mxu0
      %5839 = vmatprep.mubr.bf16.mxu0 0
      %5840 = vmatmul.mubr.bf16.gmra.mrb[0].mxu0 %v5754
      %v5841 = vpop.f32.mrb[0].mxu0
      %v5842 = vadd.f32 0.0, %v5841
      %v5843 = vpop.f32.mrb[0].mxu0
      %v5844 = vpop.f32.mrb[0].mxu0
      %v5845 = vadd.f32 0.0, %v5844
      %v5846 = vpop.f32.mrb[0].mxu0
      %5847 = vmatprep.mubr.bf16.mxu0 0
      %5848 = vmatmul.mubr.bf16.gmra.mrb[0].mxu0 %v5757
      %v5849 = vpop.f32.mrb[0].mxu0
      %v5850 = vadd.f32 0.0, %v5849
      %v5851 = vpop.f32.mrb[0].mxu0
      %v5852 = vpop.f32.mrb[0].mxu0
      %v5853 = vadd.f32 0.0, %v5852
      %v5854 = vpop.f32.mrb[0].mxu0
      %5855 = vdwg.mxu0
      %v5856 = vadd.f32 %v5711, %v5794
      %v5857 = vadd.f32 %v5712, %v5797
      %v5858 = vadd.f32 %v5713, %v5802
      %v5859 = vadd.f32 %v5714, %v5805
      %v5860 = vadd.f32 %v5715, %v5810
      %v5861 = vadd.f32 %v5716, %v5813
      %v5862 = vadd.f32 %v5717, %v5818
      %v5863 = vadd.f32 %v5718, %v5821
      %v5864 = vadd.f32 %v5719, %v5826
      %v5865 = vadd.f32 %v5720, %v5829
      %v5866 = vadd.f32 %v5721, %v5834
      %v5867 = vadd.f32 %v5722, %v5837
      %v5868 = vadd.f32 %v5723, %v5842
      %v5869 = vadd.f32 %v5724, %v5845
      %v5870 = vadd.f32 %v5725, %v5850
      %v5871 = vadd.f32 %v5726, %v5853
      %v5872 = vrcp.pop %v5695
      %v5873 = vmul.f32 %v5856, %v5872
      %v5874 = vrcp.pop %v5696
      %v5875 = vmul.f32 %v5857, %v5874
      %v5876 = vrcp.pop %v5697
      %v5877 = vmul.f32 %v5858, %v5876
      %v5878 = vrcp.pop %v5698
      %v5879 = vmul.f32 %v5859, %v5878
      %v5880 = vrcp.pop %v5699
      %v5881 = vmul.f32 %v5860, %v5880
      %v5882 = vrcp.pop %v5700
      %v5883 = vmul.f32 %v5861, %v5882
      %v5884 = vrcp.pop %v5701
      %v5885 = vmul.f32 %v5862, %v5884
      %v5886 = vrcp.pop %v5702
      %v5887 = vmul.f32 %v5863, %v5886
      %v5888 = vrcp.pop %v5703
      %v5889 = vmul.f32 %v5864, %v5888
      %v5890 = vrcp.pop %v5704
      %v5891 = vmul.f32 %v5865, %v5890
      %v5892 = vrcp.pop %v5705
      %v5893 = vmul.f32 %v5866, %v5892
      %v5894 = vrcp.pop %v5706
      %v5895 = vmul.f32 %v5867, %v5894
      %v5896 = vrcp.pop %v5707
      %v5897 = vmul.f32 %v5868, %v5896
      %v5898 = vrcp.pop %v5708
      %v5899 = vmul.f32 %v5869, %v5898
      %v5900 = vrcp.pop %v5709
      %v5901 = vmul.f32 %v5870, %v5900
      %v5902 = vrcp.pop %v5710
      %v5903 = vmul.f32 %v5871, %v5902
      %v5904 = vpack.c.bf16 %v5875, %v5873
      %v5905 = vpack.c.bf16 %v5879, %v5877
      %v5906 = vpack.c.bf16 %v5883, %v5881
      %v5907 = vpack.c.bf16 %v5887, %v5885
      %v5908 = vpack.c.bf16 %v5891, %v5889
      %v5909 = vpack.c.bf16 %v5895, %v5893
      %v5910 = vpack.c.bf16 %v5899, %v5897
      %v5911 = vpack.c.bf16 %v5903, %v5901
      %v5912 = vld [vmem:[%s4] sm:$0xf]
      %v5913 = vld [vmem:[%s4 + $0x4] sm:$0xf]
      %v5914 = vld [vmem:[%s4 + $0x8] sm:$0xf]
      %v5915 = vld [vmem:[%s4 + $0xc] sm:$0xf]
      %v5916 = vld [vmem:[%s4 + $0x10] sm:$0xf]
      %v5917 = vld [vmem:[%s4 + $0x14] sm:$0xf]
      %v5918 = vld [vmem:[%s4 + $0x18] sm:$0xf]
      %v5919 = vld [vmem:[%s4 + $0x1c] sm:$0xf]
      %v5920 = vld [vmem:[%s4 + $0x20] sm:$0xf]
      %v5921 = vld [vmem:[%s4 + $0x24] sm:$0xf]
      %v5922 = vld [vmem:[%s4 + $0x28] sm:$0xf]
      %v5923 = vld [vmem:[%s4 + $0x2c] sm:$0xf]
      %v5924 = vld [vmem:[%s4 + $0x30] sm:$0xf]
      %v5925 = vld [vmem:[%s4 + $0x34] sm:$0xf]
      %v5926 = vld [vmem:[%s4 + $0x38] sm:$0xf]
      %v5927 = vld [vmem:[%s4 + $0x3c] sm:$0xf]
      %v5928 = vld [vmem:[%s5] sm:$0x1]
      %v5930 = vlaneseq
      %v5931 = vshrl.u32 %v5930, 7
      %v5932 = vsub.s32 0, %v5931
      %v5933 = vrot.slane %v5928, %v5932
      %v5951 = vunpack.c.l.b16 %v5912
      %v5952 = vunpack.c.l.b16 %v5913
      %v5953 = vunpack.c.l.b16 %v5914
      %v5954 = vunpack.c.l.b16 %v5915
      %v5955 = vunpack.c.l.b16 %v5916
      %v5956 = vunpack.c.l.b16 %v5917
      %v5957 = vunpack.c.l.b16 %v5918
      %v5958 = vunpack.c.l.b16 %v5919
      %v5959 = vunpack.c.l.b16 %v5920
      %v5960 = vunpack.c.l.b16 %v5921
      %v5961 = vunpack.c.l.b16 %v5922
      %v5962 = vunpack.c.l.b16 %v5923
      %v5963 = vunpack.c.l.b16 %v5924
      %v5964 = vunpack.c.l.b16 %v5925
      %v5965 = vunpack.c.l.b16 %v5926
      %v5966 = vunpack.c.l.b16 %v5927
      %v5967 = vpack.c.b16 %v5952, %v5951
      %v5968 = vpack.c.b16 %v5954, %v5953
      %v5969 = vpack.c.b16 %v5956, %v5955
      %v5970 = vpack.c.b16 %v5958, %v5957
      %v5971 = vpack.c.b16 %v5960, %v5959
      %v5972 = vpack.c.b16 %v5962, %v5961
      %v5973 = vpack.c.b16 %v5964, %v5963
      %v5974 = vpack.c.b16 %v5966, %v5965
      %5983 = vmatprep.subr.bf16.mxu0 0
      %5984 = vmatpush1.bf16.msra.mxu0 %v5967
      %5985 = vmatprep.subr.bf16.mxu0 0
      %5986 = vmatpush1.bf16.msra.mxu0 %v5968
      %5987 = vmatprep.subr.bf16.mxu0 0
      %5988 = vmatpush1.bf16.msra.mxu0 %v5969
      %5989 = vmatprep.subr.bf16.mxu0 0
      %5990 = vmatpush1.bf16.msra.mxu0 %v5970
      %5991 = vmatprep.subr.bf16.mxu0 0
      %5992 = vmatpush1.bf16.msra.mxu0 %v5971
      %5993 = vmatprep.subr.bf16.mxu0 0
      %5994 = vmatpush1.bf16.msra.mxu0 %v5972
      %5995 = vmatprep.subr.bf16.mxu0 0
      %5996 = vmatpush1.bf16.msra.mxu0 %v5973
      %5997 = vmatprep.subr.bf16.mxu0 0
      %5998 = vmatpush1.bf16.msra.mxu0 %v5974
      %5999 = vmatprep.subr.bf16.mxu0 0
      %6000 = vmatpush1.bf16.msra.mxu0 0
      %6001 = vmatprep.subr.bf16.mxu0 0
      %6002 = vmatpush1.bf16.msra.mxu0 0
      %6003 = vmatprep.subr.bf16.mxu0 0
      %6004 = vmatpush1.bf16.msra.mxu0 0
      %6005 = vmatprep.subr.bf16.mxu0 0
      %6006 = vmatpush1.bf16.msra.mxu0 0
      %6007 = vmatprep.subr.bf16.mxu0 0
      %6008 = vmatpush1.bf16.msra.mxu0 0
      %6009 = vmatprep.subr.bf16.mxu0 0
      %6010 = vmatpush1.bf16.msra.mxu0 0
      %6011 = vmatprep.subr.bf16.mxu0 0
      %6012 = vmatpush1.bf16.msra.mxu0 0
      %6013 = vmatprep.subr.bf16.mxu0 0
      %6014 = vmatpush1.bf16.msra.mxu0 0
      %6015 = vmatprep.mubr.bf16.mxu0 0
      %6016 = vmatmul.mubr.bf16.gmra.mrb[0].mxu0 %v5904
      %v6017 = vpop.f32.mrb[0].mxu0
      %v6018 = vadd.f32 %v5933, %v6017
      %v6019 = vpop.f32.mrb[0].mxu0
      %v6020 = vpop.f32.mrb[0].mxu0
      %v6021 = vadd.f32 %v5933, %v6020
      %v6022 = vpop.f32.mrb[0].mxu0
      %6023 = vmatprep.mubr.bf16.mxu0 0
      %6024 = vmatmul.mubr.bf16.gmra.mrb[0].mxu0 %v5905
      %v6025 = vpop.f32.mrb[0].mxu0
      %v6026 = vadd.f32 %v5933, %v6025
      %v6027 = vpop.f32.mrb[0].mxu0
      %v6028 = vpop.f32.mrb[0].mxu0
      %v6029 = vadd.f32 %v5933, %v6028
      %v6030 = vpop.f32.mrb[0].mxu0
      %6031 = vmatprep.mubr.bf16.mxu0 0
      %6032 = vmatmul.mubr.bf16.gmra.mrb[0].mxu0 %v5906
      %v6033 = vpop.f32.mrb[0].mxu0
      %v6034 = vadd.f32 %v5933, %v6033
      %v6035 = vpop.f32.mrb[0].mxu0
      %v6036 = vpop.f32.mrb[0].mxu0
      %v6037 = vadd.f32 %v5933, %v6036
      %v6038 = vpop.f32.mrb[0].mxu0
      %6039 = vmatprep.mubr.bf16.mxu0 0
      %6040 = vmatmul.mubr.bf16.gmra.mrb[0].mxu0 %v5907
      %v6041 = vpop.f32.mrb[0].mxu0
      %v6042 = vadd.f32 %v5933, %v6041
      %v6043 = vpop.f32.mrb[0].mxu0
      %v6044 = vpop.f32.mrb[0].mxu0
      %v6045 = vadd.f32 %v5933, %v6044
      %v6046 = vpop.f32.mrb[0].mxu0
      %6047 = vmatprep.mubr.bf16.mxu0 0
      %6048 = vmatmul.mubr.bf16.gmra.mrb[0].mxu0 %v5908
      %v6049 = vpop.f32.mrb[0].mxu0
      %v6050 = vadd.f32 %v5933, %v6049
      %v6051 = vpop.f32.mrb[0].mxu0
      %v6052 = vpop.f32.mrb[0].mxu0
      %v6053 = vadd.f32 %v5933, %v6052
      %v6054 = vpop.f32.mrb[0].mxu0
      %6055 = vmatprep.mubr.bf16.mxu0 0
      %6056 = vmatmul.mubr.bf16.gmra.mrb[0].mxu0 %v5909
      %v6057 = vpop.f32.mrb[0].mxu0
      %v6058 = vadd.f32 %v5933, %v6057
      %v6059 = vpop.f32.mrb[0].mxu0
      %v6060 = vpop.f32.mrb[0].mxu0
      %v6061 = vadd.f32 %v5933, %v6060
      %v6062 = vpop.f32.mrb[0].mxu0
      %6063 = vmatprep.mubr.bf16.mxu0 0
      %6064 = vmatmul.mubr.bf16.gmra.mrb[0].mxu0 %v5910
      %v6065 = vpop.f32.mrb[0].mxu0
      %v6066 = vadd.f32 %v5933, %v6065
      %v6067 = vpop.f32.mrb[0].mxu0
      %v6068 = vpop.f32.mrb[0].mxu0
      %v6069 = vadd.f32 %v5933, %v6068
      %v6070 = vpop.f32.mrb[0].mxu0
      %6071 = vmatprep.mubr.bf16.mxu0 0
      %6072 = vmatmul.mubr.bf16.gmra.mrb[0].mxu0 %v5911
      %v6073 = vpop.f32.mrb[0].mxu0
      %v6074 = vadd.f32 %v5933, %v6073
      %v6075 = vpop.f32.mrb[0].mxu0
      %v6076 = vpop.f32.mrb[0].mxu0
      %v6077 = vadd.f32 %v5933, %v6076
      %v6078 = vpop.f32.mrb[0].mxu0
      %6079 = vdwg.mxu0
      %v6080 = vadd.f32 %v2093, %v6018
      %v6081 = vadd.f32 %v2096, %v6021
      %v6082 = vadd.f32 %v2101, %v6026
      %v6083 = vadd.f32 %v2104, %v6029
      %v6084 = vadd.f32 %v2109, %v6034
      %v6085 = vadd.f32 %v2112, %v6037
      %v6086 = vadd.f32 %v2117, %v6042
      %v6087 = vadd.f32 %v2120, %v6045
      %v6088 = vadd.f32 %v2125, %v6050
      %v6089 = vadd.f32 %v2128, %v6053
      %v6090 = vadd.f32 %v2133, %v6058
      %v6091 = vadd.f32 %v2136, %v6061
      %v6092 = vadd.f32 %v2141, %v6066
      %v6093 = vadd.f32 %v2144, %v6069
      %v6094 = vadd.f32 %v2149, %v6074
      %v6095 = vadd.f32 %v2152, %v6077
      %6096 = vadd.xlane.f32.xlu0 %v6080
      %v6097 = vpop.xlane.xlu0 %6096
      %6098 = vadd.xlane.f32.xlu0 %v6081
      %v6099 = vpop.xlane.xlu0 %6098
      %6100 = vadd.xlane.f32.xlu0 %v6082
      %v6101 = vpop.xlane.xlu0 %6100
      %6102 = vadd.xlane.f32.xlu0 %v6083
      %v6103 = vpop.xlane.xlu0 %6102
      %6104 = vadd.xlane.f32.xlu0 %v6084
      %v6105 = vpop.xlane.xlu0 %6104
      %6106 = vadd.xlane.f32.xlu0 %v6085
      %v6107 = vpop.xlane.xlu0 %6106
      %6108 = vadd.xlane.f32.xlu0 %v6086
      %v6109 = vpop.xlane.xlu0 %6108
      %6110 = vadd.xlane.f32.xlu0 %v6087
      %v6111 = vpop.xlane.xlu0 %6110
      %6112 = vadd.xlane.f32.xlu0 %v6088
      %v6113 = vpop.xlane.xlu0 %6112
      %6114 = vadd.xlane.f32.xlu0 %v6089
      %v6115 = vpop.xlane.xlu0 %6114
      %6116 = vadd.xlane.f32.xlu0 %v6090
      %v6117 = vpop.xlane.xlu0 %6116
      %6118 = vadd.xlane.f32.xlu0 %v6091
      %v6119 = vpop.xlane.xlu0 %6118
      %6120 = vadd.xlane.f32.xlu0 %v6092
      %v6121 = vpop.xlane.xlu0 %6120
      %6122 = vadd.xlane.f32.xlu0 %v6093
      %v6123 = vpop.xlane.xlu0 %6122
      %6124 = vadd.xlane.f32.xlu0 %v6094
      %v6125 = vpop.xlane.xlu0 %6124
      %6126 = vadd.xlane.f32.xlu0 %v6095
      %v6127 = vpop.xlane.xlu0 %6126
      %v6128 = vmul.f32 %v6097, %v3867
      %v6129 = vmul.f32 %v6099, %v3867
      %v6130 = vmul.f32 %v6101, %v3867
      %v6131 = vmul.f32 %v6103, %v3867
      %v6132 = vmul.f32 %v6105, %v3867
      %v6133 = vmul.f32 %v6107, %v3867
      %v6134 = vmul.f32 %v6109, %v3867
      %v6135 = vmul.f32 %v6111, %v3867
      %v6136 = vmul.f32 %v6113, %v3867
      %v6137 = vmul.f32 %v6115, %v3867
      %v6138 = vmul.f32 %v6117, %v3867
      %v6139 = vmul.f32 %v6119, %v3867
      %v6140 = vmul.f32 %v6121, %v3867
      %v6141 = vmul.f32 %v6123, %v3867
      %v6142 = vmul.f32 %v6125, %v3867
      %v6143 = vmul.f32 %v6127, %v3867
      %v6144 = vsub.f32 %v6080, %v6128
      %v6145 = vsub.f32 %v6081, %v6129
      %v6146 = vsub.f32 %v6082, %v6130
      %v6147 = vsub.f32 %v6083, %v6131
      %v6148 = vsub.f32 %v6084, %v6132
      %v6149 = vsub.f32 %v6085, %v6133
      %v6150 = vsub.f32 %v6086, %v6134
      %v6151 = vsub.f32 %v6087, %v6135
      %v6152 = vsub.f32 %v6088, %v6136
      %v6153 = vsub.f32 %v6089, %v6137
      %v6154 = vsub.f32 %v6090, %v6138
      %v6155 = vsub.f32 %v6091, %v6139
      %v6156 = vsub.f32 %v6092, %v6140
      %v6157 = vsub.f32 %v6093, %v6141
      %v6158 = vsub.f32 %v6094, %v6142
      %v6159 = vsub.f32 %v6095, %v6143
      %v6160 = vmul.f32 %v6144, %v6144
      %v6161 = vmul.f32 %v6145, %v6145
      %v6162 = vmul.f32 %v6146, %v6146
      %v6163 = vmul.f32 %v6147, %v6147
      %v6164 = vmul.f32 %v6148, %v6148
      %v6165 = vmul.f32 %v6149, %v6149
      %v6166 = vmul.f32 %v6150, %v6150
      %v6167 = vmul.f32 %v6151, %v6151
      %v6168 = vmul.f32 %v6152, %v6152
      %v6169 = vmul.f32 %v6153, %v6153
      %v6170 = vmul.f32 %v6154, %v6154
      %v6171 = vmul.f32 %v6155, %v6155
      %v6172 = vmul.f32 %v6156, %v6156
      %v6173 = vmul.f32 %v6157, %v6157
      %v6174 = vmul.f32 %v6158, %v6158
      %v6175 = vmul.f32 %v6159, %v6159
      %6176 = vadd.xlane.f32.xlu0 %v6160
      %v6177 = vpop.xlane.xlu0 %6176
      %6178 = vadd.xlane.f32.xlu0 %v6161
      %v6179 = vpop.xlane.xlu0 %6178
      %6180 = vadd.xlane.f32.xlu0 %v6162
      %v6181 = vpop.xlane.xlu0 %6180
      %6182 = vadd.xlane.f32.xlu0 %v6163
      %v6183 = vpop.xlane.xlu0 %6182
      %6184 = vadd.xlane.f32.xlu0 %v6164
      %v6185 = vpop.xlane.xlu0 %6184
      %6186 = vadd.xlane.f32.xlu0 %v6165
      %v6187 = vpop.xlane.xlu0 %6186
      %6188 = vadd.xlane.f32.xlu0 %v6166
      %v6189 = vpop.xlane.xlu0 %6188
      %6190 = vadd.xlane.f32.xlu0 %v6167
      %v6191 = vpop.xlane.xlu0 %6190
      %6192 = vadd.xlane.f32.xlu0 %v6168
      %v6193 = vpop.xlane.xlu0 %6192
      %6194 = vadd.xlane.f32.xlu0 %v6169
      %v6195 = vpop.xlane.xlu0 %6194
      %6196 = vadd.xlane.f32.xlu0 %v6170
      %v6197 = vpop.xlane.xlu0 %6196
      %6198 = vadd.xlane.f32.xlu0 %v6171
      %v6199 = vpop.xlane.xlu0 %6198
      %6200 = vadd.xlane.f32.xlu0 %v6172
      %v6201 = vpop.xlane.xlu0 %6200
      %6202 = vadd.xlane.f32.xlu0 %v6173
      %v6203 = vpop.xlane.xlu0 %6202
      %6204 = vadd.xlane.f32.xlu0 %v6174
      %v6205 = vpop.xlane.xlu0 %6204
      %6206 = vadd.xlane.f32.xlu0 %v6175
      %v6207 = vpop.xlane.xlu0 %6206
      %v6208 = vmul.f32 %v6177, %v3867
      %v6209 = vmul.f32 %v6179, %v3867
      %v6210 = vmul.f32 %v6181, %v3867
      %v6211 = vmul.f32 %v6183, %v3867
      %v6212 = vmul.f32 %v6185, %v3867
      %v6213 = vmul.f32 %v6187, %v3867
      %v6214 = vmul.f32 %v6189, %v3867
      %v6215 = vmul.f32 %v6191, %v3867
      %v6216 = vmul.f32 %v6193, %v3867
      %v6217 = vmul.f32 %v6195, %v3867
      %v6218 = vmul.f32 %v6197, %v3867
      %v6219 = vmul.f32 %v6199, %v3867
      %v6220 = vmul.f32 %v6201, %v3867
      %v6221 = vmul.f32 %v6203, %v3867
      %v6222 = vmul.f32 %v6205, %v3867
      %v6223 = vmul.f32 %v6207, %v3867
      %v6224 = vadd.f32 %v6208, 1e-05
      %v6225 = vadd.f32 %v6209, 1e-05
      %v6226 = vadd.f32 %v6210, 1e-05
      %v6227 = vadd.f32 %v6211, 1e-05
      %v6228 = vadd.f32 %v6212, 1e-05
      %v6229 = vadd.f32 %v6213, 1e-05
      %v6230 = vadd.f32 %v6214, 1e-05
      %v6231 = vadd.f32 %v6215, 1e-05
      %v6232 = vadd.f32 %v6216, 1e-05
      %v6233 = vadd.f32 %v6217, 1e-05
      %v6234 = vadd.f32 %v6218, 1e-05
      %v6235 = vadd.f32 %v6219, 1e-05
      %v6236 = vadd.f32 %v6220, 1e-05
      %v6237 = vadd.f32 %v6221, 1e-05
      %v6238 = vadd.f32 %v6222, 1e-05
      %v6239 = vadd.f32 %v6223, 1e-05
      %v6240 = vrsqrt.pop %v6224
      %v6241 = vrsqrt.pop %v6225
      %v6242 = vrsqrt.pop %v6226
      %v6243 = vrsqrt.pop %v6227
      %v6244 = vrsqrt.pop %v6228
      %v6245 = vrsqrt.pop %v6229
      %v6246 = vrsqrt.pop %v6230
      %v6247 = vrsqrt.pop %v6231
      %v6248 = vrsqrt.pop %v6232
      %v6249 = vrsqrt.pop %v6233
      %v6250 = vrsqrt.pop %v6234
      %v6251 = vrsqrt.pop %v6235
      %v6252 = vrsqrt.pop %v6236
      %v6253 = vrsqrt.pop %v6237
      %v6254 = vrsqrt.pop %v6238
      %v6255 = vrsqrt.pop %v6239
      %v6256 = vmul.f32 %v6144, %v6240
      %v6257 = vmul.f32 %v6145, %v6241
      %v6258 = vmul.f32 %v6146, %v6242
      %v6259 = vmul.f32 %v6147, %v6243
      %v6260 = vmul.f32 %v6148, %v6244
      %v6261 = vmul.f32 %v6149, %v6245
      %v6262 = vmul.f32 %v6150, %v6246
      %v6263 = vmul.f32 %v6151, %v6247
      %v6264 = vmul.f32 %v6152, %v6248
      %v6265 = vmul.f32 %v6153, %v6249
      %v6266 = vmul.f32 %v6154, %v6250
      %v6267 = vmul.f32 %v6155, %v6251
      %v6268 = vmul.f32 %v6156, %v6252
      %v6269 = vmul.f32 %v6157, %v6253
      %v6270 = vmul.f32 %v6158, %v6254
      %v6271 = vmul.f32 %v6159, %v6255
      %v6272 = vld [vmem:[%s6] sm:$0x1]
      %v6274 = vlaneseq
      %v6275 = vshrl.u32 %v6274, 7
      %v6276 = vsub.s32 0, %v6275
      %v6277 = vrot.slane %v6272, %v6276
      %v6279 = vmul.f32 %v6256, %v6277
      %v6280 = vmul.f32 %v6257, %v6277
      %v6281 = vmul.f32 %v6258, %v6277
      %v6282 = vmul.f32 %v6259, %v6277
      %v6283 = vmul.f32 %v6260, %v6277
      %v6284 = vmul.f32 %v6261, %v6277
      %v6285 = vmul.f32 %v6262, %v6277
      %v6286 = vmul.f32 %v6263, %v6277
      %v6287 = vmul.f32 %v6264, %v6277
      %v6288 = vmul.f32 %v6265, %v6277
      %v6289 = vmul.f32 %v6266, %v6277
      %v6290 = vmul.f32 %v6267, %v6277
      %v6291 = vmul.f32 %v6268, %v6277
      %v6292 = vmul.f32 %v6269, %v6277
      %v6293 = vmul.f32 %v6270, %v6277
      %v6294 = vmul.f32 %v6271, %v6277
      %v6295 = vld [vmem:[%s7] sm:$0x1]
      %v6297 = vlaneseq
      %v6298 = vshrl.u32 %v6297, 7
      %v6299 = vsub.s32 0, %v6298
      %v6300 = vrot.slane %v6295, %v6299
      %v6302 = vadd.f32 %v6279, %v6300
      %v6303 = vadd.f32 %v6280, %v6300
      %v6304 = vadd.f32 %v6281, %v6300
      %v6305 = vadd.f32 %v6282, %v6300
      %v6306 = vadd.f32 %v6283, %v6300
      %v6307 = vadd.f32 %v6284, %v6300
      %v6308 = vadd.f32 %v6285, %v6300
      %v6309 = vadd.f32 %v6286, %v6300
      %v6310 = vadd.f32 %v6287, %v6300
      %v6311 = vadd.f32 %v6288, %v6300
      %v6312 = vadd.f32 %v6289, %v6300
      %v6313 = vadd.f32 %v6290, %v6300
      %v6314 = vadd.f32 %v6291, %v6300
      %v6315 = vadd.f32 %v6292, %v6300
      %v6316 = vadd.f32 %v6293, %v6300
      %v6317 = vadd.f32 %v6294, %v6300
      %v6318 = vpack.c.bf16 %v6303, %v6302
      %v6319 = vpack.c.bf16 %v6305, %v6304
      %v6320 = vpack.c.bf16 %v6307, %v6306
      %v6321 = vpack.c.bf16 %v6309, %v6308
      %v6322 = vpack.c.bf16 %v6311, %v6310
      %v6323 = vpack.c.bf16 %v6313, %v6312
      %v6324 = vpack.c.bf16 %v6315, %v6314
      %v6325 = vpack.c.bf16 %v6317, %v6316
      %v6326 = vld [vmem:[%s8] sm:$0xf]
      %v6327 = vld [vmem:[%s8 + $0x4] sm:$0xf]
      %v6328 = vld [vmem:[%s8 + $0x8] sm:$0xf]
      %v6329 = vld [vmem:[%s8 + $0xc] sm:$0xf]
      %v6330 = vld [vmem:[%s8 + $0x10] sm:$0xf]
      %v6331 = vld [vmem:[%s8 + $0x14] sm:$0xf]
      %v6332 = vld [vmem:[%s8 + $0x18] sm:$0xf]
      %v6333 = vld [vmem:[%s8 + $0x1c] sm:$0xf]
      %v6334 = vld [vmem:[%s8 + $0x20] sm:$0xf]
      %v6335 = vld [vmem:[%s8 + $0x24] sm:$0xf]
      %v6336 = vld [vmem:[%s8 + $0x28] sm:$0xf]
      %v6337 = vld [vmem:[%s8 + $0x2c] sm:$0xf]
      %v6338 = vld [vmem:[%s8 + $0x30] sm:$0xf]
      %v6339 = vld [vmem:[%s8 + $0x34] sm:$0xf]
      %v6340 = vld [vmem:[%s8 + $0x38] sm:$0xf]
      %v6341 = vld [vmem:[%s8 + $0x3c] sm:$0xf]
      %v6342 = vld [vmem:[%s9] sm:$0x1]
      %v6344 = vlaneseq
      %v6345 = vshrl.u32 %v6344, 7
      %v6346 = vsub.s32 0, %v6345
      %v6347 = vrot.slane %v6342, %v6346
      %v6365 = vunpack.c.l.b16 %v6326
      %v6366 = vunpack.c.l.b16 %v6327
      %v6367 = vunpack.c.l.b16 %v6328
      %v6368 = vunpack.c.l.b16 %v6329
      %v6369 = vunpack.c.l.b16 %v6330
      %v6370 = vunpack.c.l.b16 %v6331
      %v6371 = vunpack.c.l.b16 %v6332
      %v6372 = vunpack.c.l.b16 %v6333
      %v6373 = vunpack.c.l.b16 %v6334
      %v6374 = vunpack.c.l.b16 %v6335
      %v6375 = vunpack.c.l.b16 %v6336
      %v6376 = vunpack.c.l.b16 %v6337
      %v6377 = vunpack.c.l.b16 %v6338
      %v6378 = vunpack.c.l.b16 %v6339
      %v6379 = vunpack.c.l.b16 %v6340
      %v6380 = vunpack.c.l.b16 %v6341
      %v6381 = vpack.c.b16 %v6366, %v6365
      %v6382 = vpack.c.b16 %v6368, %v6367
      %v6383 = vpack.c.b16 %v6370, %v6369
      %v6384 = vpack.c.b16 %v6372, %v6371
      %v6385 = vpack.c.b16 %v6374, %v6373
      %v6386 = vpack.c.b16 %v6376, %v6375
      %v6387 = vpack.c.b16 %v6378, %v6377
      %v6388 = vpack.c.b16 %v6380, %v6379
      %6397 = vmatprep.subr.bf16.mxu0 0
      %6398 = vmatpush1.bf16.msra.mxu0 %v6381
      %6399 = vmatprep.subr.bf16.mxu0 0
      %6400 = vmatpush1.bf16.msra.mxu0 %v6382
      %6401 = vmatprep.subr.bf16.mxu0 0
      %6402 = vmatpush1.bf16.msra.mxu0 %v6383
      %6403 = vmatprep.subr.bf16.mxu0 0
      %6404 = vmatpush1.bf16.msra.mxu0 %v6384
      %6405 = vmatprep.subr.bf16.mxu0 0
      %6406 = vmatpush1.bf16.msra.mxu0 %v6385
      %6407 = vmatprep.subr.bf16.mxu0 0
      %6408 = vmatpush1.bf16.msra.mxu0 %v6386
      %6409 = vmatprep.subr.bf16.mxu0 0
      %6410 = vmatpush1.bf16.msra.mxu0 %v6387
      %6411 = vmatprep.subr.bf16.mxu0 0
      %6412 = vmatpush1.bf16.msra.mxu0 %v6388
      %6413 = vmatprep.subr.bf16.mxu0 0
      %6414 = vmatpush1.bf16.msra.mxu0 0
      %6415 = vmatprep.subr.bf16.mxu0 0
      %6416 = vmatpush1.bf16.msra.mxu0 0
      %6417 = vmatprep.subr.bf16.mxu0 0
      %6418 = vmatpush1.bf16.msra.mxu0 0
      %6419 = vmatprep.subr.bf16.mxu0 0
      %6420 = vmatpush1.bf16.msra.mxu0 0
      %6421 = vmatprep.subr.bf16.mxu0 0
      %6422 = vmatpush1.bf16.msra.mxu0 0
      %6423 = vmatprep.subr.bf16.mxu0 0
      %6424 = vmatpush1.bf16.msra.mxu0 0
      %6425 = vmatprep.subr.bf16.mxu0 0
      %6426 = vmatpush1.bf16.msra.mxu0 0
      %6427 = vmatprep.subr.bf16.mxu0 0
      %6428 = vmatpush1.bf16.msra.mxu0 0
      %6429 = vmatprep.mubr.bf16.mxu0 0
      %6430 = vmatmul.mubr.bf16.gmra.mrb[0].mxu0 %v6318
      %v6431 = vpop.f32.mrb[0].mxu0
      %v6432 = vadd.f32 %v6347, %v6431
      %v6433 = vpop.f32.mrb[0].mxu0
      %v6434 = vpop.f32.mrb[0].mxu0
      %v6435 = vadd.f32 %v6347, %v6434
      %v6436 = vpop.f32.mrb[0].mxu0
      %6437 = vmatprep.mubr.bf16.mxu0 0
      %6438 = vmatmul.mubr.bf16.gmra.mrb[0].mxu0 %v6319
      %v6439 = vpop.f32.mrb[0].mxu0
      %v6440 = vadd.f32 %v6347, %v6439
      %v6441 = vpop.f32.mrb[0].mxu0
      %v6442 = vpop.f32.mrb[0].mxu0
      %v6443 = vadd.f32 %v6347, %v6442
      %v6444 = vpop.f32.mrb[0].mxu0
      %6445 = vmatprep.mubr.bf16.mxu0 0
      %6446 = vmatmul.mubr.bf16.gmra.mrb[0].mxu0 %v6320
      %v6447 = vpop.f32.mrb[0].mxu0
      %v6448 = vadd.f32 %v6347, %v6447
      %v6449 = vpop.f32.mrb[0].mxu0
      %v6450 = vpop.f32.mrb[0].mxu0
      %v6451 = vadd.f32 %v6347, %v6450
      %v6452 = vpop.f32.mrb[0].mxu0
      %6453 = vmatprep.mubr.bf16.mxu0 0
      %6454 = vmatmul.mubr.bf16.gmra.mrb[0].mxu0 %v6321
      %v6455 = vpop.f32.mrb[0].mxu0
      %v6456 = vadd.f32 %v6347, %v6455
      %v6457 = vpop.f32.mrb[0].mxu0
      %v6458 = vpop.f32.mrb[0].mxu0
      %v6459 = vadd.f32 %v6347, %v6458
      %v6460 = vpop.f32.mrb[0].mxu0
      %6461 = vmatprep.mubr.bf16.mxu0 0
      %6462 = vmatmul.mubr.bf16.gmra.mrb[0].mxu0 %v6322
      %v6463 = vpop.f32.mrb[0].mxu0
      %v6464 = vadd.f32 %v6347, %v6463
      %v6465 = vpop.f32.mrb[0].mxu0
      %v6466 = vpop.f32.mrb[0].mxu0
      %v6467 = vadd.f32 %v6347, %v6466
      %v6468 = vpop.f32.mrb[0].mxu0
      %6469 = vmatprep.mubr.bf16.mxu0 0
      %6470 = vmatmul.mubr.bf16.gmra.mrb[0].mxu0 %v6323
      %v6471 = vpop.f32.mrb[0].mxu0
      %v6472 = vadd.f32 %v6347, %v6471
      %v6473 = vpop.f32.mrb[0].mxu0
      %v6474 = vpop.f32.mrb[0].mxu0
      %v6475 = vadd.f32 %v6347, %v6474
      %v6476 = vpop.f32.mrb[0].mxu0
      %6477 = vmatprep.mubr.bf16.mxu0 0
      %6478 = vmatmul.mubr.bf16.gmra.mrb[0].mxu0 %v6324
      %v6479 = vpop.f32.mrb[0].mxu0
      %v6480 = vadd.f32 %v6347, %v6479
      %v6481 = vpop.f32.mrb[0].mxu0
      %v6482 = vpop.f32.mrb[0].mxu0
      %v6483 = vadd.f32 %v6347, %v6482
      %v6484 = vpop.f32.mrb[0].mxu0
      %6485 = vmatprep.mubr.bf16.mxu0 0
      %6486 = vmatmul.mubr.bf16.gmra.mrb[0].mxu0 %v6325
      %v6487 = vpop.f32.mrb[0].mxu0
      %v6488 = vadd.f32 %v6347, %v6487
      %v6489 = vpop.f32.mrb[0].mxu0
      %v6490 = vpop.f32.mrb[0].mxu0
      %v6491 = vadd.f32 %v6347, %v6490
      %v6492 = vpop.f32.mrb[0].mxu0
      %6493 = vdwg.mxu0
      %v6494 = vmul.f32 %v6432, 0.5
      %v6495 = vmul.f32 %v6435, 0.5
      %v6496 = vmul.f32 %v6440, 0.5
      %v6497 = vmul.f32 %v6443, 0.5
      %v6498 = vmul.f32 %v6448, 0.5
      %v6499 = vmul.f32 %v6451, 0.5
      %v6500 = vmul.f32 %v6456, 0.5
      %v6501 = vmul.f32 %v6459, 0.5
      %v6502 = vmul.f32 %v6464, 0.5
      %v6503 = vmul.f32 %v6467, 0.5
      %v6504 = vmul.f32 %v6472, 0.5
      %v6505 = vmul.f32 %v6475, 0.5
      %v6506 = vmul.f32 %v6480, 0.5
      %v6507 = vmul.f32 %v6483, 0.5
      %v6508 = vmul.f32 %v6488, 0.5
      %v6509 = vmul.f32 %v6491, 0.5
      %v6510 = vmul.f32 %v6432, 0.70710677
      %v6511 = vmul.f32 %v6435, 0.70710677
      %v6512 = vmul.f32 %v6440, 0.70710677
      %v6513 = vmul.f32 %v6443, 0.70710677
      %v6514 = vmul.f32 %v6448, 0.70710677
      %v6515 = vmul.f32 %v6451, 0.70710677
      %v6516 = vmul.f32 %v6456, 0.70710677
      %v6517 = vmul.f32 %v6459, 0.70710677
      %v6518 = vmul.f32 %v6464, 0.70710677
      %v6519 = vmul.f32 %v6467, 0.70710677
      %v6520 = vmul.f32 %v6472, 0.70710677
      %v6521 = vmul.f32 %v6475, 0.70710677
      %v6522 = vmul.f32 %v6480, 0.70710677
      %v6523 = vmul.f32 %v6483, 0.70710677
      %v6524 = vmul.f32 %v6488, 0.70710677
      %v6525 = vmul.f32 %v6491, 0.70710677
      %v6526 = verf.f32.pop %v6510
      %v6527 = verf.f32.pop %v6511
      %v6528 = verf.f32.pop %v6512
      %v6529 = verf.f32.pop %v6513
      %v6530 = verf.f32.pop %v6514
      %v6531 = verf.f32.pop %v6515
      %v6532 = verf.f32.pop %v6516
      %v6533 = verf.f32.pop %v6517
      %v6534 = verf.f32.pop %v6518
      %v6535 = verf.f32.pop %v6519
      %v6536 = verf.f32.pop %v6520
      %v6537 = verf.f32.pop %v6521
      %v6538 = verf.f32.pop %v6522
      %v6539 = verf.f32.pop %v6523
      %v6540 = verf.f32.pop %v6524
      %v6541 = verf.f32.pop %v6525
      %v6542 = vadd.f32 %v6526, 1.0
      %v6543 = vadd.f32 %v6527, 1.0
      %v6544 = vadd.f32 %v6528, 1.0
      %v6545 = vadd.f32 %v6529, 1.0
      %v6546 = vadd.f32 %v6530, 1.0
      %v6547 = vadd.f32 %v6531, 1.0
      %v6548 = vadd.f32 %v6532, 1.0
      %v6549 = vadd.f32 %v6533, 1.0
      %v6550 = vadd.f32 %v6534, 1.0
      %v6551 = vadd.f32 %v6535, 1.0
      %v6552 = vadd.f32 %v6536, 1.0
      %v6553 = vadd.f32 %v6537, 1.0
      %v6554 = vadd.f32 %v6538, 1.0
      %v6555 = vadd.f32 %v6539, 1.0
      %v6556 = vadd.f32 %v6540, 1.0
      %v6557 = vadd.f32 %v6541, 1.0
      %v6558 = vmul.f32 %v6494, %v6542
      %v6559 = vmul.f32 %v6495, %v6543
      %v6560 = vmul.f32 %v6496, %v6544
      %v6561 = vmul.f32 %v6497, %v6545
      %v6562 = vmul.f32 %v6498, %v6546
      %v6563 = vmul.f32 %v6499, %v6547
      %v6564 = vmul.f32 %v6500, %v6548
      %v6565 = vmul.f32 %v6501, %v6549
      %v6566 = vmul.f32 %v6502, %v6550
      %v6567 = vmul.f32 %v6503, %v6551
      %v6568 = vmul.f32 %v6504, %v6552
      %v6569 = vmul.f32 %v6505, %v6553
      %v6570 = vmul.f32 %v6506, %v6554
      %v6571 = vmul.f32 %v6507, %v6555
      %v6572 = vmul.f32 %v6508, %v6556
      %v6573 = vmul.f32 %v6509, %v6557
      %v6574 = vpack.c.bf16 %v6559, %v6558
      %v6575 = vpack.c.bf16 %v6561, %v6560
      %v6576 = vpack.c.bf16 %v6563, %v6562
      %v6577 = vpack.c.bf16 %v6565, %v6564
      %v6578 = vpack.c.bf16 %v6567, %v6566
      %v6579 = vpack.c.bf16 %v6569, %v6568
      %v6580 = vpack.c.bf16 %v6571, %v6570
      %v6581 = vpack.c.bf16 %v6573, %v6572
      %v6582 = vld [vmem:[%s10] sm:$0xf]
      %v6583 = vld [vmem:[%s10 + $0x4] sm:$0xf]
      %v6584 = vld [vmem:[%s10 + $0x8] sm:$0xf]
      %v6585 = vld [vmem:[%s10 + $0xc] sm:$0xf]
      %v6586 = vld [vmem:[%s10 + $0x10] sm:$0xf]
      %v6587 = vld [vmem:[%s10 + $0x14] sm:$0xf]
      %v6588 = vld [vmem:[%s10 + $0x18] sm:$0xf]
      %v6589 = vld [vmem:[%s10 + $0x1c] sm:$0xf]
      %v6590 = vld [vmem:[%s10 + $0x20] sm:$0xf]
      %v6591 = vld [vmem:[%s10 + $0x24] sm:$0xf]
      %v6592 = vld [vmem:[%s10 + $0x28] sm:$0xf]
      %v6593 = vld [vmem:[%s10 + $0x2c] sm:$0xf]
      %v6594 = vld [vmem:[%s10 + $0x30] sm:$0xf]
      %v6595 = vld [vmem:[%s10 + $0x34] sm:$0xf]
      %v6596 = vld [vmem:[%s10 + $0x38] sm:$0xf]
      %v6597 = vld [vmem:[%s10 + $0x3c] sm:$0xf]
      %v6598 = vld [vmem:[%s11] sm:$0x1]
      %v6600 = vlaneseq
      %v6601 = vshrl.u32 %v6600, 7
      %v6602 = vsub.s32 0, %v6601
      %v6603 = vrot.slane %v6598, %v6602
      %v6621 = vunpack.c.l.b16 %v6582
      %v6622 = vunpack.c.l.b16 %v6583
      %v6623 = vunpack.c.l.b16 %v6584
      %v6624 = vunpack.c.l.b16 %v6585
      %v6625 = vunpack.c.l.b16 %v6586
      %v6626 = vunpack.c.l.b16 %v6587
      %v6627 = vunpack.c.l.b16 %v6588
      %v6628 = vunpack.c.l.b16 %v6589
      %v6629 = vunpack.c.l.b16 %v6590
      %v6630 = vunpack.c.l.b16 %v6591
      %v6631 = vunpack.c.l.b16 %v6592
      %v6632 = vunpack.c.l.b16 %v6593
      %v6633 = vunpack.c.l.b16 %v6594
      %v6634 = vunpack.c.l.b16 %v6595
      %v6635 = vunpack.c.l.b16 %v6596
      %v6636 = vunpack.c.l.b16 %v6597
      %v6637 = vpack.c.b16 %v6622, %v6621
      %v6638 = vpack.c.b16 %v6624, %v6623
      %v6639 = vpack.c.b16 %v6626, %v6625
      %v6640 = vpack.c.b16 %v6628, %v6627
      %v6641 = vpack.c.b16 %v6630, %v6629
      %v6642 = vpack.c.b16 %v6632, %v6631
      %v6643 = vpack.c.b16 %v6634, %v6633
      %v6644 = vpack.c.b16 %v6636, %v6635
      %6653 = vmatprep.subr.bf16.mxu0 0
      %6654 = vmatpush1.bf16.msra.mxu0 %v6637
      %6655 = vmatprep.subr.bf16.mxu0 0
      %6656 = vmatpush1.bf16.msra.mxu0 %v6638
      %6657 = vmatprep.subr.bf16.mxu0 0
      %6658 = vmatpush1.bf16.msra.mxu0 %v6639
      %6659 = vmatprep.subr.bf16.mxu0 0
      %6660 = vmatpush1.bf16.msra.mxu0 %v6640
      %6661 = vmatprep.subr.bf16.mxu0 0
      %6662 = vmatpush1.bf16.msra.mxu0 %v6641
      %6663 = vmatprep.subr.bf16.mxu0 0
      %6664 = vmatpush1.bf16.msra.mxu0 %v6642
      %6665 = vmatprep.subr.bf16.mxu0 0
      %6666 = vmatpush1.bf16.msra.mxu0 %v6643
      %6667 = vmatprep.subr.bf16.mxu0 0
      %6668 = vmatpush1.bf16.msra.mxu0 %v6644
      %6669 = vmatprep.subr.bf16.mxu0 0
      %6670 = vmatpush1.bf16.msra.mxu0 0
      %6671 = vmatprep.subr.bf16.mxu0 0
      %6672 = vmatpush1.bf16.msra.mxu0 0
      %6673 = vmatprep.subr.bf16.mxu0 0
      %6674 = vmatpush1.bf16.msra.mxu0 0
      %6675 = vmatprep.subr.bf16.mxu0 0
      %6676 = vmatpush1.bf16.msra.mxu0 0
      %6677 = vmatprep.subr.bf16.mxu0 0
      %6678 = vmatpush1.bf16.msra.mxu0 0
      %6679 = vmatprep.subr.bf16.mxu0 0
      %6680 = vmatpush1.bf16.msra.mxu0 0
      %6681 = vmatprep.subr.bf16.mxu0 0
      %6682 = vmatpush1.bf16.msra.mxu0 0
      %6683 = vmatprep.subr.bf16.mxu0 0
      %6684 = vmatpush1.bf16.msra.mxu0 0
      %6685 = vmatprep.mubr.bf16.mxu0 0
      %6686 = vmatmul.mubr.bf16.gmra.mrb[0].mxu0 %v6574
      %v6687 = vpop.f32.mrb[0].mxu0
      %v6688 = vadd.f32 %v6603, %v6687
      %v6689 = vpop.f32.mrb[0].mxu0
      %v6690 = vpop.f32.mrb[0].mxu0
      %v6691 = vadd.f32 %v6603, %v6690
      %v6692 = vpop.f32.mrb[0].mxu0
      %6693 = vmatprep.mubr.bf16.mxu0 0
      %6694 = vmatmul.mubr.bf16.gmra.mrb[0].mxu0 %v6575
      %v6695 = vpop.f32.mrb[0].mxu0
      %v6696 = vadd.f32 %v6603, %v6695
      %v6697 = vpop.f32.mrb[0].mxu0
      %v6698 = vpop.f32.mrb[0].mxu0
      %v6699 = vadd.f32 %v6603, %v6698
      %v6700 = vpop.f32.mrb[0].mxu0
      %6701 = vmatprep.mubr.bf16.mxu0 0
      %6702 = vmatmul.mubr.bf16.gmra.mrb[0].mxu0 %v6576
      %v6703 = vpop.f32.mrb[0].mxu0
      %v6704 = vadd.f32 %v6603, %v6703
      %v6705 = vpop.f32.mrb[0].mxu0
      %v6706 = vpop.f32.mrb[0].mxu0
      %v6707 = vadd.f32 %v6603, %v6706
      %v6708 = vpop.f32.mrb[0].mxu0
      %6709 = vmatprep.mubr.bf16.mxu0 0
      %6710 = vmatmul.mubr.bf16.gmra.mrb[0].mxu0 %v6577
      %v6711 = vpop.f32.mrb[0].mxu0
      %v6712 = vadd.f32 %v6603, %v6711
      %v6713 = vpop.f32.mrb[0].mxu0
      %v6714 = vpop.f32.mrb[0].mxu0
      %v6715 = vadd.f32 %v6603, %v6714
      %v6716 = vpop.f32.mrb[0].mxu0
      %6717 = vmatprep.mubr.bf16.mxu0 0
      %6718 = vmatmul.mubr.bf16.gmra.mrb[0].mxu0 %v6578
      %v6719 = vpop.f32.mrb[0].mxu0
      %v6720 = vadd.f32 %v6603, %v6719
      %v6721 = vpop.f32.mrb[0].mxu0
      %v6722 = vpop.f32.mrb[0].mxu0
      %v6723 = vadd.f32 %v6603, %v6722
      %v6724 = vpop.f32.mrb[0].mxu0
      %6725 = vmatprep.mubr.bf16.mxu0 0
      %6726 = vmatmul.mubr.bf16.gmra.mrb[0].mxu0 %v6579
      %v6727 = vpop.f32.mrb[0].mxu0
      %v6728 = vadd.f32 %v6603, %v6727
      %v6729 = vpop.f32.mrb[0].mxu0
      %v6730 = vpop.f32.mrb[0].mxu0
      %v6731 = vadd.f32 %v6603, %v6730
      %v6732 = vpop.f32.mrb[0].mxu0
      %6733 = vmatprep.mubr.bf16.mxu0 0
      %6734 = vmatmul.mubr.bf16.gmra.mrb[0].mxu0 %v6580
      %v6735 = vpop.f32.mrb[0].mxu0
      %v6736 = vadd.f32 %v6603, %v6735
      %v6737 = vpop.f32.mrb[0].mxu0
      %v6738 = vpop.f32.mrb[0].mxu0
      %v6739 = vadd.f32 %v6603, %v6738
      %v6740 = vpop.f32.mrb[0].mxu0
      %6741 = vmatprep.mubr.bf16.mxu0 0
      %6742 = vmatmul.mubr.bf16.gmra.mrb[0].mxu0 %v6581
      %v6743 = vpop.f32.mrb[0].mxu0
      %v6744 = vadd.f32 %v6603, %v6743
      %v6745 = vpop.f32.mrb[0].mxu0
      %v6746 = vpop.f32.mrb[0].mxu0
      %v6747 = vadd.f32 %v6603, %v6746
      %v6748 = vpop.f32.mrb[0].mxu0
      %6749 = vdwg.mxu0
      %v6750 = vadd.f32 %v6080, %v6688
      %v6751 = vadd.f32 %v6081, %v6691
      %v6752 = vadd.f32 %v6082, %v6696
      %v6753 = vadd.f32 %v6083, %v6699
      %v6754 = vadd.f32 %v6084, %v6704
      %v6755 = vadd.f32 %v6085, %v6707
      %v6756 = vadd.f32 %v6086, %v6712
      %v6757 = vadd.f32 %v6087, %v6715
      %v6758 = vadd.f32 %v6088, %v6720
      %v6759 = vadd.f32 %v6089, %v6723
      %v6760 = vadd.f32 %v6090, %v6728
      %v6761 = vadd.f32 %v6091, %v6731
      %v6762 = vadd.f32 %v6092, %v6736
      %v6763 = vadd.f32 %v6093, %v6739
      %v6764 = vadd.f32 %v6094, %v6744
      %v6765 = vadd.f32 %v6095, %v6747
      %6766 = vst [vmem:[%s413 + $0x80] sm:$0xff] %v6750
      %6767 = vst [vmem:[%s413 + $0x88] sm:$0xff] %v6751
      %6768 = vst [vmem:[%s413 + $0x90] sm:$0xff] %v6752
      %6769 = vst [vmem:[%s413 + $0x98] sm:$0xff] %v6753
      %6770 = vst [vmem:[%s413 + $0xa0] sm:$0xff] %v6754
      %6771 = vst [vmem:[%s413 + $0xa8] sm:$0xff] %v6755
      %6772 = vst [vmem:[%s413 + $0xb0] sm:$0xff] %v6756
      %6773 = vst [vmem:[%s413 + $0xb8] sm:$0xff] %v6757
      %6774 = vst [vmem:[%s413 + $0xc0] sm:$0xff] %v6758
      %6775 = vst [vmem:[%s413 + $0xc8] sm:$0xff] %v6759
      %6776 = vst [vmem:[%s413 + $0xd0] sm:$0xff] %v6760
      %6777 = vst [vmem:[%s413 + $0xd8] sm:$0xff] %v6761
      %6778 = vst [vmem:[%s413 + $0xe0] sm:$0xff] %v6762
      %6779 = vst [vmem:[%s413 + $0xe8] sm:$0xff] %v6763
      %6780 = vst [vmem:[%s413 + $0xf0] sm:$0xff] %v6764
      %6781 = vst [vmem:[%s413 + $0xf8] sm:$0xff] %v6765
      %6782 = vmatprep.subr.bf16.mxu0 0
      %6783 = vmatpush1.bf16.xpose.msra.mxu0 %v2215
      %6784 = vmatprep.subr.bf16.mxu0 0
      %6785 = vmatpush1.bf16.xpose.msra.mxu0 %v2216
      %6786 = vmatprep.subr.bf16.mxu0 0
      %6787 = vmatpush1.bf16.xpose.msra.mxu0 %v2217
      %6788 = vmatprep.subr.bf16.mxu0 0
      %6789 = vmatpush1.bf16.xpose.msra.mxu0 %v2218
      %6790 = vmatprep.subr.bf16.mxu0 0
      %6791 = vmatpush1.bf16.xpose.msra.mxu0 %v2219
      %6792 = vmatprep.subr.bf16.mxu0 0
      %6793 = vmatpush1.bf16.xpose.msra.mxu0 %v2220
      %6794 = vmatprep.subr.bf16.mxu0 0
      %6795 = vmatpush1.bf16.xpose.msra.mxu0 %v2221
      %6796 = vmatprep.subr.bf16.mxu0 0
      %6797 = vmatpush1.bf16.xpose.msra.mxu0 %v2222
      %6798 = vmatprep.subr.bf16.mxu0 0
      %6799 = vmatpush1.bf16.xpose.msra.mxu0 0
      %6800 = vmatprep.subr.bf16.mxu0 0
      %6801 = vmatpush1.bf16.xpose.msra.mxu0 0
      %6802 = vmatprep.subr.bf16.mxu0 0
      %6803 = vmatpush1.bf16.xpose.msra.mxu0 0
      %6804 = vmatprep.subr.bf16.mxu0 0
      %6805 = vmatpush1.bf16.xpose.msra.mxu0 0
      %6806 = vmatprep.subr.bf16.mxu0 0
      %6807 = vmatpush1.bf16.xpose.msra.mxu0 0
      %6808 = vmatprep.subr.bf16.mxu0 0
      %6809 = vmatpush1.bf16.xpose.msra.mxu0 0
      %6810 = vmatprep.subr.bf16.mxu0 0
      %6811 = vmatpush1.bf16.xpose.msra.mxu0 0
      %6812 = vmatprep.subr.bf16.mxu0 0
      %6813 = vmatpush1.bf16.xpose.msra.mxu0 0
      %6814 = vmatprep.mubr.bf16.mxu0 0
      %6815 = vmatmul.mubr.bf16.gmra.mrb[0].mxu0 %v2210
      %v6816 = vpop.f32.mrb[0].mxu0
      %v6817 = vadd.f32 0.0, %v6816
      %v6818 = vpop.f32.mrb[0].mxu0
      %v6819 = vpop.f32.mrb[0].mxu0
      %v6820 = vadd.f32 0.0, %v6819
      %v6821 = vpop.f32.mrb[0].mxu0
      %6822 = vmatprep.mubr.bf16.mxu0 0
      %6823 = vmatmul.mubr.bf16.gmra.mrb[0].mxu0 %v2211
      %v6824 = vpop.f32.mrb[0].mxu0
      %v6825 = vadd.f32 0.0, %v6824
      %v6826 = vpop.f32.mrb[0].mxu0
      %v6827 = vpop.f32.mrb[0].mxu0
      %v6828 = vadd.f32 0.0, %v6827
      %v6829 = vpop.f32.mrb[0].mxu0
      %6830 = vmatprep.mubr.bf16.mxu0 0
      %6831 = vmatmul.mubr.bf16.gmra.mrb[0].mxu0 %v2212
      %v6832 = vpop.f32.mrb[0].mxu0
      %v6833 = vadd.f32 0.0, %v6832
      %v6834 = vpop.f32.mrb[0].mxu0
      %v6835 = vpop.f32.mrb[0].mxu0
      %v6836 = vadd.f32 0.0, %v6835
      %v6837 = vpop.f32.mrb[0].mxu0
      %6838 = vmatprep.mubr.bf16.mxu0 0
      %6839 = vmatmul.mubr.bf16.gmra.mrb[0].mxu0 %v2213
      %v6840 = vpop.f32.mrb[0].mxu0
      %v6841 = vadd.f32 0.0, %v6840
      %v6842 = vpop.f32.mrb[0].mxu0
      %v6843 = vpop.f32.mrb[0].mxu0
      %v6844 = vadd.f32 0.0, %v6843
      %v6845 = vpop.f32.mrb[0].mxu0
      %6846 = vmatprep.mubr.bf16.mxu0 0
      %6847 = vmatmul.mubr.bf16.gmra.mrb[0].mxu0 %v2214
      %v6848 = vpop.f32.mrb[0].mxu0
      %v6849 = vadd.f32 0.0, %v6848
      %v6850 = vpop.f32.mrb[0].mxu0
      %v6851 = vpop.f32.mrb[0].mxu0
      %v6852 = vpop.f32.mrb[0].mxu0
      %6853 = vdwg.mxu0
      %6854 = vmax.xlane.f32.xlu0 %v6817
      %v6855 = vpop.xlane.xlu0 %6854
      %6856 = vmax.xlane.f32.xlu0 %v6820
      %v6857 = vpop.xlane.xlu0 %6856
      %6858 = vmax.xlane.f32.xlu0 %v6825
      %v6859 = vpop.xlane.xlu0 %6858
      %6860 = vmax.xlane.f32.xlu0 %v6828
      %v6861 = vpop.xlane.xlu0 %6860
      %6862 = vmax.xlane.f32.xlu0 %v6833
      %v6863 = vpop.xlane.xlu0 %6862
      %6864 = vmax.xlane.f32.xlu0 %v6836
      %v6865 = vpop.xlane.xlu0 %6864
      %6866 = vmax.xlane.f32.xlu0 %v6841
      %v6867 = vpop.xlane.xlu0 %6866
      %6868 = vmax.xlane.f32.xlu0 %v6844
      %v6869 = vpop.xlane.xlu0 %6868
      %vm6870 = vcmask 1043456
      %v6871 = vsel %vm6870, %v6849, -inf
      %6872 = vmax.xlane.f32.xlu0 %v6871
      %v6873 = vpop.xlane.xlu0 %6872
      %v6874 = vsub.f32 -inf, %v6855
      %v6875 = vsub.f32 -inf, %v6857
      %v6876 = vsub.f32 -inf, %v6859
      %v6877 = vsub.f32 -inf, %v6861
      %v6878 = vsub.f32 -inf, %v6863
      %v6879 = vsub.f32 -inf, %v6865
      %v6880 = vsub.f32 -inf, %v6867
      %v6881 = vsub.f32 -inf, %v6869
      %v6882 = vsub.f32 -inf, %v6873
      %v6883 = vmul.f32 %v6874, 1.442695
      %v6884 = vpow.pop %v6883
      %v6885 = vmul.f32 %v6875, 1.442695
      %v6886 = vpow.pop %v6885
      %v6887 = vmul.f32 %v6876, 1.442695
      %v6888 = vpow.pop %v6887
      %v6889 = vmul.f32 %v6877, 1.442695
      %v6890 = vpow.pop %v6889
      %v6891 = vmul.f32 %v6878, 1.442695
      %v6892 = vpow.pop %v6891
      %v6893 = vmul.f32 %v6879, 1.442695
      %v6894 = vpow.pop %v6893
      %v6895 = vmul.f32 %v6880, 1.442695
      %v6896 = vpow.pop %v6895
      %v6897 = vmul.f32 %v6881, 1.442695
      %v6898 = vpow.pop %v6897
      %v6899 = vmul.f32 %v6882, 1.442695
      %v6900 = vpow.pop %v6899
      %v6901 = vsub.f32 %v6817, %v6855
      %v6902 = vsub.f32 %v6820, %v6857
      %v6903 = vsub.f32 %v6825, %v6859
      %v6904 = vsub.f32 %v6828, %v6861
      %v6905 = vsub.f32 %v6833, %v6863
      %v6906 = vsub.f32 %v6836, %v6865
      %v6907 = vsub.f32 %v6841, %v6867
      %v6908 = vsub.f32 %v6844, %v6869
      %v6909 = vsub.f32 %v6849, %v6873
      %v6910 = vmul.f32 %v6901, 1.442695
      %v6911 = vpow.pop %v6910
      %v6912 = vmul.f32 %v6902, 1.442695
      %v6913 = vpow.pop %v6912
      %v6914 = vmul.f32 %v6903, 1.442695
      %v6915 = vpow.pop %v6914
      %v6916 = vmul.f32 %v6904, 1.442695
      %v6917 = vpow.pop %v6916
      %v6918 = vmul.f32 %v6905, 1.442695
      %v6919 = vpow.pop %v6918
      %v6920 = vmul.f32 %v6906, 1.442695
      %v6921 = vpow.pop %v6920
      %v6922 = vmul.f32 %v6907, 1.442695
      %v6923 = vpow.pop %v6922
      %v6924 = vmul.f32 %v6908, 1.442695
      %v6925 = vpow.pop %v6924
      %v6926 = vmul.f32 %v6909, 1.442695
      %v6927 = vpow.pop %v6926
      %v6928 = vmul.f32 %v6884, 0.0
      %v6929 = vmul.f32 %v6886, 0.0
      %v6930 = vmul.f32 %v6888, 0.0
      %v6931 = vmul.f32 %v6890, 0.0
      %v6932 = vmul.f32 %v6892, 0.0
      %v6933 = vmul.f32 %v6894, 0.0
      %v6934 = vmul.f32 %v6896, 0.0
      %v6935 = vmul.f32 %v6898, 0.0
      %v6936 = vmul.f32 %v6900, 0.0
      %6937 = vadd.xlane.f32.xlu0 %v6911
      %v6938 = vpop.xlane.xlu0 %6937
      %6939 = vadd.xlane.f32.xlu0 %v6913
      %v6940 = vpop.xlane.xlu0 %6939
      %6941 = vadd.xlane.f32.xlu0 %v6915
      %v6942 = vpop.xlane.xlu0 %6941
      %6943 = vadd.xlane.f32.xlu0 %v6917
      %v6944 = vpop.xlane.xlu0 %6943
      %6945 = vadd.xlane.f32.xlu0 %v6919
      %v6946 = vpop.xlane.xlu0 %6945
      %6947 = vadd.xlane.f32.xlu0 %v6921
      %v6948 = vpop.xlane.xlu0 %6947
      %6949 = vadd.xlane.f32.xlu0 %v6923
      %v6950 = vpop.xlane.xlu0 %6949
      %6951 = vadd.xlane.f32.xlu0 %v6925
      %v6952 = vpop.xlane.xlu0 %6951
      %v6953 = vsel %vm6870, %v6927, 0.0
      %6954 = vadd.xlane.f32.xlu0 %v6953
      %v6955 = vpop.xlane.xlu0 %6954
      %v6956 = vadd.f32 %v6928, %v6938
      %v6957 = vadd.f32 %v6929, %v6940
      %v6958 = vadd.f32 %v6930, %v6942
      %v6959 = vadd.f32 %v6931, %v6944
      %v6960 = vadd.f32 %v6932, %v6946
      %v6961 = vadd.f32 %v6933, %v6948
      %v6962 = vadd.f32 %v6934, %v6950
      %v6963 = vadd.f32 %v6935, %v6952
      %v6964 = vadd.f32 %v6936, %v6955
      %v6965 = vpack.c.bf16 %v6913, %v6911
      %v6966 = vpack.c.bf16 %v6917, %v6915
      %v6967 = vpack.c.bf16 %v6921, %v6919
      %v6968 = vpack.c.bf16 %v6925, %v6923
      %v6969 = vpack.c.bf16 %v6927, %v6927
      %6970 = vmatprep.subr.bf16.mxu0 0
      %6971 = vmatpush1.bf16.msra.mxu0 %v2236
      %6972 = vmatprep.subr.bf16.mxu0 0
      %6973 = vmatpush1.bf16.msra.mxu0 %v2237
      %6974 = vmatprep.subr.bf16.mxu0 0
      %6975 = vmatpush1.bf16.msra.mxu0 %v2238
      %6976 = vmatprep.subr.bf16.mxu0 0
      %6977 = vmatpush1.bf16.msra.mxu0 %v2239
      %6978 = vmatprep.subr.bf16.mxu0 0
      %6979 = vmatpush1.bf16.msra.mxu0 %v2240
      %6980 = vmatprep.subr.bf16.mxu0 0
      %6981 = vmatpush1.bf16.msra.mxu0 %v2241
      %6982 = vmatprep.subr.bf16.mxu0 0
      %6983 = vmatpush1.bf16.msra.mxu0 %v2242
      %6984 = vmatprep.subr.bf16.mxu0 0
      %6985 = vmatpush1.bf16.msra.mxu0 %v2243
      %6986 = vmatprep.subr.bf16.mxu0 0
      %6987 = vmatpush1.bf16.msra.mxu0 0
      %6988 = vmatprep.subr.bf16.mxu0 0
      %6989 = vmatpush1.bf16.msra.mxu0 0
      %6990 = vmatprep.subr.bf16.mxu0 0
      %6991 = vmatpush1.bf16.msra.mxu0 0
      %6992 = vmatprep.subr.bf16.mxu0 0
      %6993 = vmatpush1.bf16.msra.mxu0 0
      %6994 = vmatprep.subr.bf16.mxu0 0
      %6995 = vmatpush1.bf16.msra.mxu0 0
      %6996 = vmatprep.subr.bf16.mxu0 0
      %6997 = vmatpush1.bf16.msra.mxu0 0
      %6998 = vmatprep.subr.bf16.mxu0 0
      %6999 = vmatpush1.bf16.msra.mxu0 0
      %7000 = vmatprep.subr.bf16.mxu0 0
      %7001 = vmatpush1.bf16.msra.mxu0 0
      %7002 = vmatprep.mubr.bf16.mxu0 0
      %7003 = vmatmul.mubr.bf16.gmra.mrb[0].mxu0 %v6965
      %v7004 = vpop.f32.mrb[0].mxu0
      %v7005 = vadd.f32 0.0, %v7004
      %v7006 = vpop.f32.mrb[0].mxu0
      %v7007 = vpop.f32.mrb[0].mxu0
      %v7008 = vadd.f32 0.0, %v7007
      %v7009 = vpop.f32.mrb[0].mxu0
      %7010 = vmatprep.mubr.bf16.mxu0 0
      %7011 = vmatmul.mubr.bf16.gmra.mrb[0].mxu0 %v6966
      %v7012 = vpop.f32.mrb[0].mxu0
      %v7013 = vadd.f32 0.0, %v7012
      %v7014 = vpop.f32.mrb[0].mxu0
      %v7015 = vpop.f32.mrb[0].mxu0
      %v7016 = vadd.f32 0.0, %v7015
      %v7017 = vpop.f32.mrb[0].mxu0
      %7018 = vmatprep.mubr.bf16.mxu0 0
      %7019 = vmatmul.mubr.bf16.gmra.mrb[0].mxu0 %v6967
      %v7020 = vpop.f32.mrb[0].mxu0
      %v7021 = vadd.f32 0.0, %v7020
      %v7022 = vpop.f32.mrb[0].mxu0
      %v7023 = vpop.f32.mrb[0].mxu0
      %v7024 = vadd.f32 0.0, %v7023
      %v7025 = vpop.f32.mrb[0].mxu0
      %7026 = vmatprep.mubr.bf16.mxu0 0
      %7027 = vmatmul.mubr.bf16.gmra.mrb[0].mxu0 %v6968
      %v7028 = vpop.f32.mrb[0].mxu0
      %v7029 = vadd.f32 0.0, %v7028
      %v7030 = vpop.f32.mrb[0].mxu0
      %v7031 = vpop.f32.mrb[0].mxu0
      %v7032 = vadd.f32 0.0, %v7031
      %v7033 = vpop.f32.mrb[0].mxu0
      %7034 = vmatprep.mubr.bf16.mxu0 0
      %7035 = vmatmul.mubr.bf16.gmra.mrb[0].mxu0 %v6969
      %v7036 = vpop.f32.mrb[0].mxu0
      %v7037 = vadd.f32 0.0, %v7036
      %v7038 = vpop.f32.mrb[0].mxu0
      %v7039 = vpop.f32.mrb[0].mxu0
      %v7040 = vpop.f32.mrb[0].mxu0
      %7041 = vdwg.mxu0
      %v7042 = vadd.f32 %v6928, %v7005
      %v7043 = vadd.f32 %v6929, %v7008
      %v7044 = vadd.f32 %v6930, %v7013
      %v7045 = vadd.f32 %v6931, %v7016
      %v7046 = vadd.f32 %v6932, %v7021
      %v7047 = vadd.f32 %v6933, %v7024
      %v7048 = vadd.f32 %v6934, %v7029
      %v7049 = vadd.f32 %v6935, %v7032
      %v7050 = vadd.f32 %v6936, %v7037
      %7051 = vmatprep.subr.bf16.mxu0 0
      %7052 = vmatpush1.bf16.xpose.msra.mxu0 %v2223
      %7053 = vmatprep.subr.bf16.mxu0 0
      %7054 = vmatpush1.bf16.xpose.msra.mxu0 %v2224
      %7055 = vmatprep.subr.bf16.mxu0 0
      %7056 = vmatpush1.bf16.xpose.msra.mxu0 %v2225
      %7057 = vmatprep.subr.bf16.mxu0 0
      %7058 = vmatpush1.bf16.xpose.msra.mxu0 %v2226
      %7059 = vmatprep.subr.bf16.mxu0 0
      %7060 = vmatpush1.bf16.xpose.msra.mxu0 %v2227
      %7061 = vmatprep.subr.bf16.mxu0 0
      %7062 = vmatpush1.bf16.xpose.msra.mxu0 %v2228
      %7063 = vmatprep.subr.bf16.mxu0 0
      %7064 = vmatpush1.bf16.xpose.msra.mxu0 %v2229
      %7065 = vmatprep.subr.bf16.mxu0 0
      %7066 = vmatpush1.bf16.xpose.msra.mxu0 %v2230
      %7067 = vmatprep.subr.bf16.mxu0 0
      %7068 = vmatpush1.bf16.xpose.msra.mxu0 0
      %7069 = vmatprep.subr.bf16.mxu0 0
      %7070 = vmatpush1.bf16.xpose.msra.mxu0 0
      %7071 = vmatprep.subr.bf16.mxu0 0
      %7072 = vmatpush1.bf16.xpose.msra.mxu0 0
      %7073 = vmatprep.subr.bf16.mxu0 0
      %7074 = vmatpush1.bf16.xpose.msra.mxu0 0
      %7075 = vmatprep.subr.bf16.mxu0 0
      %7076 = vmatpush1.bf16.xpose.msra.mxu0 0
      %7077 = vmatprep.subr.bf16.mxu0 0
      %7078 = vmatpush1.bf16.xpose.msra.mxu0 0
      %7079 = vmatprep.subr.bf16.mxu0 0
      %7080 = vmatpush1.bf16.xpose.msra.mxu0 0
      %7081 = vmatprep.subr.bf16.mxu0 0
      %7082 = vmatpush1.bf16.xpose.msra.mxu0 0
      %7083 = vmatprep.mubr.bf16.mxu0 0
      %7084 = vmatmul.mubr.bf16.gmra.mrb[0].mxu0 %v2210
      %v7085 = vpop.f32.mrb[0].mxu0
      %v7086 = vadd.f32 0.0, %v7085
      %v7087 = vpop.f32.mrb[0].mxu0
      %v7088 = vpop.f32.mrb[0].mxu0
      %v7089 = vadd.f32 0.0, %v7088
      %v7090 = vpop.f32.mrb[0].mxu0
      %7091 = vmatprep.mubr.bf16.mxu0 0
      %7092 = vmatmul.mubr.bf16.gmra.mrb[0].mxu0 %v2211
      %v7093 = vpop.f32.mrb[0].mxu0
      %v7094 = vadd.f32 0.0, %v7093
      %v7095 = vpop.f32.mrb[0].mxu0
      %v7096 = vpop.f32.mrb[0].mxu0
      %v7097 = vadd.f32 0.0, %v7096
      %v7098 = vpop.f32.mrb[0].mxu0
      %7099 = vmatprep.mubr.bf16.mxu0 0
      %7100 = vmatmul.mubr.bf16.gmra.mrb[0].mxu0 %v2212
      %v7101 = vpop.f32.mrb[0].mxu0
      %v7102 = vadd.f32 0.0, %v7101
      %v7103 = vpop.f32.mrb[0].mxu0
      %v7104 = vpop.f32.mrb[0].mxu0
      %v7105 = vadd.f32 0.0, %v7104
      %v7106 = vpop.f32.mrb[0].mxu0
      %7107 = vmatprep.mubr.bf16.mxu0 0
      %7108 = vmatmul.mubr.bf16.gmra.mrb[0].mxu0 %v2213
      %v7109 = vpop.f32.mrb[0].mxu0
      %v7110 = vadd.f32 0.0, %v7109
      %v7111 = vpop.f32.mrb[0].mxu0
      %v7112 = vpop.f32.mrb[0].mxu0
      %v7113 = vadd.f32 0.0, %v7112
      %v7114 = vpop.f32.mrb[0].mxu0
      %7115 = vmatprep.mubr.bf16.mxu0 0
      %7116 = vmatmul.mubr.bf16.gmra.mrb[0].mxu0 %v2214
      %v7117 = vpop.f32.mrb[0].mxu0
      %v7118 = vadd.f32 0.0, %v7117
      %v7119 = vpop.f32.mrb[0].mxu0
      %v7120 = vpop.f32.mrb[0].mxu0
      %v7121 = vpop.f32.mrb[0].mxu0
      %7122 = vdwg.mxu0
      %7123 = vmax.xlane.f32.xlu0 %v7086
      %v7124 = vpop.xlane.xlu0 %7123
      %7125 = vmax.xlane.f32.xlu0 %v7089
      %v7126 = vpop.xlane.xlu0 %7125
      %7127 = vmax.xlane.f32.xlu0 %v7094
      %v7128 = vpop.xlane.xlu0 %7127
      %7129 = vmax.xlane.f32.xlu0 %v7097
      %v7130 = vpop.xlane.xlu0 %7129
      %7131 = vmax.xlane.f32.xlu0 %v7102
      %v7132 = vpop.xlane.xlu0 %7131
      %7133 = vmax.xlane.f32.xlu0 %v7105
      %v7134 = vpop.xlane.xlu0 %7133
      %7135 = vmax.xlane.f32.xlu0 %v7110
      %v7136 = vpop.xlane.xlu0 %7135
      %7137 = vmax.xlane.f32.xlu0 %v7113
      %v7138 = vpop.xlane.xlu0 %7137
      %v7139 = vsel %vm6870, %v7118, -inf
      %7140 = vmax.xlane.f32.xlu0 %v7139
      %v7141 = vpop.xlane.xlu0 %7140
      %v7142 = vmax.f32 %v6855, %v7124
      %v7143 = vmax.f32 %v6857, %v7126
      %v7144 = vmax.f32 %v6859, %v7128
      %v7145 = vmax.f32 %v6861, %v7130
      %v7146 = vmax.f32 %v6863, %v7132
      %v7147 = vmax.f32 %v6865, %v7134
      %v7148 = vmax.f32 %v6867, %v7136
      %v7149 = vmax.f32 %v6869, %v7138
      %v7150 = vmax.f32 %v6873, %v7141
      %v7151 = vsub.f32 %v6855, %v7142
      %v7152 = vsub.f32 %v6857, %v7143
      %v7153 = vsub.f32 %v6859, %v7144
      %v7154 = vsub.f32 %v6861, %v7145
      %v7155 = vsub.f32 %v6863, %v7146
      %v7156 = vsub.f32 %v6865, %v7147
      %v7157 = vsub.f32 %v6867, %v7148
      %v7158 = vsub.f32 %v6869, %v7149
      %v7159 = vsub.f32 %v6873, %v7150
      %v7160 = vmul.f32 %v7151, 1.442695
      %v7161 = vpow.pop %v7160
      %v7162 = vmul.f32 %v7152, 1.442695
      %v7163 = vpow.pop %v7162
      %v7164 = vmul.f32 %v7153, 1.442695
      %v7165 = vpow.pop %v7164
      %v7166 = vmul.f32 %v7154, 1.442695
      %v7167 = vpow.pop %v7166
      %v7168 = vmul.f32 %v7155, 1.442695
      %v7169 = vpow.pop %v7168
      %v7170 = vmul.f32 %v7156, 1.442695
      %v7171 = vpow.pop %v7170
      %v7172 = vmul.f32 %v7157, 1.442695
      %v7173 = vpow.pop %v7172
      %v7174 = vmul.f32 %v7158, 1.442695
      %v7175 = vpow.pop %v7174
      %v7176 = vmul.f32 %v7159, 1.442695
      %v7177 = vpow.pop %v7176
      %v7178 = vsub.f32 %v7086, %v7142
      %v7179 = vsub.f32 %v7089, %v7143
      %v7180 = vsub.f32 %v7094, %v7144
      %v7181 = vsub.f32 %v7097, %v7145
      %v7182 = vsub.f32 %v7102, %v7146
      %v7183 = vsub.f32 %v7105, %v7147
      %v7184 = vsub.f32 %v7110, %v7148
      %v7185 = vsub.f32 %v7113, %v7149
      %v7186 = vsub.f32 %v7118, %v7150
      %v7187 = vmul.f32 %v7178, 1.442695
      %v7188 = vpow.pop %v7187
      %v7189 = vmul.f32 %v7179, 1.442695
      %v7190 = vpow.pop %v7189
      %v7191 = vmul.f32 %v7180, 1.442695
      %v7192 = vpow.pop %v7191
      %v7193 = vmul.f32 %v7181, 1.442695
      %v7194 = vpow.pop %v7193
      %v7195 = vmul.f32 %v7182, 1.442695
      %v7196 = vpow.pop %v7195
      %v7197 = vmul.f32 %v7183, 1.442695
      %v7198 = vpow.pop %v7197
      %v7199 = vmul.f32 %v7184, 1.442695
      %v7200 = vpow.pop %v7199
      %v7201 = vmul.f32 %v7185, 1.442695
      %v7202 = vpow.pop %v7201
      %v7203 = vmul.f32 %v7186, 1.442695
      %v7204 = vpow.pop %v7203
      %v7205 = vmul.f32 %v7161, %v6956
      %v7206 = vmul.f32 %v7163, %v6957
      %v7207 = vmul.f32 %v7165, %v6958
      %v7208 = vmul.f32 %v7167, %v6959
      %v7209 = vmul.f32 %v7169, %v6960
      %v7210 = vmul.f32 %v7171, %v6961
      %v7211 = vmul.f32 %v7173, %v6962
      %v7212 = vmul.f32 %v7175, %v6963
      %v7213 = vmul.f32 %v7177, %v6964
      %7214 = vadd.xlane.f32.xlu0 %v7188
      %v7215 = vpop.xlane.xlu0 %7214
      %7216 = vadd.xlane.f32.xlu0 %v7190
      %v7217 = vpop.xlane.xlu0 %7216
      %7218 = vadd.xlane.f32.xlu0 %v7192
      %v7219 = vpop.xlane.xlu0 %7218
      %7220 = vadd.xlane.f32.xlu0 %v7194
      %v7221 = vpop.xlane.xlu0 %7220
      %7222 = vadd.xlane.f32.xlu0 %v7196
      %v7223 = vpop.xlane.xlu0 %7222
      %7224 = vadd.xlane.f32.xlu0 %v7198
      %v7225 = vpop.xlane.xlu0 %7224
      %7226 = vadd.xlane.f32.xlu0 %v7200
      %v7227 = vpop.xlane.xlu0 %7226
      %7228 = vadd.xlane.f32.xlu0 %v7202
      %v7229 = vpop.xlane.xlu0 %7228
      %v7230 = vsel %vm6870, %v7204, 0.0
      %7231 = vadd.xlane.f32.xlu0 %v7230
      %v7232 = vpop.xlane.xlu0 %7231
      %v7233 = vadd.f32 %v7205, %v7215
      %v7234 = vadd.f32 %v7206, %v7217
      %v7235 = vadd.f32 %v7207, %v7219
      %v7236 = vadd.f32 %v7208, %v7221
      %v7237 = vadd.f32 %v7209, %v7223
      %v7238 = vadd.f32 %v7210, %v7225
      %v7239 = vadd.f32 %v7211, %v7227
      %v7240 = vadd.f32 %v7212, %v7229
      %v7241 = vadd.f32 %v7213, %v7232
      %v7242 = vmul.f32 %v7161, %v7042
      %v7243 = vmul.f32 %v7163, %v7043
      %v7244 = vmul.f32 %v7165, %v7044
      %v7245 = vmul.f32 %v7167, %v7045
      %v7246 = vmul.f32 %v7169, %v7046
      %v7247 = vmul.f32 %v7171, %v7047
      %v7248 = vmul.f32 %v7173, %v7048
      %v7249 = vmul.f32 %v7175, %v7049
      %v7250 = vmul.f32 %v7177, %v7050
      %v7251 = vpack.c.bf16 %v7190, %v7188
      %v7252 = vpack.c.bf16 %v7194, %v7192
      %v7253 = vpack.c.bf16 %v7198, %v7196
      %v7254 = vpack.c.bf16 %v7202, %v7200
      %v7255 = vpack.c.bf16 %v7204, %v7204
      %7256 = vmatprep.subr.bf16.mxu0 0
      %7257 = vmatpush1.bf16.msra.mxu0 %v2244
      %7258 = vmatprep.subr.bf16.mxu0 0
      %7259 = vmatpush1.bf16.msra.mxu0 %v2245
      %7260 = vmatprep.subr.bf16.mxu0 0
      %7261 = vmatpush1.bf16.msra.mxu0 %v2246
      %7262 = vmatprep.subr.bf16.mxu0 0
      %7263 = vmatpush1.bf16.msra.mxu0 %v2247
      %7264 = vmatprep.subr.bf16.mxu0 0
      %7265 = vmatpush1.bf16.msra.mxu0 %v2248
      %7266 = vmatprep.subr.bf16.mxu0 0
      %7267 = vmatpush1.bf16.msra.mxu0 %v2249
      %7268 = vmatprep.subr.bf16.mxu0 0
      %7269 = vmatpush1.bf16.msra.mxu0 %v2250
      %7270 = vmatprep.subr.bf16.mxu0 0
      %7271 = vmatpush1.bf16.msra.mxu0 %v2251
      %7272 = vmatprep.subr.bf16.mxu0 0
      %7273 = vmatpush1.bf16.msra.mxu0 0
      %7274 = vmatprep.subr.bf16.mxu0 0
      %7275 = vmatpush1.bf16.msra.mxu0 0
      %7276 = vmatprep.subr.bf16.mxu0 0
      %7277 = vmatpush1.bf16.msra.mxu0 0
      %7278 = vmatprep.subr.bf16.mxu0 0
      %7279 = vmatpush1.bf16.msra.mxu0 0
      %7280 = vmatprep.subr.bf16.mxu0 0
      %7281 = vmatpush1.bf16.msra.mxu0 0
      %7282 = vmatprep.subr.bf16.mxu0 0
      %7283 = vmatpush1.bf16.msra.mxu0 0
      %7284 = vmatprep.subr.bf16.mxu0 0
      %7285 = vmatpush1.bf16.msra.mxu0 0
      %7286 = vmatprep.subr.bf16.mxu0 0
      %7287 = vmatpush1.bf16.msra.mxu0 0
      %7288 = vmatprep.mubr.bf16.mxu0 0
      %7289 = vmatmul.mubr.bf16.gmra.mrb[0].mxu0 %v7251
      %v7290 = vpop.f32.mrb[0].mxu0
      %v7291 = vadd.f32 0.0, %v7290
      %v7292 = vpop.f32.mrb[0].mxu0
      %v7293 = vpop.f32.mrb[0].mxu0
      %v7294 = vadd.f32 0.0, %v7293
      %v7295 = vpop.f32.mrb[0].mxu0
      %7296 = vmatprep.mubr.bf16.mxu0 0
      %7297 = vmatmul.mubr.bf16.gmra.mrb[0].mxu0 %v7252
      %v7298 = vpop.f32.mrb[0].mxu0
      %v7299 = vadd.f32 0.0, %v7298
      %v7300 = vpop.f32.mrb[0].mxu0
      %v7301 = vpop.f32.mrb[0].mxu0
      %v7302 = vadd.f32 0.0, %v7301
      %v7303 = vpop.f32.mrb[0].mxu0
      %7304 = vmatprep.mubr.bf16.mxu0 0
      %7305 = vmatmul.mubr.bf16.gmra.mrb[0].mxu0 %v7253
      %v7306 = vpop.f32.mrb[0].mxu0
      %v7307 = vadd.f32 0.0, %v7306
      %v7308 = vpop.f32.mrb[0].mxu0
      %v7309 = vpop.f32.mrb[0].mxu0
      %v7310 = vadd.f32 0.0, %v7309
      %v7311 = vpop.f32.mrb[0].mxu0
      %7312 = vmatprep.mubr.bf16.mxu0 0
      %7313 = vmatmul.mubr.bf16.gmra.mrb[0].mxu0 %v7254
      %v7314 = vpop.f32.mrb[0].mxu0
      %v7315 = vadd.f32 0.0, %v7314
      %v7316 = vpop.f32.mrb[0].mxu0
      %v7317 = vpop.f32.mrb[0].mxu0
      %v7318 = vadd.f32 0.0, %v7317
      %v7319 = vpop.f32.mrb[0].mxu0
      %7320 = vmatprep.mubr.bf16.mxu0 0
      %7321 = vmatmul.mubr.bf16.gmra.mrb[0].mxu0 %v7255
      %v7322 = vpop.f32.mrb[0].mxu0
      %v7323 = vadd.f32 0.0, %v7322
      %v7324 = vpop.f32.mrb[0].mxu0
      %v7325 = vpop.f32.mrb[0].mxu0
      %v7326 = vpop.f32.mrb[0].mxu0
      %7327 = vdwg.mxu0
      %v7328 = vadd.f32 %v7242, %v7291
      %v7329 = vadd.f32 %v7243, %v7294
      %v7330 = vadd.f32 %v7244, %v7299
      %v7331 = vadd.f32 %v7245, %v7302
      %v7332 = vadd.f32 %v7246, %v7307
      %v7333 = vadd.f32 %v7247, %v7310
      %v7334 = vadd.f32 %v7248, %v7315
      %v7335 = vadd.f32 %v7249, %v7318
      %v7336 = vadd.f32 %v7250, %v7323
      %7337 = vmatprep.subr.bf16.mxu0 0
      %7338 = vmatpush1.bf16.xpose.msra.mxu0 %v2231
      %7339 = vmatprep.subr.bf16.mxu0 0
      %7340 = vmatpush1.bf16.xpose.msra.mxu0 %v2232
      %7341 = vmatprep.subr.bf16.mxu0 0
      %7342 = vmatpush1.bf16.xpose.msra.mxu0 %v2233
      %7343 = vmatprep.subr.bf16.mxu0 0
      %7344 = vmatpush1.bf16.xpose.msra.mxu0 %v2234
      %7345 = vmatprep.subr.bf16.mxu0 0
      %7346 = vmatpush1.bf16.xpose.msra.mxu0 %v2235
      %7347 = vmatprep.subr.bf16.mxu0 0
      %7348 = vmatpush1.bf16.xpose.msra.mxu0 0
      %7349 = vmatprep.subr.bf16.mxu0 0
      %7350 = vmatpush1.bf16.xpose.msra.mxu0 0
      %7351 = vmatprep.subr.bf16.mxu0 0
      %7352 = vmatpush1.bf16.xpose.msra.mxu0 0
      %7353 = vmatprep.subr.bf16.mxu0 0
      %7354 = vmatpush1.bf16.xpose.msra.mxu0 0
      %7355 = vmatprep.subr.bf16.mxu0 0
      %7356 = vmatpush1.bf16.xpose.msra.mxu0 0
      %7357 = vmatprep.subr.bf16.mxu0 0
      %7358 = vmatpush1.bf16.xpose.msra.mxu0 0
      %7359 = vmatprep.subr.bf16.mxu0 0
      %7360 = vmatpush1.bf16.xpose.msra.mxu0 0
      %7361 = vmatprep.subr.bf16.mxu0 0
      %7362 = vmatpush1.bf16.xpose.msra.mxu0 0
      %7363 = vmatprep.subr.bf16.mxu0 0
      %7364 = vmatpush1.bf16.xpose.msra.mxu0 0
      %7365 = vmatprep.subr.bf16.mxu0 0
      %7366 = vmatpush1.bf16.xpose.msra.mxu0 0
      %7367 = vmatprep.subr.bf16.mxu0 0
      %7368 = vmatpush1.bf16.xpose.msra.mxu0 0
      %7369 = vmatprep.mubr.bf16.mxu0 0
      %7370 = vmatmul.mubr.bf16.gmra.mrb[0].mxu0 %v2210
      %v7371 = vpop.f32.mrb[0].mxu0
      %v7372 = vadd.f32 0.0, %v7371
      %v7373 = vpop.f32.mrb[0].mxu0
      %v7374 = vpop.f32.mrb[0].mxu0
      %v7375 = vadd.f32 0.0, %v7374
      %v7376 = vpop.f32.mrb[0].mxu0
      %7377 = vmatprep.mubr.bf16.mxu0 0
      %7378 = vmatmul.mubr.bf16.gmra.mrb[0].mxu0 %v2211
      %v7379 = vpop.f32.mrb[0].mxu0
      %v7380 = vadd.f32 0.0, %v7379
      %v7381 = vpop.f32.mrb[0].mxu0
      %v7382 = vpop.f32.mrb[0].mxu0
      %v7383 = vadd.f32 0.0, %v7382
      %v7384 = vpop.f32.mrb[0].mxu0
      %7385 = vmatprep.mubr.bf16.mxu0 0
      %7386 = vmatmul.mubr.bf16.gmra.mrb[0].mxu0 %v2212
      %v7387 = vpop.f32.mrb[0].mxu0
      %v7388 = vadd.f32 0.0, %v7387
      %v7389 = vpop.f32.mrb[0].mxu0
      %v7390 = vpop.f32.mrb[0].mxu0
      %v7391 = vadd.f32 0.0, %v7390
      %v7392 = vpop.f32.mrb[0].mxu0
      %7393 = vmatprep.mubr.bf16.mxu0 0
      %7394 = vmatmul.mubr.bf16.gmra.mrb[0].mxu0 %v2213
      %v7395 = vpop.f32.mrb[0].mxu0
      %v7396 = vadd.f32 0.0, %v7395
      %v7397 = vpop.f32.mrb[0].mxu0
      %v7398 = vpop.f32.mrb[0].mxu0
      %v7399 = vadd.f32 0.0, %v7398
      %v7400 = vpop.f32.mrb[0].mxu0
      %7401 = vmatprep.mubr.bf16.mxu0 0
      %7402 = vmatmul.mubr.bf16.gmra.mrb[0].mxu0 %v2214
      %v7403 = vpop.f32.mrb[0].mxu0
      %v7404 = vadd.f32 0.0, %v7403
      %v7405 = vpop.f32.mrb[0].mxu0
      %v7406 = vpop.f32.mrb[0].mxu0
      %v7407 = vpop.f32.mrb[0].mxu0
      %7408 = vdwg.mxu0
      %v7409 = vsel %vm3206, %v7372, -inf
      %7410 = vmax.xlane.f32.xlu0 %v7409
      %v7411 = vpop.xlane.xlu0 %7410
      %v7412 = vsel %vm3206, %v7375, -inf
      %7413 = vmax.xlane.f32.xlu0 %v7412
      %v7414 = vpop.xlane.xlu0 %7413
      %v7415 = vsel %vm3206, %v7380, -inf
      %7416 = vmax.xlane.f32.xlu0 %v7415
      %v7417 = vpop.xlane.xlu0 %7416
      %v7418 = vsel %vm3206, %v7383, -inf
      %7419 = vmax.xlane.f32.xlu0 %v7418
      %v7420 = vpop.xlane.xlu0 %7419
      %v7421 = vsel %vm3206, %v7388, -inf
      %7422 = vmax.xlane.f32.xlu0 %v7421
      %v7423 = vpop.xlane.xlu0 %7422
      %v7424 = vsel %vm3206, %v7391, -inf
      %7425 = vmax.xlane.f32.xlu0 %v7424
      %v7426 = vpop.xlane.xlu0 %7425
      %v7427 = vsel %vm3206, %v7396, -inf
      %7428 = vmax.xlane.f32.xlu0 %v7427
      %v7429 = vpop.xlane.xlu0 %7428
      %v7430 = vsel %vm3206, %v7399, -inf
      %7431 = vmax.xlane.f32.xlu0 %v7430
      %v7432 = vpop.xlane.xlu0 %7431
      %vm7433 = vcmask 551936
      %v7434 = vsel %vm7433, %v7404, -inf
      %7435 = vmax.xlane.f32.xlu0 %v7434
      %v7436 = vpop.xlane.xlu0 %7435
      %v7437 = vmax.f32 %v7142, %v7411
      %v7438 = vmax.f32 %v7143, %v7414
      %v7439 = vmax.f32 %v7144, %v7417
      %v7440 = vmax.f32 %v7145, %v7420
      %v7441 = vmax.f32 %v7146, %v7423
      %v7442 = vmax.f32 %v7147, %v7426
      %v7443 = vmax.f32 %v7148, %v7429
      %v7444 = vmax.f32 %v7149, %v7432
      %v7445 = vmax.f32 %v7150, %v7436
      %v7446 = vsub.f32 %v7142, %v7437
      %v7447 = vsub.f32 %v7143, %v7438
      %v7448 = vsub.f32 %v7144, %v7439
      %v7449 = vsub.f32 %v7145, %v7440
      %v7450 = vsub.f32 %v7146, %v7441
      %v7451 = vsub.f32 %v7147, %v7442
      %v7452 = vsub.f32 %v7148, %v7443
      %v7453 = vsub.f32 %v7149, %v7444
      %v7454 = vsub.f32 %v7150, %v7445
      %v7455 = vmul.f32 %v7446, 1.442695
      %v7456 = vpow.pop %v7455
      %v7457 = vmul.f32 %v7447, 1.442695
      %v7458 = vpow.pop %v7457
      %v7459 = vmul.f32 %v7448, 1.442695
      %v7460 = vpow.pop %v7459
      %v7461 = vmul.f32 %v7449, 1.442695
      %v7462 = vpow.pop %v7461
      %v7463 = vmul.f32 %v7450, 1.442695
      %v7464 = vpow.pop %v7463
      %v7465 = vmul.f32 %v7451, 1.442695
      %v7466 = vpow.pop %v7465
      %v7467 = vmul.f32 %v7452, 1.442695
      %v7468 = vpow.pop %v7467
      %v7469 = vmul.f32 %v7453, 1.442695
      %v7470 = vpow.pop %v7469
      %v7471 = vmul.f32 %v7454, 1.442695
      %v7472 = vpow.pop %v7471
      %v7473 = vsub.f32 %v7372, %v7437
      %v7474 = vsub.f32 %v7375, %v7438
      %v7475 = vsub.f32 %v7380, %v7439
      %v7476 = vsub.f32 %v7383, %v7440
      %v7477 = vsub.f32 %v7388, %v7441
      %v7478 = vsub.f32 %v7391, %v7442
      %v7479 = vsub.f32 %v7396, %v7443
      %v7480 = vsub.f32 %v7399, %v7444
      %v7481 = vsub.f32 %v7404, %v7445
      %v7482 = vmul.f32 %v7473, 1.442695
      %v7483 = vpow.pop %v7482
      %v7484 = vmul.f32 %v7474, 1.442695
      %v7485 = vpow.pop %v7484
      %v7486 = vmul.f32 %v7475, 1.442695
      %v7487 = vpow.pop %v7486
      %v7488 = vmul.f32 %v7476, 1.442695
      %v7489 = vpow.pop %v7488
      %v7490 = vmul.f32 %v7477, 1.442695
      %v7491 = vpow.pop %v7490
      %v7492 = vmul.f32 %v7478, 1.442695
      %v7493 = vpow.pop %v7492
      %v7494 = vmul.f32 %v7479, 1.442695
      %v7495 = vpow.pop %v7494
      %v7496 = vmul.f32 %v7480, 1.442695
      %v7497 = vpow.pop %v7496
      %v7498 = vmul.f32 %v7481, 1.442695
      %v7499 = vpow.pop %v7498
      %v7500 = vmul.f32 %v7456, %v7233
      %v7501 = vmul.f32 %v7458, %v7234
      %v7502 = vmul.f32 %v7460, %v7235
      %v7503 = vmul.f32 %v7462, %v7236
      %v7504 = vmul.f32 %v7464, %v7237
      %v7505 = vmul.f32 %v7466, %v7238
      %v7506 = vmul.f32 %v7468, %v7239
      %v7507 = vmul.f32 %v7470, %v7240
      %v7508 = vmul.f32 %v7472, %v7241
      %v7509 = vsel %vm3206, %v7483, 0.0
      %7510 = vadd.xlane.f32.xlu0 %v7509
      %v7511 = vpop.xlane.xlu0 %7510
      %v7512 = vsel %vm3206, %v7485, 0.0
      %7513 = vadd.xlane.f32.xlu0 %v7512
      %v7514 = vpop.xlane.xlu0 %7513
      %v7515 = vsel %vm3206, %v7487, 0.0
      %7516 = vadd.xlane.f32.xlu0 %v7515
      %v7517 = vpop.xlane.xlu0 %7516
      %v7518 = vsel %vm3206, %v7489, 0.0
      %7519 = vadd.xlane.f32.xlu0 %v7518
      %v7520 = vpop.xlane.xlu0 %7519
      %v7521 = vsel %vm3206, %v7491, 0.0
      %7522 = vadd.xlane.f32.xlu0 %v7521
      %v7523 = vpop.xlane.xlu0 %7522
      %v7524 = vsel %vm3206, %v7493, 0.0
      %7525 = vadd.xlane.f32.xlu0 %v7524
      %v7526 = vpop.xlane.xlu0 %7525
      %v7527 = vsel %vm3206, %v7495, 0.0
      %7528 = vadd.xlane.f32.xlu0 %v7527
      %v7529 = vpop.xlane.xlu0 %7528
      %v7530 = vsel %vm3206, %v7497, 0.0
      %7531 = vadd.xlane.f32.xlu0 %v7530
      %v7532 = vpop.xlane.xlu0 %7531
      %v7533 = vsel %vm7433, %v7499, 0.0
      %7534 = vadd.xlane.f32.xlu0 %v7533
      %v7535 = vpop.xlane.xlu0 %7534
      %v7536 = vadd.f32 %v7500, %v7511
      %v7537 = vadd.f32 %v7501, %v7514
      %v7538 = vadd.f32 %v7502, %v7517
      %v7539 = vadd.f32 %v7503, %v7520
      %v7540 = vadd.f32 %v7504, %v7523
      %v7541 = vadd.f32 %v7505, %v7526
      %v7542 = vadd.f32 %v7506, %v7529
      %v7543 = vadd.f32 %v7507, %v7532
      %v7544 = vadd.f32 %v7508, %v7535
      %v7545 = vmul.f32 %v7456, %v7328
      %v7546 = vmul.f32 %v7458, %v7329
      %v7547 = vmul.f32 %v7460, %v7330
      %v7548 = vmul.f32 %v7462, %v7331
      %v7549 = vmul.f32 %v7464, %v7332
      %v7550 = vmul.f32 %v7466, %v7333
      %v7551 = vmul.f32 %v7468, %v7334
      %v7552 = vmul.f32 %v7470, %v7335
      %v7553 = vmul.f32 %v7472, %v7336
      %v7554 = vpack.c.bf16 %v7485, %v7483
      %v7555 = vpack.c.bf16 %v7489, %v7487
      %v7556 = vpack.c.bf16 %v7493, %v7491
      %v7557 = vpack.c.bf16 %v7497, %v7495
      %v7558 = vpack.c.bf16 %v7499, %v7499
      %v7560 = vsel %vm3206, %v7554, 0
      %v7563 = vsel %vm3206, %v7555, 0
      %v7566 = vsel %vm3206, %v7556, 0
      %v7569 = vsel %vm3206, %v7557, 0
      %v7572 = vsel %vm3206, %v7558, 0
      %7574 = vmatprep.subr.bf16.mxu0 0
      %7575 = vmatpush1.bf16.msra.mxu0 %v2252
      %7576 = vmatprep.subr.bf16.mxu0 0
      %7577 = vmatpush1.bf16.msra.mxu0 %v2253
      %7578 = vmatprep.subr.bf16.mxu0 0
      %7579 = vmatpush1.bf16.msra.mxu0 %v2254
      %7580 = vmatprep.subr.bf16.mxu0 0
      %7581 = vmatpush1.bf16.msra.mxu0 %v2255
      %7582 = vmatprep.subr.bf16.mxu0 0
      %7583 = vmatpush1.bf16.msra.mxu0 %v3496
      %7584 = vmatprep.subr.bf16.mxu0 0
      %7585 = vmatpush1.bf16.msra.mxu0 0
      %7586 = vmatprep.subr.bf16.mxu0 0
      %7587 = vmatpush1.bf16.msra.mxu0 0
      %7588 = vmatprep.subr.bf16.mxu0 0
      %7589 = vmatpush1.bf16.msra.mxu0 0
      %7590 = vmatprep.subr.bf16.mxu0 0
      %7591 = vmatpush1.bf16.msra.mxu0 0
      %7592 = vmatprep.subr.bf16.mxu0 0
      %7593 = vmatpush1.bf16.msra.mxu0 0
      %7594 = vmatprep.subr.bf16.mxu0 0
      %7595 = vmatpush1.bf16.msra.mxu0 0
      %7596 = vmatprep.subr.bf16.mxu0 0
      %7597 = vmatpush1.bf16.msra.mxu0 0
      %7598 = vmatprep.subr.bf16.mxu0 0
      %7599 = vmatpush1.bf16.msra.mxu0 0
      %7600 = vmatprep.subr.bf16.mxu0 0
      %7601 = vmatpush1.bf16.msra.mxu0 0
      %7602 = vmatprep.subr.bf16.mxu0 0
      %7603 = vmatpush1.bf16.msra.mxu0 0
      %7604 = vmatprep.subr.bf16.mxu0 0
      %7605 = vmatpush1.bf16.msra.mxu0 0
      %7606 = vmatprep.mubr.bf16.mxu0 0
      %7607 = vmatmul.mubr.bf16.gmra.mrb[0].mxu0 %v7560
      %v7608 = vpop.f32.mrb[0].mxu0
      %v7609 = vadd.f32 0.0, %v7608
      %v7610 = vpop.f32.mrb[0].mxu0
      %v7611 = vpop.f32.mrb[0].mxu0
      %v7612 = vadd.f32 0.0, %v7611
      %v7613 = vpop.f32.mrb[0].mxu0
      %7614 = vmatprep.mubr.bf16.mxu0 0
      %7615 = vmatmul.mubr.bf16.gmra.mrb[0].mxu0 %v7563
      %v7616 = vpop.f32.mrb[0].mxu0
      %v7617 = vadd.f32 0.0, %v7616
      %v7618 = vpop.f32.mrb[0].mxu0
      %v7619 = vpop.f32.mrb[0].mxu0
      %v7620 = vadd.f32 0.0, %v7619
      %v7621 = vpop.f32.mrb[0].mxu0
      %7622 = vmatprep.mubr.bf16.mxu0 0
      %7623 = vmatmul.mubr.bf16.gmra.mrb[0].mxu0 %v7566
      %v7624 = vpop.f32.mrb[0].mxu0
      %v7625 = vadd.f32 0.0, %v7624
      %v7626 = vpop.f32.mrb[0].mxu0
      %v7627 = vpop.f32.mrb[0].mxu0
      %v7628 = vadd.f32 0.0, %v7627
      %v7629 = vpop.f32.mrb[0].mxu0
      %7630 = vmatprep.mubr.bf16.mxu0 0
      %7631 = vmatmul.mubr.bf16.gmra.mrb[0].mxu0 %v7569
      %v7632 = vpop.f32.mrb[0].mxu0
      %v7633 = vadd.f32 0.0, %v7632
      %v7634 = vpop.f32.mrb[0].mxu0
      %v7635 = vpop.f32.mrb[0].mxu0
      %v7636 = vadd.f32 0.0, %v7635
      %v7637 = vpop.f32.mrb[0].mxu0
      %7638 = vmatprep.mubr.bf16.mxu0 0
      %7639 = vmatmul.mubr.bf16.gmra.mrb[0].mxu0 %v7572
      %v7640 = vpop.f32.mrb[0].mxu0
      %v7641 = vadd.f32 0.0, %v7640
      %v7642 = vpop.f32.mrb[0].mxu0
      %v7643 = vpop.f32.mrb[0].mxu0
      %v7644 = vpop.f32.mrb[0].mxu0
      %7645 = vdwg.mxu0
      %v7646 = vadd.f32 %v7545, %v7609
      %v7647 = vadd.f32 %v7546, %v7612
      %v7648 = vadd.f32 %v7547, %v7617
      %v7649 = vadd.f32 %v7548, %v7620
      %v7650 = vadd.f32 %v7549, %v7625
      %v7651 = vadd.f32 %v7550, %v7628
      %v7652 = vadd.f32 %v7551, %v7633
      %v7653 = vadd.f32 %v7552, %v7636
      %v7654 = vadd.f32 %v7553, %v7641
      %v7655 = vrcp.pop %v7536
      %v7656 = vmul.f32 %v7646, %v7655
      %v7657 = vrcp.pop %v7537
      %v7658 = vmul.f32 %v7647, %v7657
      %v7659 = vrcp.pop %v7538
      %v7660 = vmul.f32 %v7648, %v7659
      %v7661 = vrcp.pop %v7539
      %v7662 = vmul.f32 %v7649, %v7661
      %v7663 = vrcp.pop %v7540
      %v7664 = vmul.f32 %v7650, %v7663
      %v7665 = vrcp.pop %v7541
      %v7666 = vmul.f32 %v7651, %v7665
      %v7667 = vrcp.pop %v7542
      %v7668 = vmul.f32 %v7652, %v7667
      %v7669 = vrcp.pop %v7543
      %v7670 = vmul.f32 %v7653, %v7669
      %v7671 = vrcp.pop %v7544
      %v7672 = vmul.f32 %v7654, %v7671
      %v7673 = vpack.c.bf16 %v7658, %v7656
      %v7674 = vpack.c.bf16 %v7662, %v7660
      %v7675 = vpack.c.bf16 %v7666, %v7664
      %v7676 = vpack.c.bf16 %v7670, %v7668
      %v7677 = vpack.c.bf16 %v7672, %v7672
      %v7678 = vld [vmem:[%s4] sm:$0xf]
      %v7679 = vld [vmem:[%s4 + $0x4] sm:$0xf]
      %v7680 = vld [vmem:[%s4 + $0x8] sm:$0xf]
      %v7681 = vld [vmem:[%s4 + $0xc] sm:$0xf]
      %v7682 = vld [vmem:[%s4 + $0x10] sm:$0xf]
      %v7683 = vld [vmem:[%s4 + $0x14] sm:$0xf]
      %v7684 = vld [vmem:[%s4 + $0x18] sm:$0xf]
      %v7685 = vld [vmem:[%s4 + $0x1c] sm:$0xf]
      %v7686 = vld [vmem:[%s4 + $0x20] sm:$0xf]
      %v7687 = vld [vmem:[%s4 + $0x24] sm:$0xf]
      %v7688 = vld [vmem:[%s4 + $0x28] sm:$0xf]
      %v7689 = vld [vmem:[%s4 + $0x2c] sm:$0xf]
      %v7690 = vld [vmem:[%s4 + $0x30] sm:$0xf]
      %v7691 = vld [vmem:[%s4 + $0x34] sm:$0xf]
      %v7692 = vld [vmem:[%s4 + $0x38] sm:$0xf]
      %v7693 = vld [vmem:[%s4 + $0x3c] sm:$0xf]
      %v7694 = vld [vmem:[%s5] sm:$0x1]
      %v7696 = vlaneseq
      %v7697 = vshrl.u32 %v7696, 7
      %v7698 = vsub.s32 0, %v7697
      %v7699 = vrot.slane %v7694, %v7698
      %v7717 = vunpack.c.l.b16 %v7678
      %v7718 = vunpack.c.l.b16 %v7679
      %v7719 = vunpack.c.l.b16 %v7680
      %v7720 = vunpack.c.l.b16 %v7681
      %v7721 = vunpack.c.l.b16 %v7682
      %v7722 = vunpack.c.l.b16 %v7683
      %v7723 = vunpack.c.l.b16 %v7684
      %v7724 = vunpack.c.l.b16 %v7685
      %v7725 = vunpack.c.l.b16 %v7686
      %v7726 = vunpack.c.l.b16 %v7687
      %v7727 = vunpack.c.l.b16 %v7688
      %v7728 = vunpack.c.l.b16 %v7689
      %v7729 = vunpack.c.l.b16 %v7690
      %v7730 = vunpack.c.l.b16 %v7691
      %v7731 = vunpack.c.l.b16 %v7692
      %v7732 = vunpack.c.l.b16 %v7693
      %v7733 = vpack.c.b16 %v7718, %v7717
      %v7734 = vpack.c.b16 %v7720, %v7719
      %v7735 = vpack.c.b16 %v7722, %v7721
      %v7736 = vpack.c.b16 %v7724, %v7723
      %v7737 = vpack.c.b16 %v7726, %v7725
      %v7738 = vpack.c.b16 %v7728, %v7727
      %v7739 = vpack.c.b16 %v7730, %v7729
      %v7740 = vpack.c.b16 %v7732, %v7731
      %7749 = vmatprep.subr.bf16.mxu0 0
      %7750 = vmatpush1.bf16.msra.mxu0 %v7733
      %7751 = vmatprep.subr.bf16.mxu0 0
      %7752 = vmatpush1.bf16.msra.mxu0 %v7734
      %7753 = vmatprep.subr.bf16.mxu0 0
      %7754 = vmatpush1.bf16.msra.mxu0 %v7735
      %7755 = vmatprep.subr.bf16.mxu0 0
      %7756 = vmatpush1.bf16.msra.mxu0 %v7736
      %7757 = vmatprep.subr.bf16.mxu0 0
      %7758 = vmatpush1.bf16.msra.mxu0 %v7737
      %7759 = vmatprep.subr.bf16.mxu0 0
      %7760 = vmatpush1.bf16.msra.mxu0 %v7738
      %7761 = vmatprep.subr.bf16.mxu0 0
      %7762 = vmatpush1.bf16.msra.mxu0 %v7739
      %7763 = vmatprep.subr.bf16.mxu0 0
      %7764 = vmatpush1.bf16.msra.mxu0 %v7740
      %7765 = vmatprep.subr.bf16.mxu0 0
      %7766 = vmatpush1.bf16.msra.mxu0 0
      %7767 = vmatprep.subr.bf16.mxu0 0
      %7768 = vmatpush1.bf16.msra.mxu0 0
      %7769 = vmatprep.subr.bf16.mxu0 0
      %7770 = vmatpush1.bf16.msra.mxu0 0
      %7771 = vmatprep.subr.bf16.mxu0 0
      %7772 = vmatpush1.bf16.msra.mxu0 0
      %7773 = vmatprep.subr.bf16.mxu0 0
      %7774 = vmatpush1.bf16.msra.mxu0 0
      %7775 = vmatprep.subr.bf16.mxu0 0
      %7776 = vmatpush1.bf16.msra.mxu0 0
      %7777 = vmatprep.subr.bf16.mxu0 0
      %7778 = vmatpush1.bf16.msra.mxu0 0
      %7779 = vmatprep.subr.bf16.mxu0 0
      %7780 = vmatpush1.bf16.msra.mxu0 0
      %7781 = vmatprep.mubr.bf16.mxu0 0
      %7782 = vmatmul.mubr.bf16.gmra.mrb[0].mxu0 %v7673
      %v7783 = vpop.f32.mrb[0].mxu0
      %v7784 = vadd.f32 %v7699, %v7783
      %v7785 = vpop.f32.mrb[0].mxu0
      %v7786 = vpop.f32.mrb[0].mxu0
      %v7787 = vadd.f32 %v7699, %v7786
      %v7788 = vpop.f32.mrb[0].mxu0
      %7789 = vmatprep.mubr.bf16.mxu0 0
      %7790 = vmatmul.mubr.bf16.gmra.mrb[0].mxu0 %v7674
      %v7791 = vpop.f32.mrb[0].mxu0
      %v7792 = vadd.f32 %v7699, %v7791
      %v7793 = vpop.f32.mrb[0].mxu0
      %v7794 = vpop.f32.mrb[0].mxu0
      %v7795 = vadd.f32 %v7699, %v7794
      %v7796 = vpop.f32.mrb[0].mxu0
      %7797 = vmatprep.mubr.bf16.mxu0 0
      %7798 = vmatmul.mubr.bf16.gmra.mrb[0].mxu0 %v7675
      %v7799 = vpop.f32.mrb[0].mxu0
      %v7800 = vadd.f32 %v7699, %v7799
      %v7801 = vpop.f32.mrb[0].mxu0
      %v7802 = vpop.f32.mrb[0].mxu0
      %v7803 = vadd.f32 %v7699, %v7802
      %v7804 = vpop.f32.mrb[0].mxu0
      %7805 = vmatprep.mubr.bf16.mxu0 0
      %7806 = vmatmul.mubr.bf16.gmra.mrb[0].mxu0 %v7676
      %v7807 = vpop.f32.mrb[0].mxu0
      %v7808 = vadd.f32 %v7699, %v7807
      %v7809 = vpop.f32.mrb[0].mxu0
      %v7810 = vpop.f32.mrb[0].mxu0
      %v7811 = vadd.f32 %v7699, %v7810
      %v7812 = vpop.f32.mrb[0].mxu0
      %7813 = vmatprep.mubr.bf16.mxu0 0
      %7814 = vmatmul.mubr.bf16.gmra.mrb[0].mxu0 %v7677
      %v7815 = vpop.f32.mrb[0].mxu0
      %v7816 = vadd.f32 %v7699, %v7815
      %v7817 = vpop.f32.mrb[0].mxu0
      %v7818 = vpop.f32.mrb[0].mxu0
      %v7819 = vpop.f32.mrb[0].mxu0
      %7820 = vdwg.mxu0
      %v7821 = vadd.f32 %v2157, %v7784
      %v7822 = vadd.f32 %v2160, %v7787
      %v7823 = vadd.f32 %v2165, %v7792
      %v7824 = vadd.f32 %v2168, %v7795
      %v7825 = vadd.f32 %v2173, %v7800
      %v7826 = vadd.f32 %v2176, %v7803
      %v7827 = vadd.f32 %v2181, %v7808
      %v7828 = vadd.f32 %v2184, %v7811
      %v7829 = vadd.f32 %v2189, %v7816
      %7830 = vadd.xlane.f32.xlu0 %v7821
      %v7831 = vpop.xlane.xlu0 %7830
      %7832 = vadd.xlane.f32.xlu0 %v7822
      %v7833 = vpop.xlane.xlu0 %7832
      %7834 = vadd.xlane.f32.xlu0 %v7823
      %v7835 = vpop.xlane.xlu0 %7834
      %7836 = vadd.xlane.f32.xlu0 %v7824
      %v7837 = vpop.xlane.xlu0 %7836
      %7838 = vadd.xlane.f32.xlu0 %v7825
      %v7839 = vpop.xlane.xlu0 %7838
      %7840 = vadd.xlane.f32.xlu0 %v7826
      %v7841 = vpop.xlane.xlu0 %7840
      %7842 = vadd.xlane.f32.xlu0 %v7827
      %v7843 = vpop.xlane.xlu0 %7842
      %7844 = vadd.xlane.f32.xlu0 %v7828
      %v7845 = vpop.xlane.xlu0 %7844
      %v7846 = vsel %vm6870, %v7829, 0.0
      %7847 = vadd.xlane.f32.xlu0 %v7846
      %v7848 = vpop.xlane.xlu0 %7847
      %v7849 = vmul.f32 %v7831, %v3867
      %v7850 = vmul.f32 %v7833, %v3867
      %v7851 = vmul.f32 %v7835, %v3867
      %v7852 = vmul.f32 %v7837, %v3867
      %v7853 = vmul.f32 %v7839, %v3867
      %v7854 = vmul.f32 %v7841, %v3867
      %v7855 = vmul.f32 %v7843, %v3867
      %v7856 = vmul.f32 %v7845, %v3867
      %v7857 = vmul.f32 %v7848, %v3867
      %v7858 = vsub.f32 %v7821, %v7849
      %v7859 = vsub.f32 %v7822, %v7850
      %v7860 = vsub.f32 %v7823, %v7851
      %v7861 = vsub.f32 %v7824, %v7852
      %v7862 = vsub.f32 %v7825, %v7853
      %v7863 = vsub.f32 %v7826, %v7854
      %v7864 = vsub.f32 %v7827, %v7855
      %v7865 = vsub.f32 %v7828, %v7856
      %v7866 = vsub.f32 %v7829, %v7857
      %v7867 = vmul.f32 %v7858, %v7858
      %v7868 = vmul.f32 %v7859, %v7859
      %v7869 = vmul.f32 %v7860, %v7860
      %v7870 = vmul.f32 %v7861, %v7861
      %v7871 = vmul.f32 %v7862, %v7862
      %v7872 = vmul.f32 %v7863, %v7863
      %v7873 = vmul.f32 %v7864, %v7864
      %v7874 = vmul.f32 %v7865, %v7865
      %v7875 = vmul.f32 %v7866, %v7866
      %7876 = vadd.xlane.f32.xlu0 %v7867
      %v7877 = vpop.xlane.xlu0 %7876
      %7878 = vadd.xlane.f32.xlu0 %v7868
      %v7879 = vpop.xlane.xlu0 %7878
      %7880 = vadd.xlane.f32.xlu0 %v7869
      %v7881 = vpop.xlane.xlu0 %7880
      %7882 = vadd.xlane.f32.xlu0 %v7870
      %v7883 = vpop.xlane.xlu0 %7882
      %7884 = vadd.xlane.f32.xlu0 %v7871
      %v7885 = vpop.xlane.xlu0 %7884
      %7886 = vadd.xlane.f32.xlu0 %v7872
      %v7887 = vpop.xlane.xlu0 %7886
      %7888 = vadd.xlane.f32.xlu0 %v7873
      %v7889 = vpop.xlane.xlu0 %7888
      %7890 = vadd.xlane.f32.xlu0 %v7874
      %v7891 = vpop.xlane.xlu0 %7890
      %v7892 = vsel %vm6870, %v7875, 0.0
      %7893 = vadd.xlane.f32.xlu0 %v7892
      %v7894 = vpop.xlane.xlu0 %7893
      %v7895 = vmul.f32 %v7877, %v3867
      %v7896 = vmul.f32 %v7879, %v3867
      %v7897 = vmul.f32 %v7881, %v3867
      %v7898 = vmul.f32 %v7883, %v3867
      %v7899 = vmul.f32 %v7885, %v3867
      %v7900 = vmul.f32 %v7887, %v3867
      %v7901 = vmul.f32 %v7889, %v3867
      %v7902 = vmul.f32 %v7891, %v3867
      %v7903 = vmul.f32 %v7894, %v3867
      %v7904 = vadd.f32 %v7895, 1e-05
      %v7905 = vadd.f32 %v7896, 1e-05
      %v7906 = vadd.f32 %v7897, 1e-05
      %v7907 = vadd.f32 %v7898, 1e-05
      %v7908 = vadd.f32 %v7899, 1e-05
      %v7909 = vadd.f32 %v7900, 1e-05
      %v7910 = vadd.f32 %v7901, 1e-05
      %v7911 = vadd.f32 %v7902, 1e-05
      %v7912 = vadd.f32 %v7903, 1e-05
      %v7913 = vrsqrt.pop %v7904
      %v7914 = vrsqrt.pop %v7905
      %v7915 = vrsqrt.pop %v7906
      %v7916 = vrsqrt.pop %v7907
      %v7917 = vrsqrt.pop %v7908
      %v7918 = vrsqrt.pop %v7909
      %v7919 = vrsqrt.pop %v7910
      %v7920 = vrsqrt.pop %v7911
      %v7921 = vrsqrt.pop %v7912
      %v7922 = vmul.f32 %v7858, %v7913
      %v7923 = vmul.f32 %v7859, %v7914
      %v7924 = vmul.f32 %v7860, %v7915
      %v7925 = vmul.f32 %v7861, %v7916
      %v7926 = vmul.f32 %v7862, %v7917
      %v7927 = vmul.f32 %v7863, %v7918
      %v7928 = vmul.f32 %v7864, %v7919
      %v7929 = vmul.f32 %v7865, %v7920
      %v7930 = vmul.f32 %v7866, %v7921
      %v7931 = vld [vmem:[%s6] sm:$0x1]
      %v7933 = vlaneseq
      %v7934 = vshrl.u32 %v7933, 7
      %v7935 = vsub.s32 0, %v7934
      %v7936 = vrot.slane %v7931, %v7935
      %v7938 = vmul.f32 %v7922, %v7936
      %v7939 = vmul.f32 %v7923, %v7936
      %v7940 = vmul.f32 %v7924, %v7936
      %v7941 = vmul.f32 %v7925, %v7936
      %v7942 = vmul.f32 %v7926, %v7936
      %v7943 = vmul.f32 %v7927, %v7936
      %v7944 = vmul.f32 %v7928, %v7936
      %v7945 = vmul.f32 %v7929, %v7936
      %v7946 = vmul.f32 %v7930, %v7936
      %v7947 = vld [vmem:[%s7] sm:$0x1]
      %v7949 = vlaneseq
      %v7950 = vshrl.u32 %v7949, 7
      %v7951 = vsub.s32 0, %v7950
      %v7952 = vrot.slane %v7947, %v7951
      %v7954 = vadd.f32 %v7938, %v7952
      %v7955 = vadd.f32 %v7939, %v7952
      %v7956 = vadd.f32 %v7940, %v7952
      %v7957 = vadd.f32 %v7941, %v7952
      %v7958 = vadd.f32 %v7942, %v7952
      %v7959 = vadd.f32 %v7943, %v7952
      %v7960 = vadd.f32 %v7944, %v7952
      %v7961 = vadd.f32 %v7945, %v7952
      %v7962 = vadd.f32 %v7946, %v7952
      %v7963 = vpack.c.bf16 %v7955, %v7954
      %v7964 = vpack.c.bf16 %v7957, %v7956
      %v7965 = vpack.c.bf16 %v7959, %v7958
      %v7966 = vpack.c.bf16 %v7961, %v7960
      %v7967 = vpack.c.bf16 %v7962, %v7962
      %v7968 = vld [vmem:[%s8] sm:$0xf]
      %v7969 = vld [vmem:[%s8 + $0x4] sm:$0xf]
      %v7970 = vld [vmem:[%s8 + $0x8] sm:$0xf]
      %v7971 = vld [vmem:[%s8 + $0xc] sm:$0xf]
      %v7972 = vld [vmem:[%s8 + $0x10] sm:$0xf]
      %v7973 = vld [vmem:[%s8 + $0x14] sm:$0xf]
      %v7974 = vld [vmem:[%s8 + $0x18] sm:$0xf]
      %v7975 = vld [vmem:[%s8 + $0x1c] sm:$0xf]
      %v7976 = vld [vmem:[%s8 + $0x20] sm:$0xf]
      %v7977 = vld [vmem:[%s8 + $0x24] sm:$0xf]
      %v7978 = vld [vmem:[%s8 + $0x28] sm:$0xf]
      %v7979 = vld [vmem:[%s8 + $0x2c] sm:$0xf]
      %v7980 = vld [vmem:[%s8 + $0x30] sm:$0xf]
      %v7981 = vld [vmem:[%s8 + $0x34] sm:$0xf]
      %v7982 = vld [vmem:[%s8 + $0x38] sm:$0xf]
      %v7983 = vld [vmem:[%s8 + $0x3c] sm:$0xf]
      %v7984 = vld [vmem:[%s9] sm:$0x1]
      %v7986 = vlaneseq
      %v7987 = vshrl.u32 %v7986, 7
      %v7988 = vsub.s32 0, %v7987
      %v7989 = vrot.slane %v7984, %v7988
      %v8007 = vunpack.c.l.b16 %v7968
      %v8008 = vunpack.c.l.b16 %v7969
      %v8009 = vunpack.c.l.b16 %v7970
      %v8010 = vunpack.c.l.b16 %v7971
      %v8011 = vunpack.c.l.b16 %v7972
      %v8012 = vunpack.c.l.b16 %v7973
      %v8013 = vunpack.c.l.b16 %v7974
      %v8014 = vunpack.c.l.b16 %v7975
      %v8015 = vunpack.c.l.b16 %v7976
      %v8016 = vunpack.c.l.b16 %v7977
      %v8017 = vunpack.c.l.b16 %v7978
      %v8018 = vunpack.c.l.b16 %v7979
      %v8019 = vunpack.c.l.b16 %v7980
      %v8020 = vunpack.c.l.b16 %v7981
      %v8021 = vunpack.c.l.b16 %v7982
      %v8022 = vunpack.c.l.b16 %v7983
      %v8023 = vpack.c.b16 %v8008, %v8007
      %v8024 = vpack.c.b16 %v8010, %v8009
      %v8025 = vpack.c.b16 %v8012, %v8011
      %v8026 = vpack.c.b16 %v8014, %v8013
      %v8027 = vpack.c.b16 %v8016, %v8015
      %v8028 = vpack.c.b16 %v8018, %v8017
      %v8029 = vpack.c.b16 %v8020, %v8019
      %v8030 = vpack.c.b16 %v8022, %v8021
      %8039 = vmatprep.subr.bf16.mxu0 0
      %8040 = vmatpush1.bf16.msra.mxu0 %v8023
      %8041 = vmatprep.subr.bf16.mxu0 0
      %8042 = vmatpush1.bf16.msra.mxu0 %v8024
      %8043 = vmatprep.subr.bf16.mxu0 0
      %8044 = vmatpush1.bf16.msra.mxu0 %v8025
      %8045 = vmatprep.subr.bf16.mxu0 0
      %8046 = vmatpush1.bf16.msra.mxu0 %v8026
      %8047 = vmatprep.subr.bf16.mxu0 0
      %8048 = vmatpush1.bf16.msra.mxu0 %v8027
      %8049 = vmatprep.subr.bf16.mxu0 0
      %8050 = vmatpush1.bf16.msra.mxu0 %v8028
      %8051 = vmatprep.subr.bf16.mxu0 0
      %8052 = vmatpush1.bf16.msra.mxu0 %v8029
      %8053 = vmatprep.subr.bf16.mxu0 0
      %8054 = vmatpush1.bf16.msra.mxu0 %v8030
      %8055 = vmatprep.subr.bf16.mxu0 0
      %8056 = vmatpush1.bf16.msra.mxu0 0
      %8057 = vmatprep.subr.bf16.mxu0 0
      %8058 = vmatpush1.bf16.msra.mxu0 0
      %8059 = vmatprep.subr.bf16.mxu0 0
      %8060 = vmatpush1.bf16.msra.mxu0 0
      %8061 = vmatprep.subr.bf16.mxu0 0
      %8062 = vmatpush1.bf16.msra.mxu0 0
      %8063 = vmatprep.subr.bf16.mxu0 0
      %8064 = vmatpush1.bf16.msra.mxu0 0
      %8065 = vmatprep.subr.bf16.mxu0 0
      %8066 = vmatpush1.bf16.msra.mxu0 0
      %8067 = vmatprep.subr.bf16.mxu0 0
      %8068 = vmatpush1.bf16.msra.mxu0 0
      %8069 = vmatprep.subr.bf16.mxu0 0
      %8070 = vmatpush1.bf16.msra.mxu0 0
      %8071 = vmatprep.mubr.bf16.mxu0 0
      %8072 = vmatmul.mubr.bf16.gmra.mrb[0].mxu0 %v7963
      %v8073 = vpop.f32.mrb[0].mxu0
      %v8074 = vadd.f32 %v7989, %v8073
      %v8075 = vpop.f32.mrb[0].mxu0
      %v8076 = vpop.f32.mrb[0].mxu0
      %v8077 = vadd.f32 %v7989, %v8076
      %v8078 = vpop.f32.mrb[0].mxu0
      %8079 = vmatprep.mubr.bf16.mxu0 0
      %8080 = vmatmul.mubr.bf16.gmra.mrb[0].mxu0 %v7964
      %v8081 = vpop.f32.mrb[0].mxu0
      %v8082 = vadd.f32 %v7989, %v8081
      %v8083 = vpop.f32.mrb[0].mxu0
      %v8084 = vpop.f32.mrb[0].mxu0
      %v8085 = vadd.f32 %v7989, %v8084
      %v8086 = vpop.f32.mrb[0].mxu0
      %8087 = vmatprep.mubr.bf16.mxu0 0
      %8088 = vmatmul.mubr.bf16.gmra.mrb[0].mxu0 %v7965
      %v8089 = vpop.f32.mrb[0].mxu0
      %v8090 = vadd.f32 %v7989, %v8089
      %v8091 = vpop.f32.mrb[0].mxu0
      %v8092 = vpop.f32.mrb[0].mxu0
      %v8093 = vadd.f32 %v7989, %v8092
      %v8094 = vpop.f32.mrb[0].mxu0
      %8095 = vmatprep.mubr.bf16.mxu0 0
      %8096 = vmatmul.mubr.bf16.gmra.mrb[0].mxu0 %v7966
      %v8097 = vpop.f32.mrb[0].mxu0
      %v8098 = vadd.f32 %v7989, %v8097
      %v8099 = vpop.f32.mrb[0].mxu0
      %v8100 = vpop.f32.mrb[0].mxu0
      %v8101 = vadd.f32 %v7989, %v8100
      %v8102 = vpop.f32.mrb[0].mxu0
      %8103 = vmatprep.mubr.bf16.mxu0 0
      %8104 = vmatmul.mubr.bf16.gmra.mrb[0].mxu0 %v7967
      %v8105 = vpop.f32.mrb[0].mxu0
      %v8106 = vadd.f32 %v7989, %v8105
      %v8107 = vpop.f32.mrb[0].mxu0
      %v8108 = vpop.f32.mrb[0].mxu0
      %v8109 = vpop.f32.mrb[0].mxu0
      %8110 = vdwg.mxu0
      %v8111 = vmul.f32 %v8074, 0.5
      %v8112 = vmul.f32 %v8077, 0.5
      %v8113 = vmul.f32 %v8082, 0.5
      %v8114 = vmul.f32 %v8085, 0.5
      %v8115 = vmul.f32 %v8090, 0.5
      %v8116 = vmul.f32 %v8093, 0.5
      %v8117 = vmul.f32 %v8098, 0.5
      %v8118 = vmul.f32 %v8101, 0.5
      %v8119 = vmul.f32 %v8106, 0.5
      %v8120 = vmul.f32 %v8074, 0.70710677
      %v8121 = vmul.f32 %v8077, 0.70710677
      %v8122 = vmul.f32 %v8082, 0.70710677
      %v8123 = vmul.f32 %v8085, 0.70710677
      %v8124 = vmul.f32 %v8090, 0.70710677
      %v8125 = vmul.f32 %v8093, 0.70710677
      %v8126 = vmul.f32 %v8098, 0.70710677
      %v8127 = vmul.f32 %v8101, 0.70710677
      %v8128 = vmul.f32 %v8106, 0.70710677
      %v8129 = verf.f32.pop %v8120
      %v8130 = verf.f32.pop %v8121
      %v8131 = verf.f32.pop %v8122
      %v8132 = verf.f32.pop %v8123
      %v8133 = verf.f32.pop %v8124
      %v8134 = verf.f32.pop %v8125
      %v8135 = verf.f32.pop %v8126
      %v8136 = verf.f32.pop %v8127
      %v8137 = verf.f32.pop %v8128
      %v8138 = vadd.f32 %v8129, 1.0
      %v8139 = vadd.f32 %v8130, 1.0
      %v8140 = vadd.f32 %v8131, 1.0
      %v8141 = vadd.f32 %v8132, 1.0
      %v8142 = vadd.f32 %v8133, 1.0
      %v8143 = vadd.f32 %v8134, 1.0
      %v8144 = vadd.f32 %v8135, 1.0
      %v8145 = vadd.f32 %v8136, 1.0
      %v8146 = vadd.f32 %v8137, 1.0
      %v8147 = vmul.f32 %v8111, %v8138
      %v8148 = vmul.f32 %v8112, %v8139
      %v8149 = vmul.f32 %v8113, %v8140
      %v8150 = vmul.f32 %v8114, %v8141
      %v8151 = vmul.f32 %v8115, %v8142
      %v8152 = vmul.f32 %v8116, %v8143
      %v8153 = vmul.f32 %v8117, %v8144
      %v8154 = vmul.f32 %v8118, %v8145
      %v8155 = vmul.f32 %v8119, %v8146
      %v8156 = vpack.c.bf16 %v8148, %v8147
      %v8157 = vpack.c.bf16 %v8150, %v8149
      %v8158 = vpack.c.bf16 %v8152, %v8151
      %v8159 = vpack.c.bf16 %v8154, %v8153
      %v8160 = vpack.c.bf16 %v8155, %v8155
      %v8161 = vld [vmem:[%s10] sm:$0xf]
      %v8162 = vld [vmem:[%s10 + $0x4] sm:$0xf]
      %v8163 = vld [vmem:[%s10 + $0x8] sm:$0xf]
      %v8164 = vld [vmem:[%s10 + $0xc] sm:$0xf]
      %v8165 = vld [vmem:[%s10 + $0x10] sm:$0xf]
      %v8166 = vld [vmem:[%s10 + $0x14] sm:$0xf]
      %v8167 = vld [vmem:[%s10 + $0x18] sm:$0xf]
      %v8168 = vld [vmem:[%s10 + $0x1c] sm:$0xf]
      %v8169 = vld [vmem:[%s10 + $0x20] sm:$0xf]
      %v8170 = vld [vmem:[%s10 + $0x24] sm:$0xf]
      %v8171 = vld [vmem:[%s10 + $0x28] sm:$0xf]
      %v8172 = vld [vmem:[%s10 + $0x2c] sm:$0xf]
      %v8173 = vld [vmem:[%s10 + $0x30] sm:$0xf]
      %v8174 = vld [vmem:[%s10 + $0x34] sm:$0xf]
      %v8175 = vld [vmem:[%s10 + $0x38] sm:$0xf]
      %v8176 = vld [vmem:[%s10 + $0x3c] sm:$0xf]
      %v8177 = vld [vmem:[%s11] sm:$0x1]
      %v8179 = vlaneseq
      %v8180 = vshrl.u32 %v8179, 7
      %v8181 = vsub.s32 0, %v8180
      %v8182 = vrot.slane %v8177, %v8181
      %v8200 = vunpack.c.l.b16 %v8161
      %v8201 = vunpack.c.l.b16 %v8162
      %v8202 = vunpack.c.l.b16 %v8163
      %v8203 = vunpack.c.l.b16 %v8164
      %v8204 = vunpack.c.l.b16 %v8165
      %v8205 = vunpack.c.l.b16 %v8166
      %v8206 = vunpack.c.l.b16 %v8167
      %v8207 = vunpack.c.l.b16 %v8168
      %v8208 = vunpack.c.l.b16 %v8169
      %v8209 = vunpack.c.l.b16 %v8170
      %v8210 = vunpack.c.l.b16 %v8171
      %v8211 = vunpack.c.l.b16 %v8172
      %v8212 = vunpack.c.l.b16 %v8173
      %v8213 = vunpack.c.l.b16 %v8174
      %v8214 = vunpack.c.l.b16 %v8175
      %v8215 = vunpack.c.l.b16 %v8176
      %v8216 = vpack.c.b16 %v8201, %v8200
      %v8217 = vpack.c.b16 %v8203, %v8202
      %v8218 = vpack.c.b16 %v8205, %v8204
      %v8219 = vpack.c.b16 %v8207, %v8206
      %v8220 = vpack.c.b16 %v8209, %v8208
      %v8221 = vpack.c.b16 %v8211, %v8210
      %v8222 = vpack.c.b16 %v8213, %v8212
      %v8223 = vpack.c.b16 %v8215, %v8214
      %8232 = vmatprep.subr.bf16.mxu0 0
      %8233 = vmatpush1.bf16.msra.mxu0 %v8216
      %8234 = vmatprep.subr.bf16.mxu0 0
      %8235 = vmatpush1.bf16.msra.mxu0 %v8217
      %8236 = vmatprep.subr.bf16.mxu0 0
      %8237 = vmatpush1.bf16.msra.mxu0 %v8218
      %8238 = vmatprep.subr.bf16.mxu0 0
      %8239 = vmatpush1.bf16.msra.mxu0 %v8219
      %8240 = vmatprep.subr.bf16.mxu0 0
      %8241 = vmatpush1.bf16.msra.mxu0 %v8220
      %8242 = vmatprep.subr.bf16.mxu0 0
      %8243 = vmatpush1.bf16.msra.mxu0 %v8221
      %8244 = vmatprep.subr.bf16.mxu0 0
      %8245 = vmatpush1.bf16.msra.mxu0 %v8222
      %8246 = vmatprep.subr.bf16.mxu0 0
      %8247 = vmatpush1.bf16.msra.mxu0 %v8223
      %8248 = vmatprep.subr.bf16.mxu0 0
      %8249 = vmatpush1.bf16.msra.mxu0 0
      %8250 = vmatprep.subr.bf16.mxu0 0
      %8251 = vmatpush1.bf16.msra.mxu0 0
      %8252 = vmatprep.subr.bf16.mxu0 0
      %8253 = vmatpush1.bf16.msra.mxu0 0
      %8254 = vmatprep.subr.bf16.mxu0 0
      %8255 = vmatpush1.bf16.msra.mxu0 0
      %8256 = vmatprep.subr.bf16.mxu0 0
      %8257 = vmatpush1.bf16.msra.mxu0 0
      %8258 = vmatprep.subr.bf16.mxu0 0
      %8259 = vmatpush1.bf16.msra.mxu0 0
      %8260 = vmatprep.subr.bf16.mxu0 0
      %8261 = vmatpush1.bf16.msra.mxu0 0
      %8262 = vmatprep.subr.bf16.mxu0 0
      %8263 = vmatpush1.bf16.msra.mxu0 0
      %8264 = vmatprep.mubr.bf16.mxu0 0
      %8265 = vmatmul.mubr.bf16.gmra.mrb[0].mxu0 %v8156
      %v8266 = vpop.f32.mrb[0].mxu0
      %v8267 = vadd.f32 %v8182, %v8266
      %v8268 = vpop.f32.mrb[0].mxu0
      %v8269 = vpop.f32.mrb[0].mxu0
      %v8270 = vadd.f32 %v8182, %v8269
      %v8271 = vpop.f32.mrb[0].mxu0
      %8272 = vmatprep.mubr.bf16.mxu0 0
      %8273 = vmatmul.mubr.bf16.gmra.mrb[0].mxu0 %v8157
      %v8274 = vpop.f32.mrb[0].mxu0
      %v8275 = vadd.f32 %v8182, %v8274
      %v8276 = vpop.f32.mrb[0].mxu0
      %v8277 = vpop.f32.mrb[0].mxu0
      %v8278 = vadd.f32 %v8182, %v8277
      %v8279 = vpop.f32.mrb[0].mxu0
      %8280 = vmatprep.mubr.bf16.mxu0 0
      %8281 = vmatmul.mubr.bf16.gmra.mrb[0].mxu0 %v8158
      %v8282 = vpop.f32.mrb[0].mxu0
      %v8283 = vadd.f32 %v8182, %v8282
      %v8284 = vpop.f32.mrb[0].mxu0
      %v8285 = vpop.f32.mrb[0].mxu0
      %v8286 = vadd.f32 %v8182, %v8285
      %v8287 = vpop.f32.mrb[0].mxu0
      %8288 = vmatprep.mubr.bf16.mxu0 0
      %8289 = vmatmul.mubr.bf16.gmra.mrb[0].mxu0 %v8159
      %v8290 = vpop.f32.mrb[0].mxu0
      %v8291 = vadd.f32 %v8182, %v8290
      %v8292 = vpop.f32.mrb[0].mxu0
      %v8293 = vpop.f32.mrb[0].mxu0
      %v8294 = vadd.f32 %v8182, %v8293
      %v8295 = vpop.f32.mrb[0].mxu0
      %8296 = vmatprep.mubr.bf16.mxu0 0
      %8297 = vmatmul.mubr.bf16.gmra.mrb[0].mxu0 %v8160
      %v8298 = vpop.f32.mrb[0].mxu0
      %v8299 = vadd.f32 %v8182, %v8298
      %v8300 = vpop.f32.mrb[0].mxu0
      %v8301 = vpop.f32.mrb[0].mxu0
      %v8302 = vpop.f32.mrb[0].mxu0
      %8303 = vdwg.mxu0
      %v8304 = vadd.f32 %v7821, %v8267
      %v8305 = vadd.f32 %v7822, %v8270
      %v8306 = vadd.f32 %v7823, %v8275
      %v8307 = vadd.f32 %v7824, %v8278
      %v8308 = vadd.f32 %v7825, %v8283
      %v8309 = vadd.f32 %v7826, %v8286
      %v8310 = vadd.f32 %v7827, %v8291
      %v8311 = vadd.f32 %v7828, %v8294
      %v8312 = vadd.f32 %v7829, %v8299
      %8313 = vst [vmem:[%s413 + $0x100] sm:$0xff] %v8304
      %8314 = vst [vmem:[%s413 + $0x108] sm:$0xff] %v8305
      %8315 = vst [vmem:[%s413 + $0x110] sm:$0xff] %v8306
      %8316 = vst [vmem:[%s413 + $0x118] sm:$0xff] %v8307
      %8317 = vst [vmem:[%s413 + $0x120] sm:$0xff] %v8308
      %8318 = vst [vmem:[%s413 + $0x128] sm:$0xff] %v8309
      %8319 = vst [vmem:[%s413 + $0x130] sm:$0xff] %v8310
      %8320 = vst [vmem:[%s413 + $0x138] sm:$0xff] %v8311
      %8321 = vst [vmem:[%s413 + $0x140] sm:$0xf] %v8312
      %p8322 = scmp.lt.s32.totalorder %s23, 1
      %s8323 = scalar_select %p8322, %s23, 1
      %s8324 = smul.addr %s8323, 41
      %s8325 = smul.addr %s8324, 8
      %s8326 = scalar_lea.vmem %s12, %s8325
      // Predicated region
      $region69: #{aspp_block_forward.1} parent=67 // pred_check
        %p8327 = pneg %p298
      $region70: #{aspp_block_forward.1} parent=67 // pred_check_branch
        %8329 = sbr.rel (%p8327) target = $region72
      $region71: #{aspp_block_forward.1} parent=67 // pred_region
        _
      $region72: #{aspp_block_forward.1} parent=67 // pred_fallthru
        _
    $region68: #{aspp_block_forward.1} parent=5 // pred_fallthru
      _
    %p8330 = scmp.le.s32.totalorder 2, %s18
    // Predicated region
    $region73: #{aspp_block_forward.1} parent=5 // pred_check
      %p8331 = pneg %p8330
    $region74: #{aspp_block_forward.1} parent=5 // pred_check_branch
      %8333 = sbr.rel (%p8331) target = $region76
    $region75: #{aspp_block_forward.1} parent=5 // pred_region
      %s8334 = ssub.s32 %s18, 2
      // Predicated region
      $region77: #{aspp_block_forward.1} parent=75 // pred_check
        %p8335 = pneg %p304
      $region78: #{aspp_block_forward.1} parent=75 // pred_check_branch
        %8337 = sbr.rel (%p8335) target = $region80
      $region79: #{aspp_block_forward.1} parent=75 // pred_region
        %p8338 = scmp.lt.s32.totalorder %s24, 1
        %s8339 = scalar_select %p8338, %s24, 1
        %s8340 = smul.addr %s8339, 41
        %s8341 = smul.addr %s8340, 8
        %s8342 = scalar_lea.vmem %s12, %s8341
      $region80: #{aspp_block_forward.1} parent=75 // pred_fallthru
        _
    $region76: #{aspp_block_forward.1} parent=5 // pred_fallthru
      _
  $region6: #{aspp_block_forward.1} parent=0 // loop_footer
    %s22 = sadd.s32 1, %s18
  $region7: #{aspp_block_forward.1} parent=0 // loop_footer_branch
    %17 = sbr.rel target = $region3
  $region8: #{aspp_block_forward.1} parent=0 // loop_exit
    _

</llo_original>
